<compile_context>
chip_gen: v5e
topology: v5e:2x2
jax: 0.10.0
libtpu: 0.0.40
codegen_flags: <defaults>
</compile_context>

<pallas_src>
import functools

import jax
import jax.numpy as jnp
from jax.experimental import pallas as pl
from jax.experimental.pallas import tpu as pltpu

NEG_SLOPE = 0.2     # nn.LeakyReLU(0.2)
BN_EPS = 1e-5
LPAD = 8            # sublane-aligned left pad of the halo scratch (needs >= 1)


# ---------------------------------------------------------------------------
# Fused kernel: one grid step = one image through all num_blocks x 3 stages.
# Stage = LeakyReLU -> depthwise 3x3 (pad=1) -> pointwise 1x1 -> BN (folded).
# ---------------------------------------------------------------------------
def _middle_block_kernel(x_ref, wd_ref, wp_ref, bias_ref, out_ref, xpad_ref,
                         *, num_blocks, H, W, C):
    # Zero the halo scratch once per grid step (fully aligned wide stores,
    # ~60 vregs -- negligible).  Only the interior [1:H+1, LPAD:LPAD+W, :] is
    # ever rewritten, so the 1-pixel border used by the 3x3 taps stays zero
    # (== Conv2d padding=1; leaky_relu(0) == 0, so applying the activation
    # before padding is equivalent).
    xpad_ref[...] = jnp.zeros_like(xpad_ref)

    x = x_ref[0]                                      # (H, W, C) f32
    s = 0                                             # global stage index
    for _ in range(num_blocks):                       # MiddleBasicBlock
        r = x
        for _ in range(3):
            # LeakyReLU(0.2) on the VPU in f32, stored straight into the
            # (sublane-aligned) interior of the halo scratch.
            xpad_ref[1:H + 1, LPAD:LPAD + W, :] = jnp.where(
                r >= 0, r, NEG_SLOPE * r)

            # Depthwise 3x3: nine shifted-window taps.  Load this stage's
            # nine per-channel weight rows once, multiply on the VPU, and
            # combine with a balanced tree sum (shorter VALU dep chain than a
            # serial accumulate).
            wds = wd_ref[s]                            # (9, C) f32
            taps = []
            for kh in range(3):
                for kw in range(3):
                    c0 = LPAD - 1 + kw
                    win = xpad_ref[kh:kh + H, c0:c0 + W, :]
                    taps.append(win * wds[3 * kh + kw])
            while len(taps) > 1:
                nxt = [taps[i] + taps[i + 1]
                       for i in range(0, len(taps) - 1, 2)]
                if len(taps) % 2:
                    nxt.append(taps[-1])
                taps = nxt
            acc = taps[0]                              # (H, W, C) f32

            # Pointwise 1x1 conv (BN scale pre-folded into wp) as one bf16
            # MXU matmul with f32 accumulation; epilogue adds folded BN bias.
            y = jnp.dot(acc.reshape(H * W, C).astype(jnp.bfloat16),
                        wp_ref[s],
                        preferred_element_type=jnp.float32)
            r = (y + bias_ref[s]).reshape(H, W, C)
            s += 1
        x = x + r                                     # block residual
    out_ref[0] = x


def middle_block_forward(x_nchw, params):
    """x_nchw: (N, C, H, W) float32 (PyTorch layout).

    params = (wd, wp, bias) stacked over the 3*num_blocks stages:
      wd   : (S, 9, C)  f32   depthwise 3x3 weights, flattened (kh, kw)
      wp   : (S, C, C)  bf16  pointwise weights with BN scale folded in
      bias : (S, 1, C)  f32   folded BN bias
    """
    wd, wp, bias = params
    S, _, C = wd.shape
    num_blocks = S // 3
    N, Cin, H, W = x_nchw.shape
    assert Cin == C and S == 3 * num_blocks

    x = jnp.transpose(x_nchw, (0, 2, 3, 1)).astype(jnp.float32)   # NCHW->NHWC

    kernel = functools.partial(_middle_block_kernel,
                               num_blocks=num_blocks, H=H, W=W, C=C)
    out = pl.pallas_call(
        kernel,
        out_shape=jax.ShapeDtypeStruct((N, H, W, C), jnp.float32),
        grid=(N,),
        in_specs=[
            pl.BlockSpec((1, H, W, C), lambda n: (n, 0, 0, 0)),
            # Constant block index -> weights DMA'd once and kept resident
            # across grid steps by the Pallas pipeline.
            pl.BlockSpec((S, 9, C), lambda n: (0, 0, 0)),
            pl.BlockSpec((S, C, C), lambda n: (0, 0, 0)),
            pl.BlockSpec((S, 1, C), lambda n: (0, 0, 0)),
        ],
        out_specs=pl.BlockSpec((1, H, W, C), lambda n: (n, 0, 0, 0)),
        scratch_shapes=[pltpu.VMEM((H + 2, W + 2 * LPAD, C), jnp.float32)],
        compiler_params=pltpu.CompilerParams(
            dimension_semantics=("parallel",)),
    )(x, wd, wp, bias)

    return jnp.transpose(out, (0, 3, 1, 2))                       # NHWC->NCHW


# ---------------------------------------------------------------------------
# Synthetic parameters (BatchNorm folded: scale into wp, shift into bias).
# ---------------------------------------------------------------------------
def init_params(key, num_blocks, channels):
    wd_l, wp_l, b_l = [], [], []
    for _ in range(3 * num_blocks):
        key, k1, k2, k3, k4, k5, k6 = jax.random.split(key, 7)
        wd = 0.1 * jax.random.normal(k1, (9, channels), jnp.float32)
        wp = jax.random.normal(k2, (channels, channels), jnp.float32) \
             / jnp.sqrt(float(channels))
        gamma = 1.0 + 0.1 * jax.random.normal(k3, (channels,), jnp.float32)
        beta = 0.1 * jax.random.normal(k4, (channels,), jnp.float32)
        rmean = 0.1 * jax.random.normal(k5, (channels,), jnp.float32)
        rvar = 0.5 + jnp.abs(jax.random.normal(k6, (channels,), jnp.float32))
        scale = gamma / jnp.sqrt(rvar + BN_EPS)
        bias = beta - rmean * scale
        wd_l.append(wd)
        wp_l.append((wp * scale[None, :]).astype(jnp.bfloat16))  # fold BN scale
        b_l.append(bias[None, :])
    return (jnp.stack(wd_l), jnp.stack(wp_l), jnp.stack(b_l))


# ---------------------------------------------------------------------------
# Pure-JAX reference (f32 math with the same bf16-stored pointwise weights).
# ---------------------------------------------------------------------------
def middle_block_reference(x_nchw, params):
    wd, wp, bias = params
    S, _, C = wd.shape
    num_blocks = S // 3
    x = jnp.transpose(x_nchw, (0, 2, 3, 1)).astype(jnp.float32)
    s = 0
    for _ in range(num_blocks):
        r = x
        for _ in range(3):
            a = jnp.where(r >= 0, r, NEG_SLOPE * r)
            y = jax.lax.conv_general_dilated(
                a, wd[s].reshape(3, 3, 1, C), window_strides=(1, 1),
                padding=((1, 1), (1, 1)),
                dimension_numbers=("NHWC", "HWIO", "NHWC"),
                feature_group_count=C,
                precision=jax.lax.Precision.HIGHEST)
            y = jnp.einsum("nhwc,cd->nhwd", y, wp[s].astype(jnp.float32),
                           precision=jax.lax.Precision.HIGHEST)
            r = y + bias[s]
            s += 1
        x = x + r
    return jnp.transpose(x, (0, 3, 1, 2))


if __name__ == "__main__":
    # Channels are fixed at 256 by the module; keep batch/spatial small.
    N, C, H, W = 2, 256, 8, 8
    NUM_BLOCKS = 2

    key = jax.random.PRNGKey(0)
    key, kx = jax.random.split(key)
    x = jax.random.normal(kx, (N, C, H, W), jnp.float32)     # NCHW like PyTorch
    params = init_params(key, NUM_BLOCKS, C)

    out = jax.block_until_ready(jax.jit(middle_block_forward)(x, params))
    assert out.shape == (N, C, H, W), out.shape

    ref = jax.block_until_ready(middle_block_reference(x, params))
    max_err = float(jnp.max(jnp.abs(out - ref)))
    # bf16 MXU operands bound the error at ~1e-2 scale over 6 fused stages.
    if max_err > 3e-2:
        raise AssertionError(f"mismatch vs reference, max abs err = {max_err}")

    print("KERNEL_OK")
</pallas_src>

<mosaic_0001>
module attributes {stable_mosaic.version = 11 : i64} {
  func.func @_middle_block_kernel(%arg0: i32, %arg1: memref<1x8x8x256xf32, #tpu.memory_space<vmem>>, %arg2: memref<6x9x256xf32, #tpu.memory_space<vmem>>, %arg3: memref<6x256x256xbf16, #tpu.memory_space<vmem>>, %arg4: memref<6x1x256xf32, #tpu.memory_space<vmem>>, %arg5: memref<1x8x8x256xf32, #tpu.memory_space<vmem>>, %arg6: memref<10x24x256xf32, #tpu.memory_space<vmem>>) attributes {dimension_semantics = [#tpu.dimension_semantics<parallel>], iteration_bounds = array<i64: 2>, scalar_prefetch = 0 : i64, scratch_operands = 1 : i64, tpu.core_type = #tpu.core_type<tc>, window_params = [{transform_indices = @transform_0, window_bounds = array<i64: 1, 8, 8, 256>}, {pipeline_mode = #tpu.pipeline_mode<synchronous>, transform_indices = @transform_1, window_bounds = array<i64: 6, 9, 256>}, {pipeline_mode = #tpu.pipeline_mode<synchronous>, transform_indices = @transform_2, window_bounds = array<i64: 6, 256, 256>}, {pipeline_mode = #tpu.pipeline_mode<synchronous>, transform_indices = @transform_3, window_bounds = array<i64: 6, 1, 256>}, {transform_indices = @transform_4, window_bounds = array<i64: 1, 8, 8, 256>}]} {
    %cst = arith.constant 0.000000e+00 : f32
    %0 = vector.broadcast %cst : f32 to vector<10x24x256xf32>
    %c0 = arith.constant 0 : index
    %c0_0 = arith.constant 0 : index
    %c0_1 = arith.constant 0 : index
    %1 = vector.load %arg6[%c0, %c0_0, %c0_1] : memref<10x24x256xf32, #tpu.memory_space<vmem>>, vector<10x24x256xf32>
    tpu.vector_store %arg6[%c0, %c0_0, %c0_1], %0 {strides = array<i32>} : memref<10x24x256xf32, #tpu.memory_space<vmem>>, vector<10x24x256xf32>,
    %c0_2 = arith.constant 0 : index
    %c0_3 = arith.constant 0 : index
    %c0_4 = arith.constant 0 : index
    %c0_5 = arith.constant 0 : index
    %2 = vector.load %arg1[%c0_2, %c0_3, %c0_4, %c0_5] : memref<1x8x8x256xf32, #tpu.memory_space<vmem>>, vector<1x8x8x256xf32>
    %3 = vector.shape_cast %2 : vector<1x8x8x256xf32> to vector<8x8x256xf32>
    %cst_6 = arith.constant 0.000000e+00 : f32
    %4 = vector.broadcast %cst_6 : f32 to vector<8x8x256xf32>
    %5 = arith.cmpf oge, %3, %4 : vector<8x8x256xf32>
    %cst_7 = arith.constant 2.000000e-01 : f32
    %6 = vector.broadcast %cst_7 : f32 to vector<8x8x256xf32>
    %7 = arith.mulf %6, %3 : vector<8x8x256xf32>
    %8 = arith.select %5, %3, %7 : vector<8x8x256xi1>, vector<8x8x256xf32>
    %c1 = arith.constant 1 : index
    %c8 = arith.constant 8 : index
    %c0_8 = arith.constant 0 : index
    %9 = vector.load %arg6[%c1, %c8, %c0_8] : memref<10x24x256xf32, #tpu.memory_space<vmem>>, vector<8x8x256xf32>
    tpu.vector_store %arg6[%c1, %c8, %c0_8], %8 {strides = array<i32>} : memref<10x24x256xf32, #tpu.memory_space<vmem>>, vector<8x8x256xf32>,
    %c0_9 = arith.constant 0 : index
    %c0_10 = arith.constant 0 : index
    %c0_11 = arith.constant 0 : index
    %10 = vector.load %arg2[%c0_9, %c0_10, %c0_11] : memref<6x9x256xf32, #tpu.memory_space<vmem>>, vector<1x9x256xf32>
    %11 = vector.shape_cast %10 : vector<1x9x256xf32> to vector<9x256xf32>
    %c0_12 = arith.constant 0 : index
    %c7 = arith.constant 7 : index
    %c0_13 = arith.constant 0 : index
    %12 = vector.load %arg6[%c0_12, %c7, %c0_13] : memref<10x24x256xf32, #tpu.memory_space<vmem>>, vector<8x8x256xf32>
    %13 = vector.extract_strided_slice %11 {offsets = [0, 0], sizes = [1, 256], strides = [1, 1]} : vector<9x256xf32> to vector<1x256xf32>
    %14 = vector.shape_cast %13 : vector<1x256xf32> to vector<256xf32>
    %15 = vector.shape_cast %14 : vector<256xf32> to vector<1x1x256xf32>
    %16 = vector.broadcast %15 : vector<1x1x256xf32> to vector<8x8x256xf32>
    %17 = arith.mulf %12, %16 : vector<8x8x256xf32>
    %c0_14 = arith.constant 0 : index
    %c8_15 = arith.constant 8 : index
    %c0_16 = arith.constant 0 : index
    %18 = vector.load %arg6[%c0_14, %c8_15, %c0_16] : memref<10x24x256xf32, #tpu.memory_space<vmem>>, vector<8x8x256xf32>
    %19 = vector.extract_strided_slice %11 {offsets = [1, 0], sizes = [1, 256], strides = [1, 1]} : vector<9x256xf32> to vector<1x256xf32>
    %20 = vector.shape_cast %19 : vector<1x256xf32> to vector<256xf32>
    %21 = vector.shape_cast %20 : vector<256xf32> to vector<1x1x256xf32>
    %22 = vector.broadcast %21 : vector<1x1x256xf32> to vector<8x8x256xf32>
    %23 = arith.mulf %18, %22 : vector<8x8x256xf32>
    %c0_17 = arith.constant 0 : index
    %c9 = arith.constant 9 : index
    %c0_18 = arith.constant 0 : index
    %24 = vector.load %arg6[%c0_17, %c9, %c0_18] : memref<10x24x256xf32, #tpu.memory_space<vmem>>, vector<8x8x256xf32>
    %25 = vector.extract_strided_slice %11 {offsets = [2, 0], sizes = [1, 256], strides = [1, 1]} : vector<9x256xf32> to vector<1x256xf32>
    %26 = vector.shape_cast %25 : vector<1x256xf32> to vector<256xf32>
    %27 = vector.shape_cast %26 : vector<256xf32> to vector<1x1x256xf32>
    %28 = vector.broadcast %27 : vector<1x1x256xf32> to vector<8x8x256xf32>
    %29 = arith.mulf %24, %28 : vector<8x8x256xf32>
    %c1_19 = arith.constant 1 : index
    %c7_20 = arith.constant 7 : index
    %c0_21 = arith.constant 0 : index
    %30 = vector.load %arg6[%c1_19, %c7_20, %c0_21] : memref<10x24x256xf32, #tpu.memory_space<vmem>>, vector<8x8x256xf32>
    %31 = vector.extract_strided_slice %11 {offsets = [3, 0], sizes = [1, 256], strides = [1, 1]} : vector<9x256xf32> to vector<1x256xf32>
    %32 = vector.shape_cast %31 : vector<1x256xf32> to vector<256xf32>
    %33 = vector.shape_cast %32 : vector<256xf32> to vector<1x1x256xf32>
    %34 = vector.broadcast %33 : vector<1x1x256xf32> to vector<8x8x256xf32>
    %35 = arith.mulf %30, %34 : vector<8x8x256xf32>
    %c1_22 = arith.constant 1 : index
    %c8_23 = arith.constant 8 : index
    %c0_24 = arith.constant 0 : index
    %36 = vector.load %arg6[%c1_22, %c8_23, %c0_24] : memref<10x24x256xf32, #tpu.memory_space<vmem>>, vector<8x8x256xf32>
    %37 = vector.extract_strided_slice %11 {offsets = [4, 0], sizes = [1, 256], strides = [1, 1]} : vector<9x256xf32> to vector<1x256xf32>
    %38 = vector.shape_cast %37 : vector<1x256xf32> to vector<256xf32>
    %39 = vector.shape_cast %38 : vector<256xf32> to vector<1x1x256xf32>
    %40 = vector.broadcast %39 : vector<1x1x256xf32> to vector<8x8x256xf32>
    %41 = arith.mulf %36, %40 : vector<8x8x256xf32>
    %c1_25 = arith.constant 1 : index
    %c9_26 = arith.constant 9 : index
    %c0_27 = arith.constant 0 : index
    %42 = vector.load %arg6[%c1_25, %c9_26, %c0_27] : memref<10x24x256xf32, #tpu.memory_space<vmem>>, vector<8x8x256xf32>
    %43 = vector.extract_strided_slice %11 {offsets = [5, 0], sizes = [1, 256], strides = [1, 1]} : vector<9x256xf32> to vector<1x256xf32>
    %44 = vector.shape_cast %43 : vector<1x256xf32> to vector<256xf32>
    %45 = vector.shape_cast %44 : vector<256xf32> to vector<1x1x256xf32>
    %46 = vector.broadcast %45 : vector<1x1x256xf32> to vector<8x8x256xf32>
    %47 = arith.mulf %42, %46 : vector<8x8x256xf32>
    %c2 = arith.constant 2 : index
    %c7_28 = arith.constant 7 : index
    %c0_29 = arith.constant 0 : index
    %48 = vector.load %arg6[%c2, %c7_28, %c0_29] : memref<10x24x256xf32, #tpu.memory_space<vmem>>, vector<8x8x256xf32>
    %49 = vector.extract_strided_slice %11 {offsets = [6, 0], sizes = [1, 256], strides = [1, 1]} : vector<9x256xf32> to vector<1x256xf32>
    %50 = vector.shape_cast %49 : vector<1x256xf32> to vector<256xf32>
    %51 = vector.shape_cast %50 : vector<256xf32> to vector<1x1x256xf32>
    %52 = vector.broadcast %51 : vector<1x1x256xf32> to vector<8x8x256xf32>
    %53 = arith.mulf %48, %52 : vector<8x8x256xf32>
    %c2_30 = arith.constant 2 : index
    %c8_31 = arith.constant 8 : index
    %c0_32 = arith.constant 0 : index
    %54 = vector.load %arg6[%c2_30, %c8_31, %c0_32] : memref<10x24x256xf32, #tpu.memory_space<vmem>>, vector<8x8x256xf32>
    %55 = vector.extract_strided_slice %11 {offsets = [7, 0], sizes = [1, 256], strides = [1, 1]} : vector<9x256xf32> to vector<1x256xf32>
    %56 = vector.shape_cast %55 : vector<1x256xf32> to vector<256xf32>
    %57 = vector.shape_cast %56 : vector<256xf32> to vector<1x1x256xf32>
    %58 = vector.broadcast %57 : vector<1x1x256xf32> to vector<8x8x256xf32>
    %59 = arith.mulf %54, %58 : vector<8x8x256xf32>
    %c2_33 = arith.constant 2 : index
    %c9_34 = arith.constant 9 : index
    %c0_35 = arith.constant 0 : index
    %60 = vector.load %arg6[%c2_33, %c9_34, %c0_35] : memref<10x24x256xf32, #tpu.memory_space<vmem>>, vector<8x8x256xf32>
    %61 = vector.extract_strided_slice %11 {offsets = [8, 0], sizes = [1, 256], strides = [1, 1]} : vector<9x256xf32> to vector<1x256xf32>
    %62 = vector.shape_cast %61 : vector<1x256xf32> to vector<256xf32>
    %63 = vector.shape_cast %62 : vector<256xf32> to vector<1x1x256xf32>
    %64 = vector.broadcast %63 : vector<1x1x256xf32> to vector<8x8x256xf32>
    %65 = arith.mulf %60, %64 : vector<8x8x256xf32>
    %66 = arith.addf %17, %23 : vector<8x8x256xf32>
    %67 = arith.addf %29, %35 : vector<8x8x256xf32>
    %68 = arith.addf %41, %47 : vector<8x8x256xf32>
    %69 = arith.addf %53, %59 : vector<8x8x256xf32>
    %70 = arith.addf %66, %67 : vector<8x8x256xf32>
    %71 = arith.addf %68, %69 : vector<8x8x256xf32>
    %72 = arith.addf %70, %71 : vector<8x8x256xf32>
    %73 = arith.addf %72, %65 : vector<8x8x256xf32>
    %74 = vector.shape_cast %73 : vector<8x8x256xf32> to vector<64x256xf32>
    %75 = arith.truncf %74 : vector<64x256xf32> to vector<64x256xbf16>
    %c0_36 = arith.constant 0 : index
    %c0_37 = arith.constant 0 : index
    %c0_38 = arith.constant 0 : index
    %76 = vector.load %arg3[%c0_36, %c0_37, %c0_38] : memref<6x256x256xbf16, #tpu.memory_space<vmem>>, vector<1x256x256xbf16>
    %77 = vector.shape_cast %76 : vector<1x256x256xbf16> to vector<256x256xbf16>
    %cst_39 = arith.constant dense<0.000000e+00> : vector<64x256xf32>
    %78 = tpu.matmul %75, %77, %cst_39 {dimension_numbers = #tpu.dot_dimension_numbers<[1], [0], [0], [1], [0, 0, 1, 1], [], []>} : vector<64x256xbf16>, vector<256x256xbf16>, vector<64x256xf32> -> vector<64x256xf32>
    %c0_40 = arith.constant 0 : index
    %c0_41 = arith.constant 0 : index
    %c0_42 = arith.constant 0 : index
    %79 = vector.load %arg4[%c0_40, %c0_41, %c0_42] : memref<6x1x256xf32, #tpu.memory_space<vmem>>, vector<1x1x256xf32>
    %80 = vector.shape_cast %79 : vector<1x1x256xf32> to vector<1x256xf32>
    %81 = vector.broadcast %80 : vector<1x256xf32> to vector<64x256xf32>
    %82 = arith.addf %78, %81 : vector<64x256xf32>
    %83 = vector.shape_cast %82 : vector<64x256xf32> to vector<8x8x256xf32>
    %cst_43 = arith.constant 0.000000e+00 : f32
    %84 = vector.broadcast %cst_43 : f32 to vector<8x8x256xf32>
    %85 = arith.cmpf oge, %83, %84 : vector<8x8x256xf32>
    %cst_44 = arith.constant 2.000000e-01 : f32
    %86 = vector.broadcast %cst_44 : f32 to vector<8x8x256xf32>
    %87 = arith.mulf %86, %83 : vector<8x8x256xf32>
    %88 = arith.select %85, %83, %87 : vector<8x8x256xi1>, vector<8x8x256xf32>
    %c1_45 = arith.constant 1 : index
    %c8_46 = arith.constant 8 : index
    %c0_47 = arith.constant 0 : index
    %89 = vector.load %arg6[%c1_45, %c8_46, %c0_47] : memref<10x24x256xf32, #tpu.memory_space<vmem>>, vector<8x8x256xf32>
    tpu.vector_store %arg6[%c1_45, %c8_46, %c0_47], %88 {strides = array<i32>} : memref<10x24x256xf32, #tpu.memory_space<vmem>>, vector<8x8x256xf32>,
    %c1_48 = arith.constant 1 : index
    %c0_49 = arith.constant 0 : index
    %c0_50 = arith.constant 0 : index
    %90 = vector.load %arg2[%c1_48, %c0_49, %c0_50] : memref<6x9x256xf32, #tpu.memory_space<vmem>>, vector<1x9x256xf32>
    %91 = vector.shape_cast %90 : vector<1x9x256xf32> to vector<9x256xf32>
    %c0_51 = arith.constant 0 : index
    %c7_52 = arith.constant 7 : index
    %c0_53 = arith.constant 0 : index
    %92 = vector.load %arg6[%c0_51, %c7_52, %c0_53] : memref<10x24x256xf32, #tpu.memory_space<vmem>>, vector<8x8x256xf32>
    %93 = vector.extract_strided_slice %91 {offsets = [0, 0], sizes = [1, 256], strides = [1, 1]} : vector<9x256xf32> to vector<1x256xf32>
    %94 = vector.shape_cast %93 : vector<1x256xf32> to vector<256xf32>
    %95 = vector.shape_cast %94 : vector<256xf32> to vector<1x1x256xf32>
    %96 = vector.broadcast %95 : vector<1x1x256xf32> to vector<8x8x256xf32>
    %97 = arith.mulf %92, %96 : vector<8x8x256xf32>
    %c0_54 = arith.constant 0 : index
    %c8_55 = arith.constant 8 : index
    %c0_56 = arith.constant 0 : index
    %98 = vector.load %arg6[%c0_54, %c8_55, %c0_56] : memref<10x24x256xf32, #tpu.memory_space<vmem>>, vector<8x8x256xf32>
    %99 = vector.extract_strided_slice %91 {offsets = [1, 0], sizes = [1, 256], strides = [1, 1]} : vector<9x256xf32> to vector<1x256xf32>
    %100 = vector.shape_cast %99 : vector<1x256xf32> to vector<256xf32>
    %101 = vector.shape_cast %100 : vector<256xf32> to vector<1x1x256xf32>
    %102 = vector.broadcast %101 : vector<1x1x256xf32> to vector<8x8x256xf32>
    %103 = arith.mulf %98, %102 : vector<8x8x256xf32>
    %c0_57 = arith.constant 0 : index
    %c9_58 = arith.constant 9 : index
    %c0_59 = arith.constant 0 : index
    %104 = vector.load %arg6[%c0_57, %c9_58, %c0_59] : memref<10x24x256xf32, #tpu.memory_space<vmem>>, vector<8x8x256xf32>
    %105 = vector.extract_strided_slice %91 {offsets = [2, 0], sizes = [1, 256], strides = [1, 1]} : vector<9x256xf32> to vector<1x256xf32>
    %106 = vector.shape_cast %105 : vector<1x256xf32> to vector<256xf32>
    %107 = vector.shape_cast %106 : vector<256xf32> to vector<1x1x256xf32>
    %108 = vector.broadcast %107 : vector<1x1x256xf32> to vector<8x8x256xf32>
    %109 = arith.mulf %104, %108 : vector<8x8x256xf32>
    %c1_60 = arith.constant 1 : index
    %c7_61 = arith.constant 7 : index
    %c0_62 = arith.constant 0 : index
    %110 = vector.load %arg6[%c1_60, %c7_61, %c0_62] : memref<10x24x256xf32, #tpu.memory_space<vmem>>, vector<8x8x256xf32>
    %111 = vector.extract_strided_slice %91 {offsets = [3, 0], sizes = [1, 256], strides = [1, 1]} : vector<9x256xf32> to vector<1x256xf32>
    %112 = vector.shape_cast %111 : vector<1x256xf32> to vector<256xf32>
    %113 = vector.shape_cast %112 : vector<256xf32> to vector<1x1x256xf32>
    %114 = vector.broadcast %113 : vector<1x1x256xf32> to vector<8x8x256xf32>
    %115 = arith.mulf %110, %114 : vector<8x8x256xf32>
    %c1_63 = arith.constant 1 : index
    %c8_64 = arith.constant 8 : index
    %c0_65 = arith.constant 0 : index
    %116 = vector.load %arg6[%c1_63, %c8_64, %c0_65] : memref<10x24x256xf32, #tpu.memory_space<vmem>>, vector<8x8x256xf32>
    %117 = vector.extract_strided_slice %91 {offsets = [4, 0], sizes = [1, 256], strides = [1, 1]} : vector<9x256xf32> to vector<1x256xf32>
    %118 = vector.shape_cast %117 : vector<1x256xf32> to vector<256xf32>
    %119 = vector.shape_cast %118 : vector<256xf32> to vector<1x1x256xf32>
    %120 = vector.broadcast %119 : vector<1x1x256xf32> to vector<8x8x256xf32>
    %121 = arith.mulf %116, %120 : vector<8x8x256xf32>
    %c1_66 = arith.constant 1 : index
    %c9_67 = arith.constant 9 : index
    %c0_68 = arith.constant 0 : index
    %122 = vector.load %arg6[%c1_66, %c9_67, %c0_68] : memref<10x24x256xf32, #tpu.memory_space<vmem>>, vector<8x8x256xf32>
    %123 = vector.extract_strided_slice %91 {offsets = [5, 0], sizes = [1, 256], strides = [1, 1]} : vector<9x256xf32> to vector<1x256xf32>
    %124 = vector.shape_cast %123 : vector<1x256xf32> to vector<256xf32>
    %125 = vector.shape_cast %124 : vector<256xf32> to vector<1x1x256xf32>
    %126 = vector.broadcast %125 : vector<1x1x256xf32> to vector<8x8x256xf32>
    %127 = arith.mulf %122, %126 : vector<8x8x256xf32>
    %c2_69 = arith.constant 2 : index
    %c7_70 = arith.constant 7 : index
    %c0_71 = arith.constant 0 : index
    %128 = vector.load %arg6[%c2_69, %c7_70, %c0_71] : memref<10x24x256xf32, #tpu.memory_space<vmem>>, vector<8x8x256xf32>
    %129 = vector.extract_strided_slice %91 {offsets = [6, 0], sizes = [1, 256], strides = [1, 1]} : vector<9x256xf32> to vector<1x256xf32>
    %130 = vector.shape_cast %129 : vector<1x256xf32> to vector<256xf32>
    %131 = vector.shape_cast %130 : vector<256xf32> to vector<1x1x256xf32>
    %132 = vector.broadcast %131 : vector<1x1x256xf32> to vector<8x8x256xf32>
    %133 = arith.mulf %128, %132 : vector<8x8x256xf32>
    %c2_72 = arith.constant 2 : index
    %c8_73 = arith.constant 8 : index
    %c0_74 = arith.constant 0 : index
    %134 = vector.load %arg6[%c2_72, %c8_73, %c0_74] : memref<10x24x256xf32, #tpu.memory_space<vmem>>, vector<8x8x256xf32>
    %135 = vector.extract_strided_slice %91 {offsets = [7, 0], sizes = [1, 256], strides = [1, 1]} : vector<9x256xf32> to vector<1x256xf32>
    %136 = vector.shape_cast %135 : vector<1x256xf32> to vector<256xf32>
    %137 = vector.shape_cast %136 : vector<256xf32> to vector<1x1x256xf32>
    %138 = vector.broadcast %137 : vector<1x1x256xf32> to vector<8x8x256xf32>
    %139 = arith.mulf %134, %138 : vector<8x8x256xf32>
    %c2_75 = arith.constant 2 : index
    %c9_76 = arith.constant 9 : index
    %c0_77 = arith.constant 0 : index
    %140 = vector.load %arg6[%c2_75, %c9_76, %c0_77] : memref<10x24x256xf32, #tpu.memory_space<vmem>>, vector<8x8x256xf32>
    %141 = vector.extract_strided_slice %91 {offsets = [8, 0], sizes = [1, 256], strides = [1, 1]} : vector<9x256xf32> to vector<1x256xf32>
    %142 = vector.shape_cast %141 : vector<1x256xf32> to vector<256xf32>
    %143 = vector.shape_cast %142 : vector<256xf32> to vector<1x1x256xf32>
    %144 = vector.broadcast %143 : vector<1x1x256xf32> to vector<8x8x256xf32>
    %145 = arith.mulf %140, %144 : vector<8x8x256xf32>
    %146 = arith.addf %97, %103 : vector<8x8x256xf32>
    %147 = arith.addf %109, %115 : vector<8x8x256xf32>
    %148 = arith.addf %121, %127 : vector<8x8x256xf32>
    %149 = arith.addf %133, %139 : vector<8x8x256xf32>
    %150 = arith.addf %146, %147 : vector<8x8x256xf32>
    %151 = arith.addf %148, %149 : vector<8x8x256xf32>
    %152 = arith.addf %150, %151 : vector<8x8x256xf32>
    %153 = arith.addf %152, %145 : vector<8x8x256xf32>
    %154 = vector.shape_cast %153 : vector<8x8x256xf32> to vector<64x256xf32>
    %155 = arith.truncf %154 : vector<64x256xf32> to vector<64x256xbf16>
    %c1_78 = arith.constant 1 : index
    %c0_79 = arith.constant 0 : index
    %c0_80 = arith.constant 0 : index
    %156 = vector.load %arg3[%c1_78, %c0_79, %c0_80] : memref<6x256x256xbf16, #tpu.memory_space<vmem>>, vector<1x256x256xbf16>
    %157 = vector.shape_cast %156 : vector<1x256x256xbf16> to vector<256x256xbf16>
    %cst_81 = arith.constant dense<0.000000e+00> : vector<64x256xf32>
    %158 = tpu.matmul %155, %157, %cst_81 {dimension_numbers = #tpu.dot_dimension_numbers<[1], [0], [0], [1], [0, 0, 1, 1], [], []>} : vector<64x256xbf16>, vector<256x256xbf16>, vector<64x256xf32> -> vector<64x256xf32>
    %c1_82 = arith.constant 1 : index
    %c0_83 = arith.constant 0 : index
    %c0_84 = arith.constant 0 : index
    %159 = vector.load %arg4[%c1_82, %c0_83, %c0_84] : memref<6x1x256xf32, #tpu.memory_space<vmem>>, vector<1x1x256xf32>
    %160 = vector.shape_cast %159 : vector<1x1x256xf32> to vector<1x256xf32>
    %161 = vector.broadcast %160 : vector<1x256xf32> to vector<64x256xf32>
    %162 = arith.addf %158, %161 : vector<64x256xf32>
    %163 = vector.shape_cast %162 : vector<64x256xf32> to vector<8x8x256xf32>
    %cst_85 = arith.constant 0.000000e+00 : f32
    %164 = vector.broadcast %cst_85 : f32 to vector<8x8x256xf32>
    %165 = arith.cmpf oge, %163, %164 : vector<8x8x256xf32>
    %cst_86 = arith.constant 2.000000e-01 : f32
    %166 = vector.broadcast %cst_86 : f32 to vector<8x8x256xf32>
    %167 = arith.mulf %166, %163 : vector<8x8x256xf32>
    %168 = arith.select %165, %163, %167 : vector<8x8x256xi1>, vector<8x8x256xf32>
    %c1_87 = arith.constant 1 : index
    %c8_88 = arith.constant 8 : index
    %c0_89 = arith.constant 0 : index
    %169 = vector.load %arg6[%c1_87, %c8_88, %c0_89] : memref<10x24x256xf32, #tpu.memory_space<vmem>>, vector<8x8x256xf32>
    tpu.vector_store %arg6[%c1_87, %c8_88, %c0_89], %168 {strides = array<i32>} : memref<10x24x256xf32, #tpu.memory_space<vmem>>, vector<8x8x256xf32>,
    %c2_90 = arith.constant 2 : index
    %c0_91 = arith.constant 0 : index
    %c0_92 = arith.constant 0 : index
    %170 = vector.load %arg2[%c2_90, %c0_91, %c0_92] : memref<6x9x256xf32, #tpu.memory_space<vmem>>, vector<1x9x256xf32>
    %171 = vector.shape_cast %170 : vector<1x9x256xf32> to vector<9x256xf32>
    %c0_93 = arith.constant 0 : index
    %c7_94 = arith.constant 7 : index
    %c0_95 = arith.constant 0 : index
    %172 = vector.load %arg6[%c0_93, %c7_94, %c0_95] : memref<10x24x256xf32, #tpu.memory_space<vmem>>, vector<8x8x256xf32>
    %173 = vector.extract_strided_slice %171 {offsets = [0, 0], sizes = [1, 256], strides = [1, 1]} : vector<9x256xf32> to vector<1x256xf32>
    %174 = vector.shape_cast %173 : vector<1x256xf32> to vector<256xf32>
    %175 = vector.shape_cast %174 : vector<256xf32> to vector<1x1x256xf32>
    %176 = vector.broadcast %175 : vector<1x1x256xf32> to vector<8x8x256xf32>
    %177 = arith.mulf %172, %176 : vector<8x8x256xf32>
    %c0_96 = arith.constant 0 : index
    %c8_97 = arith.constant 8 : index
    %c0_98 = arith.constant 0 : index
    %178 = vector.load %arg6[%c0_96, %c8_97, %c0_98] : memref<10x24x256xf32, #tpu.memory_space<vmem>>, vector<8x8x256xf32>
    %179 = vector.extract_strided_slice %171 {offsets = [1, 0], sizes = [1, 256], strides = [1, 1]} : vector<9x256xf32> to vector<1x256xf32>
    %180 = vector.shape_cast %179 : vector<1x256xf32> to vector<256xf32>
    %181 = vector.shape_cast %180 : vector<256xf32> to vector<1x1x256xf32>
    %182 = vector.broadcast %181 : vector<1x1x256xf32> to vector<8x8x256xf32>
    %183 = arith.mulf %178, %182 : vector<8x8x256xf32>
    %c0_99 = arith.constant 0 : index
    %c9_100 = arith.constant 9 : index
    %c0_101 = arith.constant 0 : index
    %184 = vector.load %arg6[%c0_99, %c9_100, %c0_101] : memref<10x24x256xf32, #tpu.memory_space<vmem>>, vector<8x8x256xf32>
    %185 = vector.extract_strided_slice %171 {offsets = [2, 0], sizes = [1, 256], strides = [1, 1]} : vector<9x256xf32> to vector<1x256xf32>
    %186 = vector.shape_cast %185 : vector<1x256xf32> to vector<256xf32>
    %187 = vector.shape_cast %186 : vector<256xf32> to vector<1x1x256xf32>
    %188 = vector.broadcast %187 : vector<1x1x256xf32> to vector<8x8x256xf32>
    %189 = arith.mulf %184, %188 : vector<8x8x256xf32>
    %c1_102 = arith.constant 1 : index
    %c7_103 = arith.constant 7 : index
    %c0_104 = arith.constant 0 : index
    %190 = vector.load %arg6[%c1_102, %c7_103, %c0_104] : memref<10x24x256xf32, #tpu.memory_space<vmem>>, vector<8x8x256xf32>
    %191 = vector.extract_strided_slice %171 {offsets = [3, 0], sizes = [1, 256], strides = [1, 1]} : vector<9x256xf32> to vector<1x256xf32>
    %192 = vector.shape_cast %191 : vector<1x256xf32> to vector<256xf32>
    %193 = vector.shape_cast %192 : vector<256xf32> to vector<1x1x256xf32>
    %194 = vector.broadcast %193 : vector<1x1x256xf32> to vector<8x8x256xf32>
    %195 = arith.mulf %190, %194 : vector<8x8x256xf32>
    %c1_105 = arith.constant 1 : index
    %c8_106 = arith.constant 8 : index
    %c0_107 = arith.constant 0 : index
    %196 = vector.load %arg6[%c1_105, %c8_106, %c0_107] : memref<10x24x256xf32, #tpu.memory_space<vmem>>, vector<8x8x256xf32>
    %197 = vector.extract_strided_slice %171 {offsets = [4, 0], sizes = [1, 256], strides = [1, 1]} : vector<9x256xf32> to vector<1x256xf32>
    %198 = vector.shape_cast %197 : vector<1x256xf32> to vector<256xf32>
    %199 = vector.shape_cast %198 : vector<256xf32> to vector<1x1x256xf32>
    %200 = vector.broadcast %199 : vector<1x1x256xf32> to vector<8x8x256xf32>
    %201 = arith.mulf %196, %200 : vector<8x8x256xf32>
    %c1_108 = arith.constant 1 : index
    %c9_109 = arith.constant 9 : index
    %c0_110 = arith.constant 0 : index
    %202 = vector.load %arg6[%c1_108, %c9_109, %c0_110] : memref<10x24x256xf32, #tpu.memory_space<vmem>>, vector<8x8x256xf32>
    %203 = vector.extract_strided_slice %171 {offsets = [5, 0], sizes = [1, 256], strides = [1, 1]} : vector<9x256xf32> to vector<1x256xf32>
    %204 = vector.shape_cast %203 : vector<1x256xf32> to vector<256xf32>
    %205 = vector.shape_cast %204 : vector<256xf32> to vector<1x1x256xf32>
    %206 = vector.broadcast %205 : vector<1x1x256xf32> to vector<8x8x256xf32>
    %207 = arith.mulf %202, %206 : vector<8x8x256xf32>
    %c2_111 = arith.constant 2 : index
    %c7_112 = arith.constant 7 : index
    %c0_113 = arith.constant 0 : index
    %208 = vector.load %arg6[%c2_111, %c7_112, %c0_113] : memref<10x24x256xf32, #tpu.memory_space<vmem>>, vector<8x8x256xf32>
    %209 = vector.extract_strided_slice %171 {offsets = [6, 0], sizes = [1, 256], strides = [1, 1]} : vector<9x256xf32> to vector<1x256xf32>
    %210 = vector.shape_cast %209 : vector<1x256xf32> to vector<256xf32>
    %211 = vector.shape_cast %210 : vector<256xf32> to vector<1x1x256xf32>
    %212 = vector.broadcast %211 : vector<1x1x256xf32> to vector<8x8x256xf32>
    %213 = arith.mulf %208, %212 : vector<8x8x256xf32>
    %c2_114 = arith.constant 2 : index
    %c8_115 = arith.constant 8 : index
    %c0_116 = arith.constant 0 : index
    %214 = vector.load %arg6[%c2_114, %c8_115, %c0_116] : memref<10x24x256xf32, #tpu.memory_space<vmem>>, vector<8x8x256xf32>
    %215 = vector.extract_strided_slice %171 {offsets = [7, 0], sizes = [1, 256], strides = [1, 1]} : vector<9x256xf32> to vector<1x256xf32>
    %216 = vector.shape_cast %215 : vector<1x256xf32> to vector<256xf32>
    %217 = vector.shape_cast %216 : vector<256xf32> to vector<1x1x256xf32>
    %218 = vector.broadcast %217 : vector<1x1x256xf32> to vector<8x8x256xf32>
    %219 = arith.mulf %214, %218 : vector<8x8x256xf32>
    %c2_117 = arith.constant 2 : index
    %c9_118 = arith.constant 9 : index
    %c0_119 = arith.constant 0 : index
    %220 = vector.load %arg6[%c2_117, %c9_118, %c0_119] : memref<10x24x256xf32, #tpu.memory_space<vmem>>, vector<8x8x256xf32>
    %221 = vector.extract_strided_slice %171 {offsets = [8, 0], sizes = [1, 256], strides = [1, 1]} : vector<9x256xf32> to vector<1x256xf32>
    %222 = vector.shape_cast %221 : vector<1x256xf32> to vector<256xf32>
    %223 = vector.shape_cast %222 : vector<256xf32> to vector<1x1x256xf32>
    %224 = vector.broadcast %223 : vector<1x1x256xf32> to vector<8x8x256xf32>
    %225 = arith.mulf %220, %224 : vector<8x8x256xf32>
    %226 = arith.addf %177, %183 : vector<8x8x256xf32>
    %227 = arith.addf %189, %195 : vector<8x8x256xf32>
    %228 = arith.addf %201, %207 : vector<8x8x256xf32>
    %229 = arith.addf %213, %219 : vector<8x8x256xf32>
    %230 = arith.addf %226, %227 : vector<8x8x256xf32>
    %231 = arith.addf %228, %229 : vector<8x8x256xf32>
    %232 = arith.addf %230, %231 : vector<8x8x256xf32>
    %233 = arith.addf %232, %225 : vector<8x8x256xf32>
    %234 = vector.shape_cast %233 : vector<8x8x256xf32> to vector<64x256xf32>
    %235 = arith.truncf %234 : vector<64x256xf32> to vector<64x256xbf16>
    %c2_120 = arith.constant 2 : index
    %c0_121 = arith.constant 0 : index
    %c0_122 = arith.constant 0 : index
    %236 = vector.load %arg3[%c2_120, %c0_121, %c0_122] : memref<6x256x256xbf16, #tpu.memory_space<vmem>>, vector<1x256x256xbf16>
    %237 = vector.shape_cast %236 : vector<1x256x256xbf16> to vector<256x256xbf16>
    %cst_123 = arith.constant dense<0.000000e+00> : vector<64x256xf32>
    %238 = tpu.matmul %235, %237, %cst_123 {dimension_numbers = #tpu.dot_dimension_numbers<[1], [0], [0], [1], [0, 0, 1, 1], [], []>} : vector<64x256xbf16>, vector<256x256xbf16>, vector<64x256xf32> -> vector<64x256xf32>
    %c2_124 = arith.constant 2 : index
    %c0_125 = arith.constant 0 : index
    %c0_126 = arith.constant 0 : index
    %239 = vector.load %arg4[%c2_124, %c0_125, %c0_126] : memref<6x1x256xf32, #tpu.memory_space<vmem>>, vector<1x1x256xf32>
    %240 = vector.shape_cast %239 : vector<1x1x256xf32> to vector<1x256xf32>
    %241 = vector.broadcast %240 : vector<1x256xf32> to vector<64x256xf32>
    %242 = arith.addf %238, %241 : vector<64x256xf32>
    %243 = vector.shape_cast %242 : vector<64x256xf32> to vector<8x8x256xf32>
    %244 = arith.addf %3, %243 : vector<8x8x256xf32>
    %cst_127 = arith.constant 0.000000e+00 : f32
    %245 = vector.broadcast %cst_127 : f32 to vector<8x8x256xf32>
    %246 = arith.cmpf oge, %244, %245 : vector<8x8x256xf32>
    %cst_128 = arith.constant 2.000000e-01 : f32
    %247 = vector.broadcast %cst_128 : f32 to vector<8x8x256xf32>
    %248 = arith.mulf %247, %244 : vector<8x8x256xf32>
    %249 = arith.select %246, %244, %248 : vector<8x8x256xi1>, vector<8x8x256xf32>
    %c1_129 = arith.constant 1 : index
    %c8_130 = arith.constant 8 : index
    %c0_131 = arith.constant 0 : index
    %250 = vector.load %arg6[%c1_129, %c8_130, %c0_131] : memref<10x24x256xf32, #tpu.memory_space<vmem>>, vector<8x8x256xf32>
    tpu.vector_store %arg6[%c1_129, %c8_130, %c0_131], %249 {strides = array<i32>} : memref<10x24x256xf32, #tpu.memory_space<vmem>>, vector<8x8x256xf32>,
    %c3 = arith.constant 3 : index
    %c0_132 = arith.constant 0 : index
    %c0_133 = arith.constant 0 : index
    %251 = vector.load %arg2[%c3, %c0_132, %c0_133] : memref<6x9x256xf32, #tpu.memory_space<vmem>>, vector<1x9x256xf32>
    %252 = vector.shape_cast %251 : vector<1x9x256xf32> to vector<9x256xf32>
    %c0_134 = arith.constant 0 : index
    %c7_135 = arith.constant 7 : index
    %c0_136 = arith.constant 0 : index
    %253 = vector.load %arg6[%c0_134, %c7_135, %c0_136] : memref<10x24x256xf32, #tpu.memory_space<vmem>>, vector<8x8x256xf32>
    %254 = vector.extract_strided_slice %252 {offsets = [0, 0], sizes = [1, 256], strides = [1, 1]} : vector<9x256xf32> to vector<1x256xf32>
    %255 = vector.shape_cast %254 : vector<1x256xf32> to vector<256xf32>
    %256 = vector.shape_cast %255 : vector<256xf32> to vector<1x1x256xf32>
    %257 = vector.broadcast %256 : vector<1x1x256xf32> to vector<8x8x256xf32>
    %258 = arith.mulf %253, %257 : vector<8x8x256xf32>
    %c0_137 = arith.constant 0 : index
    %c8_138 = arith.constant 8 : index
    %c0_139 = arith.constant 0 : index
    %259 = vector.load %arg6[%c0_137, %c8_138, %c0_139] : memref<10x24x256xf32, #tpu.memory_space<vmem>>, vector<8x8x256xf32>
    %260 = vector.extract_strided_slice %252 {offsets = [1, 0], sizes = [1, 256], strides = [1, 1]} : vector<9x256xf32> to vector<1x256xf32>
    %261 = vector.shape_cast %260 : vector<1x256xf32> to vector<256xf32>
    %262 = vector.shape_cast %261 : vector<256xf32> to vector<1x1x256xf32>
    %263 = vector.broadcast %262 : vector<1x1x256xf32> to vector<8x8x256xf32>
    %264 = arith.mulf %259, %263 : vector<8x8x256xf32>
    %c0_140 = arith.constant 0 : index
    %c9_141 = arith.constant 9 : index
    %c0_142 = arith.constant 0 : index
    %265 = vector.load %arg6[%c0_140, %c9_141, %c0_142] : memref<10x24x256xf32, #tpu.memory_space<vmem>>, vector<8x8x256xf32>
    %266 = vector.extract_strided_slice %252 {offsets = [2, 0], sizes = [1, 256], strides = [1, 1]} : vector<9x256xf32> to vector<1x256xf32>
    %267 = vector.shape_cast %266 : vector<1x256xf32> to vector<256xf32>
    %268 = vector.shape_cast %267 : vector<256xf32> to vector<1x1x256xf32>
    %269 = vector.broadcast %268 : vector<1x1x256xf32> to vector<8x8x256xf32>
    %270 = arith.mulf %265, %269 : vector<8x8x256xf32>
    %c1_143 = arith.constant 1 : index
    %c7_144 = arith.constant 7 : index
    %c0_145 = arith.constant 0 : index
    %271 = vector.load %arg6[%c1_143, %c7_144, %c0_145] : memref<10x24x256xf32, #tpu.memory_space<vmem>>, vector<8x8x256xf32>
    %272 = vector.extract_strided_slice %252 {offsets = [3, 0], sizes = [1, 256], strides = [1, 1]} : vector<9x256xf32> to vector<1x256xf32>
    %273 = vector.shape_cast %272 : vector<1x256xf32> to vector<256xf32>
    %274 = vector.shape_cast %273 : vector<256xf32> to vector<1x1x256xf32>
    %275 = vector.broadcast %274 : vector<1x1x256xf32> to vector<8x8x256xf32>
    %276 = arith.mulf %271, %275 : vector<8x8x256xf32>
    %c1_146 = arith.constant 1 : index
    %c8_147 = arith.constant 8 : index
    %c0_148 = arith.constant 0 : index
    %277 = vector.load %arg6[%c1_146, %c8_147, %c0_148] : memref<10x24x256xf32, #tpu.memory_space<vmem>>, vector<8x8x256xf32>
    %278 = vector.extract_strided_slice %252 {offsets = [4, 0], sizes = [1, 256], strides = [1, 1]} : vector<9x256xf32> to vector<1x256xf32>
    %279 = vector.shape_cast %278 : vector<1x256xf32> to vector<256xf32>
    %280 = vector.shape_cast %279 : vector<256xf32> to vector<1x1x256xf32>
    %281 = vector.broadcast %280 : vector<1x1x256xf32> to vector<8x8x256xf32>
    %282 = arith.mulf %277, %281 : vector<8x8x256xf32>
    %c1_149 = arith.constant 1 : index
    %c9_150 = arith.constant 9 : index
    %c0_151 = arith.constant 0 : index
    %283 = vector.load %arg6[%c1_149, %c9_150, %c0_151] : memref<10x24x256xf32, #tpu.memory_space<vmem>>, vector<8x8x256xf32>
    %284 = vector.extract_strided_slice %252 {offsets = [5, 0], sizes = [1, 256], strides = [1, 1]} : vector<9x256xf32> to vector<1x256xf32>
    %285 = vector.shape_cast %284 : vector<1x256xf32> to vector<256xf32>
    %286 = vector.shape_cast %285 : vector<256xf32> to vector<1x1x256xf32>
    %287 = vector.broadcast %286 : vector<1x1x256xf32> to vector<8x8x256xf32>
    %288 = arith.mulf %283, %287 : vector<8x8x256xf32>
    %c2_152 = arith.constant 2 : index
    %c7_153 = arith.constant 7 : index
    %c0_154 = arith.constant 0 : index
    %289 = vector.load %arg6[%c2_152, %c7_153, %c0_154] : memref<10x24x256xf32, #tpu.memory_space<vmem>>, vector<8x8x256xf32>
    %290 = vector.extract_strided_slice %252 {offsets = [6, 0], sizes = [1, 256], strides = [1, 1]} : vector<9x256xf32> to vector<1x256xf32>
    %291 = vector.shape_cast %290 : vector<1x256xf32> to vector<256xf32>
    %292 = vector.shape_cast %291 : vector<256xf32> to vector<1x1x256xf32>
    %293 = vector.broadcast %292 : vector<1x1x256xf32> to vector<8x8x256xf32>
    %294 = arith.mulf %289, %293 : vector<8x8x256xf32>
    %c2_155 = arith.constant 2 : index
    %c8_156 = arith.constant 8 : index
    %c0_157 = arith.constant 0 : index
    %295 = vector.load %arg6[%c2_155, %c8_156, %c0_157] : memref<10x24x256xf32, #tpu.memory_space<vmem>>, vector<8x8x256xf32>
    %296 = vector.extract_strided_slice %252 {offsets = [7, 0], sizes = [1, 256], strides = [1, 1]} : vector<9x256xf32> to vector<1x256xf32>
    %297 = vector.shape_cast %296 : vector<1x256xf32> to vector<256xf32>
    %298 = vector.shape_cast %297 : vector<256xf32> to vector<1x1x256xf32>
    %299 = vector.broadcast %298 : vector<1x1x256xf32> to vector<8x8x256xf32>
    %300 = arith.mulf %295, %299 : vector<8x8x256xf32>
    %c2_158 = arith.constant 2 : index
    %c9_159 = arith.constant 9 : index
    %c0_160 = arith.constant 0 : index
    %301 = vector.load %arg6[%c2_158, %c9_159, %c0_160] : memref<10x24x256xf32, #tpu.memory_space<vmem>>, vector<8x8x256xf32>
    %302 = vector.extract_strided_slice %252 {offsets = [8, 0], sizes = [1, 256], strides = [1, 1]} : vector<9x256xf32> to vector<1x256xf32>
    %303 = vector.shape_cast %302 : vector<1x256xf32> to vector<256xf32>
    %304 = vector.shape_cast %303 : vector<256xf32> to vector<1x1x256xf32>
    %305 = vector.broadcast %304 : vector<1x1x256xf32> to vector<8x8x256xf32>
    %306 = arith.mulf %301, %305 : vector<8x8x256xf32>
    %307 = arith.addf %258, %264 : vector<8x8x256xf32>
    %308 = arith.addf %270, %276 : vector<8x8x256xf32>
    %309 = arith.addf %282, %288 : vector<8x8x256xf32>
    %310 = arith.addf %294, %300 : vector<8x8x256xf32>
    %311 = arith.addf %307, %308 : vector<8x8x256xf32>
    %312 = arith.addf %309, %310 : vector<8x8x256xf32>
    %313 = arith.addf %311, %312 : vector<8x8x256xf32>
    %314 = arith.addf %313, %306 : vector<8x8x256xf32>
    %315 = vector.shape_cast %314 : vector<8x8x256xf32> to vector<64x256xf32>
    %316 = arith.truncf %315 : vector<64x256xf32> to vector<64x256xbf16>
    %c3_161 = arith.constant 3 : index
    %c0_162 = arith.constant 0 : index
    %c0_163 = arith.constant 0 : index
    %317 = vector.load %arg3[%c3_161, %c0_162, %c0_163] : memref<6x256x256xbf16, #tpu.memory_space<vmem>>, vector<1x256x256xbf16>
    %318 = vector.shape_cast %317 : vector<1x256x256xbf16> to vector<256x256xbf16>
    %cst_164 = arith.constant dense<0.000000e+00> : vector<64x256xf32>
    %319 = tpu.matmul %316, %318, %cst_164 {dimension_numbers = #tpu.dot_dimension_numbers<[1], [0], [0], [1], [0, 0, 1, 1], [], []>} : vector<64x256xbf16>, vector<256x256xbf16>, vector<64x256xf32> -> vector<64x256xf32>
    %c3_165 = arith.constant 3 : index
    %c0_166 = arith.constant 0 : index
    %c0_167 = arith.constant 0 : index
    %320 = vector.load %arg4[%c3_165, %c0_166, %c0_167] : memref<6x1x256xf32, #tpu.memory_space<vmem>>, vector<1x1x256xf32>
    %321 = vector.shape_cast %320 : vector<1x1x256xf32> to vector<1x256xf32>
    %322 = vector.broadcast %321 : vector<1x256xf32> to vector<64x256xf32>
    %323 = arith.addf %319, %322 : vector<64x256xf32>
    %324 = vector.shape_cast %323 : vector<64x256xf32> to vector<8x8x256xf32>
    %cst_168 = arith.constant 0.000000e+00 : f32
    %325 = vector.broadcast %cst_168 : f32 to vector<8x8x256xf32>
    %326 = arith.cmpf oge, %324, %325 : vector<8x8x256xf32>
    %cst_169 = arith.constant 2.000000e-01 : f32
    %327 = vector.broadcast %cst_169 : f32 to vector<8x8x256xf32>
    %328 = arith.mulf %327, %324 : vector<8x8x256xf32>
    %329 = arith.select %326, %324, %328 : vector<8x8x256xi1>, vector<8x8x256xf32>
    %c1_170 = arith.constant 1 : index
    %c8_171 = arith.constant 8 : index
    %c0_172 = arith.constant 0 : index
    %330 = vector.load %arg6[%c1_170, %c8_171, %c0_172] : memref<10x24x256xf32, #tpu.memory_space<vmem>>, vector<8x8x256xf32>
    tpu.vector_store %arg6[%c1_170, %c8_171, %c0_172], %329 {strides = array<i32>} : memref<10x24x256xf32, #tpu.memory_space<vmem>>, vector<8x8x256xf32>,
    %c4 = arith.constant 4 : index
    %c0_173 = arith.constant 0 : index
    %c0_174 = arith.constant 0 : index
    %331 = vector.load %arg2[%c4, %c0_173, %c0_174] : memref<6x9x256xf32, #tpu.memory_space<vmem>>, vector<1x9x256xf32>
    %332 = vector.shape_cast %331 : vector<1x9x256xf32> to vector<9x256xf32>
    %c0_175 = arith.constant 0 : index
    %c7_176 = arith.constant 7 : index
    %c0_177 = arith.constant 0 : index
    %333 = vector.load %arg6[%c0_175, %c7_176, %c0_177] : memref<10x24x256xf32, #tpu.memory_space<vmem>>, vector<8x8x256xf32>
    %334 = vector.extract_strided_slice %332 {offsets = [0, 0], sizes = [1, 256], strides = [1, 1]} : vector<9x256xf32> to vector<1x256xf32>
    %335 = vector.shape_cast %334 : vector<1x256xf32> to vector<256xf32>
    %336 = vector.shape_cast %335 : vector<256xf32> to vector<1x1x256xf32>
    %337 = vector.broadcast %336 : vector<1x1x256xf32> to vector<8x8x256xf32>
    %338 = arith.mulf %333, %337 : vector<8x8x256xf32>
    %c0_178 = arith.constant 0 : index
    %c8_179 = arith.constant 8 : index
    %c0_180 = arith.constant 0 : index
    %339 = vector.load %arg6[%c0_178, %c8_179, %c0_180] : memref<10x24x256xf32, #tpu.memory_space<vmem>>, vector<8x8x256xf32>
    %340 = vector.extract_strided_slice %332 {offsets = [1, 0], sizes = [1, 256], strides = [1, 1]} : vector<9x256xf32> to vector<1x256xf32>
    %341 = vector.shape_cast %340 : vector<1x256xf32> to vector<256xf32>
    %342 = vector.shape_cast %341 : vector<256xf32> to vector<1x1x256xf32>
    %343 = vector.broadcast %342 : vector<1x1x256xf32> to vector<8x8x256xf32>
    %344 = arith.mulf %339, %343 : vector<8x8x256xf32>
    %c0_181 = arith.constant 0 : index
    %c9_182 = arith.constant 9 : index
    %c0_183 = arith.constant 0 : index
    %345 = vector.load %arg6[%c0_181, %c9_182, %c0_183] : memref<10x24x256xf32, #tpu.memory_space<vmem>>, vector<8x8x256xf32>
    %346 = vector.extract_strided_slice %332 {offsets = [2, 0], sizes = [1, 256], strides = [1, 1]} : vector<9x256xf32> to vector<1x256xf32>
    %347 = vector.shape_cast %346 : vector<1x256xf32> to vector<256xf32>
    %348 = vector.shape_cast %347 : vector<256xf32> to vector<1x1x256xf32>
    %349 = vector.broadcast %348 : vector<1x1x256xf32> to vector<8x8x256xf32>
    %350 = arith.mulf %345, %349 : vector<8x8x256xf32>
    %c1_184 = arith.constant 1 : index
    %c7_185 = arith.constant 7 : index
    %c0_186 = arith.constant 0 : index
    %351 = vector.load %arg6[%c1_184, %c7_185, %c0_186] : memref<10x24x256xf32, #tpu.memory_space<vmem>>, vector<8x8x256xf32>
    %352 = vector.extract_strided_slice %332 {offsets = [3, 0], sizes = [1, 256], strides = [1, 1]} : vector<9x256xf32> to vector<1x256xf32>
    %353 = vector.shape_cast %352 : vector<1x256xf32> to vector<256xf32>
    %354 = vector.shape_cast %353 : vector<256xf32> to vector<1x1x256xf32>
    %355 = vector.broadcast %354 : vector<1x1x256xf32> to vector<8x8x256xf32>
    %356 = arith.mulf %351, %355 : vector<8x8x256xf32>
    %c1_187 = arith.constant 1 : index
    %c8_188 = arith.constant 8 : index
    %c0_189 = arith.constant 0 : index
    %357 = vector.load %arg6[%c1_187, %c8_188, %c0_189] : memref<10x24x256xf32, #tpu.memory_space<vmem>>, vector<8x8x256xf32>
    %358 = vector.extract_strided_slice %332 {offsets = [4, 0], sizes = [1, 256], strides = [1, 1]} : vector<9x256xf32> to vector<1x256xf32>
    %359 = vector.shape_cast %358 : vector<1x256xf32> to vector<256xf32>
    %360 = vector.shape_cast %359 : vector<256xf32> to vector<1x1x256xf32>
    %361 = vector.broadcast %360 : vector<1x1x256xf32> to vector<8x8x256xf32>
    %362 = arith.mulf %357, %361 : vector<8x8x256xf32>
    %c1_190 = arith.constant 1 : index
    %c9_191 = arith.constant 9 : index
    %c0_192 = arith.constant 0 : index
    %363 = vector.load %arg6[%c1_190, %c9_191, %c0_192] : memref<10x24x256xf32, #tpu.memory_space<vmem>>, vector<8x8x256xf32>
    %364 = vector.extract_strided_slice %332 {offsets = [5, 0], sizes = [1, 256], strides = [1, 1]} : vector<9x256xf32> to vector<1x256xf32>
    %365 = vector.shape_cast %364 : vector<1x256xf32> to vector<256xf32>
    %366 = vector.shape_cast %365 : vector<256xf32> to vector<1x1x256xf32>
    %367 = vector.broadcast %366 : vector<1x1x256xf32> to vector<8x8x256xf32>
    %368 = arith.mulf %363, %367 : vector<8x8x256xf32>
    %c2_193 = arith.constant 2 : index
    %c7_194 = arith.constant 7 : index
    %c0_195 = arith.constant 0 : index
    %369 = vector.load %arg6[%c2_193, %c7_194, %c0_195] : memref<10x24x256xf32, #tpu.memory_space<vmem>>, vector<8x8x256xf32>
    %370 = vector.extract_strided_slice %332 {offsets = [6, 0], sizes = [1, 256], strides = [1, 1]} : vector<9x256xf32> to vector<1x256xf32>
    %371 = vector.shape_cast %370 : vector<1x256xf32> to vector<256xf32>
    %372 = vector.shape_cast %371 : vector<256xf32> to vector<1x1x256xf32>
    %373 = vector.broadcast %372 : vector<1x1x256xf32> to vector<8x8x256xf32>
    %374 = arith.mulf %369, %373 : vector<8x8x256xf32>
    %c2_196 = arith.constant 2 : index
    %c8_197 = arith.constant 8 : index
    %c0_198 = arith.constant 0 : index
    %375 = vector.load %arg6[%c2_196, %c8_197, %c0_198] : memref<10x24x256xf32, #tpu.memory_space<vmem>>, vector<8x8x256xf32>
    %376 = vector.extract_strided_slice %332 {offsets = [7, 0], sizes = [1, 256], strides = [1, 1]} : vector<9x256xf32> to vector<1x256xf32>
    %377 = vector.shape_cast %376 : vector<1x256xf32> to vector<256xf32>
    %378 = vector.shape_cast %377 : vector<256xf32> to vector<1x1x256xf32>
    %379 = vector.broadcast %378 : vector<1x1x256xf32> to vector<8x8x256xf32>
    %380 = arith.mulf %375, %379 : vector<8x8x256xf32>
    %c2_199 = arith.constant 2 : index
    %c9_200 = arith.constant 9 : index
    %c0_201 = arith.constant 0 : index
    %381 = vector.load %arg6[%c2_199, %c9_200, %c0_201] : memref<10x24x256xf32, #tpu.memory_space<vmem>>, vector<8x8x256xf32>
    %382 = vector.extract_strided_slice %332 {offsets = [8, 0], sizes = [1, 256], strides = [1, 1]} : vector<9x256xf32> to vector<1x256xf32>
    %383 = vector.shape_cast %382 : vector<1x256xf32> to vector<256xf32>
    %384 = vector.shape_cast %383 : vector<256xf32> to vector<1x1x256xf32>
    %385 = vector.broadcast %384 : vector<1x1x256xf32> to vector<8x8x256xf32>
    %386 = arith.mulf %381, %385 : vector<8x8x256xf32>
    %387 = arith.addf %338, %344 : vector<8x8x256xf32>
    %388 = arith.addf %350, %356 : vector<8x8x256xf32>
    %389 = arith.addf %362, %368 : vector<8x8x256xf32>
    %390 = arith.addf %374, %380 : vector<8x8x256xf32>
    %391 = arith.addf %387, %388 : vector<8x8x256xf32>
    %392 = arith.addf %389, %390 : vector<8x8x256xf32>
    %393 = arith.addf %391, %392 : vector<8x8x256xf32>
    %394 = arith.addf %393, %386 : vector<8x8x256xf32>
    %395 = vector.shape_cast %394 : vector<8x8x256xf32> to vector<64x256xf32>
    %396 = arith.truncf %395 : vector<64x256xf32> to vector<64x256xbf16>
    %c4_202 = arith.constant 4 : index
    %c0_203 = arith.constant 0 : index
    %c0_204 = arith.constant 0 : index
    %397 = vector.load %arg3[%c4_202, %c0_203, %c0_204] : memref<6x256x256xbf16, #tpu.memory_space<vmem>>, vector<1x256x256xbf16>
    %398 = vector.shape_cast %397 : vector<1x256x256xbf16> to vector<256x256xbf16>
    %cst_205 = arith.constant dense<0.000000e+00> : vector<64x256xf32>
    %399 = tpu.matmul %396, %398, %cst_205 {dimension_numbers = #tpu.dot_dimension_numbers<[1], [0], [0], [1], [0, 0, 1, 1], [], []>} : vector<64x256xbf16>, vector<256x256xbf16>, vector<64x256xf32> -> vector<64x256xf32>
    %c4_206 = arith.constant 4 : index
    %c0_207 = arith.constant 0 : index
    %c0_208 = arith.constant 0 : index
    %400 = vector.load %arg4[%c4_206, %c0_207, %c0_208] : memref<6x1x256xf32, #tpu.memory_space<vmem>>, vector<1x1x256xf32>
    %401 = vector.shape_cast %400 : vector<1x1x256xf32> to vector<1x256xf32>
    %402 = vector.broadcast %401 : vector<1x256xf32> to vector<64x256xf32>
    %403 = arith.addf %399, %402 : vector<64x256xf32>
    %404 = vector.shape_cast %403 : vector<64x256xf32> to vector<8x8x256xf32>
    %cst_209 = arith.constant 0.000000e+00 : f32
    %405 = vector.broadcast %cst_209 : f32 to vector<8x8x256xf32>
    %406 = arith.cmpf oge, %404, %405 : vector<8x8x256xf32>
    %cst_210 = arith.constant 2.000000e-01 : f32
    %407 = vector.broadcast %cst_210 : f32 to vector<8x8x256xf32>
    %408 = arith.mulf %407, %404 : vector<8x8x256xf32>
    %409 = arith.select %406, %404, %408 : vector<8x8x256xi1>, vector<8x8x256xf32>
    %c1_211 = arith.constant 1 : index
    %c8_212 = arith.constant 8 : index
    %c0_213 = arith.constant 0 : index
    %410 = vector.load %arg6[%c1_211, %c8_212, %c0_213] : memref<10x24x256xf32, #tpu.memory_space<vmem>>, vector<8x8x256xf32>
    tpu.vector_store %arg6[%c1_211, %c8_212, %c0_213], %409 {strides = array<i32>} : memref<10x24x256xf32, #tpu.memory_space<vmem>>, vector<8x8x256xf32>,
    %c5 = arith.constant 5 : index
    %c0_214 = arith.constant 0 : index
    %c0_215 = arith.constant 0 : index
    %411 = vector.load %arg2[%c5, %c0_214, %c0_215] : memref<6x9x256xf32, #tpu.memory_space<vmem>>, vector<1x9x256xf32>
    %412 = vector.shape_cast %411 : vector<1x9x256xf32> to vector<9x256xf32>
    %c0_216 = arith.constant 0 : index
    %c7_217 = arith.constant 7 : index
    %c0_218 = arith.constant 0 : index
    %413 = vector.load %arg6[%c0_216, %c7_217, %c0_218] : memref<10x24x256xf32, #tpu.memory_space<vmem>>, vector<8x8x256xf32>
    %414 = vector.extract_strided_slice %412 {offsets = [0, 0], sizes = [1, 256], strides = [1, 1]} : vector<9x256xf32> to vector<1x256xf32>
    %415 = vector.shape_cast %414 : vector<1x256xf32> to vector<256xf32>
    %416 = vector.shape_cast %415 : vector<256xf32> to vector<1x1x256xf32>
    %417 = vector.broadcast %416 : vector<1x1x256xf32> to vector<8x8x256xf32>
    %418 = arith.mulf %413, %417 : vector<8x8x256xf32>
    %c0_219 = arith.constant 0 : index
    %c8_220 = arith.constant 8 : index
    %c0_221 = arith.constant 0 : index
    %419 = vector.load %arg6[%c0_219, %c8_220, %c0_221] : memref<10x24x256xf32, #tpu.memory_space<vmem>>, vector<8x8x256xf32>
    %420 = vector.extract_strided_slice %412 {offsets = [1, 0], sizes = [1, 256], strides = [1, 1]} : vector<9x256xf32> to vector<1x256xf32>
    %421 = vector.shape_cast %420 : vector<1x256xf32> to vector<256xf32>
    %422 = vector.shape_cast %421 : vector<256xf32> to vector<1x1x256xf32>
    %423 = vector.broadcast %422 : vector<1x1x256xf32> to vector<8x8x256xf32>
    %424 = arith.mulf %419, %423 : vector<8x8x256xf32>
    %c0_222 = arith.constant 0 : index
    %c9_223 = arith.constant 9 : index
    %c0_224 = arith.constant 0 : index
    %425 = vector.load %arg6[%c0_222, %c9_223, %c0_224] : memref<10x24x256xf32, #tpu.memory_space<vmem>>, vector<8x8x256xf32>
    %426 = vector.extract_strided_slice %412 {offsets = [2, 0], sizes = [1, 256], strides = [1, 1]} : vector<9x256xf32> to vector<1x256xf32>
    %427 = vector.shape_cast %426 : vector<1x256xf32> to vector<256xf32>
    %428 = vector.shape_cast %427 : vector<256xf32> to vector<1x1x256xf32>
    %429 = vector.broadcast %428 : vector<1x1x256xf32> to vector<8x8x256xf32>
    %430 = arith.mulf %425, %429 : vector<8x8x256xf32>
    %c1_225 = arith.constant 1 : index
    %c7_226 = arith.constant 7 : index
    %c0_227 = arith.constant 0 : index
    %431 = vector.load %arg6[%c1_225, %c7_226, %c0_227] : memref<10x24x256xf32, #tpu.memory_space<vmem>>, vector<8x8x256xf32>
    %432 = vector.extract_strided_slice %412 {offsets = [3, 0], sizes = [1, 256], strides = [1, 1]} : vector<9x256xf32> to vector<1x256xf32>
    %433 = vector.shape_cast %432 : vector<1x256xf32> to vector<256xf32>
    %434 = vector.shape_cast %433 : vector<256xf32> to vector<1x1x256xf32>
    %435 = vector.broadcast %434 : vector<1x1x256xf32> to vector<8x8x256xf32>
    %436 = arith.mulf %431, %435 : vector<8x8x256xf32>
    %c1_228 = arith.constant 1 : index
    %c8_229 = arith.constant 8 : index
    %c0_230 = arith.constant 0 : index
    %437 = vector.load %arg6[%c1_228, %c8_229, %c0_230] : memref<10x24x256xf32, #tpu.memory_space<vmem>>, vector<8x8x256xf32>
    %438 = vector.extract_strided_slice %412 {offsets = [4, 0], sizes = [1, 256], strides = [1, 1]} : vector<9x256xf32> to vector<1x256xf32>
    %439 = vector.shape_cast %438 : vector<1x256xf32> to vector<256xf32>
    %440 = vector.shape_cast %439 : vector<256xf32> to vector<1x1x256xf32>
    %441 = vector.broadcast %440 : vector<1x1x256xf32> to vector<8x8x256xf32>
    %442 = arith.mulf %437, %441 : vector<8x8x256xf32>
    %c1_231 = arith.constant 1 : index
    %c9_232 = arith.constant 9 : index
    %c0_233 = arith.constant 0 : index
    %443 = vector.load %arg6[%c1_231, %c9_232, %c0_233] : memref<10x24x256xf32, #tpu.memory_space<vmem>>, vector<8x8x256xf32>
    %444 = vector.extract_strided_slice %412 {offsets = [5, 0], sizes = [1, 256], strides = [1, 1]} : vector<9x256xf32> to vector<1x256xf32>
    %445 = vector.shape_cast %444 : vector<1x256xf32> to vector<256xf32>
    %446 = vector.shape_cast %445 : vector<256xf32> to vector<1x1x256xf32>
    %447 = vector.broadcast %446 : vector<1x1x256xf32> to vector<8x8x256xf32>
    %448 = arith.mulf %443, %447 : vector<8x8x256xf32>
    %c2_234 = arith.constant 2 : index
    %c7_235 = arith.constant 7 : index
    %c0_236 = arith.constant 0 : index
    %449 = vector.load %arg6[%c2_234, %c7_235, %c0_236] : memref<10x24x256xf32, #tpu.memory_space<vmem>>, vector<8x8x256xf32>
    %450 = vector.extract_strided_slice %412 {offsets = [6, 0], sizes = [1, 256], strides = [1, 1]} : vector<9x256xf32> to vector<1x256xf32>
    %451 = vector.shape_cast %450 : vector<1x256xf32> to vector<256xf32>
    %452 = vector.shape_cast %451 : vector<256xf32> to vector<1x1x256xf32>
    %453 = vector.broadcast %452 : vector<1x1x256xf32> to vector<8x8x256xf32>
    %454 = arith.mulf %449, %453 : vector<8x8x256xf32>
    %c2_237 = arith.constant 2 : index
    %c8_238 = arith.constant 8 : index
    %c0_239 = arith.constant 0 : index
    %455 = vector.load %arg6[%c2_237, %c8_238, %c0_239] : memref<10x24x256xf32, #tpu.memory_space<vmem>>, vector<8x8x256xf32>
    %456 = vector.extract_strided_slice %412 {offsets = [7, 0], sizes = [1, 256], strides = [1, 1]} : vector<9x256xf32> to vector<1x256xf32>
    %457 = vector.shape_cast %456 : vector<1x256xf32> to vector<256xf32>
    %458 = vector.shape_cast %457 : vector<256xf32> to vector<1x1x256xf32>
    %459 = vector.broadcast %458 : vector<1x1x256xf32> to vector<8x8x256xf32>
    %460 = arith.mulf %455, %459 : vector<8x8x256xf32>
    %c2_240 = arith.constant 2 : index
    %c9_241 = arith.constant 9 : index
    %c0_242 = arith.constant 0 : index
    %461 = vector.load %arg6[%c2_240, %c9_241, %c0_242] : memref<10x24x256xf32, #tpu.memory_space<vmem>>, vector<8x8x256xf32>
    %462 = vector.extract_strided_slice %412 {offsets = [8, 0], sizes = [1, 256], strides = [1, 1]} : vector<9x256xf32> to vector<1x256xf32>
    %463 = vector.shape_cast %462 : vector<1x256xf32> to vector<256xf32>
    %464 = vector.shape_cast %463 : vector<256xf32> to vector<1x1x256xf32>
    %465 = vector.broadcast %464 : vector<1x1x256xf32> to vector<8x8x256xf32>
    %466 = arith.mulf %461, %465 : vector<8x8x256xf32>
    %467 = arith.addf %418, %424 : vector<8x8x256xf32>
    %468 = arith.addf %430, %436 : vector<8x8x256xf32>
    %469 = arith.addf %442, %448 : vector<8x8x256xf32>
    %470 = arith.addf %454, %460 : vector<8x8x256xf32>
    %471 = arith.addf %467, %468 : vector<8x8x256xf32>
    %472 = arith.addf %469, %470 : vector<8x8x256xf32>
    %473 = arith.addf %471, %472 : vector<8x8x256xf32>
    %474 = arith.addf %473, %466 : vector<8x8x256xf32>
    %475 = vector.shape_cast %474 : vector<8x8x256xf32> to vector<64x256xf32>
    %476 = arith.truncf %475 : vector<64x256xf32> to vector<64x256xbf16>
    %c5_243 = arith.constant 5 : index
    %c0_244 = arith.constant 0 : index
    %c0_245 = arith.constant 0 : index
    %477 = vector.load %arg3[%c5_243, %c0_244, %c0_245] : memref<6x256x256xbf16, #tpu.memory_space<vmem>>, vector<1x256x256xbf16>
    %478 = vector.shape_cast %477 : vector<1x256x256xbf16> to vector<256x256xbf16>
    %cst_246 = arith.constant dense<0.000000e+00> : vector<64x256xf32>
    %479 = tpu.matmul %476, %478, %cst_246 {dimension_numbers = #tpu.dot_dimension_numbers<[1], [0], [0], [1], [0, 0, 1, 1], [], []>} : vector<64x256xbf16>, vector<256x256xbf16>, vector<64x256xf32> -> vector<64x256xf32>
    %c5_247 = arith.constant 5 : index
    %c0_248 = arith.constant 0 : index
    %c0_249 = arith.constant 0 : index
    %480 = vector.load %arg4[%c5_247, %c0_248, %c0_249] : memref<6x1x256xf32, #tpu.memory_space<vmem>>, vector<1x1x256xf32>
    %481 = vector.shape_cast %480 : vector<1x1x256xf32> to vector<1x256xf32>
    %482 = vector.broadcast %481 : vector<1x256xf32> to vector<64x256xf32>
    %483 = arith.addf %479, %482 : vector<64x256xf32>
    %484 = vector.shape_cast %483 : vector<64x256xf32> to vector<8x8x256xf32>
    %485 = arith.addf %244, %484 : vector<8x8x256xf32>
    %c0_250 = arith.constant 0 : index
    %c0_251 = arith.constant 0 : index
    %c0_252 = arith.constant 0 : index
    %c0_253 = arith.constant 0 : index
    %486 = vector.load %arg5[%c0_250, %c0_251, %c0_252, %c0_253] : memref<1x8x8x256xf32, #tpu.memory_space<vmem>>, vector<1x8x8x256xf32>
    %487 = vector.shape_cast %486 : vector<1x8x8x256xf32> to vector<8x8x256xf32>
    %488 = vector.shape_cast %485 : vector<8x8x256xf32> to vector<1x8x8x256xf32>
    tpu.vector_store %arg5[%c0_250, %c0_251, %c0_252, %c0_253], %488 {strides = array<i32>} : memref<1x8x8x256xf32, #tpu.memory_space<vmem>>, vector<1x8x8x256xf32>,
    return
  }
  func.func @transform_0(%arg0: i32) -> (i32, i32, i32, i32) {
    %c0_i32 = arith.constant 0 : i32
    %c0_i32_0 = arith.constant 0 : i32
    %c0_i32_1 = arith.constant 0 : i32
    %c0_i32_2 = arith.constant 0 : i32
    return %arg0, %c0_i32, %c0_i32_0, %c0_i32_1 : i32, i32, i32, i32
  }
  func.func @transform_1(%arg0: i32) -> (i32, i32, i32) {
    %c0_i32 = arith.constant 0 : i32
    %c0_i32_0 = arith.constant 0 : i32
    %c0_i32_1 = arith.constant 0 : i32
    %c0_i32_2 = arith.constant 0 : i32
    return %c0_i32, %c0_i32_0, %c0_i32_1 : i32, i32, i32
  }
  func.func @transform_2(%arg0: i32) -> (i32, i32, i32) {
    %c0_i32 = arith.constant 0 : i32
    %c0_i32_0 = arith.constant 0 : i32
    %c0_i32_1 = arith.constant 0 : i32
    %c0_i32_2 = arith.constant 0 : i32
    return %c0_i32, %c0_i32_0, %c0_i32_1 : i32, i32, i32
  }
  func.func @transform_3(%arg0: i32) -> (i32, i32, i32) {
    %c0_i32 = arith.constant 0 : i32
    %c0_i32_0 = arith.constant 0 : i32
    %c0_i32_1 = arith.constant 0 : i32
    %c0_i32_2 = arith.constant 0 : i32
    return %c0_i32, %c0_i32_0, %c0_i32_1 : i32, i32, i32
  }
  func.func @transform_4(%arg0: i32) -> (i32, i32, i32, i32) {
    %c0_i32 = arith.constant 0 : i32
    %c0_i32_0 = arith.constant 0 : i32
    %c0_i32_1 = arith.constant 0 : i32
    %c0_i32_2 = arith.constant 0 : i32
    return %arg0, %c0_i32, %c0_i32_0, %c0_i32_1 : i32, i32, i32, i32
  }
}

</mosaic_0001>

<llo_original>
// kernel: middle_block_forward.1
$region0: #{middle_block_forward.1}
  #allocation0 [shape = 'u32[]', space=smem, size = 0x4, offset = 0x4, fixed_abs, tag = 'smem constant byte address 0x4 - core index']
  #allocation1 [shape = 'u32[72,128]{1,0:T(1,128)}', space=vmem, size = 0x9000, scoped, tag = 'internal scratch']
  #allocation2 [shape = 'f32[10,24,256]{2,1,0:T(8,128)}', space=vmem, size = 0x3c000, scoped, tag = 'scratch operand']
  %s0 = inlined_call_operand.vmem [shape: f32[2,8,8,256], index: 0, kind: input, shape index: {}]
  %s1 = inlined_call_operand.vmem [shape: f32[6,9,256], index: 1, kind: input, shape index: {}]
  %s2 = inlined_call_operand.hbm [shape: bf16[6,256,256], index: 2, kind: input, shape index: {}]
  %s3 = inlined_call_operand.vmem [shape: f32[6,1,256], index: 3, kind: input, shape index: {}]
  %s4 = inlined_call_operand.hbm [shape: f32[2,8,8,256], index: 4, kind: output, shape index: {}]
  %s5 = sld [smem:[#allocation0]]
  $region53: #{middle_block_forward.1} parent=0
    _
  %s7 = ssub.s32 1, %s5
  %s8 = scalar_select 0, %s7, %s5
  $region1: #{middle_block_forward.1} parent=0
    #allocation3 [shape = 'u8[786432]{0}', space=vmem, size = 0xc0000, scoped, tag = 'input window, operand 2, single buffered']
    #allocation4 [shape = 's32[2]{0}', space=sflag, size = 0x8, scoped, tag = 'scoped memory for middle_block_forward.1']
    #allocation5 [shape = 's32[2]{0}', space=sflag, size = 0x8, scoped, tag = 'scoped memory for middle_block_forward.1']
    #allocation6 [shape = 'u8[131072]{0}', space=vmem, size = 0x20000, scoped, tag = 'output window, operand 0']
    %9 = vsyncpa [#allocation4], 0
    %10 = vsyncpa [#allocation5], 0
    %s11 = scalar_lea.sflag [#allocation5], 1
    %12 = vsyncpa %s11, 0
    loop: start=0, step=1, limit=4
    $region2: #{middle_block_forward.1} parent=1 // loop_pre_header
      _
    $region3: #{middle_block_forward.1} parent=1 // loop_header
      %s14 = sphi 0, %s18
      %p15 = scmp.ge.s32.totalorder %s14, 4
      %s24 = sphi 0, %s26
      %s27 = sphi 0, %s24
      %s28 = sphi 0, %s27
      %s44 = sphi 0, %s28
      %s48 = sphi 0, %s48
      %s50 = sphi 0, %s48
      %s51 = sphi 0, %s50
      %s65 = sphi 0, %s51
      %s69 = sphi 0, %s69
      %s71 = sphi 0, %s69
      %s72 = sphi 0, %s71
      %s86 = sphi 0, %s72
      %s90 = sphi 0, %s90
      %s92 = sphi 0, %s90
      %s93 = sphi 0, %s92
      %s107 = sphi 0, %s93
      %s113 = sphi 0, %s115
      %s116 = sphi 0, %s113
      %s117 = sphi 0, %s116
      %s133 = sphi 0, %s117
    $region4: #{middle_block_forward.1} parent=1 // loop_header_branch
      %17 = sbr.rel (%p15) target = $region8
    $region5: #{middle_block_forward.1} parent=1 // loop_body
      %s19 = ssub.s32 %s14, 1
      %s20 = ssub.s32 %s14, 2
      %s21 = sadd.s32 %s14, 1
      %s22 = ssub.s32 %s14, %s21
      %p23 = scmp.eq.s32.totalorder %s22, 0
      %s25 = sadd.s32 %s24, 1
      %s26 = scalar_select %p23, %s24, %s25
      %p29 = pneg %p23
      %p30 = scmp.eq.s32.totalorder %s14, 1
      %p31 = por %p29, %p30
      %p32 = scmp.ne.s32.totalorder %s24, %s27
      %p33 = scmp.eq.s32.totalorder %s14, 0
      %p34 = por %p32, %p33
      %p35 = scmp.ne.s32.totalorder %s24, %s27
      %p36 = scmp.eq.s32.totalorder %s19, 1
      %p37 = por %p35, %p36
      %p38 = scmp.ne.s32.totalorder %s27, %s28
      %p39 = scmp.eq.s32.totalorder %s19, 0
      %p40 = por %p38, %p39
      %p41 = scmp.ne.s32.totalorder %s27, %s28
      %p42 = scmp.eq.s32.totalorder %s20, 1
      %p43 = por %p41, %p42
      %p45 = scmp.ne.s32.totalorder %s28, %s44
      %p46 = scmp.eq.s32.totalorder %s20, 0
      %p47 = por %p45, %p46
      %s49 = sadd.s32 %s48, 1
      %p52 = scmp.eq.s32.totalorder %s14, 1
      %p53 = scmp.ne.s32.totalorder %s48, %s50
      %p54 = scmp.eq.s32.totalorder %s14, 0
      %p55 = por %p53, %p54
      %p56 = scmp.ne.s32.totalorder %s48, %s50
      %p57 = scmp.eq.s32.totalorder %s19, 1
      %p58 = por %p56, %p57
      %p59 = scmp.ne.s32.totalorder %s50, %s51
      %p60 = scmp.eq.s32.totalorder %s19, 0
      %p61 = por %p59, %p60
      %p62 = scmp.ne.s32.totalorder %s50, %s51
      %p63 = scmp.eq.s32.totalorder %s20, 1
      %p64 = por %p62, %p63
      %p66 = scmp.ne.s32.totalorder %s51, %s65
      %p67 = scmp.eq.s32.totalorder %s20, 0
      %p68 = por %p66, %p67
      %s70 = sadd.s32 %s69, 1
      %p73 = scmp.eq.s32.totalorder %s14, 1
      %p74 = scmp.ne.s32.totalorder %s69, %s71
      %p75 = scmp.eq.s32.totalorder %s14, 0
      %p76 = por %p74, %p75
      %p77 = scmp.ne.s32.totalorder %s69, %s71
      %p78 = scmp.eq.s32.totalorder %s19, 1
      %p79 = por %p77, %p78
      %p80 = scmp.ne.s32.totalorder %s71, %s72
      %p81 = scmp.eq.s32.totalorder %s19, 0
      %p82 = por %p80, %p81
      %p83 = scmp.ne.s32.totalorder %s71, %s72
      %p84 = scmp.eq.s32.totalorder %s20, 1
      %p85 = por %p83, %p84
      %p87 = scmp.ne.s32.totalorder %s72, %s86
      %p88 = scmp.eq.s32.totalorder %s20, 0
      %p89 = por %p87, %p88
      %s91 = sadd.s32 %s90, 1
      %p94 = scmp.eq.s32.totalorder %s14, 1
      %p95 = scmp.ne.s32.totalorder %s90, %s92
      %p96 = scmp.eq.s32.totalorder %s14, 0
      %p97 = por %p95, %p96
      %p98 = scmp.ne.s32.totalorder %s90, %s92
      %p99 = scmp.eq.s32.totalorder %s19, 1
      %p100 = por %p98, %p99
      %p101 = scmp.ne.s32.totalorder %s92, %s93
      %p102 = scmp.eq.s32.totalorder %s19, 0
      %p103 = por %p101, %p102
      %p104 = scmp.ne.s32.totalorder %s92, %s93
      %p105 = scmp.eq.s32.totalorder %s20, 1
      %p106 = por %p104, %p105
      %p108 = scmp.ne.s32.totalorder %s93, %s107
      %p109 = scmp.eq.s32.totalorder %s20, 0
      %p110 = por %p108, %p109
      %s111 = ssub.s32 %s14, %s21
      %p112 = scmp.eq.s32.totalorder %s111, 0
      %s114 = sadd.s32 %s113, 1
      %s115 = scalar_select %p112, %s113, %s114
      %p118 = pneg %p112
      %p119 = scmp.eq.s32.totalorder %s14, 1
      %p120 = por %p118, %p119
      %p121 = scmp.ne.s32.totalorder %s113, %s116
      %p122 = scmp.eq.s32.totalorder %s14, 0
      %p123 = por %p121, %p122
      %p124 = scmp.ne.s32.totalorder %s113, %s116
      %p125 = scmp.eq.s32.totalorder %s19, 1
      %p126 = por %p124, %p125
      %p127 = scmp.ne.s32.totalorder %s116, %s117
      %p128 = scmp.eq.s32.totalorder %s19, 0
      %p129 = por %p127, %p128
      %p130 = scmp.ne.s32.totalorder %s116, %s117
      %p131 = scmp.eq.s32.totalorder %s20, 1
      %p132 = por %p130, %p131
      %p134 = scmp.ne.s32.totalorder %s117, %s133
      %p135 = scmp.eq.s32.totalorder %s20, 0
      %p136 = por %p134, %p135
      %p137 = scmp.le.s32.totalorder 1, %s14
      %p138 = scmp.lt.s32.totalorder %s14, 3
      %p139 = pnand %p137, %p138
      %p140 = pneg %p139
      // Predicated region
      $region9: #{middle_block_forward.1} parent=5 // pred_check
        _
      $region10: #{middle_block_forward.1} parent=5 // pred_check_branch
        %142 = sbr.rel (%p139) target = $region12
      $region11: #{middle_block_forward.1} parent=5 // pred_region
        %s143 = ssub.s32 %s14, 1
        // Predicated region
        $region13: #{middle_block_forward.1} parent=11 // pred_check
          %p144 = pneg %p61
        $region14: #{middle_block_forward.1} parent=11 // pred_check_branch
          %146 = sbr.rel (%p144) target = $region16
        $region15: #{middle_block_forward.1} parent=11 // pred_region
          _
        $region16: #{middle_block_forward.1} parent=11 // pred_fallthru
          _
        // Predicated region
        $region17: #{middle_block_forward.1} parent=11 // pred_check
          %p147 = pneg %p82
        $region18: #{middle_block_forward.1} parent=11 // pred_check_branch
          %149 = sbr.rel (%p147) target = $region20
        $region19: #{middle_block_forward.1} parent=11 // pred_region
          %151 = vsyncadd [#allocation4], 0
          %s152 = sshll.u32 %s2, 4
          %s153 = int_to_ptr.hbm [resolvable:$true] %s152
          %s154 = sshll.u32 [#allocation3], 4
          %s155 = int_to_ptr.vmem [resolvable:$true] %s154
          %160 = dma.hbm_to_vmem [thread:$0]  %s153, 24576, %s155, [#allocation4], 128, 128, 8
        $region20: #{middle_block_forward.1} parent=11 // pred_fallthru
          _
        // Predicated region
        $region21: #{middle_block_forward.1} parent=11 // pred_check
          %p161 = pneg %p103
        $region22: #{middle_block_forward.1} parent=11 // pred_check_branch
          %163 = sbr.rel (%p161) target = $region24
        $region23: #{middle_block_forward.1} parent=11 // pred_region
          _
        $region24: #{middle_block_forward.1} parent=11 // pred_fallthru
          _
      $region12: #{middle_block_forward.1} parent=5 // pred_fallthru
        _
      %p164 = scmp.lt.s32.totalorder %s14, 2
      // Predicated region
      $region25: #{middle_block_forward.1} parent=5 // pred_check
        %p165 = pneg %p164
      $region26: #{middle_block_forward.1} parent=5 // pred_check_branch
        %167 = sbr.rel (%p165) target = $region28
      $region27: #{middle_block_forward.1} parent=5 // pred_region
        // Predicated region
        $region29: #{middle_block_forward.1} parent=27 // pred_check
          %p168 = pneg %p34
        $region30: #{middle_block_forward.1} parent=27 // pred_check_branch
          %170 = sbr.rel (%p168) target = $region32
        $region31: #{middle_block_forward.1} parent=27 // pred_region
          %p171 = scmp.lt.s32.totalorder %s14, 1
          %s172 = scalar_select %p171, %s14, 1
          %s173 = smul.addr %s172, 16
          %s174 = smul.addr %s173, 8
          %s175 = scalar_lea.vmem %s0, %s174
        $region32: #{middle_block_forward.1} parent=27 // pred_fallthru
          _
      $region28: #{middle_block_forward.1} parent=5 // pred_fallthru
        _
      %p176 = scmp.le.s32.totalorder 1, %s14
      %p177 = scmp.lt.s32.totalorder %s14, 3
      %p178 = pnand %p176, %p177
      %p179 = pneg %p178
      // Predicated region
      $region33: #{middle_block_forward.1} parent=5 // pred_check
        _
      $region34: #{middle_block_forward.1} parent=5 // pred_check_branch
        %181 = sbr.rel (%p178) target = $region36
      $region35: #{middle_block_forward.1} parent=5 // pred_region
        %s182 = ssub.s32 %s14, 1
        // Predicated region
        $region37: #{middle_block_forward.1} parent=35 // pred_check
          %p183 = pneg %p82
        $region38: #{middle_block_forward.1} parent=35 // pred_check_branch
          %185 = sbr.rel (%p183) target = $region40
        $region39: #{middle_block_forward.1} parent=35 // pred_region
          %187 = dma.done [#allocation4], 24576
        $region40: #{middle_block_forward.1} parent=35 // pred_fallthru
          _
        %p188 = scmp.lt.s32.totalorder %s19, 1
        %s189 = scalar_select %p188, %s19, 1
        %s190 = smul.addr %s189, 16
        %s191 = smul.addr %s190, 8
        %s192 = scalar_lea.vmem %s0, %s191
        %p193 = pneg %p40
        %p194 = pneg %p37
        %p195 = pneg %p61
        %p196 = pneg %p58
        %p197 = pneg %p82
        %p198 = pneg %p79
        %p199 = pneg %p103
        %p200 = pneg %p100
        %p201 = pneg %p129
        %p202 = pneg %p126
        %s203 = sand.u32 %s116, 1
        %s204 = scalar_lea.sflag [#allocation5], %s203
        %s205 = sand.u32 %s116, 1
        %s206 = smul.addr %s205, 128
        %s207 = scalar_lea.vmem [#allocation6], %s206
        %p208 = scmp.lt.s32.totalorder %s19, 1
        %s209 = scalar_select %p208, %s19, 1
        %s210 = smul.addr %s209, 16
        %s211 = smul.addr %s210, 8
        %s212 = scalar_lea.vmem %s0, %s211
        %213 = vst [vmem:[#allocation2] sm:$0xff] 0.0
        %214 = vst [vmem:[#allocation2 + $0x8] sm:$0xff] 0.0
        %215 = vst [vmem:[#allocation2 + $0x10] sm:$0xff] 0.0
        %216 = vst [vmem:[#allocation2 + $0x18] sm:$0xff] 0.0
        %217 = vst [vmem:[#allocation2 + $0x20] sm:$0xff] 0.0
        %218 = vst [vmem:[#allocation2 + $0x28] sm:$0xff] 0.0
        %219 = vst [vmem:[#allocation2 + $0x30] sm:$0xff] 0.0
        %220 = vst [vmem:[#allocation2 + $0x38] sm:$0xff] 0.0
        %221 = vst [vmem:[#allocation2 + $0x40] sm:$0xff] 0.0
        %222 = vst [vmem:[#allocation2 + $0x48] sm:$0xff] 0.0
        %223 = vst [vmem:[#allocation2 + $0x50] sm:$0xff] 0.0
        %224 = vst [vmem:[#allocation2 + $0x58] sm:$0xff] 0.0
        %225 = vst [vmem:[#allocation2 + $0x60] sm:$0xff] 0.0
        %226 = vst [vmem:[#allocation2 + $0x68] sm:$0xff] 0.0
        %227 = vst [vmem:[#allocation2 + $0x70] sm:$0xff] 0.0
        %228 = vst [vmem:[#allocation2 + $0x78] sm:$0xff] 0.0
        %229 = vst [vmem:[#allocation2 + $0x80] sm:$0xff] 0.0
        %230 = vst [vmem:[#allocation2 + $0x88] sm:$0xff] 0.0
        %231 = vst [vmem:[#allocation2 + $0x90] sm:$0xff] 0.0
        %232 = vst [vmem:[#allocation2 + $0x98] sm:$0xff] 0.0
        %233 = vst [vmem:[#allocation2 + $0xa0] sm:$0xff] 0.0
        %234 = vst [vmem:[#allocation2 + $0xa8] sm:$0xff] 0.0
        %235 = vst [vmem:[#allocation2 + $0xb0] sm:$0xff] 0.0
        %236 = vst [vmem:[#allocation2 + $0xb8] sm:$0xff] 0.0
        %237 = vst [vmem:[#allocation2 + $0xc0] sm:$0xff] 0.0
        %238 = vst [vmem:[#allocation2 + $0xc8] sm:$0xff] 0.0
        %239 = vst [vmem:[#allocation2 + $0xd0] sm:$0xff] 0.0
        %240 = vst [vmem:[#allocation2 + $0xd8] sm:$0xff] 0.0
        %241 = vst [vmem:[#allocation2 + $0xe0] sm:$0xff] 0.0
        %242 = vst [vmem:[#allocation2 + $0xe8] sm:$0xff] 0.0
        %243 = vst [vmem:[#allocation2 + $0xf0] sm:$0xff] 0.0
        %244 = vst [vmem:[#allocation2 + $0xf8] sm:$0xff] 0.0
        %245 = vst [vmem:[#allocation2 + $0x100] sm:$0xff] 0.0
        %246 = vst [vmem:[#allocation2 + $0x108] sm:$0xff] 0.0
        %247 = vst [vmem:[#allocation2 + $0x110] sm:$0xff] 0.0
        %248 = vst [vmem:[#allocation2 + $0x118] sm:$0xff] 0.0
        %249 = vst [vmem:[#allocation2 + $0x120] sm:$0xff] 0.0
        %250 = vst [vmem:[#allocation2 + $0x128] sm:$0xff] 0.0
        %251 = vst [vmem:[#allocation2 + $0x130] sm:$0xff] 0.0
        %252 = vst [vmem:[#allocation2 + $0x138] sm:$0xff] 0.0
        %253 = vst [vmem:[#allocation2 + $0x140] sm:$0xff] 0.0
        %254 = vst [vmem:[#allocation2 + $0x148] sm:$0xff] 0.0
        %255 = vst [vmem:[#allocation2 + $0x150] sm:$0xff] 0.0
        %256 = vst [vmem:[#allocation2 + $0x158] sm:$0xff] 0.0
        %257 = vst [vmem:[#allocation2 + $0x160] sm:$0xff] 0.0
        %258 = vst [vmem:[#allocation2 + $0x168] sm:$0xff] 0.0
        %259 = vst [vmem:[#allocation2 + $0x170] sm:$0xff] 0.0
        %260 = vst [vmem:[#allocation2 + $0x178] sm:$0xff] 0.0
        %261 = vst [vmem:[#allocation2 + $0x180] sm:$0xff] 0.0
        %262 = vst [vmem:[#allocation2 + $0x188] sm:$0xff] 0.0
        %263 = vst [vmem:[#allocation2 + $0x190] sm:$0xff] 0.0
        %264 = vst [vmem:[#allocation2 + $0x198] sm:$0xff] 0.0
        %265 = vst [vmem:[#allocation2 + $0x1a0] sm:$0xff] 0.0
        %266 = vst [vmem:[#allocation2 + $0x1a8] sm:$0xff] 0.0
        %267 = vst [vmem:[#allocation2 + $0x1b0] sm:$0xff] 0.0
        %268 = vst [vmem:[#allocation2 + $0x1b8] sm:$0xff] 0.0
        %269 = vst [vmem:[#allocation2 + $0x1c0] sm:$0xff] 0.0
        %270 = vst [vmem:[#allocation2 + $0x1c8] sm:$0xff] 0.0
        %271 = vst [vmem:[#allocation2 + $0x1d0] sm:$0xff] 0.0
        %272 = vst [vmem:[#allocation2 + $0x1d8] sm:$0xff] 0.0
        %v273 = vld [vmem:[%s212] sm:$0xff]
        %v274 = vld [vmem:[%s212 + $0x8] sm:$0xff]
        %v275 = vld [vmem:[%s212 + $0x10] sm:$0xff]
        %v276 = vld [vmem:[%s212 + $0x18] sm:$0xff]
        %v277 = vld [vmem:[%s212 + $0x20] sm:$0xff]
        %v278 = vld [vmem:[%s212 + $0x28] sm:$0xff]
        %v279 = vld [vmem:[%s212 + $0x30] sm:$0xff]
        %v280 = vld [vmem:[%s212 + $0x38] sm:$0xff]
        %v281 = vld [vmem:[%s212 + $0x40] sm:$0xff]
        %v282 = vld [vmem:[%s212 + $0x48] sm:$0xff]
        %v283 = vld [vmem:[%s212 + $0x50] sm:$0xff]
        %v284 = vld [vmem:[%s212 + $0x58] sm:$0xff]
        %v285 = vld [vmem:[%s212 + $0x60] sm:$0xff]
        %v286 = vld [vmem:[%s212 + $0x68] sm:$0xff]
        %v287 = vld [vmem:[%s212 + $0x70] sm:$0xff]
        %v288 = vld [vmem:[%s212 + $0x78] sm:$0xff]
        %vm289 = vcmp.ge.f32.partialorder %v273, 0.0
        %vm290 = vcmp.ge.f32.partialorder %v274, 0.0
        %vm291 = vcmp.ge.f32.partialorder %v275, 0.0
        %vm292 = vcmp.ge.f32.partialorder %v276, 0.0
        %vm293 = vcmp.ge.f32.partialorder %v277, 0.0
        %vm294 = vcmp.ge.f32.partialorder %v278, 0.0
        %vm295 = vcmp.ge.f32.partialorder %v279, 0.0
        %vm296 = vcmp.ge.f32.partialorder %v280, 0.0
        %vm297 = vcmp.ge.f32.partialorder %v281, 0.0
        %vm298 = vcmp.ge.f32.partialorder %v282, 0.0
        %vm299 = vcmp.ge.f32.partialorder %v283, 0.0
        %vm300 = vcmp.ge.f32.partialorder %v284, 0.0
        %vm301 = vcmp.ge.f32.partialorder %v285, 0.0
        %vm302 = vcmp.ge.f32.partialorder %v286, 0.0
        %vm303 = vcmp.ge.f32.partialorder %v287, 0.0
        %vm304 = vcmp.ge.f32.partialorder %v288, 0.0
        %v305 = vmul.f32 %v273, 0.2
        %v306 = vmul.f32 %v274, 0.2
        %v307 = vmul.f32 %v275, 0.2
        %v308 = vmul.f32 %v276, 0.2
        %v309 = vmul.f32 %v277, 0.2
        %v310 = vmul.f32 %v278, 0.2
        %v311 = vmul.f32 %v279, 0.2
        %v312 = vmul.f32 %v280, 0.2
        %v313 = vmul.f32 %v281, 0.2
        %v314 = vmul.f32 %v282, 0.2
        %v315 = vmul.f32 %v283, 0.2
        %v316 = vmul.f32 %v284, 0.2
        %v317 = vmul.f32 %v285, 0.2
        %v318 = vmul.f32 %v286, 0.2
        %v319 = vmul.f32 %v287, 0.2
        %v320 = vmul.f32 %v288, 0.2
        %v321 = vsel %vm289, %v273, %v305
        %v322 = vsel %vm290, %v274, %v306
        %v323 = vsel %vm291, %v275, %v307
        %v324 = vsel %vm292, %v276, %v308
        %v325 = vsel %vm293, %v277, %v309
        %v326 = vsel %vm294, %v278, %v310
        %v327 = vsel %vm295, %v279, %v311
        %v328 = vsel %vm296, %v280, %v312
        %v329 = vsel %vm297, %v281, %v313
        %v330 = vsel %vm298, %v282, %v314
        %v331 = vsel %vm299, %v283, %v315
        %v332 = vsel %vm300, %v284, %v316
        %v333 = vsel %vm301, %v285, %v317
        %v334 = vsel %vm302, %v286, %v318
        %v335 = vsel %vm303, %v287, %v319
        %v336 = vsel %vm304, %v288, %v320
        %s337 = scalar_lea.vmem [#allocation2], 48
        %338 = vst [vmem:[%s337 + $0x10] sm:$0xff] %v321
        %339 = vst [vmem:[%s337 + $0x18] sm:$0xff] %v322
        %340 = vst [vmem:[%s337 + $0x40] sm:$0xff] %v323
        %341 = vst [vmem:[%s337 + $0x48] sm:$0xff] %v324
        %342 = vst [vmem:[%s337 + $0x70] sm:$0xff] %v325
        %343 = vst [vmem:[%s337 + $0x78] sm:$0xff] %v326
        %344 = vst [vmem:[%s337 + $0xa0] sm:$0xff] %v327
        %345 = vst [vmem:[%s337 + $0xa8] sm:$0xff] %v328
        %346 = vst [vmem:[%s337 + $0xd0] sm:$0xff] %v329
        %347 = vst [vmem:[%s337 + $0xd8] sm:$0xff] %v330
        %348 = vst [vmem:[%s337 + $0x100] sm:$0xff] %v331
        %349 = vst [vmem:[%s337 + $0x108] sm:$0xff] %v332
        %350 = vst [vmem:[%s337 + $0x130] sm:$0xff] %v333
        %351 = vst [vmem:[%s337 + $0x138] sm:$0xff] %v334
        %352 = vst [vmem:[%s337 + $0x160] sm:$0xff] %v335
        %353 = vst [vmem:[%s337 + $0x168] sm:$0xff] %v336
        %v354 = vld [vmem:[%s1] sm:$0xff]
        %v355 = vld [vmem:[%s1 + $0x8] sm:$0xff]
        %v356 = vld [vmem:[%s1 + $0x10] sm:$0x1]
        %v357 = vld [vmem:[%s1 + $0x18] sm:$0x1]
        %v358 = vld [vmem:[#allocation2] sm:$0x80]
        %v359 = vld [vmem:[#allocation2 + $0x8] sm:$0x80]
        %v360 = vld [vmem:[#allocation2 + $0x10] sm:$0x7f]
        %v361 = vld [vmem:[#allocation2 + $0x18] sm:$0x7f]
        %v362 = vld [vmem:[#allocation2 + $0x30] sm:$0x80]
        %v363 = vld [vmem:[#allocation2 + $0x38] sm:$0x80]
        %v364 = vld [vmem:[#allocation2 + $0x40] sm:$0x7f]
        %v365 = vld [vmem:[#allocation2 + $0x48] sm:$0x7f]
        %v366 = vld [vmem:[#allocation2 + $0x60] sm:$0x80]
        %v367 = vld [vmem:[#allocation2 + $0x68] sm:$0x80]
        %v368 = vld [vmem:[#allocation2 + $0x70] sm:$0x7f]
        %v369 = vld [vmem:[#allocation2 + $0x78] sm:$0x7f]
        %v370 = vld [vmem:[#allocation2 + $0x90] sm:$0x80]
        %v371 = vld [vmem:[#allocation2 + $0x98] sm:$0x80]
        %v372 = vld [vmem:[#allocation2 + $0xa0] sm:$0x7f]
        %v373 = vld [vmem:[#allocation2 + $0xa8] sm:$0x7f]
        %v374 = vld [vmem:[#allocation2 + $0xc0] sm:$0x80]
        %v375 = vld [vmem:[#allocation2 + $0xc8] sm:$0x80]
        %v376 = vld [vmem:[#allocation2 + $0xd0] sm:$0x7f]
        %v377 = vld [vmem:[#allocation2 + $0xd8] sm:$0x7f]
        %v378 = vld [vmem:[#allocation2 + $0xf0] sm:$0x80]
        %v379 = vld [vmem:[#allocation2 + $0xf8] sm:$0x80]
        %v380 = vld [vmem:[#allocation2 + $0x100] sm:$0x7f]
        %v381 = vld [vmem:[#allocation2 + $0x108] sm:$0x7f]
        %v382 = vld [vmem:[#allocation2 + $0x120] sm:$0x80]
        %v383 = vld [vmem:[#allocation2 + $0x128] sm:$0x80]
        %v384 = vld [vmem:[#allocation2 + $0x130] sm:$0x7f]
        %v385 = vld [vmem:[#allocation2 + $0x138] sm:$0x7f]
        %v386 = vld [vmem:[#allocation2 + $0x150] sm:$0x80]
        %v387 = vld [vmem:[#allocation2 + $0x158] sm:$0x80]
        %v388 = vld [vmem:[#allocation2 + $0x160] sm:$0x7f]
        %v389 = vld [vmem:[#allocation2 + $0x168] sm:$0x7f]
        %v390 = vperm.slane %v354, 0
        %v391 = vperm.slane %v355, 0
        %v392 = vmul.f32 %v358, %v390
        %v393 = vmul.f32 %v359, %v391
        %v394 = vmul.f32 %v360, %v390
        %v395 = vmul.f32 %v361, %v391
        %v396 = vmul.f32 %v362, %v390
        %v397 = vmul.f32 %v363, %v391
        %v398 = vmul.f32 %v364, %v390
        %v399 = vmul.f32 %v365, %v391
        %v400 = vmul.f32 %v366, %v390
        %v401 = vmul.f32 %v367, %v391
        %v402 = vmul.f32 %v368, %v390
        %v403 = vmul.f32 %v369, %v391
        %v404 = vmul.f32 %v370, %v390
        %v405 = vmul.f32 %v371, %v391
        %v406 = vmul.f32 %v372, %v390
        %v407 = vmul.f32 %v373, %v391
        %v408 = vmul.f32 %v374, %v390
        %v409 = vmul.f32 %v375, %v391
        %v410 = vmul.f32 %v376, %v390
        %v411 = vmul.f32 %v377, %v391
        %v412 = vmul.f32 %v378, %v390
        %v413 = vmul.f32 %v379, %v391
        %v414 = vmul.f32 %v380, %v390
        %v415 = vmul.f32 %v381, %v391
        %v416 = vmul.f32 %v382, %v390
        %v417 = vmul.f32 %v383, %v391
        %v418 = vmul.f32 %v384, %v390
        %v419 = vmul.f32 %v385, %v391
        %v420 = vmul.f32 %v386, %v390
        %v421 = vmul.f32 %v387, %v391
        %v422 = vmul.f32 %v388, %v390
        %v423 = vmul.f32 %v389, %v391
        %v424 = vld [vmem:[#allocation2 + $0x10] sm:$0xff]
        %v425 = vld [vmem:[#allocation2 + $0x18] sm:$0xff]
        %v426 = vld [vmem:[#allocation2 + $0x40] sm:$0xff]
        %v427 = vld [vmem:[#allocation2 + $0x48] sm:$0xff]
        %v428 = vld [vmem:[#allocation2 + $0x70] sm:$0xff]
        %v429 = vld [vmem:[#allocation2 + $0x78] sm:$0xff]
        %v430 = vld [vmem:[#allocation2 + $0xa0] sm:$0xff]
        %v431 = vld [vmem:[#allocation2 + $0xa8] sm:$0xff]
        %v432 = vld [vmem:[#allocation2 + $0xd0] sm:$0xff]
        %v433 = vld [vmem:[#allocation2 + $0xd8] sm:$0xff]
        %v434 = vld [vmem:[#allocation2 + $0x100] sm:$0xff]
        %v435 = vld [vmem:[#allocation2 + $0x108] sm:$0xff]
        %v436 = vld [vmem:[#allocation2 + $0x130] sm:$0xff]
        %v437 = vld [vmem:[#allocation2 + $0x138] sm:$0xff]
        %v438 = vld [vmem:[#allocation2 + $0x160] sm:$0xff]
        %v439 = vld [vmem:[#allocation2 + $0x168] sm:$0xff]
        %v440 = vperm.slane %v354, 1
        %v441 = vperm.slane %v355, 1
        %v442 = vmul.f32 %v424, %v440
        %v443 = vmul.f32 %v425, %v441
        %v444 = vmul.f32 %v426, %v440
        %v445 = vmul.f32 %v427, %v441
        %v446 = vmul.f32 %v428, %v440
        %v447 = vmul.f32 %v429, %v441
        %v448 = vmul.f32 %v430, %v440
        %v449 = vmul.f32 %v431, %v441
        %v450 = vmul.f32 %v432, %v440
        %v451 = vmul.f32 %v433, %v441
        %v452 = vmul.f32 %v434, %v440
        %v453 = vmul.f32 %v435, %v441
        %v454 = vmul.f32 %v436, %v440
        %v455 = vmul.f32 %v437, %v441
        %v456 = vmul.f32 %v438, %v440
        %v457 = vmul.f32 %v439, %v441
        %v458 = vld [vmem:[#allocation2 + $0x10] sm:$0xfe]
        %v459 = vld [vmem:[#allocation2 + $0x18] sm:$0xfe]
        %v460 = vld [vmem:[#allocation2 + $0x20] sm:$0x1]
        %v461 = vld [vmem:[#allocation2 + $0x28] sm:$0x1]
        %v462 = vld [vmem:[#allocation2 + $0x40] sm:$0xfe]
        %v463 = vld [vmem:[#allocation2 + $0x48] sm:$0xfe]
        %v464 = vld [vmem:[#allocation2 + $0x50] sm:$0x1]
        %v465 = vld [vmem:[#allocation2 + $0x58] sm:$0x1]
        %v466 = vld [vmem:[#allocation2 + $0x70] sm:$0xfe]
        %v467 = vld [vmem:[#allocation2 + $0x78] sm:$0xfe]
        %v468 = vld [vmem:[#allocation2 + $0x80] sm:$0x1]
        %v469 = vld [vmem:[#allocation2 + $0x88] sm:$0x1]
        %v470 = vld [vmem:[#allocation2 + $0xa0] sm:$0xfe]
        %v471 = vld [vmem:[#allocation2 + $0xa8] sm:$0xfe]
        %v472 = vld [vmem:[#allocation2 + $0xb0] sm:$0x1]
        %v473 = vld [vmem:[#allocation2 + $0xb8] sm:$0x1]
        %v474 = vld [vmem:[#allocation2 + $0xd0] sm:$0xfe]
        %v475 = vld [vmem:[#allocation2 + $0xd8] sm:$0xfe]
        %v476 = vld [vmem:[#allocation2 + $0xe0] sm:$0x1]
        %v477 = vld [vmem:[#allocation2 + $0xe8] sm:$0x1]
        %v478 = vld [vmem:[#allocation2 + $0x100] sm:$0xfe]
        %v479 = vld [vmem:[#allocation2 + $0x108] sm:$0xfe]
        %v480 = vld [vmem:[#allocation2 + $0x110] sm:$0x1]
        %v481 = vld [vmem:[#allocation2 + $0x118] sm:$0x1]
        %v482 = vld [vmem:[#allocation2 + $0x130] sm:$0xfe]
        %v483 = vld [vmem:[#allocation2 + $0x138] sm:$0xfe]
        %v484 = vld [vmem:[#allocation2 + $0x140] sm:$0x1]
        %v485 = vld [vmem:[#allocation2 + $0x148] sm:$0x1]
        %v486 = vld [vmem:[#allocation2 + $0x160] sm:$0xfe]
        %v487 = vld [vmem:[#allocation2 + $0x168] sm:$0xfe]
        %v488 = vld [vmem:[#allocation2 + $0x170] sm:$0x1]
        %v489 = vld [vmem:[#allocation2 + $0x178] sm:$0x1]
        %v490 = vperm.slane %v354, 2
        %v491 = vperm.slane %v355, 2
        %v492 = vmul.f32 %v458, %v490
        %v493 = vmul.f32 %v459, %v491
        %v494 = vmul.f32 %v460, %v490
        %v495 = vmul.f32 %v461, %v491
        %v496 = vmul.f32 %v462, %v490
        %v497 = vmul.f32 %v463, %v491
        %v498 = vmul.f32 %v464, %v490
        %v499 = vmul.f32 %v465, %v491
        %v500 = vmul.f32 %v466, %v490
        %v501 = vmul.f32 %v467, %v491
        %v502 = vmul.f32 %v468, %v490
        %v503 = vmul.f32 %v469, %v491
        %v504 = vmul.f32 %v470, %v490
        %v505 = vmul.f32 %v471, %v491
        %v506 = vmul.f32 %v472, %v490
        %v507 = vmul.f32 %v473, %v491
        %v508 = vmul.f32 %v474, %v490
        %v509 = vmul.f32 %v475, %v491
        %v510 = vmul.f32 %v476, %v490
        %v511 = vmul.f32 %v477, %v491
        %v512 = vmul.f32 %v478, %v490
        %v513 = vmul.f32 %v479, %v491
        %v514 = vmul.f32 %v480, %v490
        %v515 = vmul.f32 %v481, %v491
        %v516 = vmul.f32 %v482, %v490
        %v517 = vmul.f32 %v483, %v491
        %v518 = vmul.f32 %v484, %v490
        %v519 = vmul.f32 %v485, %v491
        %v520 = vmul.f32 %v486, %v490
        %v521 = vmul.f32 %v487, %v491
        %v522 = vmul.f32 %v488, %v490
        %v523 = vmul.f32 %v489, %v491
        %v524 = vld [vmem:[%s337] sm:$0x80]
        %v525 = vld [vmem:[%s337 + $0x8] sm:$0x80]
        %v526 = vld [vmem:[%s337 + $0x10] sm:$0x7f]
        %v527 = vld [vmem:[%s337 + $0x18] sm:$0x7f]
        %v528 = vld [vmem:[%s337 + $0x30] sm:$0x80]
        %v529 = vld [vmem:[%s337 + $0x38] sm:$0x80]
        %v530 = vld [vmem:[%s337 + $0x40] sm:$0x7f]
        %v531 = vld [vmem:[%s337 + $0x48] sm:$0x7f]
        %v532 = vld [vmem:[%s337 + $0x60] sm:$0x80]
        %v533 = vld [vmem:[%s337 + $0x68] sm:$0x80]
        %v534 = vld [vmem:[%s337 + $0x70] sm:$0x7f]
        %v535 = vld [vmem:[%s337 + $0x78] sm:$0x7f]
        %v536 = vld [vmem:[%s337 + $0x90] sm:$0x80]
        %v537 = vld [vmem:[%s337 + $0x98] sm:$0x80]
        %v538 = vld [vmem:[%s337 + $0xa0] sm:$0x7f]
        %v539 = vld [vmem:[%s337 + $0xa8] sm:$0x7f]
        %v540 = vld [vmem:[%s337 + $0xc0] sm:$0x80]
        %v541 = vld [vmem:[%s337 + $0xc8] sm:$0x80]
        %v542 = vld [vmem:[%s337 + $0xd0] sm:$0x7f]
        %v543 = vld [vmem:[%s337 + $0xd8] sm:$0x7f]
        %v544 = vld [vmem:[%s337 + $0xf0] sm:$0x80]
        %v545 = vld [vmem:[%s337 + $0xf8] sm:$0x80]
        %v546 = vld [vmem:[%s337 + $0x100] sm:$0x7f]
        %v547 = vld [vmem:[%s337 + $0x108] sm:$0x7f]
        %v548 = vld [vmem:[%s337 + $0x120] sm:$0x80]
        %v549 = vld [vmem:[%s337 + $0x128] sm:$0x80]
        %v550 = vld [vmem:[%s337 + $0x130] sm:$0x7f]
        %v551 = vld [vmem:[%s337 + $0x138] sm:$0x7f]
        %v552 = vld [vmem:[%s337 + $0x150] sm:$0x80]
        %v553 = vld [vmem:[%s337 + $0x158] sm:$0x80]
        %v554 = vld [vmem:[%s337 + $0x160] sm:$0x7f]
        %v555 = vld [vmem:[%s337 + $0x168] sm:$0x7f]
        %v556 = vperm.slane %v354, 3
        %v557 = vperm.slane %v355, 3
        %v558 = vmul.f32 %v524, %v556
        %v559 = vmul.f32 %v525, %v557
        %v560 = vmul.f32 %v526, %v556
        %v561 = vmul.f32 %v527, %v557
        %v562 = vmul.f32 %v528, %v556
        %v563 = vmul.f32 %v529, %v557
        %v564 = vmul.f32 %v530, %v556
        %v565 = vmul.f32 %v531, %v557
        %v566 = vmul.f32 %v532, %v556
        %v567 = vmul.f32 %v533, %v557
        %v568 = vmul.f32 %v534, %v556
        %v569 = vmul.f32 %v535, %v557
        %v570 = vmul.f32 %v536, %v556
        %v571 = vmul.f32 %v537, %v557
        %v572 = vmul.f32 %v538, %v556
        %v573 = vmul.f32 %v539, %v557
        %v574 = vmul.f32 %v540, %v556
        %v575 = vmul.f32 %v541, %v557
        %v576 = vmul.f32 %v542, %v556
        %v577 = vmul.f32 %v543, %v557
        %v578 = vmul.f32 %v544, %v556
        %v579 = vmul.f32 %v545, %v557
        %v580 = vmul.f32 %v546, %v556
        %v581 = vmul.f32 %v547, %v557
        %v582 = vmul.f32 %v548, %v556
        %v583 = vmul.f32 %v549, %v557
        %v584 = vmul.f32 %v550, %v556
        %v585 = vmul.f32 %v551, %v557
        %v586 = vmul.f32 %v552, %v556
        %v587 = vmul.f32 %v553, %v557
        %v588 = vmul.f32 %v554, %v556
        %v589 = vmul.f32 %v555, %v557
        %v590 = vld [vmem:[%s337 + $0x10] sm:$0xff]
        %v591 = vld [vmem:[%s337 + $0x18] sm:$0xff]
        %v592 = vld [vmem:[%s337 + $0x40] sm:$0xff]
        %v593 = vld [vmem:[%s337 + $0x48] sm:$0xff]
        %v594 = vld [vmem:[%s337 + $0x70] sm:$0xff]
        %v595 = vld [vmem:[%s337 + $0x78] sm:$0xff]
        %v596 = vld [vmem:[%s337 + $0xa0] sm:$0xff]
        %v597 = vld [vmem:[%s337 + $0xa8] sm:$0xff]
        %v598 = vld [vmem:[%s337 + $0xd0] sm:$0xff]
        %v599 = vld [vmem:[%s337 + $0xd8] sm:$0xff]
        %v600 = vld [vmem:[%s337 + $0x100] sm:$0xff]
        %v601 = vld [vmem:[%s337 + $0x108] sm:$0xff]
        %v602 = vld [vmem:[%s337 + $0x130] sm:$0xff]
        %v603 = vld [vmem:[%s337 + $0x138] sm:$0xff]
        %v604 = vld [vmem:[%s337 + $0x160] sm:$0xff]
        %v605 = vld [vmem:[%s337 + $0x168] sm:$0xff]
        %v606 = vperm.slane %v354, 4
        %v607 = vperm.slane %v355, 4
        %v608 = vmul.f32 %v590, %v606
        %v609 = vmul.f32 %v591, %v607
        %v610 = vmul.f32 %v592, %v606
        %v611 = vmul.f32 %v593, %v607
        %v612 = vmul.f32 %v594, %v606
        %v613 = vmul.f32 %v595, %v607
        %v614 = vmul.f32 %v596, %v606
        %v615 = vmul.f32 %v597, %v607
        %v616 = vmul.f32 %v598, %v606
        %v617 = vmul.f32 %v599, %v607
        %v618 = vmul.f32 %v600, %v606
        %v619 = vmul.f32 %v601, %v607
        %v620 = vmul.f32 %v602, %v606
        %v621 = vmul.f32 %v603, %v607
        %v622 = vmul.f32 %v604, %v606
        %v623 = vmul.f32 %v605, %v607
        %v624 = vld [vmem:[%s337 + $0x10] sm:$0xfe]
        %v625 = vld [vmem:[%s337 + $0x18] sm:$0xfe]
        %v626 = vld [vmem:[%s337 + $0x20] sm:$0x1]
        %v627 = vld [vmem:[%s337 + $0x28] sm:$0x1]
        %v628 = vld [vmem:[%s337 + $0x40] sm:$0xfe]
        %v629 = vld [vmem:[%s337 + $0x48] sm:$0xfe]
        %v630 = vld [vmem:[%s337 + $0x50] sm:$0x1]
        %v631 = vld [vmem:[%s337 + $0x58] sm:$0x1]
        %v632 = vld [vmem:[%s337 + $0x70] sm:$0xfe]
        %v633 = vld [vmem:[%s337 + $0x78] sm:$0xfe]
        %v634 = vld [vmem:[%s337 + $0x80] sm:$0x1]
        %v635 = vld [vmem:[%s337 + $0x88] sm:$0x1]
        %v636 = vld [vmem:[%s337 + $0xa0] sm:$0xfe]
        %v637 = vld [vmem:[%s337 + $0xa8] sm:$0xfe]
        %v638 = vld [vmem:[%s337 + $0xb0] sm:$0x1]
        %v639 = vld [vmem:[%s337 + $0xb8] sm:$0x1]
        %v640 = vld [vmem:[%s337 + $0xd0] sm:$0xfe]
        %v641 = vld [vmem:[%s337 + $0xd8] sm:$0xfe]
        %v642 = vld [vmem:[%s337 + $0xe0] sm:$0x1]
        %v643 = vld [vmem:[%s337 + $0xe8] sm:$0x1]
        %v644 = vld [vmem:[%s337 + $0x100] sm:$0xfe]
        %v645 = vld [vmem:[%s337 + $0x108] sm:$0xfe]
        %v646 = vld [vmem:[%s337 + $0x110] sm:$0x1]
        %v647 = vld [vmem:[%s337 + $0x118] sm:$0x1]
        %v648 = vld [vmem:[%s337 + $0x130] sm:$0xfe]
        %v649 = vld [vmem:[%s337 + $0x138] sm:$0xfe]
        %v650 = vld [vmem:[%s337 + $0x140] sm:$0x1]
        %v651 = vld [vmem:[%s337 + $0x148] sm:$0x1]
        %v652 = vld [vmem:[%s337 + $0x160] sm:$0xfe]
        %v653 = vld [vmem:[%s337 + $0x168] sm:$0xfe]
        %v654 = vld [vmem:[%s337 + $0x170] sm:$0x1]
        %v655 = vld [vmem:[%s337 + $0x178] sm:$0x1]
        %v656 = vperm.slane %v354, 5
        %v657 = vperm.slane %v355, 5
        %v658 = vmul.f32 %v624, %v656
        %v659 = vmul.f32 %v625, %v657
        %v660 = vmul.f32 %v626, %v656
        %v661 = vmul.f32 %v627, %v657
        %v662 = vmul.f32 %v628, %v656
        %v663 = vmul.f32 %v629, %v657
        %v664 = vmul.f32 %v630, %v656
        %v665 = vmul.f32 %v631, %v657
        %v666 = vmul.f32 %v632, %v656
        %v667 = vmul.f32 %v633, %v657
        %v668 = vmul.f32 %v634, %v656
        %v669 = vmul.f32 %v635, %v657
        %v670 = vmul.f32 %v636, %v656
        %v671 = vmul.f32 %v637, %v657
        %v672 = vmul.f32 %v638, %v656
        %v673 = vmul.f32 %v639, %v657
        %v674 = vmul.f32 %v640, %v656
        %v675 = vmul.f32 %v641, %v657
        %v676 = vmul.f32 %v642, %v656
        %v677 = vmul.f32 %v643, %v657
        %v678 = vmul.f32 %v644, %v656
        %v679 = vmul.f32 %v645, %v657
        %v680 = vmul.f32 %v646, %v656
        %v681 = vmul.f32 %v647, %v657
        %v682 = vmul.f32 %v648, %v656
        %v683 = vmul.f32 %v649, %v657
        %v684 = vmul.f32 %v650, %v656
        %v685 = vmul.f32 %v651, %v657
        %v686 = vmul.f32 %v652, %v656
        %v687 = vmul.f32 %v653, %v657
        %v688 = vmul.f32 %v654, %v656
        %v689 = vmul.f32 %v655, %v657
        %s690 = scalar_lea.vmem [#allocation2], 96
        %v691 = vld [vmem:[%s690] sm:$0x80]
        %v692 = vld [vmem:[%s690 + $0x8] sm:$0x80]
        %v693 = vld [vmem:[%s690 + $0x10] sm:$0x7f]
        %v694 = vld [vmem:[%s690 + $0x18] sm:$0x7f]
        %v695 = vld [vmem:[%s690 + $0x30] sm:$0x80]
        %v696 = vld [vmem:[%s690 + $0x38] sm:$0x80]
        %v697 = vld [vmem:[%s690 + $0x40] sm:$0x7f]
        %v698 = vld [vmem:[%s690 + $0x48] sm:$0x7f]
        %v699 = vld [vmem:[%s690 + $0x60] sm:$0x80]
        %v700 = vld [vmem:[%s690 + $0x68] sm:$0x80]
        %v701 = vld [vmem:[%s690 + $0x70] sm:$0x7f]
        %v702 = vld [vmem:[%s690 + $0x78] sm:$0x7f]
        %v703 = vld [vmem:[%s690 + $0x90] sm:$0x80]
        %v704 = vld [vmem:[%s690 + $0x98] sm:$0x80]
        %v705 = vld [vmem:[%s690 + $0xa0] sm:$0x7f]
        %v706 = vld [vmem:[%s690 + $0xa8] sm:$0x7f]
        %v707 = vld [vmem:[%s690 + $0xc0] sm:$0x80]
        %v708 = vld [vmem:[%s690 + $0xc8] sm:$0x80]
        %v709 = vld [vmem:[%s690 + $0xd0] sm:$0x7f]
        %v710 = vld [vmem:[%s690 + $0xd8] sm:$0x7f]
        %v711 = vld [vmem:[%s690 + $0xf0] sm:$0x80]
        %v712 = vld [vmem:[%s690 + $0xf8] sm:$0x80]
        %v713 = vld [vmem:[%s690 + $0x100] sm:$0x7f]
        %v714 = vld [vmem:[%s690 + $0x108] sm:$0x7f]
        %v715 = vld [vmem:[%s690 + $0x120] sm:$0x80]
        %v716 = vld [vmem:[%s690 + $0x128] sm:$0x80]
        %v717 = vld [vmem:[%s690 + $0x130] sm:$0x7f]
        %v718 = vld [vmem:[%s690 + $0x138] sm:$0x7f]
        %v719 = vld [vmem:[%s690 + $0x150] sm:$0x80]
        %v720 = vld [vmem:[%s690 + $0x158] sm:$0x80]
        %v721 = vld [vmem:[%s690 + $0x160] sm:$0x7f]
        %v722 = vld [vmem:[%s690 + $0x168] sm:$0x7f]
        %v723 = vperm.slane %v354, 6
        %v724 = vperm.slane %v355, 6
        %v725 = vmul.f32 %v691, %v723
        %v726 = vmul.f32 %v692, %v724
        %v727 = vmul.f32 %v693, %v723
        %v728 = vmul.f32 %v694, %v724
        %v729 = vmul.f32 %v695, %v723
        %v730 = vmul.f32 %v696, %v724
        %v731 = vmul.f32 %v697, %v723
        %v732 = vmul.f32 %v698, %v724
        %v733 = vmul.f32 %v699, %v723
        %v734 = vmul.f32 %v700, %v724
        %v735 = vmul.f32 %v701, %v723
        %v736 = vmul.f32 %v702, %v724
        %v737 = vmul.f32 %v703, %v723
        %v738 = vmul.f32 %v704, %v724
        %v739 = vmul.f32 %v705, %v723
        %v740 = vmul.f32 %v706, %v724
        %v741 = vmul.f32 %v707, %v723
        %v742 = vmul.f32 %v708, %v724
        %v743 = vmul.f32 %v709, %v723
        %v744 = vmul.f32 %v710, %v724
        %v745 = vmul.f32 %v711, %v723
        %v746 = vmul.f32 %v712, %v724
        %v747 = vmul.f32 %v713, %v723
        %v748 = vmul.f32 %v714, %v724
        %v749 = vmul.f32 %v715, %v723
        %v750 = vmul.f32 %v716, %v724
        %v751 = vmul.f32 %v717, %v723
        %v752 = vmul.f32 %v718, %v724
        %v753 = vmul.f32 %v719, %v723
        %v754 = vmul.f32 %v720, %v724
        %v755 = vmul.f32 %v721, %v723
        %v756 = vmul.f32 %v722, %v724
        %v757 = vld [vmem:[%s690 + $0x10] sm:$0xff]
        %v758 = vld [vmem:[%s690 + $0x18] sm:$0xff]
        %v759 = vld [vmem:[%s690 + $0x40] sm:$0xff]
        %v760 = vld [vmem:[%s690 + $0x48] sm:$0xff]
        %v761 = vld [vmem:[%s690 + $0x70] sm:$0xff]
        %v762 = vld [vmem:[%s690 + $0x78] sm:$0xff]
        %v763 = vld [vmem:[%s690 + $0xa0] sm:$0xff]
        %v764 = vld [vmem:[%s690 + $0xa8] sm:$0xff]
        %v765 = vld [vmem:[%s690 + $0xd0] sm:$0xff]
        %v766 = vld [vmem:[%s690 + $0xd8] sm:$0xff]
        %v767 = vld [vmem:[%s690 + $0x100] sm:$0xff]
        %v768 = vld [vmem:[%s690 + $0x108] sm:$0xff]
        %v769 = vld [vmem:[%s690 + $0x130] sm:$0xff]
        %v770 = vld [vmem:[%s690 + $0x138] sm:$0xff]
        %v771 = vld [vmem:[%s690 + $0x160] sm:$0xff]
        %v772 = vld [vmem:[%s690 + $0x168] sm:$0xff]
        %v773 = vperm.slane %v354, 7
        %v774 = vperm.slane %v355, 7
        %v775 = vmul.f32 %v757, %v773
        %v776 = vmul.f32 %v758, %v774
        %v777 = vmul.f32 %v759, %v773
        %v778 = vmul.f32 %v760, %v774
        %v779 = vmul.f32 %v761, %v773
        %v780 = vmul.f32 %v762, %v774
        %v781 = vmul.f32 %v763, %v773
        %v782 = vmul.f32 %v764, %v774
        %v783 = vmul.f32 %v765, %v773
        %v784 = vmul.f32 %v766, %v774
        %v785 = vmul.f32 %v767, %v773
        %v786 = vmul.f32 %v768, %v774
        %v787 = vmul.f32 %v769, %v773
        %v788 = vmul.f32 %v770, %v774
        %v789 = vmul.f32 %v771, %v773
        %v790 = vmul.f32 %v772, %v774
        %v791 = vld [vmem:[%s690 + $0x10] sm:$0xfe]
        %v792 = vld [vmem:[%s690 + $0x18] sm:$0xfe]
        %v793 = vld [vmem:[%s690 + $0x20] sm:$0x1]
        %v794 = vld [vmem:[%s690 + $0x28] sm:$0x1]
        %v795 = vld [vmem:[%s690 + $0x40] sm:$0xfe]
        %v796 = vld [vmem:[%s690 + $0x48] sm:$0xfe]
        %v797 = vld [vmem:[%s690 + $0x50] sm:$0x1]
        %v798 = vld [vmem:[%s690 + $0x58] sm:$0x1]
        %v799 = vld [vmem:[%s690 + $0x70] sm:$0xfe]
        %v800 = vld [vmem:[%s690 + $0x78] sm:$0xfe]
        %v801 = vld [vmem:[%s690 + $0x80] sm:$0x1]
        %v802 = vld [vmem:[%s690 + $0x88] sm:$0x1]
        %v803 = vld [vmem:[%s690 + $0xa0] sm:$0xfe]
        %v804 = vld [vmem:[%s690 + $0xa8] sm:$0xfe]
        %v805 = vld [vmem:[%s690 + $0xb0] sm:$0x1]
        %v806 = vld [vmem:[%s690 + $0xb8] sm:$0x1]
        %v807 = vld [vmem:[%s690 + $0xd0] sm:$0xfe]
        %v808 = vld [vmem:[%s690 + $0xd8] sm:$0xfe]
        %v809 = vld [vmem:[%s690 + $0xe0] sm:$0x1]
        %v810 = vld [vmem:[%s690 + $0xe8] sm:$0x1]
        %v811 = vld [vmem:[%s690 + $0x100] sm:$0xfe]
        %v812 = vld [vmem:[%s690 + $0x108] sm:$0xfe]
        %v813 = vld [vmem:[%s690 + $0x110] sm:$0x1]
        %v814 = vld [vmem:[%s690 + $0x118] sm:$0x1]
        %v815 = vld [vmem:[%s690 + $0x130] sm:$0xfe]
        %v816 = vld [vmem:[%s690 + $0x138] sm:$0xfe]
        %v817 = vld [vmem:[%s690 + $0x140] sm:$0x1]
        %v818 = vld [vmem:[%s690 + $0x148] sm:$0x1]
        %v819 = vld [vmem:[%s690 + $0x160] sm:$0xfe]
        %v820 = vld [vmem:[%s690 + $0x168] sm:$0xfe]
        %v821 = vld [vmem:[%s690 + $0x170] sm:$0x1]
        %v822 = vld [vmem:[%s690 + $0x178] sm:$0x1]
        %v823 = vperm.slane %v356, 0
        %v824 = vperm.slane %v357, 0
        %v825 = vmul.f32 %v791, %v823
        %v826 = vmul.f32 %v792, %v824
        %v827 = vmul.f32 %v793, %v823
        %v828 = vmul.f32 %v794, %v824
        %v829 = vmul.f32 %v795, %v823
        %v830 = vmul.f32 %v796, %v824
        %v831 = vmul.f32 %v797, %v823
        %v832 = vmul.f32 %v798, %v824
        %v833 = vmul.f32 %v799, %v823
        %v834 = vmul.f32 %v800, %v824
        %v835 = vmul.f32 %v801, %v823
        %v836 = vmul.f32 %v802, %v824
        %v837 = vmul.f32 %v803, %v823
        %v838 = vmul.f32 %v804, %v824
        %v839 = vmul.f32 %v805, %v823
        %v840 = vmul.f32 %v806, %v824
        %v841 = vmul.f32 %v807, %v823
        %v842 = vmul.f32 %v808, %v824
        %v843 = vmul.f32 %v809, %v823
        %v844 = vmul.f32 %v810, %v824
        %v845 = vmul.f32 %v811, %v823
        %v846 = vmul.f32 %v812, %v824
        %v847 = vmul.f32 %v813, %v823
        %v848 = vmul.f32 %v814, %v824
        %v849 = vmul.f32 %v815, %v823
        %v850 = vmul.f32 %v816, %v824
        %v851 = vmul.f32 %v817, %v823
        %v852 = vmul.f32 %v818, %v824
        %v853 = vmul.f32 %v819, %v823
        %v854 = vmul.f32 %v820, %v824
        %v855 = vmul.f32 %v821, %v823
        %v856 = vmul.f32 %v822, %v824
        %v873 = vrot.slane %v442, 1
        %v874 = vrot.slane %v443, 1
        %v875 = vrot.slane %v444, 1
        %v876 = vrot.slane %v445, 1
        %v877 = vrot.slane %v446, 1
        %v878 = vrot.slane %v447, 1
        %v879 = vrot.slane %v448, 1
        %v880 = vrot.slane %v449, 1
        %v881 = vrot.slane %v450, 1
        %v882 = vrot.slane %v451, 1
        %v883 = vrot.slane %v452, 1
        %v884 = vrot.slane %v453, 1
        %v885 = vrot.slane %v454, 1
        %v886 = vrot.slane %v455, 1
        %v887 = vrot.slane %v456, 1
        %v888 = vrot.slane %v457, 1
        %v905 = vadd.f32 %v392, %v873
        %v906 = vadd.f32 %v393, %v874
        %v907 = vadd.f32 %v394, %v873
        %v908 = vadd.f32 %v395, %v874
        %v909 = vadd.f32 %v396, %v875
        %v910 = vadd.f32 %v397, %v876
        %v911 = vadd.f32 %v398, %v875
        %v912 = vadd.f32 %v399, %v876
        %v913 = vadd.f32 %v400, %v877
        %v914 = vadd.f32 %v401, %v878
        %v915 = vadd.f32 %v402, %v877
        %v916 = vadd.f32 %v403, %v878
        %v917 = vadd.f32 %v404, %v879
        %v918 = vadd.f32 %v405, %v880
        %v919 = vadd.f32 %v406, %v879
        %v920 = vadd.f32 %v407, %v880
        %v921 = vadd.f32 %v408, %v881
        %v922 = vadd.f32 %v409, %v882
        %v923 = vadd.f32 %v410, %v881
        %v924 = vadd.f32 %v411, %v882
        %v925 = vadd.f32 %v412, %v883
        %v926 = vadd.f32 %v413, %v884
        %v927 = vadd.f32 %v414, %v883
        %v928 = vadd.f32 %v415, %v884
        %v929 = vadd.f32 %v416, %v885
        %v930 = vadd.f32 %v417, %v886
        %v931 = vadd.f32 %v418, %v885
        %v932 = vadd.f32 %v419, %v886
        %v933 = vadd.f32 %v420, %v887
        %v934 = vadd.f32 %v421, %v888
        %v935 = vadd.f32 %v422, %v887
        %v936 = vadd.f32 %v423, %v888
        %vm969 = vcmask 1041408
        %v970 = vrot.slane %v558, 6
        %v971 = vrot.slane %v560, 6
        %v972 = vsel %vm969, %v970, %v971
        %v973 = vrot.slane %v559, 6
        %v974 = vrot.slane %v561, 6
        %v975 = vsel %vm969, %v973, %v974
        %v976 = vrot.slane %v562, 6
        %v977 = vrot.slane %v564, 6
        %v978 = vsel %vm969, %v976, %v977
        %v979 = vrot.slane %v563, 6
        %v980 = vrot.slane %v565, 6
        %v981 = vsel %vm969, %v979, %v980
        %v982 = vrot.slane %v566, 6
        %v983 = vrot.slane %v568, 6
        %v984 = vsel %vm969, %v982, %v983
        %v985 = vrot.slane %v567, 6
        %v986 = vrot.slane %v569, 6
        %v987 = vsel %vm969, %v985, %v986
        %v988 = vrot.slane %v570, 6
        %v989 = vrot.slane %v572, 6
        %v990 = vsel %vm969, %v988, %v989
        %v991 = vrot.slane %v571, 6
        %v992 = vrot.slane %v573, 6
        %v993 = vsel %vm969, %v991, %v992
        %v994 = vrot.slane %v574, 6
        %v995 = vrot.slane %v576, 6
        %v996 = vsel %vm969, %v994, %v995
        %v997 = vrot.slane %v575, 6
        %v998 = vrot.slane %v577, 6
        %v999 = vsel %vm969, %v997, %v998
        %v1000 = vrot.slane %v578, 6
        %v1001 = vrot.slane %v580, 6
        %v1002 = vsel %vm969, %v1000, %v1001
        %v1003 = vrot.slane %v579, 6
        %v1004 = vrot.slane %v581, 6
        %v1005 = vsel %vm969, %v1003, %v1004
        %v1006 = vrot.slane %v582, 6
        %v1007 = vrot.slane %v584, 6
        %v1008 = vsel %vm969, %v1006, %v1007
        %v1009 = vrot.slane %v583, 6
        %v1010 = vrot.slane %v585, 6
        %v1011 = vsel %vm969, %v1009, %v1010
        %v1012 = vrot.slane %v586, 6
        %v1013 = vrot.slane %v588, 6
        %v1014 = vsel %vm969, %v1012, %v1013
        %v1015 = vrot.slane %v587, 6
        %v1016 = vrot.slane %v589, 6
        %v1017 = vsel %vm969, %v1015, %v1016
        %v1050 = vadd.f32 %v492, %v972
        %v1051 = vadd.f32 %v493, %v975
        %v1052 = vadd.f32 %v494, %v971
        %v1053 = vadd.f32 %v495, %v974
        %v1054 = vadd.f32 %v496, %v978
        %v1055 = vadd.f32 %v497, %v981
        %v1056 = vadd.f32 %v498, %v977
        %v1057 = vadd.f32 %v499, %v980
        %v1058 = vadd.f32 %v500, %v984
        %v1059 = vadd.f32 %v501, %v987
        %v1060 = vadd.f32 %v502, %v983
        %v1061 = vadd.f32 %v503, %v986
        %v1062 = vadd.f32 %v504, %v990
        %v1063 = vadd.f32 %v505, %v993
        %v1064 = vadd.f32 %v506, %v989
        %v1065 = vadd.f32 %v507, %v992
        %v1066 = vadd.f32 %v508, %v996
        %v1067 = vadd.f32 %v509, %v999
        %v1068 = vadd.f32 %v510, %v995
        %v1069 = vadd.f32 %v511, %v998
        %v1070 = vadd.f32 %v512, %v1002
        %v1071 = vadd.f32 %v513, %v1005
        %v1072 = vadd.f32 %v514, %v1001
        %v1073 = vadd.f32 %v515, %v1004
        %v1074 = vadd.f32 %v516, %v1008
        %v1075 = vadd.f32 %v517, %v1011
        %v1076 = vadd.f32 %v518, %v1007
        %v1077 = vadd.f32 %v519, %v1010
        %v1078 = vadd.f32 %v520, %v1014
        %v1079 = vadd.f32 %v521, %v1017
        %v1080 = vadd.f32 %v522, %v1013
        %v1081 = vadd.f32 %v523, %v1016
        %vm1114 = vcmask 1046528
        %v1115 = vrot.slane %v658, 1
        %v1116 = vrot.slane %v660, 1
        %v1117 = vsel %vm1114, %v1115, %v1116
        %v1118 = vrot.slane %v659, 1
        %v1119 = vrot.slane %v661, 1
        %v1120 = vsel %vm1114, %v1118, %v1119
        %v1121 = vrot.slane %v662, 1
        %v1122 = vrot.slane %v664, 1
        %v1123 = vsel %vm1114, %v1121, %v1122
        %v1124 = vrot.slane %v663, 1
        %v1125 = vrot.slane %v665, 1
        %v1126 = vsel %vm1114, %v1124, %v1125
        %v1127 = vrot.slane %v666, 1
        %v1128 = vrot.slane %v668, 1
        %v1129 = vsel %vm1114, %v1127, %v1128
        %v1130 = vrot.slane %v667, 1
        %v1131 = vrot.slane %v669, 1
        %v1132 = vsel %vm1114, %v1130, %v1131
        %v1133 = vrot.slane %v670, 1
        %v1134 = vrot.slane %v672, 1
        %v1135 = vsel %vm1114, %v1133, %v1134
        %v1136 = vrot.slane %v671, 1
        %v1137 = vrot.slane %v673, 1
        %v1138 = vsel %vm1114, %v1136, %v1137
        %v1139 = vrot.slane %v674, 1
        %v1140 = vrot.slane %v676, 1
        %v1141 = vsel %vm1114, %v1139, %v1140
        %v1142 = vrot.slane %v675, 1
        %v1143 = vrot.slane %v677, 1
        %v1144 = vsel %vm1114, %v1142, %v1143
        %v1145 = vrot.slane %v678, 1
        %v1146 = vrot.slane %v680, 1
        %v1147 = vsel %vm1114, %v1145, %v1146
        %v1148 = vrot.slane %v679, 1
        %v1149 = vrot.slane %v681, 1
        %v1150 = vsel %vm1114, %v1148, %v1149
        %v1151 = vrot.slane %v682, 1
        %v1152 = vrot.slane %v684, 1
        %v1153 = vsel %vm1114, %v1151, %v1152
        %v1154 = vrot.slane %v683, 1
        %v1155 = vrot.slane %v685, 1
        %v1156 = vsel %vm1114, %v1154, %v1155
        %v1157 = vrot.slane %v686, 1
        %v1158 = vrot.slane %v688, 1
        %v1159 = vsel %vm1114, %v1157, %v1158
        %v1160 = vrot.slane %v687, 1
        %v1161 = vrot.slane %v689, 1
        %v1162 = vsel %vm1114, %v1160, %v1161
        %v1179 = vadd.f32 %v608, %v1117
        %v1180 = vadd.f32 %v609, %v1120
        %v1181 = vadd.f32 %v610, %v1123
        %v1182 = vadd.f32 %v611, %v1126
        %v1183 = vadd.f32 %v612, %v1129
        %v1184 = vadd.f32 %v613, %v1132
        %v1185 = vadd.f32 %v614, %v1135
        %v1186 = vadd.f32 %v615, %v1138
        %v1187 = vadd.f32 %v616, %v1141
        %v1188 = vadd.f32 %v617, %v1144
        %v1189 = vadd.f32 %v618, %v1147
        %v1190 = vadd.f32 %v619, %v1150
        %v1191 = vadd.f32 %v620, %v1153
        %v1192 = vadd.f32 %v621, %v1156
        %v1193 = vadd.f32 %v622, %v1159
        %v1194 = vadd.f32 %v623, %v1162
        %v1211 = vrot.slane %v775, 1
        %v1212 = vrot.slane %v776, 1
        %v1213 = vrot.slane %v777, 1
        %v1214 = vrot.slane %v778, 1
        %v1215 = vrot.slane %v779, 1
        %v1216 = vrot.slane %v780, 1
        %v1217 = vrot.slane %v781, 1
        %v1218 = vrot.slane %v782, 1
        %v1219 = vrot.slane %v783, 1
        %v1220 = vrot.slane %v784, 1
        %v1221 = vrot.slane %v785, 1
        %v1222 = vrot.slane %v786, 1
        %v1223 = vrot.slane %v787, 1
        %v1224 = vrot.slane %v788, 1
        %v1225 = vrot.slane %v789, 1
        %v1226 = vrot.slane %v790, 1
        %v1243 = vadd.f32 %v725, %v1211
        %v1244 = vadd.f32 %v726, %v1212
        %v1245 = vadd.f32 %v727, %v1211
        %v1246 = vadd.f32 %v728, %v1212
        %v1247 = vadd.f32 %v729, %v1213
        %v1248 = vadd.f32 %v730, %v1214
        %v1249 = vadd.f32 %v731, %v1213
        %v1250 = vadd.f32 %v732, %v1214
        %v1251 = vadd.f32 %v733, %v1215
        %v1252 = vadd.f32 %v734, %v1216
        %v1253 = vadd.f32 %v735, %v1215
        %v1254 = vadd.f32 %v736, %v1216
        %v1255 = vadd.f32 %v737, %v1217
        %v1256 = vadd.f32 %v738, %v1218
        %v1257 = vadd.f32 %v739, %v1217
        %v1258 = vadd.f32 %v740, %v1218
        %v1259 = vadd.f32 %v741, %v1219
        %v1260 = vadd.f32 %v742, %v1220
        %v1261 = vadd.f32 %v743, %v1219
        %v1262 = vadd.f32 %v744, %v1220
        %v1263 = vadd.f32 %v745, %v1221
        %v1264 = vadd.f32 %v746, %v1222
        %v1265 = vadd.f32 %v747, %v1221
        %v1266 = vadd.f32 %v748, %v1222
        %v1267 = vadd.f32 %v749, %v1223
        %v1268 = vadd.f32 %v750, %v1224
        %v1269 = vadd.f32 %v751, %v1223
        %v1270 = vadd.f32 %v752, %v1224
        %v1271 = vadd.f32 %v753, %v1225
        %v1272 = vadd.f32 %v754, %v1226
        %v1273 = vadd.f32 %v755, %v1225
        %v1274 = vadd.f32 %v756, %v1226
        %vm1307 = vcmask 1045504
        %v1308 = vrot.slane %v1050, 2
        %v1309 = vrot.slane %v1051, 2
        %v1310 = vrot.slane %v1052, 2
        %v1311 = vsel %vm1307, %v1308, %v1310
        %v1312 = vrot.slane %v1053, 2
        %v1313 = vsel %vm1307, %v1309, %v1312
        %v1314 = vrot.slane %v1054, 2
        %v1315 = vrot.slane %v1055, 2
        %v1316 = vrot.slane %v1056, 2
        %v1317 = vsel %vm1307, %v1314, %v1316
        %v1318 = vrot.slane %v1057, 2
        %v1319 = vsel %vm1307, %v1315, %v1318
        %v1320 = vrot.slane %v1058, 2
        %v1321 = vrot.slane %v1059, 2
        %v1322 = vrot.slane %v1060, 2
        %v1323 = vsel %vm1307, %v1320, %v1322
        %v1324 = vrot.slane %v1061, 2
        %v1325 = vsel %vm1307, %v1321, %v1324
        %v1326 = vrot.slane %v1062, 2
        %v1327 = vrot.slane %v1063, 2
        %v1328 = vrot.slane %v1064, 2
        %v1329 = vsel %vm1307, %v1326, %v1328
        %v1330 = vrot.slane %v1065, 2
        %v1331 = vsel %vm1307, %v1327, %v1330
        %v1332 = vrot.slane %v1066, 2
        %v1333 = vrot.slane %v1067, 2
        %v1334 = vrot.slane %v1068, 2
        %v1335 = vsel %vm1307, %v1332, %v1334
        %v1336 = vrot.slane %v1069, 2
        %v1337 = vsel %vm1307, %v1333, %v1336
        %v1338 = vrot.slane %v1070, 2
        %v1339 = vrot.slane %v1071, 2
        %v1340 = vrot.slane %v1072, 2
        %v1341 = vsel %vm1307, %v1338, %v1340
        %v1342 = vrot.slane %v1073, 2
        %v1343 = vsel %vm1307, %v1339, %v1342
        %v1344 = vrot.slane %v1074, 2
        %v1345 = vrot.slane %v1075, 2
        %v1346 = vrot.slane %v1076, 2
        %v1347 = vsel %vm1307, %v1344, %v1346
        %v1348 = vrot.slane %v1077, 2
        %v1349 = vsel %vm1307, %v1345, %v1348
        %v1350 = vrot.slane %v1078, 2
        %v1351 = vrot.slane %v1079, 2
        %v1352 = vrot.slane %v1080, 2
        %v1353 = vsel %vm1307, %v1350, %v1352
        %v1354 = vrot.slane %v1081, 2
        %v1355 = vsel %vm1307, %v1351, %v1354
        %v1388 = vadd.f32 %v905, %v1308
        %v1389 = vadd.f32 %v906, %v1309
        %v1390 = vadd.f32 %v907, %v1311
        %v1391 = vadd.f32 %v908, %v1313
        %v1392 = vadd.f32 %v909, %v1314
        %v1393 = vadd.f32 %v910, %v1315
        %v1394 = vadd.f32 %v911, %v1317
        %v1395 = vadd.f32 %v912, %v1319
        %v1396 = vadd.f32 %v913, %v1320
        %v1397 = vadd.f32 %v914, %v1321
        %v1398 = vadd.f32 %v915, %v1323
        %v1399 = vadd.f32 %v916, %v1325
        %v1400 = vadd.f32 %v917, %v1326
        %v1401 = vadd.f32 %v918, %v1327
        %v1402 = vadd.f32 %v919, %v1329
        %v1403 = vadd.f32 %v920, %v1331
        %v1404 = vadd.f32 %v921, %v1332
        %v1405 = vadd.f32 %v922, %v1333
        %v1406 = vadd.f32 %v923, %v1335
        %v1407 = vadd.f32 %v924, %v1337
        %v1408 = vadd.f32 %v925, %v1338
        %v1409 = vadd.f32 %v926, %v1339
        %v1410 = vadd.f32 %v927, %v1341
        %v1411 = vadd.f32 %v928, %v1343
        %v1412 = vadd.f32 %v929, %v1344
        %v1413 = vadd.f32 %v930, %v1345
        %v1414 = vadd.f32 %v931, %v1347
        %v1415 = vadd.f32 %v932, %v1349
        %v1416 = vadd.f32 %v933, %v1350
        %v1417 = vadd.f32 %v934, %v1351
        %v1418 = vadd.f32 %v935, %v1353
        %v1419 = vadd.f32 %v936, %v1355
        %vm1452 = vcmask 1040384
        %v1453 = vrot.slane %v1243, 7
        %v1454 = vrot.slane %v1245, 7
        %v1455 = vsel %vm1452, %v1453, %v1454
        %v1456 = vrot.slane %v1244, 7
        %v1457 = vrot.slane %v1246, 7
        %v1458 = vsel %vm1452, %v1456, %v1457
        %v1459 = vrot.slane %v1247, 7
        %v1460 = vrot.slane %v1249, 7
        %v1461 = vsel %vm1452, %v1459, %v1460
        %v1462 = vrot.slane %v1248, 7
        %v1463 = vrot.slane %v1250, 7
        %v1464 = vsel %vm1452, %v1462, %v1463
        %v1465 = vrot.slane %v1251, 7
        %v1466 = vrot.slane %v1253, 7
        %v1467 = vsel %vm1452, %v1465, %v1466
        %v1468 = vrot.slane %v1252, 7
        %v1469 = vrot.slane %v1254, 7
        %v1470 = vsel %vm1452, %v1468, %v1469
        %v1471 = vrot.slane %v1255, 7
        %v1472 = vrot.slane %v1257, 7
        %v1473 = vsel %vm1452, %v1471, %v1472
        %v1474 = vrot.slane %v1256, 7
        %v1475 = vrot.slane %v1258, 7
        %v1476 = vsel %vm1452, %v1474, %v1475
        %v1477 = vrot.slane %v1259, 7
        %v1478 = vrot.slane %v1261, 7
        %v1479 = vsel %vm1452, %v1477, %v1478
        %v1480 = vrot.slane %v1260, 7
        %v1481 = vrot.slane %v1262, 7
        %v1482 = vsel %vm1452, %v1480, %v1481
        %v1483 = vrot.slane %v1263, 7
        %v1484 = vrot.slane %v1265, 7
        %v1485 = vsel %vm1452, %v1483, %v1484
        %v1486 = vrot.slane %v1264, 7
        %v1487 = vrot.slane %v1266, 7
        %v1488 = vsel %vm1452, %v1486, %v1487
        %v1489 = vrot.slane %v1267, 7
        %v1490 = vrot.slane %v1269, 7
        %v1491 = vsel %vm1452, %v1489, %v1490
        %v1492 = vrot.slane %v1268, 7
        %v1493 = vrot.slane %v1270, 7
        %v1494 = vsel %vm1452, %v1492, %v1493
        %v1495 = vrot.slane %v1271, 7
        %v1496 = vrot.slane %v1273, 7
        %v1497 = vsel %vm1452, %v1495, %v1496
        %v1498 = vrot.slane %v1272, 7
        %v1499 = vrot.slane %v1274, 7
        %v1500 = vsel %vm1452, %v1498, %v1499
        %v1517 = vadd.f32 %v1179, %v1455
        %v1518 = vadd.f32 %v1180, %v1458
        %v1519 = vadd.f32 %v1181, %v1461
        %v1520 = vadd.f32 %v1182, %v1464
        %v1521 = vadd.f32 %v1183, %v1467
        %v1522 = vadd.f32 %v1184, %v1470
        %v1523 = vadd.f32 %v1185, %v1473
        %v1524 = vadd.f32 %v1186, %v1476
        %v1525 = vadd.f32 %v1187, %v1479
        %v1526 = vadd.f32 %v1188, %v1482
        %v1527 = vadd.f32 %v1189, %v1485
        %v1528 = vadd.f32 %v1190, %v1488
        %v1529 = vadd.f32 %v1191, %v1491
        %v1530 = vadd.f32 %v1192, %v1494
        %v1531 = vadd.f32 %v1193, %v1497
        %v1532 = vadd.f32 %v1194, %v1500
        %v1549 = vrot.slane %v1517, 1
        %v1550 = vrot.slane %v1518, 1
        %v1551 = vrot.slane %v1519, 1
        %v1552 = vrot.slane %v1520, 1
        %v1553 = vrot.slane %v1521, 1
        %v1554 = vrot.slane %v1522, 1
        %v1555 = vrot.slane %v1523, 1
        %v1556 = vrot.slane %v1524, 1
        %v1557 = vrot.slane %v1525, 1
        %v1558 = vrot.slane %v1526, 1
        %v1559 = vrot.slane %v1527, 1
        %v1560 = vrot.slane %v1528, 1
        %v1561 = vrot.slane %v1529, 1
        %v1562 = vrot.slane %v1530, 1
        %v1563 = vrot.slane %v1531, 1
        %v1564 = vrot.slane %v1532, 1
        %v1581 = vadd.f32 %v1388, %v1549
        %v1582 = vadd.f32 %v1389, %v1550
        %v1583 = vadd.f32 %v1390, %v1549
        %v1584 = vadd.f32 %v1391, %v1550
        %v1585 = vadd.f32 %v1392, %v1551
        %v1586 = vadd.f32 %v1393, %v1552
        %v1587 = vadd.f32 %v1394, %v1551
        %v1588 = vadd.f32 %v1395, %v1552
        %v1589 = vadd.f32 %v1396, %v1553
        %v1590 = vadd.f32 %v1397, %v1554
        %v1591 = vadd.f32 %v1398, %v1553
        %v1592 = vadd.f32 %v1399, %v1554
        %v1593 = vadd.f32 %v1400, %v1555
        %v1594 = vadd.f32 %v1401, %v1556
        %v1595 = vadd.f32 %v1402, %v1555
        %v1596 = vadd.f32 %v1403, %v1556
        %v1597 = vadd.f32 %v1404, %v1557
        %v1598 = vadd.f32 %v1405, %v1558
        %v1599 = vadd.f32 %v1406, %v1557
        %v1600 = vadd.f32 %v1407, %v1558
        %v1601 = vadd.f32 %v1408, %v1559
        %v1602 = vadd.f32 %v1409, %v1560
        %v1603 = vadd.f32 %v1410, %v1559
        %v1604 = vadd.f32 %v1411, %v1560
        %v1605 = vadd.f32 %v1412, %v1561
        %v1606 = vadd.f32 %v1413, %v1562
        %v1607 = vadd.f32 %v1414, %v1561
        %v1608 = vadd.f32 %v1415, %v1562
        %v1609 = vadd.f32 %v1416, %v1563
        %v1610 = vadd.f32 %v1417, %v1564
        %v1611 = vadd.f32 %v1418, %v1563
        %v1612 = vadd.f32 %v1419, %v1564
        %v1645 = vrot.slane %v825, 2
        %v1646 = vrot.slane %v826, 2
        %v1647 = vrot.slane %v827, 2
        %v1648 = vsel %vm1307, %v1645, %v1647
        %v1649 = vrot.slane %v828, 2
        %v1650 = vsel %vm1307, %v1646, %v1649
        %v1651 = vrot.slane %v829, 2
        %v1652 = vrot.slane %v830, 2
        %v1653 = vrot.slane %v831, 2
        %v1654 = vsel %vm1307, %v1651, %v1653
        %v1655 = vrot.slane %v832, 2
        %v1656 = vsel %vm1307, %v1652, %v1655
        %v1657 = vrot.slane %v833, 2
        %v1658 = vrot.slane %v834, 2
        %v1659 = vrot.slane %v835, 2
        %v1660 = vsel %vm1307, %v1657, %v1659
        %v1661 = vrot.slane %v836, 2
        %v1662 = vsel %vm1307, %v1658, %v1661
        %v1663 = vrot.slane %v837, 2
        %v1664 = vrot.slane %v838, 2
        %v1665 = vrot.slane %v839, 2
        %v1666 = vsel %vm1307, %v1663, %v1665
        %v1667 = vrot.slane %v840, 2
        %v1668 = vsel %vm1307, %v1664, %v1667
        %v1669 = vrot.slane %v841, 2
        %v1670 = vrot.slane %v842, 2
        %v1671 = vrot.slane %v843, 2
        %v1672 = vsel %vm1307, %v1669, %v1671
        %v1673 = vrot.slane %v844, 2
        %v1674 = vsel %vm1307, %v1670, %v1673
        %v1675 = vrot.slane %v845, 2
        %v1676 = vrot.slane %v846, 2
        %v1677 = vrot.slane %v847, 2
        %v1678 = vsel %vm1307, %v1675, %v1677
        %v1679 = vrot.slane %v848, 2
        %v1680 = vsel %vm1307, %v1676, %v1679
        %v1681 = vrot.slane %v849, 2
        %v1682 = vrot.slane %v850, 2
        %v1683 = vrot.slane %v851, 2
        %v1684 = vsel %vm1307, %v1681, %v1683
        %v1685 = vrot.slane %v852, 2
        %v1686 = vsel %vm1307, %v1682, %v1685
        %v1687 = vrot.slane %v853, 2
        %v1688 = vrot.slane %v854, 2
        %v1689 = vrot.slane %v855, 2
        %v1690 = vsel %vm1307, %v1687, %v1689
        %v1691 = vrot.slane %v856, 2
        %v1692 = vsel %vm1307, %v1688, %v1691
        %v1725 = vadd.f32 %v1581, %v1645
        %v1726 = vadd.f32 %v1582, %v1646
        %v1727 = vadd.f32 %v1583, %v1648
        %v1728 = vadd.f32 %v1584, %v1650
        %v1729 = vadd.f32 %v1585, %v1651
        %v1730 = vadd.f32 %v1586, %v1652
        %v1731 = vadd.f32 %v1587, %v1654
        %v1732 = vadd.f32 %v1588, %v1656
        %v1733 = vadd.f32 %v1589, %v1657
        %v1734 = vadd.f32 %v1590, %v1658
        %v1735 = vadd.f32 %v1591, %v1660
        %v1736 = vadd.f32 %v1592, %v1662
        %v1737 = vadd.f32 %v1593, %v1663
        %v1738 = vadd.f32 %v1594, %v1664
        %v1739 = vadd.f32 %v1595, %v1666
        %v1740 = vadd.f32 %v1596, %v1668
        %v1741 = vadd.f32 %v1597, %v1669
        %v1742 = vadd.f32 %v1598, %v1670
        %v1743 = vadd.f32 %v1599, %v1672
        %v1744 = vadd.f32 %v1600, %v1674
        %v1745 = vadd.f32 %v1601, %v1675
        %v1746 = vadd.f32 %v1602, %v1676
        %v1747 = vadd.f32 %v1603, %v1678
        %v1748 = vadd.f32 %v1604, %v1680
        %v1749 = vadd.f32 %v1605, %v1681
        %v1750 = vadd.f32 %v1606, %v1682
        %v1751 = vadd.f32 %v1607, %v1684
        %v1752 = vadd.f32 %v1608, %v1686
        %v1753 = vadd.f32 %v1609, %v1687
        %v1754 = vadd.f32 %v1610, %v1688
        %v1755 = vadd.f32 %v1611, %v1690
        %v1756 = vadd.f32 %v1612, %v1692
        %v1789 = vrot.slane %v1725, 7
        %v1790 = vrot.slane %v1727, 7
        %v1791 = vsel %vm1452, %v1789, %v1790
        %v1792 = vrot.slane %v1726, 7
        %v1793 = vrot.slane %v1728, 7
        %v1794 = vsel %vm1452, %v1792, %v1793
        %v1795 = vrot.slane %v1729, 7
        %v1796 = vrot.slane %v1731, 7
        %v1797 = vsel %vm1452, %v1795, %v1796
        %v1798 = vrot.slane %v1730, 7
        %v1799 = vrot.slane %v1732, 7
        %v1800 = vsel %vm1452, %v1798, %v1799
        %v1801 = vrot.slane %v1733, 7
        %v1802 = vrot.slane %v1735, 7
        %v1803 = vsel %vm1452, %v1801, %v1802
        %v1804 = vrot.slane %v1734, 7
        %v1805 = vrot.slane %v1736, 7
        %v1806 = vsel %vm1452, %v1804, %v1805
        %v1807 = vrot.slane %v1737, 7
        %v1808 = vrot.slane %v1739, 7
        %v1809 = vsel %vm1452, %v1807, %v1808
        %v1810 = vrot.slane %v1738, 7
        %v1811 = vrot.slane %v1740, 7
        %v1812 = vsel %vm1452, %v1810, %v1811
        %v1813 = vrot.slane %v1741, 7
        %v1814 = vrot.slane %v1743, 7
        %v1815 = vsel %vm1452, %v1813, %v1814
        %v1816 = vrot.slane %v1742, 7
        %v1817 = vrot.slane %v1744, 7
        %v1818 = vsel %vm1452, %v1816, %v1817
        %v1819 = vrot.slane %v1745, 7
        %v1820 = vrot.slane %v1747, 7
        %v1821 = vsel %vm1452, %v1819, %v1820
        %v1822 = vrot.slane %v1746, 7
        %v1823 = vrot.slane %v1748, 7
        %v1824 = vsel %vm1452, %v1822, %v1823
        %v1825 = vrot.slane %v1749, 7
        %v1826 = vrot.slane %v1751, 7
        %v1827 = vsel %vm1452, %v1825, %v1826
        %v1828 = vrot.slane %v1750, 7
        %v1829 = vrot.slane %v1752, 7
        %v1830 = vsel %vm1452, %v1828, %v1829
        %v1831 = vrot.slane %v1753, 7
        %v1832 = vrot.slane %v1755, 7
        %v1833 = vsel %vm1452, %v1831, %v1832
        %v1834 = vrot.slane %v1754, 7
        %v1835 = vrot.slane %v1756, 7
        %v1836 = vsel %vm1452, %v1834, %v1835
        %v1853 = vpack.c.bf16 %v1797, %v1791
        %v1854 = vpack.c.bf16 %v1800, %v1794
        %v1855 = vpack.c.bf16 %v1809, %v1803
        %v1856 = vpack.c.bf16 %v1812, %v1806
        %v1857 = vpack.c.bf16 %v1821, %v1815
        %v1858 = vpack.c.bf16 %v1824, %v1818
        %v1859 = vpack.c.bf16 %v1833, %v1827
        %v1860 = vpack.c.bf16 %v1836, %v1830
        %v1861 = vld [vmem:[#allocation3] sm:$0xff]
        %v1862 = vld [vmem:[#allocation3 + $0x8] sm:$0xff]
        %v1863 = vld [vmem:[#allocation3 + $0x10] sm:$0xff]
        %v1864 = vld [vmem:[#allocation3 + $0x18] sm:$0xff]
        %v1865 = vld [vmem:[#allocation3 + $0x20] sm:$0xff]
        %v1866 = vld [vmem:[#allocation3 + $0x28] sm:$0xff]
        %v1867 = vld [vmem:[#allocation3 + $0x30] sm:$0xff]
        %v1868 = vld [vmem:[#allocation3 + $0x38] sm:$0xff]
        %v1869 = vld [vmem:[#allocation3 + $0x40] sm:$0xff]
        %v1870 = vld [vmem:[#allocation3 + $0x48] sm:$0xff]
        %v1871 = vld [vmem:[#allocation3 + $0x50] sm:$0xff]
        %v1872 = vld [vmem:[#allocation3 + $0x58] sm:$0xff]
        %v1873 = vld [vmem:[#allocation3 + $0x60] sm:$0xff]
        %v1874 = vld [vmem:[#allocation3 + $0x68] sm:$0xff]
        %v1875 = vld [vmem:[#allocation3 + $0x70] sm:$0xff]
        %v1876 = vld [vmem:[#allocation3 + $0x78] sm:$0xff]
        %v1877 = vld [vmem:[#allocation3 + $0x80] sm:$0xff]
        %v1878 = vld [vmem:[#allocation3 + $0x88] sm:$0xff]
        %v1879 = vld [vmem:[#allocation3 + $0x90] sm:$0xff]
        %v1880 = vld [vmem:[#allocation3 + $0x98] sm:$0xff]
        %v1881 = vld [vmem:[#allocation3 + $0xa0] sm:$0xff]
        %v1882 = vld [vmem:[#allocation3 + $0xa8] sm:$0xff]
        %v1883 = vld [vmem:[#allocation3 + $0xb0] sm:$0xff]
        %v1884 = vld [vmem:[#allocation3 + $0xb8] sm:$0xff]
        %v1885 = vld [vmem:[#allocation3 + $0xc0] sm:$0xff]
        %v1886 = vld [vmem:[#allocation3 + $0xc8] sm:$0xff]
        %v1887 = vld [vmem:[#allocation3 + $0xd0] sm:$0xff]
        %v1888 = vld [vmem:[#allocation3 + $0xd8] sm:$0xff]
        %v1889 = vld [vmem:[#allocation3 + $0xe0] sm:$0xff]
        %v1890 = vld [vmem:[#allocation3 + $0xe8] sm:$0xff]
        %v1891 = vld [vmem:[#allocation3 + $0xf0] sm:$0xff]
        %v1892 = vld [vmem:[#allocation3 + $0xf8] sm:$0xff]
        %v1893 = vld [vmem:[%s3] sm:$0x3]
        %v1895 = vperm.slane %v1893, 0
        %v1896 = vperm.slane %v1893, 1
        %v1931 = vunpack.c.l.b16 %v1861
        %v1932 = vunpack.c.h.b16 %v1861
        %v1933 = vunpack.c.l.b16 %v1862
        %v1934 = vunpack.c.h.b16 %v1862
        %v1935 = vunpack.c.l.b16 %v1863
        %v1936 = vunpack.c.h.b16 %v1863
        %v1937 = vunpack.c.l.b16 %v1864
        %v1938 = vunpack.c.h.b16 %v1864
        %v1939 = vunpack.c.l.b16 %v1865
        %v1940 = vunpack.c.h.b16 %v1865
        %v1941 = vunpack.c.l.b16 %v1866
        %v1942 = vunpack.c.h.b16 %v1866
        %v1943 = vunpack.c.l.b16 %v1867
        %v1944 = vunpack.c.h.b16 %v1867
        %v1945 = vunpack.c.l.b16 %v1868
        %v1946 = vunpack.c.h.b16 %v1868
        %v1947 = vunpack.c.l.b16 %v1869
        %v1948 = vunpack.c.h.b16 %v1869
        %v1949 = vunpack.c.l.b16 %v1870
        %v1950 = vunpack.c.h.b16 %v1870
        %v1951 = vunpack.c.l.b16 %v1871
        %v1952 = vunpack.c.h.b16 %v1871
        %v1953 = vunpack.c.l.b16 %v1872
        %v1954 = vunpack.c.h.b16 %v1872
        %v1955 = vunpack.c.l.b16 %v1873
        %v1956 = vunpack.c.h.b16 %v1873
        %v1957 = vunpack.c.l.b16 %v1874
        %v1958 = vunpack.c.h.b16 %v1874
        %v1959 = vunpack.c.l.b16 %v1875
        %v1960 = vunpack.c.h.b16 %v1875
        %v1961 = vunpack.c.l.b16 %v1876
        %v1962 = vunpack.c.h.b16 %v1876
        %v1963 = vunpack.c.l.b16 %v1877
        %v1964 = vunpack.c.h.b16 %v1877
        %v1965 = vunpack.c.l.b16 %v1878
        %v1966 = vunpack.c.h.b16 %v1878
        %v1967 = vunpack.c.l.b16 %v1879
        %v1968 = vunpack.c.h.b16 %v1879
        %v1969 = vunpack.c.l.b16 %v1880
        %v1970 = vunpack.c.h.b16 %v1880
        %v1971 = vunpack.c.l.b16 %v1881
        %v1972 = vunpack.c.h.b16 %v1881
        %v1973 = vunpack.c.l.b16 %v1882
        %v1974 = vunpack.c.h.b16 %v1882
        %v1975 = vunpack.c.l.b16 %v1883
        %v1976 = vunpack.c.h.b16 %v1883
        %v1977 = vunpack.c.l.b16 %v1884
        %v1978 = vunpack.c.h.b16 %v1884
        %v1979 = vunpack.c.l.b16 %v1885
        %v1980 = vunpack.c.h.b16 %v1885
        %v1981 = vunpack.c.l.b16 %v1886
        %v1982 = vunpack.c.h.b16 %v1886
        %v1983 = vunpack.c.l.b16 %v1887
        %v1984 = vunpack.c.h.b16 %v1887
        %v1985 = vunpack.c.l.b16 %v1888
        %v1986 = vunpack.c.h.b16 %v1888
        %v1987 = vunpack.c.l.b16 %v1889
        %v1988 = vunpack.c.h.b16 %v1889
        %v1989 = vunpack.c.l.b16 %v1890
        %v1990 = vunpack.c.h.b16 %v1890
        %v1991 = vunpack.c.l.b16 %v1891
        %v1992 = vunpack.c.h.b16 %v1891
        %v1993 = vunpack.c.l.b16 %v1892
        %v1994 = vunpack.c.h.b16 %v1892
        %v1995 = vpack.c.b16 %v1933, %v1931
        %v1996 = vpack.c.b16 %v1934, %v1932
        %v1997 = vpack.c.b16 %v1937, %v1935
        %v1998 = vpack.c.b16 %v1938, %v1936
        %v1999 = vpack.c.b16 %v1941, %v1939
        %v2000 = vpack.c.b16 %v1942, %v1940
        %v2001 = vpack.c.b16 %v1945, %v1943
        %v2002 = vpack.c.b16 %v1946, %v1944
        %v2003 = vpack.c.b16 %v1949, %v1947
        %v2004 = vpack.c.b16 %v1950, %v1948
        %v2005 = vpack.c.b16 %v1953, %v1951
        %v2006 = vpack.c.b16 %v1954, %v1952
        %v2007 = vpack.c.b16 %v1957, %v1955
        %v2008 = vpack.c.b16 %v1958, %v1956
        %v2009 = vpack.c.b16 %v1961, %v1959
        %v2010 = vpack.c.b16 %v1962, %v1960
        %v2011 = vpack.c.b16 %v1965, %v1963
        %v2012 = vpack.c.b16 %v1966, %v1964
        %v2013 = vpack.c.b16 %v1969, %v1967
        %v2014 = vpack.c.b16 %v1970, %v1968
        %v2015 = vpack.c.b16 %v1973, %v1971
        %v2016 = vpack.c.b16 %v1974, %v1972
        %v2017 = vpack.c.b16 %v1977, %v1975
        %v2018 = vpack.c.b16 %v1978, %v1976
        %v2019 = vpack.c.b16 %v1981, %v1979
        %v2020 = vpack.c.b16 %v1982, %v1980
        %v2021 = vpack.c.b16 %v1985, %v1983
        %v2022 = vpack.c.b16 %v1986, %v1984
        %v2023 = vpack.c.b16 %v1989, %v1987
        %v2024 = vpack.c.b16 %v1990, %v1988
        %v2025 = vpack.c.b16 %v1993, %v1991
        %v2026 = vpack.c.b16 %v1994, %v1992
        %2059 = vmatpush.bf16.msra.mxu0 %v2009
        %2060 = vmatpush.bf16.msra.mxu0 %v2007
        %2061 = vmatpush.bf16.msra.mxu0 %v2005
        %2062 = vmatpush.bf16.msra.mxu0 %v2003
        %2063 = vmatpush.bf16.msra.mxu0 %v2001
        %2064 = vmatpush.bf16.msra.mxu0 %v1999
        %2065 = vmatpush.bf16.msra.mxu0 %v1997
        %2066 = vmatpush.bf16.msra.mxu0 %v1995
        %2067 = vmatmul.bf16.gmra.mxu0 %v1853
        %v2068 = vpop.f32.mrf.mxu0
        %v2069 = vadd.f32 %v1895, %v2068
        %v2070 = vpop.f32.mrf.mxu0
        %v2071 = vadd.f32 %v1895, %v2070
        %2072 = vmatmul.bf16.gmra.mxu0 %v1855
        %v2073 = vpop.f32.mrf.mxu0
        %v2074 = vadd.f32 %v1895, %v2073
        %v2075 = vpop.f32.mrf.mxu0
        %v2076 = vadd.f32 %v1895, %v2075
        %2077 = vmatmul.bf16.gmra.mxu0 %v1857
        %v2078 = vpop.f32.mrf.mxu0
        %v2079 = vadd.f32 %v1895, %v2078
        %v2080 = vpop.f32.mrf.mxu0
        %v2081 = vadd.f32 %v1895, %v2080
        %2082 = vmatmul.bf16.gmra.mxu0 %v1859
        %v2083 = vpop.f32.mrf.mxu0
        %v2084 = vadd.f32 %v1895, %v2083
        %v2085 = vpop.f32.mrf.mxu0
        %v2086 = vadd.f32 %v1895, %v2085
        %2087 = vdwg.mxu0
        %2088 = vmatpush.bf16.msra.mxu0 %v2025
        %2089 = vmatpush.bf16.msra.mxu0 %v2023
        %2090 = vmatpush.bf16.msra.mxu0 %v2021
        %2091 = vmatpush.bf16.msra.mxu0 %v2019
        %2092 = vmatpush.bf16.msra.mxu0 %v2017
        %2093 = vmatpush.bf16.msra.mxu0 %v2015
        %2094 = vmatpush.bf16.msra.mxu0 %v2013
        %2095 = vmatpush.bf16.msra.mxu0 %v2011
        %2096 = vmatmul.bf16.gmra.mxu0 %v1854
        %v2097 = vpop.f32.mrf.mxu0
        %v2098 = vadd.f32 %v2069, %v2097
        %v2099 = vpop.f32.mrf.mxu0
        %v2100 = vadd.f32 %v2071, %v2099
        %2101 = vmatmul.bf16.gmra.mxu0 %v1856
        %v2102 = vpop.f32.mrf.mxu0
        %v2103 = vadd.f32 %v2074, %v2102
        %v2104 = vpop.f32.mrf.mxu0
        %v2105 = vadd.f32 %v2076, %v2104
        %2106 = vmatmul.bf16.gmra.mxu0 %v1858
        %v2107 = vpop.f32.mrf.mxu0
        %v2108 = vadd.f32 %v2079, %v2107
        %v2109 = vpop.f32.mrf.mxu0
        %v2110 = vadd.f32 %v2081, %v2109
        %2111 = vmatmul.bf16.gmra.mxu0 %v1860
        %v2112 = vpop.f32.mrf.mxu0
        %v2113 = vadd.f32 %v2084, %v2112
        %v2114 = vpop.f32.mrf.mxu0
        %v2115 = vadd.f32 %v2086, %v2114
        %2116 = vdwg.mxu0
        %2117 = vmatpush.bf16.msra.mxu0 %v2010
        %2118 = vmatpush.bf16.msra.mxu0 %v2008
        %2119 = vmatpush.bf16.msra.mxu0 %v2006
        %2120 = vmatpush.bf16.msra.mxu0 %v2004
        %2121 = vmatpush.bf16.msra.mxu0 %v2002
        %2122 = vmatpush.bf16.msra.mxu0 %v2000
        %2123 = vmatpush.bf16.msra.mxu0 %v1998
        %2124 = vmatpush.bf16.msra.mxu0 %v1996
        %2125 = vmatmul.bf16.gmra.mxu0 %v1853
        %v2126 = vpop.f32.mrf.mxu0
        %v2127 = vadd.f32 %v1896, %v2126
        %v2128 = vpop.f32.mrf.mxu0
        %v2129 = vadd.f32 %v1896, %v2128
        %2130 = vmatmul.bf16.gmra.mxu0 %v1855
        %v2131 = vpop.f32.mrf.mxu0
        %v2132 = vadd.f32 %v1896, %v2131
        %v2133 = vpop.f32.mrf.mxu0
        %v2134 = vadd.f32 %v1896, %v2133
        %2135 = vmatmul.bf16.gmra.mxu0 %v1857
        %v2136 = vpop.f32.mrf.mxu0
        %v2137 = vadd.f32 %v1896, %v2136
        %v2138 = vpop.f32.mrf.mxu0
        %v2139 = vadd.f32 %v1896, %v2138
        %2140 = vmatmul.bf16.gmra.mxu0 %v1859
        %v2141 = vpop.f32.mrf.mxu0
        %v2142 = vadd.f32 %v1896, %v2141
        %v2143 = vpop.f32.mrf.mxu0
        %v2144 = vadd.f32 %v1896, %v2143
        %2145 = vdwg.mxu0
        %2146 = vmatpush.bf16.msra.mxu0 %v2026
        %2147 = vmatpush.bf16.msra.mxu0 %v2024
        %2148 = vmatpush.bf16.msra.mxu0 %v2022
        %2149 = vmatpush.bf16.msra.mxu0 %v2020
        %2150 = vmatpush.bf16.msra.mxu0 %v2018
        %2151 = vmatpush.bf16.msra.mxu0 %v2016
        %2152 = vmatpush.bf16.msra.mxu0 %v2014
        %2153 = vmatpush.bf16.msra.mxu0 %v2012
        %2154 = vmatmul.bf16.gmra.mxu0 %v1854
        %v2155 = vpop.f32.mrf.mxu0
        %v2156 = vadd.f32 %v2127, %v2155
        %v2157 = vpop.f32.mrf.mxu0
        %v2158 = vadd.f32 %v2129, %v2157
        %2159 = vmatmul.bf16.gmra.mxu0 %v1856
        %v2160 = vpop.f32.mrf.mxu0
        %v2161 = vadd.f32 %v2132, %v2160
        %v2162 = vpop.f32.mrf.mxu0
        %v2163 = vadd.f32 %v2134, %v2162
        %2164 = vmatmul.bf16.gmra.mxu0 %v1858
        %v2165 = vpop.f32.mrf.mxu0
        %v2166 = vadd.f32 %v2137, %v2165
        %v2167 = vpop.f32.mrf.mxu0
        %v2168 = vadd.f32 %v2139, %v2167
        %2169 = vmatmul.bf16.gmra.mxu0 %v1860
        %v2170 = vpop.f32.mrf.mxu0
        %v2171 = vadd.f32 %v2142, %v2170
        %v2172 = vpop.f32.mrf.mxu0
        %v2173 = vadd.f32 %v2144, %v2172
        %2174 = vdwg.mxu0
        %vm2175 = vcmp.ge.f32.partialorder %v2098, 0.0
        %vm2176 = vcmp.ge.f32.partialorder %v2156, 0.0
        %vm2177 = vcmp.ge.f32.partialorder %v2100, 0.0
        %vm2178 = vcmp.ge.f32.partialorder %v2158, 0.0
        %vm2179 = vcmp.ge.f32.partialorder %v2103, 0.0
        %vm2180 = vcmp.ge.f32.partialorder %v2161, 0.0
        %vm2181 = vcmp.ge.f32.partialorder %v2105, 0.0
        %vm2182 = vcmp.ge.f32.partialorder %v2163, 0.0
        %vm2183 = vcmp.ge.f32.partialorder %v2108, 0.0
        %vm2184 = vcmp.ge.f32.partialorder %v2166, 0.0
        %vm2185 = vcmp.ge.f32.partialorder %v2110, 0.0
        %vm2186 = vcmp.ge.f32.partialorder %v2168, 0.0
        %vm2187 = vcmp.ge.f32.partialorder %v2113, 0.0
        %vm2188 = vcmp.ge.f32.partialorder %v2171, 0.0
        %vm2189 = vcmp.ge.f32.partialorder %v2115, 0.0
        %vm2190 = vcmp.ge.f32.partialorder %v2173, 0.0
        %v2191 = vmul.f32 %v2098, 0.2
        %v2192 = vmul.f32 %v2156, 0.2
        %v2193 = vmul.f32 %v2100, 0.2
        %v2194 = vmul.f32 %v2158, 0.2
        %v2195 = vmul.f32 %v2103, 0.2
        %v2196 = vmul.f32 %v2161, 0.2
        %v2197 = vmul.f32 %v2105, 0.2
        %v2198 = vmul.f32 %v2163, 0.2
        %v2199 = vmul.f32 %v2108, 0.2
        %v2200 = vmul.f32 %v2166, 0.2
        %v2201 = vmul.f32 %v2110, 0.2
        %v2202 = vmul.f32 %v2168, 0.2
        %v2203 = vmul.f32 %v2113, 0.2
        %v2204 = vmul.f32 %v2171, 0.2
        %v2205 = vmul.f32 %v2115, 0.2
        %v2206 = vmul.f32 %v2173, 0.2
        %v2207 = vsel %vm2175, %v2098, %v2191
        %v2208 = vsel %vm2176, %v2156, %v2192
        %v2209 = vsel %vm2177, %v2100, %v2193
        %v2210 = vsel %vm2178, %v2158, %v2194
        %v2211 = vsel %vm2179, %v2103, %v2195
        %v2212 = vsel %vm2180, %v2161, %v2196
        %v2213 = vsel %vm2181, %v2105, %v2197
        %v2214 = vsel %vm2182, %v2163, %v2198
        %v2215 = vsel %vm2183, %v2108, %v2199
        %v2216 = vsel %vm2184, %v2166, %v2200
        %v2217 = vsel %vm2185, %v2110, %v2201
        %v2218 = vsel %vm2186, %v2168, %v2202
        %v2219 = vsel %vm2187, %v2113, %v2203
        %v2220 = vsel %vm2188, %v2171, %v2204
        %v2221 = vsel %vm2189, %v2115, %v2205
        %v2222 = vsel %vm2190, %v2173, %v2206
        %2223 = vst [vmem:[%s337 + $0x10] sm:$0xff] %v2207
        %2224 = vst [vmem:[%s337 + $0x18] sm:$0xff] %v2208
        %2225 = vst [vmem:[%s337 + $0x40] sm:$0xff] %v2209
        %2226 = vst [vmem:[%s337 + $0x48] sm:$0xff] %v2210
        %2227 = vst [vmem:[%s337 + $0x70] sm:$0xff] %v2211
        %2228 = vst [vmem:[%s337 + $0x78] sm:$0xff] %v2212
        %2229 = vst [vmem:[%s337 + $0xa0] sm:$0xff] %v2213
        %2230 = vst [vmem:[%s337 + $0xa8] sm:$0xff] %v2214
        %2231 = vst [vmem:[%s337 + $0xd0] sm:$0xff] %v2215
        %2232 = vst [vmem:[%s337 + $0xd8] sm:$0xff] %v2216
        %2233 = vst [vmem:[%s337 + $0x100] sm:$0xff] %v2217
        %2234 = vst [vmem:[%s337 + $0x108] sm:$0xff] %v2218
        %2235 = vst [vmem:[%s337 + $0x130] sm:$0xff] %v2219
        %2236 = vst [vmem:[%s337 + $0x138] sm:$0xff] %v2220
        %2237 = vst [vmem:[%s337 + $0x160] sm:$0xff] %v2221
        %2238 = vst [vmem:[%s337 + $0x168] sm:$0xff] %v2222
        %s2239 = scalar_lea.vmem %s1, 32
        %v2240 = vld [vmem:[%s2239] sm:$0xff]
        %v2241 = vld [vmem:[%s2239 + $0x8] sm:$0xff]
        %v2242 = vld [vmem:[%s2239 + $0x10] sm:$0x1]
        %v2243 = vld [vmem:[%s2239 + $0x18] sm:$0x1]
        %v2244 = vld [vmem:[#allocation2] sm:$0x80]
        %v2245 = vld [vmem:[#allocation2 + $0x8] sm:$0x80]
        %v2246 = vld [vmem:[#allocation2 + $0x10] sm:$0x7f]
        %v2247 = vld [vmem:[#allocation2 + $0x18] sm:$0x7f]
        %v2248 = vld [vmem:[#allocation2 + $0x30] sm:$0x80]
        %v2249 = vld [vmem:[#allocation2 + $0x38] sm:$0x80]
        %v2250 = vld [vmem:[#allocation2 + $0x40] sm:$0x7f]
        %v2251 = vld [vmem:[#allocation2 + $0x48] sm:$0x7f]
        %v2252 = vld [vmem:[#allocation2 + $0x60] sm:$0x80]
        %v2253 = vld [vmem:[#allocation2 + $0x68] sm:$0x80]
        %v2254 = vld [vmem:[#allocation2 + $0x70] sm:$0x7f]
        %v2255 = vld [vmem:[#allocation2 + $0x78] sm:$0x7f]
        %v2256 = vld [vmem:[#allocation2 + $0x90] sm:$0x80]
        %v2257 = vld [vmem:[#allocation2 + $0x98] sm:$0x80]
        %v2258 = vld [vmem:[#allocation2 + $0xa0] sm:$0x7f]
        %v2259 = vld [vmem:[#allocation2 + $0xa8] sm:$0x7f]
        %v2260 = vld [vmem:[#allocation2 + $0xc0] sm:$0x80]
        %v2261 = vld [vmem:[#allocation2 + $0xc8] sm:$0x80]
        %v2262 = vld [vmem:[#allocation2 + $0xd0] sm:$0x7f]
        %v2263 = vld [vmem:[#allocation2 + $0xd8] sm:$0x7f]
        %v2264 = vld [vmem:[#allocation2 + $0xf0] sm:$0x80]
        %v2265 = vld [vmem:[#allocation2 + $0xf8] sm:$0x80]
        %v2266 = vld [vmem:[#allocation2 + $0x100] sm:$0x7f]
        %v2267 = vld [vmem:[#allocation2 + $0x108] sm:$0x7f]
        %v2268 = vld [vmem:[#allocation2 + $0x120] sm:$0x80]
        %v2269 = vld [vmem:[#allocation2 + $0x128] sm:$0x80]
        %v2270 = vld [vmem:[#allocation2 + $0x130] sm:$0x7f]
        %v2271 = vld [vmem:[#allocation2 + $0x138] sm:$0x7f]
        %v2272 = vld [vmem:[#allocation2 + $0x150] sm:$0x80]
        %v2273 = vld [vmem:[#allocation2 + $0x158] sm:$0x80]
        %v2274 = vld [vmem:[#allocation2 + $0x160] sm:$0x7f]
        %v2275 = vld [vmem:[#allocation2 + $0x168] sm:$0x7f]
        %v2276 = vperm.slane %v2240, 0
        %v2277 = vperm.slane %v2241, 0
        %v2278 = vmul.f32 %v2244, %v2276
        %v2279 = vmul.f32 %v2245, %v2277
        %v2280 = vmul.f32 %v2246, %v2276
        %v2281 = vmul.f32 %v2247, %v2277
        %v2282 = vmul.f32 %v2248, %v2276
        %v2283 = vmul.f32 %v2249, %v2277
        %v2284 = vmul.f32 %v2250, %v2276
        %v2285 = vmul.f32 %v2251, %v2277
        %v2286 = vmul.f32 %v2252, %v2276
        %v2287 = vmul.f32 %v2253, %v2277
        %v2288 = vmul.f32 %v2254, %v2276
        %v2289 = vmul.f32 %v2255, %v2277
        %v2290 = vmul.f32 %v2256, %v2276
        %v2291 = vmul.f32 %v2257, %v2277
        %v2292 = vmul.f32 %v2258, %v2276
        %v2293 = vmul.f32 %v2259, %v2277
        %v2294 = vmul.f32 %v2260, %v2276
        %v2295 = vmul.f32 %v2261, %v2277
        %v2296 = vmul.f32 %v2262, %v2276
        %v2297 = vmul.f32 %v2263, %v2277
        %v2298 = vmul.f32 %v2264, %v2276
        %v2299 = vmul.f32 %v2265, %v2277
        %v2300 = vmul.f32 %v2266, %v2276
        %v2301 = vmul.f32 %v2267, %v2277
        %v2302 = vmul.f32 %v2268, %v2276
        %v2303 = vmul.f32 %v2269, %v2277
        %v2304 = vmul.f32 %v2270, %v2276
        %v2305 = vmul.f32 %v2271, %v2277
        %v2306 = vmul.f32 %v2272, %v2276
        %v2307 = vmul.f32 %v2273, %v2277
        %v2308 = vmul.f32 %v2274, %v2276
        %v2309 = vmul.f32 %v2275, %v2277
        %v2310 = vld [vmem:[#allocation2 + $0x10] sm:$0xff]
        %v2311 = vld [vmem:[#allocation2 + $0x18] sm:$0xff]
        %v2312 = vld [vmem:[#allocation2 + $0x40] sm:$0xff]
        %v2313 = vld [vmem:[#allocation2 + $0x48] sm:$0xff]
        %v2314 = vld [vmem:[#allocation2 + $0x70] sm:$0xff]
        %v2315 = vld [vmem:[#allocation2 + $0x78] sm:$0xff]
        %v2316 = vld [vmem:[#allocation2 + $0xa0] sm:$0xff]
        %v2317 = vld [vmem:[#allocation2 + $0xa8] sm:$0xff]
        %v2318 = vld [vmem:[#allocation2 + $0xd0] sm:$0xff]
        %v2319 = vld [vmem:[#allocation2 + $0xd8] sm:$0xff]
        %v2320 = vld [vmem:[#allocation2 + $0x100] sm:$0xff]
        %v2321 = vld [vmem:[#allocation2 + $0x108] sm:$0xff]
        %v2322 = vld [vmem:[#allocation2 + $0x130] sm:$0xff]
        %v2323 = vld [vmem:[#allocation2 + $0x138] sm:$0xff]
        %v2324 = vld [vmem:[#allocation2 + $0x160] sm:$0xff]
        %v2325 = vld [vmem:[#allocation2 + $0x168] sm:$0xff]
        %v2326 = vperm.slane %v2240, 1
        %v2327 = vperm.slane %v2241, 1
        %v2328 = vmul.f32 %v2310, %v2326
        %v2329 = vmul.f32 %v2311, %v2327
        %v2330 = vmul.f32 %v2312, %v2326
        %v2331 = vmul.f32 %v2313, %v2327
        %v2332 = vmul.f32 %v2314, %v2326
        %v2333 = vmul.f32 %v2315, %v2327
        %v2334 = vmul.f32 %v2316, %v2326
        %v2335 = vmul.f32 %v2317, %v2327
        %v2336 = vmul.f32 %v2318, %v2326
        %v2337 = vmul.f32 %v2319, %v2327
        %v2338 = vmul.f32 %v2320, %v2326
        %v2339 = vmul.f32 %v2321, %v2327
        %v2340 = vmul.f32 %v2322, %v2326
        %v2341 = vmul.f32 %v2323, %v2327
        %v2342 = vmul.f32 %v2324, %v2326
        %v2343 = vmul.f32 %v2325, %v2327
        %v2344 = vld [vmem:[#allocation2 + $0x10] sm:$0xfe]
        %v2345 = vld [vmem:[#allocation2 + $0x18] sm:$0xfe]
        %v2346 = vld [vmem:[#allocation2 + $0x20] sm:$0x1]
        %v2347 = vld [vmem:[#allocation2 + $0x28] sm:$0x1]
        %v2348 = vld [vmem:[#allocation2 + $0x40] sm:$0xfe]
        %v2349 = vld [vmem:[#allocation2 + $0x48] sm:$0xfe]
        %v2350 = vld [vmem:[#allocation2 + $0x50] sm:$0x1]
        %v2351 = vld [vmem:[#allocation2 + $0x58] sm:$0x1]
        %v2352 = vld [vmem:[#allocation2 + $0x70] sm:$0xfe]
        %v2353 = vld [vmem:[#allocation2 + $0x78] sm:$0xfe]
        %v2354 = vld [vmem:[#allocation2 + $0x80] sm:$0x1]
        %v2355 = vld [vmem:[#allocation2 + $0x88] sm:$0x1]
        %v2356 = vld [vmem:[#allocation2 + $0xa0] sm:$0xfe]
        %v2357 = vld [vmem:[#allocation2 + $0xa8] sm:$0xfe]
        %v2358 = vld [vmem:[#allocation2 + $0xb0] sm:$0x1]
        %v2359 = vld [vmem:[#allocation2 + $0xb8] sm:$0x1]
        %v2360 = vld [vmem:[#allocation2 + $0xd0] sm:$0xfe]
        %v2361 = vld [vmem:[#allocation2 + $0xd8] sm:$0xfe]
        %v2362 = vld [vmem:[#allocation2 + $0xe0] sm:$0x1]
        %v2363 = vld [vmem:[#allocation2 + $0xe8] sm:$0x1]
        %v2364 = vld [vmem:[#allocation2 + $0x100] sm:$0xfe]
        %v2365 = vld [vmem:[#allocation2 + $0x108] sm:$0xfe]
        %v2366 = vld [vmem:[#allocation2 + $0x110] sm:$0x1]
        %v2367 = vld [vmem:[#allocation2 + $0x118] sm:$0x1]
        %v2368 = vld [vmem:[#allocation2 + $0x130] sm:$0xfe]
        %v2369 = vld [vmem:[#allocation2 + $0x138] sm:$0xfe]
        %v2370 = vld [vmem:[#allocation2 + $0x140] sm:$0x1]
        %v2371 = vld [vmem:[#allocation2 + $0x148] sm:$0x1]
        %v2372 = vld [vmem:[#allocation2 + $0x160] sm:$0xfe]
        %v2373 = vld [vmem:[#allocation2 + $0x168] sm:$0xfe]
        %v2374 = vld [vmem:[#allocation2 + $0x170] sm:$0x1]
        %v2375 = vld [vmem:[#allocation2 + $0x178] sm:$0x1]
        %v2376 = vperm.slane %v2240, 2
        %v2377 = vperm.slane %v2241, 2
        %v2378 = vmul.f32 %v2344, %v2376
        %v2379 = vmul.f32 %v2345, %v2377
        %v2380 = vmul.f32 %v2346, %v2376
        %v2381 = vmul.f32 %v2347, %v2377
        %v2382 = vmul.f32 %v2348, %v2376
        %v2383 = vmul.f32 %v2349, %v2377
        %v2384 = vmul.f32 %v2350, %v2376
        %v2385 = vmul.f32 %v2351, %v2377
        %v2386 = vmul.f32 %v2352, %v2376
        %v2387 = vmul.f32 %v2353, %v2377
        %v2388 = vmul.f32 %v2354, %v2376
        %v2389 = vmul.f32 %v2355, %v2377
        %v2390 = vmul.f32 %v2356, %v2376
        %v2391 = vmul.f32 %v2357, %v2377
        %v2392 = vmul.f32 %v2358, %v2376
        %v2393 = vmul.f32 %v2359, %v2377
        %v2394 = vmul.f32 %v2360, %v2376
        %v2395 = vmul.f32 %v2361, %v2377
        %v2396 = vmul.f32 %v2362, %v2376
        %v2397 = vmul.f32 %v2363, %v2377
        %v2398 = vmul.f32 %v2364, %v2376
        %v2399 = vmul.f32 %v2365, %v2377
        %v2400 = vmul.f32 %v2366, %v2376
        %v2401 = vmul.f32 %v2367, %v2377
        %v2402 = vmul.f32 %v2368, %v2376
        %v2403 = vmul.f32 %v2369, %v2377
        %v2404 = vmul.f32 %v2370, %v2376
        %v2405 = vmul.f32 %v2371, %v2377
        %v2406 = vmul.f32 %v2372, %v2376
        %v2407 = vmul.f32 %v2373, %v2377
        %v2408 = vmul.f32 %v2374, %v2376
        %v2409 = vmul.f32 %v2375, %v2377
        %v2410 = vld [vmem:[%s337] sm:$0x80]
        %v2411 = vld [vmem:[%s337 + $0x8] sm:$0x80]
        %v2412 = vld [vmem:[%s337 + $0x10] sm:$0x7f]
        %v2413 = vld [vmem:[%s337 + $0x18] sm:$0x7f]
        %v2414 = vld [vmem:[%s337 + $0x30] sm:$0x80]
        %v2415 = vld [vmem:[%s337 + $0x38] sm:$0x80]
        %v2416 = vld [vmem:[%s337 + $0x40] sm:$0x7f]
        %v2417 = vld [vmem:[%s337 + $0x48] sm:$0x7f]
        %v2418 = vld [vmem:[%s337 + $0x60] sm:$0x80]
        %v2419 = vld [vmem:[%s337 + $0x68] sm:$0x80]
        %v2420 = vld [vmem:[%s337 + $0x70] sm:$0x7f]
        %v2421 = vld [vmem:[%s337 + $0x78] sm:$0x7f]
        %v2422 = vld [vmem:[%s337 + $0x90] sm:$0x80]
        %v2423 = vld [vmem:[%s337 + $0x98] sm:$0x80]
        %v2424 = vld [vmem:[%s337 + $0xa0] sm:$0x7f]
        %v2425 = vld [vmem:[%s337 + $0xa8] sm:$0x7f]
        %v2426 = vld [vmem:[%s337 + $0xc0] sm:$0x80]
        %v2427 = vld [vmem:[%s337 + $0xc8] sm:$0x80]
        %v2428 = vld [vmem:[%s337 + $0xd0] sm:$0x7f]
        %v2429 = vld [vmem:[%s337 + $0xd8] sm:$0x7f]
        %v2430 = vld [vmem:[%s337 + $0xf0] sm:$0x80]
        %v2431 = vld [vmem:[%s337 + $0xf8] sm:$0x80]
        %v2432 = vld [vmem:[%s337 + $0x100] sm:$0x7f]
        %v2433 = vld [vmem:[%s337 + $0x108] sm:$0x7f]
        %v2434 = vld [vmem:[%s337 + $0x120] sm:$0x80]
        %v2435 = vld [vmem:[%s337 + $0x128] sm:$0x80]
        %v2436 = vld [vmem:[%s337 + $0x130] sm:$0x7f]
        %v2437 = vld [vmem:[%s337 + $0x138] sm:$0x7f]
        %v2438 = vld [vmem:[%s337 + $0x150] sm:$0x80]
        %v2439 = vld [vmem:[%s337 + $0x158] sm:$0x80]
        %v2440 = vld [vmem:[%s337 + $0x160] sm:$0x7f]
        %v2441 = vld [vmem:[%s337 + $0x168] sm:$0x7f]
        %v2442 = vperm.slane %v2240, 3
        %v2443 = vperm.slane %v2241, 3
        %v2444 = vmul.f32 %v2410, %v2442
        %v2445 = vmul.f32 %v2411, %v2443
        %v2446 = vmul.f32 %v2412, %v2442
        %v2447 = vmul.f32 %v2413, %v2443
        %v2448 = vmul.f32 %v2414, %v2442
        %v2449 = vmul.f32 %v2415, %v2443
        %v2450 = vmul.f32 %v2416, %v2442
        %v2451 = vmul.f32 %v2417, %v2443
        %v2452 = vmul.f32 %v2418, %v2442
        %v2453 = vmul.f32 %v2419, %v2443
        %v2454 = vmul.f32 %v2420, %v2442
        %v2455 = vmul.f32 %v2421, %v2443
        %v2456 = vmul.f32 %v2422, %v2442
        %v2457 = vmul.f32 %v2423, %v2443
        %v2458 = vmul.f32 %v2424, %v2442
        %v2459 = vmul.f32 %v2425, %v2443
        %v2460 = vmul.f32 %v2426, %v2442
        %v2461 = vmul.f32 %v2427, %v2443
        %v2462 = vmul.f32 %v2428, %v2442
        %v2463 = vmul.f32 %v2429, %v2443
        %v2464 = vmul.f32 %v2430, %v2442
        %v2465 = vmul.f32 %v2431, %v2443
        %v2466 = vmul.f32 %v2432, %v2442
        %v2467 = vmul.f32 %v2433, %v2443
        %v2468 = vmul.f32 %v2434, %v2442
        %v2469 = vmul.f32 %v2435, %v2443
        %v2470 = vmul.f32 %v2436, %v2442
        %v2471 = vmul.f32 %v2437, %v2443
        %v2472 = vmul.f32 %v2438, %v2442
        %v2473 = vmul.f32 %v2439, %v2443
        %v2474 = vmul.f32 %v2440, %v2442
        %v2475 = vmul.f32 %v2441, %v2443
        %v2476 = vld [vmem:[%s337 + $0x10] sm:$0xff]
        %v2477 = vld [vmem:[%s337 + $0x18] sm:$0xff]
        %v2478 = vld [vmem:[%s337 + $0x40] sm:$0xff]
        %v2479 = vld [vmem:[%s337 + $0x48] sm:$0xff]
        %v2480 = vld [vmem:[%s337 + $0x70] sm:$0xff]
        %v2481 = vld [vmem:[%s337 + $0x78] sm:$0xff]
        %v2482 = vld [vmem:[%s337 + $0xa0] sm:$0xff]
        %v2483 = vld [vmem:[%s337 + $0xa8] sm:$0xff]
        %v2484 = vld [vmem:[%s337 + $0xd0] sm:$0xff]
        %v2485 = vld [vmem:[%s337 + $0xd8] sm:$0xff]
        %v2486 = vld [vmem:[%s337 + $0x100] sm:$0xff]
        %v2487 = vld [vmem:[%s337 + $0x108] sm:$0xff]
        %v2488 = vld [vmem:[%s337 + $0x130] sm:$0xff]
        %v2489 = vld [vmem:[%s337 + $0x138] sm:$0xff]
        %v2490 = vld [vmem:[%s337 + $0x160] sm:$0xff]
        %v2491 = vld [vmem:[%s337 + $0x168] sm:$0xff]
        %v2492 = vperm.slane %v2240, 4
        %v2493 = vperm.slane %v2241, 4
        %v2494 = vmul.f32 %v2476, %v2492
        %v2495 = vmul.f32 %v2477, %v2493
        %v2496 = vmul.f32 %v2478, %v2492
        %v2497 = vmul.f32 %v2479, %v2493
        %v2498 = vmul.f32 %v2480, %v2492
        %v2499 = vmul.f32 %v2481, %v2493
        %v2500 = vmul.f32 %v2482, %v2492
        %v2501 = vmul.f32 %v2483, %v2493
        %v2502 = vmul.f32 %v2484, %v2492
        %v2503 = vmul.f32 %v2485, %v2493
        %v2504 = vmul.f32 %v2486, %v2492
        %v2505 = vmul.f32 %v2487, %v2493
        %v2506 = vmul.f32 %v2488, %v2492
        %v2507 = vmul.f32 %v2489, %v2493
        %v2508 = vmul.f32 %v2490, %v2492
        %v2509 = vmul.f32 %v2491, %v2493
        %v2510 = vld [vmem:[%s337 + $0x10] sm:$0xfe]
        %v2511 = vld [vmem:[%s337 + $0x18] sm:$0xfe]
        %v2512 = vld [vmem:[%s337 + $0x20] sm:$0x1]
        %v2513 = vld [vmem:[%s337 + $0x28] sm:$0x1]
        %v2514 = vld [vmem:[%s337 + $0x40] sm:$0xfe]
        %v2515 = vld [vmem:[%s337 + $0x48] sm:$0xfe]
        %v2516 = vld [vmem:[%s337 + $0x50] sm:$0x1]
        %v2517 = vld [vmem:[%s337 + $0x58] sm:$0x1]
        %v2518 = vld [vmem:[%s337 + $0x70] sm:$0xfe]
        %v2519 = vld [vmem:[%s337 + $0x78] sm:$0xfe]
        %v2520 = vld [vmem:[%s337 + $0x80] sm:$0x1]
        %v2521 = vld [vmem:[%s337 + $0x88] sm:$0x1]
        %v2522 = vld [vmem:[%s337 + $0xa0] sm:$0xfe]
        %v2523 = vld [vmem:[%s337 + $0xa8] sm:$0xfe]
        %v2524 = vld [vmem:[%s337 + $0xb0] sm:$0x1]
        %v2525 = vld [vmem:[%s337 + $0xb8] sm:$0x1]
        %v2526 = vld [vmem:[%s337 + $0xd0] sm:$0xfe]
        %v2527 = vld [vmem:[%s337 + $0xd8] sm:$0xfe]
        %v2528 = vld [vmem:[%s337 + $0xe0] sm:$0x1]
        %v2529 = vld [vmem:[%s337 + $0xe8] sm:$0x1]
        %v2530 = vld [vmem:[%s337 + $0x100] sm:$0xfe]
        %v2531 = vld [vmem:[%s337 + $0x108] sm:$0xfe]
        %v2532 = vld [vmem:[%s337 + $0x110] sm:$0x1]
        %v2533 = vld [vmem:[%s337 + $0x118] sm:$0x1]
        %v2534 = vld [vmem:[%s337 + $0x130] sm:$0xfe]
        %v2535 = vld [vmem:[%s337 + $0x138] sm:$0xfe]
        %v2536 = vld [vmem:[%s337 + $0x140] sm:$0x1]
        %v2537 = vld [vmem:[%s337 + $0x148] sm:$0x1]
        %v2538 = vld [vmem:[%s337 + $0x160] sm:$0xfe]
        %v2539 = vld [vmem:[%s337 + $0x168] sm:$0xfe]
        %v2540 = vld [vmem:[%s337 + $0x170] sm:$0x1]
        %v2541 = vld [vmem:[%s337 + $0x178] sm:$0x1]
        %v2542 = vperm.slane %v2240, 5
        %v2543 = vperm.slane %v2241, 5
        %v2544 = vmul.f32 %v2510, %v2542
        %v2545 = vmul.f32 %v2511, %v2543
        %v2546 = vmul.f32 %v2512, %v2542
        %v2547 = vmul.f32 %v2513, %v2543
        %v2548 = vmul.f32 %v2514, %v2542
        %v2549 = vmul.f32 %v2515, %v2543
        %v2550 = vmul.f32 %v2516, %v2542
        %v2551 = vmul.f32 %v2517, %v2543
        %v2552 = vmul.f32 %v2518, %v2542
        %v2553 = vmul.f32 %v2519, %v2543
        %v2554 = vmul.f32 %v2520, %v2542
        %v2555 = vmul.f32 %v2521, %v2543
        %v2556 = vmul.f32 %v2522, %v2542
        %v2557 = vmul.f32 %v2523, %v2543
        %v2558 = vmul.f32 %v2524, %v2542
        %v2559 = vmul.f32 %v2525, %v2543
        %v2560 = vmul.f32 %v2526, %v2542
        %v2561 = vmul.f32 %v2527, %v2543
        %v2562 = vmul.f32 %v2528, %v2542
        %v2563 = vmul.f32 %v2529, %v2543
        %v2564 = vmul.f32 %v2530, %v2542
        %v2565 = vmul.f32 %v2531, %v2543
        %v2566 = vmul.f32 %v2532, %v2542
        %v2567 = vmul.f32 %v2533, %v2543
        %v2568 = vmul.f32 %v2534, %v2542
        %v2569 = vmul.f32 %v2535, %v2543
        %v2570 = vmul.f32 %v2536, %v2542
        %v2571 = vmul.f32 %v2537, %v2543
        %v2572 = vmul.f32 %v2538, %v2542
        %v2573 = vmul.f32 %v2539, %v2543
        %v2574 = vmul.f32 %v2540, %v2542
        %v2575 = vmul.f32 %v2541, %v2543
        %v2576 = vld [vmem:[%s690] sm:$0x80]
        %v2577 = vld [vmem:[%s690 + $0x8] sm:$0x80]
        %v2578 = vld [vmem:[%s690 + $0x10] sm:$0x7f]
        %v2579 = vld [vmem:[%s690 + $0x18] sm:$0x7f]
        %v2580 = vld [vmem:[%s690 + $0x30] sm:$0x80]
        %v2581 = vld [vmem:[%s690 + $0x38] sm:$0x80]
        %v2582 = vld [vmem:[%s690 + $0x40] sm:$0x7f]
        %v2583 = vld [vmem:[%s690 + $0x48] sm:$0x7f]
        %v2584 = vld [vmem:[%s690 + $0x60] sm:$0x80]
        %v2585 = vld [vmem:[%s690 + $0x68] sm:$0x80]
        %v2586 = vld [vmem:[%s690 + $0x70] sm:$0x7f]
        %v2587 = vld [vmem:[%s690 + $0x78] sm:$0x7f]
        %v2588 = vld [vmem:[%s690 + $0x90] sm:$0x80]
        %v2589 = vld [vmem:[%s690 + $0x98] sm:$0x80]
        %v2590 = vld [vmem:[%s690 + $0xa0] sm:$0x7f]
        %v2591 = vld [vmem:[%s690 + $0xa8] sm:$0x7f]
        %v2592 = vld [vmem:[%s690 + $0xc0] sm:$0x80]
        %v2593 = vld [vmem:[%s690 + $0xc8] sm:$0x80]
        %v2594 = vld [vmem:[%s690 + $0xd0] sm:$0x7f]
        %v2595 = vld [vmem:[%s690 + $0xd8] sm:$0x7f]
        %v2596 = vld [vmem:[%s690 + $0xf0] sm:$0x80]
        %v2597 = vld [vmem:[%s690 + $0xf8] sm:$0x80]
        %v2598 = vld [vmem:[%s690 + $0x100] sm:$0x7f]
        %v2599 = vld [vmem:[%s690 + $0x108] sm:$0x7f]
        %v2600 = vld [vmem:[%s690 + $0x120] sm:$0x80]
        %v2601 = vld [vmem:[%s690 + $0x128] sm:$0x80]
        %v2602 = vld [vmem:[%s690 + $0x130] sm:$0x7f]
        %v2603 = vld [vmem:[%s690 + $0x138] sm:$0x7f]
        %v2604 = vld [vmem:[%s690 + $0x150] sm:$0x80]
        %v2605 = vld [vmem:[%s690 + $0x158] sm:$0x80]
        %v2606 = vld [vmem:[%s690 + $0x160] sm:$0x7f]
        %v2607 = vld [vmem:[%s690 + $0x168] sm:$0x7f]
        %v2608 = vperm.slane %v2240, 6
        %v2609 = vperm.slane %v2241, 6
        %v2610 = vmul.f32 %v2576, %v2608
        %v2611 = vmul.f32 %v2577, %v2609
        %v2612 = vmul.f32 %v2578, %v2608
        %v2613 = vmul.f32 %v2579, %v2609
        %v2614 = vmul.f32 %v2580, %v2608
        %v2615 = vmul.f32 %v2581, %v2609
        %v2616 = vmul.f32 %v2582, %v2608
        %v2617 = vmul.f32 %v2583, %v2609
        %v2618 = vmul.f32 %v2584, %v2608
        %v2619 = vmul.f32 %v2585, %v2609
        %v2620 = vmul.f32 %v2586, %v2608
        %v2621 = vmul.f32 %v2587, %v2609
        %v2622 = vmul.f32 %v2588, %v2608
        %v2623 = vmul.f32 %v2589, %v2609
        %v2624 = vmul.f32 %v2590, %v2608
        %v2625 = vmul.f32 %v2591, %v2609
        %v2626 = vmul.f32 %v2592, %v2608
        %v2627 = vmul.f32 %v2593, %v2609
        %v2628 = vmul.f32 %v2594, %v2608
        %v2629 = vmul.f32 %v2595, %v2609
        %v2630 = vmul.f32 %v2596, %v2608
        %v2631 = vmul.f32 %v2597, %v2609
        %v2632 = vmul.f32 %v2598, %v2608
        %v2633 = vmul.f32 %v2599, %v2609
        %v2634 = vmul.f32 %v2600, %v2608
        %v2635 = vmul.f32 %v2601, %v2609
        %v2636 = vmul.f32 %v2602, %v2608
        %v2637 = vmul.f32 %v2603, %v2609
        %v2638 = vmul.f32 %v2604, %v2608
        %v2639 = vmul.f32 %v2605, %v2609
        %v2640 = vmul.f32 %v2606, %v2608
        %v2641 = vmul.f32 %v2607, %v2609
        %v2642 = vld [vmem:[%s690 + $0x10] sm:$0xff]
        %v2643 = vld [vmem:[%s690 + $0x18] sm:$0xff]
        %v2644 = vld [vmem:[%s690 + $0x40] sm:$0xff]
        %v2645 = vld [vmem:[%s690 + $0x48] sm:$0xff]
        %v2646 = vld [vmem:[%s690 + $0x70] sm:$0xff]
        %v2647 = vld [vmem:[%s690 + $0x78] sm:$0xff]
        %v2648 = vld [vmem:[%s690 + $0xa0] sm:$0xff]
        %v2649 = vld [vmem:[%s690 + $0xa8] sm:$0xff]
        %v2650 = vld [vmem:[%s690 + $0xd0] sm:$0xff]
        %v2651 = vld [vmem:[%s690 + $0xd8] sm:$0xff]
        %v2652 = vld [vmem:[%s690 + $0x100] sm:$0xff]
        %v2653 = vld [vmem:[%s690 + $0x108] sm:$0xff]
        %v2654 = vld [vmem:[%s690 + $0x130] sm:$0xff]
        %v2655 = vld [vmem:[%s690 + $0x138] sm:$0xff]
        %v2656 = vld [vmem:[%s690 + $0x160] sm:$0xff]
        %v2657 = vld [vmem:[%s690 + $0x168] sm:$0xff]
        %v2658 = vperm.slane %v2240, 7
        %v2659 = vperm.slane %v2241, 7
        %v2660 = vmul.f32 %v2642, %v2658
        %v2661 = vmul.f32 %v2643, %v2659
        %v2662 = vmul.f32 %v2644, %v2658
        %v2663 = vmul.f32 %v2645, %v2659
        %v2664 = vmul.f32 %v2646, %v2658
        %v2665 = vmul.f32 %v2647, %v2659
        %v2666 = vmul.f32 %v2648, %v2658
        %v2667 = vmul.f32 %v2649, %v2659
        %v2668 = vmul.f32 %v2650, %v2658
        %v2669 = vmul.f32 %v2651, %v2659
        %v2670 = vmul.f32 %v2652, %v2658
        %v2671 = vmul.f32 %v2653, %v2659
        %v2672 = vmul.f32 %v2654, %v2658
        %v2673 = vmul.f32 %v2655, %v2659
        %v2674 = vmul.f32 %v2656, %v2658
        %v2675 = vmul.f32 %v2657, %v2659
        %v2676 = vld [vmem:[%s690 + $0x10] sm:$0xfe]
        %v2677 = vld [vmem:[%s690 + $0x18] sm:$0xfe]
        %v2678 = vld [vmem:[%s690 + $0x20] sm:$0x1]
        %v2679 = vld [vmem:[%s690 + $0x28] sm:$0x1]
        %v2680 = vld [vmem:[%s690 + $0x40] sm:$0xfe]
        %v2681 = vld [vmem:[%s690 + $0x48] sm:$0xfe]
        %v2682 = vld [vmem:[%s690 + $0x50] sm:$0x1]
        %v2683 = vld [vmem:[%s690 + $0x58] sm:$0x1]
        %v2684 = vld [vmem:[%s690 + $0x70] sm:$0xfe]
        %v2685 = vld [vmem:[%s690 + $0x78] sm:$0xfe]
        %v2686 = vld [vmem:[%s690 + $0x80] sm:$0x1]
        %v2687 = vld [vmem:[%s690 + $0x88] sm:$0x1]
        %v2688 = vld [vmem:[%s690 + $0xa0] sm:$0xfe]
        %v2689 = vld [vmem:[%s690 + $0xa8] sm:$0xfe]
        %v2690 = vld [vmem:[%s690 + $0xb0] sm:$0x1]
        %v2691 = vld [vmem:[%s690 + $0xb8] sm:$0x1]
        %v2692 = vld [vmem:[%s690 + $0xd0] sm:$0xfe]
        %v2693 = vld [vmem:[%s690 + $0xd8] sm:$0xfe]
        %v2694 = vld [vmem:[%s690 + $0xe0] sm:$0x1]
        %v2695 = vld [vmem:[%s690 + $0xe8] sm:$0x1]
        %v2696 = vld [vmem:[%s690 + $0x100] sm:$0xfe]
        %v2697 = vld [vmem:[%s690 + $0x108] sm:$0xfe]
        %v2698 = vld [vmem:[%s690 + $0x110] sm:$0x1]
        %v2699 = vld [vmem:[%s690 + $0x118] sm:$0x1]
        %v2700 = vld [vmem:[%s690 + $0x130] sm:$0xfe]
        %v2701 = vld [vmem:[%s690 + $0x138] sm:$0xfe]
        %v2702 = vld [vmem:[%s690 + $0x140] sm:$0x1]
        %v2703 = vld [vmem:[%s690 + $0x148] sm:$0x1]
        %v2704 = vld [vmem:[%s690 + $0x160] sm:$0xfe]
        %v2705 = vld [vmem:[%s690 + $0x168] sm:$0xfe]
        %v2706 = vld [vmem:[%s690 + $0x170] sm:$0x1]
        %v2707 = vld [vmem:[%s690 + $0x178] sm:$0x1]
        %v2708 = vperm.slane %v2242, 0
        %v2709 = vperm.slane %v2243, 0
        %v2710 = vmul.f32 %v2676, %v2708
        %v2711 = vmul.f32 %v2677, %v2709
        %v2712 = vmul.f32 %v2678, %v2708
        %v2713 = vmul.f32 %v2679, %v2709
        %v2714 = vmul.f32 %v2680, %v2708
        %v2715 = vmul.f32 %v2681, %v2709
        %v2716 = vmul.f32 %v2682, %v2708
        %v2717 = vmul.f32 %v2683, %v2709
        %v2718 = vmul.f32 %v2684, %v2708
        %v2719 = vmul.f32 %v2685, %v2709
        %v2720 = vmul.f32 %v2686, %v2708
        %v2721 = vmul.f32 %v2687, %v2709
        %v2722 = vmul.f32 %v2688, %v2708
        %v2723 = vmul.f32 %v2689, %v2709
        %v2724 = vmul.f32 %v2690, %v2708
        %v2725 = vmul.f32 %v2691, %v2709
        %v2726 = vmul.f32 %v2692, %v2708
        %v2727 = vmul.f32 %v2693, %v2709
        %v2728 = vmul.f32 %v2694, %v2708
        %v2729 = vmul.f32 %v2695, %v2709
        %v2730 = vmul.f32 %v2696, %v2708
        %v2731 = vmul.f32 %v2697, %v2709
        %v2732 = vmul.f32 %v2698, %v2708
        %v2733 = vmul.f32 %v2699, %v2709
        %v2734 = vmul.f32 %v2700, %v2708
        %v2735 = vmul.f32 %v2701, %v2709
        %v2736 = vmul.f32 %v2702, %v2708
        %v2737 = vmul.f32 %v2703, %v2709
        %v2738 = vmul.f32 %v2704, %v2708
        %v2739 = vmul.f32 %v2705, %v2709
        %v2740 = vmul.f32 %v2706, %v2708
        %v2741 = vmul.f32 %v2707, %v2709
        %v2758 = vrot.slane %v2328, 1
        %v2759 = vrot.slane %v2329, 1
        %v2760 = vrot.slane %v2330, 1
        %v2761 = vrot.slane %v2331, 1
        %v2762 = vrot.slane %v2332, 1
        %v2763 = vrot.slane %v2333, 1
        %v2764 = vrot.slane %v2334, 1
        %v2765 = vrot.slane %v2335, 1
        %v2766 = vrot.slane %v2336, 1
        %v2767 = vrot.slane %v2337, 1
        %v2768 = vrot.slane %v2338, 1
        %v2769 = vrot.slane %v2339, 1
        %v2770 = vrot.slane %v2340, 1
        %v2771 = vrot.slane %v2341, 1
        %v2772 = vrot.slane %v2342, 1
        %v2773 = vrot.slane %v2343, 1
        %v2790 = vadd.f32 %v2278, %v2758
        %v2791 = vadd.f32 %v2279, %v2759
        %v2792 = vadd.f32 %v2280, %v2758
        %v2793 = vadd.f32 %v2281, %v2759
        %v2794 = vadd.f32 %v2282, %v2760
        %v2795 = vadd.f32 %v2283, %v2761
        %v2796 = vadd.f32 %v2284, %v2760
        %v2797 = vadd.f32 %v2285, %v2761
        %v2798 = vadd.f32 %v2286, %v2762
        %v2799 = vadd.f32 %v2287, %v2763
        %v2800 = vadd.f32 %v2288, %v2762
        %v2801 = vadd.f32 %v2289, %v2763
        %v2802 = vadd.f32 %v2290, %v2764
        %v2803 = vadd.f32 %v2291, %v2765
        %v2804 = vadd.f32 %v2292, %v2764
        %v2805 = vadd.f32 %v2293, %v2765
        %v2806 = vadd.f32 %v2294, %v2766
        %v2807 = vadd.f32 %v2295, %v2767
        %v2808 = vadd.f32 %v2296, %v2766
        %v2809 = vadd.f32 %v2297, %v2767
        %v2810 = vadd.f32 %v2298, %v2768
        %v2811 = vadd.f32 %v2299, %v2769
        %v2812 = vadd.f32 %v2300, %v2768
        %v2813 = vadd.f32 %v2301, %v2769
        %v2814 = vadd.f32 %v2302, %v2770
        %v2815 = vadd.f32 %v2303, %v2771
        %v2816 = vadd.f32 %v2304, %v2770
        %v2817 = vadd.f32 %v2305, %v2771
        %v2818 = vadd.f32 %v2306, %v2772
        %v2819 = vadd.f32 %v2307, %v2773
        %v2820 = vadd.f32 %v2308, %v2772
        %v2821 = vadd.f32 %v2309, %v2773
        %v2854 = vrot.slane %v2444, 6
        %v2855 = vrot.slane %v2446, 6
        %v2856 = vsel %vm969, %v2854, %v2855
        %v2857 = vrot.slane %v2445, 6
        %v2858 = vrot.slane %v2447, 6
        %v2859 = vsel %vm969, %v2857, %v2858
        %v2860 = vrot.slane %v2448, 6
        %v2861 = vrot.slane %v2450, 6
        %v2862 = vsel %vm969, %v2860, %v2861
        %v2863 = vrot.slane %v2449, 6
        %v2864 = vrot.slane %v2451, 6
        %v2865 = vsel %vm969, %v2863, %v2864
        %v2866 = vrot.slane %v2452, 6
        %v2867 = vrot.slane %v2454, 6
        %v2868 = vsel %vm969, %v2866, %v2867
        %v2869 = vrot.slane %v2453, 6
        %v2870 = vrot.slane %v2455, 6
        %v2871 = vsel %vm969, %v2869, %v2870
        %v2872 = vrot.slane %v2456, 6
        %v2873 = vrot.slane %v2458, 6
        %v2874 = vsel %vm969, %v2872, %v2873
        %v2875 = vrot.slane %v2457, 6
        %v2876 = vrot.slane %v2459, 6
        %v2877 = vsel %vm969, %v2875, %v2876
        %v2878 = vrot.slane %v2460, 6
        %v2879 = vrot.slane %v2462, 6
        %v2880 = vsel %vm969, %v2878, %v2879
        %v2881 = vrot.slane %v2461, 6
        %v2882 = vrot.slane %v2463, 6
        %v2883 = vsel %vm969, %v2881, %v2882
        %v2884 = vrot.slane %v2464, 6
        %v2885 = vrot.slane %v2466, 6
        %v2886 = vsel %vm969, %v2884, %v2885
        %v2887 = vrot.slane %v2465, 6
        %v2888 = vrot.slane %v2467, 6
        %v2889 = vsel %vm969, %v2887, %v2888
        %v2890 = vrot.slane %v2468, 6
        %v2891 = vrot.slane %v2470, 6
        %v2892 = vsel %vm969, %v2890, %v2891
        %v2893 = vrot.slane %v2469, 6
        %v2894 = vrot.slane %v2471, 6
        %v2895 = vsel %vm969, %v2893, %v2894
        %v2896 = vrot.slane %v2472, 6
        %v2897 = vrot.slane %v2474, 6
        %v2898 = vsel %vm969, %v2896, %v2897
        %v2899 = vrot.slane %v2473, 6
        %v2900 = vrot.slane %v2475, 6
        %v2901 = vsel %vm969, %v2899, %v2900
        %v2934 = vadd.f32 %v2378, %v2856
        %v2935 = vadd.f32 %v2379, %v2859
        %v2936 = vadd.f32 %v2380, %v2855
        %v2937 = vadd.f32 %v2381, %v2858
        %v2938 = vadd.f32 %v2382, %v2862
        %v2939 = vadd.f32 %v2383, %v2865
        %v2940 = vadd.f32 %v2384, %v2861
        %v2941 = vadd.f32 %v2385, %v2864
        %v2942 = vadd.f32 %v2386, %v2868
        %v2943 = vadd.f32 %v2387, %v2871
        %v2944 = vadd.f32 %v2388, %v2867
        %v2945 = vadd.f32 %v2389, %v2870
        %v2946 = vadd.f32 %v2390, %v2874
        %v2947 = vadd.f32 %v2391, %v2877
        %v2948 = vadd.f32 %v2392, %v2873
        %v2949 = vadd.f32 %v2393, %v2876
        %v2950 = vadd.f32 %v2394, %v2880
        %v2951 = vadd.f32 %v2395, %v2883
        %v2952 = vadd.f32 %v2396, %v2879
        %v2953 = vadd.f32 %v2397, %v2882
        %v2954 = vadd.f32 %v2398, %v2886
        %v2955 = vadd.f32 %v2399, %v2889
        %v2956 = vadd.f32 %v2400, %v2885
        %v2957 = vadd.f32 %v2401, %v2888
        %v2958 = vadd.f32 %v2402, %v2892
        %v2959 = vadd.f32 %v2403, %v2895
        %v2960 = vadd.f32 %v2404, %v2891
        %v2961 = vadd.f32 %v2405, %v2894
        %v2962 = vadd.f32 %v2406, %v2898
        %v2963 = vadd.f32 %v2407, %v2901
        %v2964 = vadd.f32 %v2408, %v2897
        %v2965 = vadd.f32 %v2409, %v2900
        %v2998 = vrot.slane %v2544, 1
        %v2999 = vrot.slane %v2546, 1
        %v3000 = vsel %vm1114, %v2998, %v2999
        %v3001 = vrot.slane %v2545, 1
        %v3002 = vrot.slane %v2547, 1
        %v3003 = vsel %vm1114, %v3001, %v3002
        %v3004 = vrot.slane %v2548, 1
        %v3005 = vrot.slane %v2550, 1
        %v3006 = vsel %vm1114, %v3004, %v3005
        %v3007 = vrot.slane %v2549, 1
        %v3008 = vrot.slane %v2551, 1
        %v3009 = vsel %vm1114, %v3007, %v3008
        %v3010 = vrot.slane %v2552, 1
        %v3011 = vrot.slane %v2554, 1
        %v3012 = vsel %vm1114, %v3010, %v3011
        %v3013 = vrot.slane %v2553, 1
        %v3014 = vrot.slane %v2555, 1
        %v3015 = vsel %vm1114, %v3013, %v3014
        %v3016 = vrot.slane %v2556, 1
        %v3017 = vrot.slane %v2558, 1
        %v3018 = vsel %vm1114, %v3016, %v3017
        %v3019 = vrot.slane %v2557, 1
        %v3020 = vrot.slane %v2559, 1
        %v3021 = vsel %vm1114, %v3019, %v3020
        %v3022 = vrot.slane %v2560, 1
        %v3023 = vrot.slane %v2562, 1
        %v3024 = vsel %vm1114, %v3022, %v3023
        %v3025 = vrot.slane %v2561, 1
        %v3026 = vrot.slane %v2563, 1
        %v3027 = vsel %vm1114, %v3025, %v3026
        %v3028 = vrot.slane %v2564, 1
        %v3029 = vrot.slane %v2566, 1
        %v3030 = vsel %vm1114, %v3028, %v3029
        %v3031 = vrot.slane %v2565, 1
        %v3032 = vrot.slane %v2567, 1
        %v3033 = vsel %vm1114, %v3031, %v3032
        %v3034 = vrot.slane %v2568, 1
        %v3035 = vrot.slane %v2570, 1
        %v3036 = vsel %vm1114, %v3034, %v3035
        %v3037 = vrot.slane %v2569, 1
        %v3038 = vrot.slane %v2571, 1
        %v3039 = vsel %vm1114, %v3037, %v3038
        %v3040 = vrot.slane %v2572, 1
        %v3041 = vrot.slane %v2574, 1
        %v3042 = vsel %vm1114, %v3040, %v3041
        %v3043 = vrot.slane %v2573, 1
        %v3044 = vrot.slane %v2575, 1
        %v3045 = vsel %vm1114, %v3043, %v3044
        %v3062 = vadd.f32 %v2494, %v3000
        %v3063 = vadd.f32 %v2495, %v3003
        %v3064 = vadd.f32 %v2496, %v3006
        %v3065 = vadd.f32 %v2497, %v3009
        %v3066 = vadd.f32 %v2498, %v3012
        %v3067 = vadd.f32 %v2499, %v3015
        %v3068 = vadd.f32 %v2500, %v3018
        %v3069 = vadd.f32 %v2501, %v3021
        %v3070 = vadd.f32 %v2502, %v3024
        %v3071 = vadd.f32 %v2503, %v3027
        %v3072 = vadd.f32 %v2504, %v3030
        %v3073 = vadd.f32 %v2505, %v3033
        %v3074 = vadd.f32 %v2506, %v3036
        %v3075 = vadd.f32 %v2507, %v3039
        %v3076 = vadd.f32 %v2508, %v3042
        %v3077 = vadd.f32 %v2509, %v3045
        %v3094 = vrot.slane %v2660, 1
        %v3095 = vrot.slane %v2661, 1
        %v3096 = vrot.slane %v2662, 1
        %v3097 = vrot.slane %v2663, 1
        %v3098 = vrot.slane %v2664, 1
        %v3099 = vrot.slane %v2665, 1
        %v3100 = vrot.slane %v2666, 1
        %v3101 = vrot.slane %v2667, 1
        %v3102 = vrot.slane %v2668, 1
        %v3103 = vrot.slane %v2669, 1
        %v3104 = vrot.slane %v2670, 1
        %v3105 = vrot.slane %v2671, 1
        %v3106 = vrot.slane %v2672, 1
        %v3107 = vrot.slane %v2673, 1
        %v3108 = vrot.slane %v2674, 1
        %v3109 = vrot.slane %v2675, 1
        %v3126 = vadd.f32 %v2610, %v3094
        %v3127 = vadd.f32 %v2611, %v3095
        %v3128 = vadd.f32 %v2612, %v3094
        %v3129 = vadd.f32 %v2613, %v3095
        %v3130 = vadd.f32 %v2614, %v3096
        %v3131 = vadd.f32 %v2615, %v3097
        %v3132 = vadd.f32 %v2616, %v3096
        %v3133 = vadd.f32 %v2617, %v3097
        %v3134 = vadd.f32 %v2618, %v3098
        %v3135 = vadd.f32 %v2619, %v3099
        %v3136 = vadd.f32 %v2620, %v3098
        %v3137 = vadd.f32 %v2621, %v3099
        %v3138 = vadd.f32 %v2622, %v3100
        %v3139 = vadd.f32 %v2623, %v3101
        %v3140 = vadd.f32 %v2624, %v3100
        %v3141 = vadd.f32 %v2625, %v3101
        %v3142 = vadd.f32 %v2626, %v3102
        %v3143 = vadd.f32 %v2627, %v3103
        %v3144 = vadd.f32 %v2628, %v3102
        %v3145 = vadd.f32 %v2629, %v3103
        %v3146 = vadd.f32 %v2630, %v3104
        %v3147 = vadd.f32 %v2631, %v3105
        %v3148 = vadd.f32 %v2632, %v3104
        %v3149 = vadd.f32 %v2633, %v3105
        %v3150 = vadd.f32 %v2634, %v3106
        %v3151 = vadd.f32 %v2635, %v3107
        %v3152 = vadd.f32 %v2636, %v3106
        %v3153 = vadd.f32 %v2637, %v3107
        %v3154 = vadd.f32 %v2638, %v3108
        %v3155 = vadd.f32 %v2639, %v3109
        %v3156 = vadd.f32 %v2640, %v3108
        %v3157 = vadd.f32 %v2641, %v3109
        %v3190 = vrot.slane %v2934, 2
        %v3191 = vrot.slane %v2935, 2
        %v3192 = vrot.slane %v2936, 2
        %v3193 = vsel %vm1307, %v3190, %v3192
        %v3194 = vrot.slane %v2937, 2
        %v3195 = vsel %vm1307, %v3191, %v3194
        %v3196 = vrot.slane %v2938, 2
        %v3197 = vrot.slane %v2939, 2
        %v3198 = vrot.slane %v2940, 2
        %v3199 = vsel %vm1307, %v3196, %v3198
        %v3200 = vrot.slane %v2941, 2
        %v3201 = vsel %vm1307, %v3197, %v3200
        %v3202 = vrot.slane %v2942, 2
        %v3203 = vrot.slane %v2943, 2
        %v3204 = vrot.slane %v2944, 2
        %v3205 = vsel %vm1307, %v3202, %v3204
        %v3206 = vrot.slane %v2945, 2
        %v3207 = vsel %vm1307, %v3203, %v3206
        %v3208 = vrot.slane %v2946, 2
        %v3209 = vrot.slane %v2947, 2
        %v3210 = vrot.slane %v2948, 2
        %v3211 = vsel %vm1307, %v3208, %v3210
        %v3212 = vrot.slane %v2949, 2
        %v3213 = vsel %vm1307, %v3209, %v3212
        %v3214 = vrot.slane %v2950, 2
        %v3215 = vrot.slane %v2951, 2
        %v3216 = vrot.slane %v2952, 2
        %v3217 = vsel %vm1307, %v3214, %v3216
        %v3218 = vrot.slane %v2953, 2
        %v3219 = vsel %vm1307, %v3215, %v3218
        %v3220 = vrot.slane %v2954, 2
        %v3221 = vrot.slane %v2955, 2
        %v3222 = vrot.slane %v2956, 2
        %v3223 = vsel %vm1307, %v3220, %v3222
        %v3224 = vrot.slane %v2957, 2
        %v3225 = vsel %vm1307, %v3221, %v3224
        %v3226 = vrot.slane %v2958, 2
        %v3227 = vrot.slane %v2959, 2
        %v3228 = vrot.slane %v2960, 2
        %v3229 = vsel %vm1307, %v3226, %v3228
        %v3230 = vrot.slane %v2961, 2
        %v3231 = vsel %vm1307, %v3227, %v3230
        %v3232 = vrot.slane %v2962, 2
        %v3233 = vrot.slane %v2963, 2
        %v3234 = vrot.slane %v2964, 2
        %v3235 = vsel %vm1307, %v3232, %v3234
        %v3236 = vrot.slane %v2965, 2
        %v3237 = vsel %vm1307, %v3233, %v3236
        %v3270 = vadd.f32 %v2790, %v3190
        %v3271 = vadd.f32 %v2791, %v3191
        %v3272 = vadd.f32 %v2792, %v3193
        %v3273 = vadd.f32 %v2793, %v3195
        %v3274 = vadd.f32 %v2794, %v3196
        %v3275 = vadd.f32 %v2795, %v3197
        %v3276 = vadd.f32 %v2796, %v3199
        %v3277 = vadd.f32 %v2797, %v3201
        %v3278 = vadd.f32 %v2798, %v3202
        %v3279 = vadd.f32 %v2799, %v3203
        %v3280 = vadd.f32 %v2800, %v3205
        %v3281 = vadd.f32 %v2801, %v3207
        %v3282 = vadd.f32 %v2802, %v3208
        %v3283 = vadd.f32 %v2803, %v3209
        %v3284 = vadd.f32 %v2804, %v3211
        %v3285 = vadd.f32 %v2805, %v3213
        %v3286 = vadd.f32 %v2806, %v3214
        %v3287 = vadd.f32 %v2807, %v3215
        %v3288 = vadd.f32 %v2808, %v3217
        %v3289 = vadd.f32 %v2809, %v3219
        %v3290 = vadd.f32 %v2810, %v3220
        %v3291 = vadd.f32 %v2811, %v3221
        %v3292 = vadd.f32 %v2812, %v3223
        %v3293 = vadd.f32 %v2813, %v3225
        %v3294 = vadd.f32 %v2814, %v3226
        %v3295 = vadd.f32 %v2815, %v3227
        %v3296 = vadd.f32 %v2816, %v3229
        %v3297 = vadd.f32 %v2817, %v3231
        %v3298 = vadd.f32 %v2818, %v3232
        %v3299 = vadd.f32 %v2819, %v3233
        %v3300 = vadd.f32 %v2820, %v3235
        %v3301 = vadd.f32 %v2821, %v3237
        %v3334 = vrot.slane %v3126, 7
        %v3335 = vrot.slane %v3128, 7
        %v3336 = vsel %vm1452, %v3334, %v3335
        %v3337 = vrot.slane %v3127, 7
        %v3338 = vrot.slane %v3129, 7
        %v3339 = vsel %vm1452, %v3337, %v3338
        %v3340 = vrot.slane %v3130, 7
        %v3341 = vrot.slane %v3132, 7
        %v3342 = vsel %vm1452, %v3340, %v3341
        %v3343 = vrot.slane %v3131, 7
        %v3344 = vrot.slane %v3133, 7
        %v3345 = vsel %vm1452, %v3343, %v3344
        %v3346 = vrot.slane %v3134, 7
        %v3347 = vrot.slane %v3136, 7
        %v3348 = vsel %vm1452, %v3346, %v3347
        %v3349 = vrot.slane %v3135, 7
        %v3350 = vrot.slane %v3137, 7
        %v3351 = vsel %vm1452, %v3349, %v3350
        %v3352 = vrot.slane %v3138, 7
        %v3353 = vrot.slane %v3140, 7
        %v3354 = vsel %vm1452, %v3352, %v3353
        %v3355 = vrot.slane %v3139, 7
        %v3356 = vrot.slane %v3141, 7
        %v3357 = vsel %vm1452, %v3355, %v3356
        %v3358 = vrot.slane %v3142, 7
        %v3359 = vrot.slane %v3144, 7
        %v3360 = vsel %vm1452, %v3358, %v3359
        %v3361 = vrot.slane %v3143, 7
        %v3362 = vrot.slane %v3145, 7
        %v3363 = vsel %vm1452, %v3361, %v3362
        %v3364 = vrot.slane %v3146, 7
        %v3365 = vrot.slane %v3148, 7
        %v3366 = vsel %vm1452, %v3364, %v3365
        %v3367 = vrot.slane %v3147, 7
        %v3368 = vrot.slane %v3149, 7
        %v3369 = vsel %vm1452, %v3367, %v3368
        %v3370 = vrot.slane %v3150, 7
        %v3371 = vrot.slane %v3152, 7
        %v3372 = vsel %vm1452, %v3370, %v3371
        %v3373 = vrot.slane %v3151, 7
        %v3374 = vrot.slane %v3153, 7
        %v3375 = vsel %vm1452, %v3373, %v3374
        %v3376 = vrot.slane %v3154, 7
        %v3377 = vrot.slane %v3156, 7
        %v3378 = vsel %vm1452, %v3376, %v3377
        %v3379 = vrot.slane %v3155, 7
        %v3380 = vrot.slane %v3157, 7
        %v3381 = vsel %vm1452, %v3379, %v3380
        %v3398 = vadd.f32 %v3062, %v3336
        %v3399 = vadd.f32 %v3063, %v3339
        %v3400 = vadd.f32 %v3064, %v3342
        %v3401 = vadd.f32 %v3065, %v3345
        %v3402 = vadd.f32 %v3066, %v3348
        %v3403 = vadd.f32 %v3067, %v3351
        %v3404 = vadd.f32 %v3068, %v3354
        %v3405 = vadd.f32 %v3069, %v3357
        %v3406 = vadd.f32 %v3070, %v3360
        %v3407 = vadd.f32 %v3071, %v3363
        %v3408 = vadd.f32 %v3072, %v3366
        %v3409 = vadd.f32 %v3073, %v3369
        %v3410 = vadd.f32 %v3074, %v3372
        %v3411 = vadd.f32 %v3075, %v3375
        %v3412 = vadd.f32 %v3076, %v3378
        %v3413 = vadd.f32 %v3077, %v3381
        %v3430 = vrot.slane %v3398, 1
        %v3431 = vrot.slane %v3399, 1
        %v3432 = vrot.slane %v3400, 1
        %v3433 = vrot.slane %v3401, 1
        %v3434 = vrot.slane %v3402, 1
        %v3435 = vrot.slane %v3403, 1
        %v3436 = vrot.slane %v3404, 1
        %v3437 = vrot.slane %v3405, 1
        %v3438 = vrot.slane %v3406, 1
        %v3439 = vrot.slane %v3407, 1
        %v3440 = vrot.slane %v3408, 1
        %v3441 = vrot.slane %v3409, 1
        %v3442 = vrot.slane %v3410, 1
        %v3443 = vrot.slane %v3411, 1
        %v3444 = vrot.slane %v3412, 1
        %v3445 = vrot.slane %v3413, 1
        %v3462 = vadd.f32 %v3270, %v3430
        %v3463 = vadd.f32 %v3271, %v3431
        %v3464 = vadd.f32 %v3272, %v3430
        %v3465 = vadd.f32 %v3273, %v3431
        %v3466 = vadd.f32 %v3274, %v3432
        %v3467 = vadd.f32 %v3275, %v3433
        %v3468 = vadd.f32 %v3276, %v3432
        %v3469 = vadd.f32 %v3277, %v3433
        %v3470 = vadd.f32 %v3278, %v3434
        %v3471 = vadd.f32 %v3279, %v3435
        %v3472 = vadd.f32 %v3280, %v3434
        %v3473 = vadd.f32 %v3281, %v3435
        %v3474 = vadd.f32 %v3282, %v3436
        %v3475 = vadd.f32 %v3283, %v3437
        %v3476 = vadd.f32 %v3284, %v3436
        %v3477 = vadd.f32 %v3285, %v3437
        %v3478 = vadd.f32 %v3286, %v3438
        %v3479 = vadd.f32 %v3287, %v3439
        %v3480 = vadd.f32 %v3288, %v3438
        %v3481 = vadd.f32 %v3289, %v3439
        %v3482 = vadd.f32 %v3290, %v3440
        %v3483 = vadd.f32 %v3291, %v3441
        %v3484 = vadd.f32 %v3292, %v3440
        %v3485 = vadd.f32 %v3293, %v3441
        %v3486 = vadd.f32 %v3294, %v3442
        %v3487 = vadd.f32 %v3295, %v3443
        %v3488 = vadd.f32 %v3296, %v3442
        %v3489 = vadd.f32 %v3297, %v3443
        %v3490 = vadd.f32 %v3298, %v3444
        %v3491 = vadd.f32 %v3299, %v3445
        %v3492 = vadd.f32 %v3300, %v3444
        %v3493 = vadd.f32 %v3301, %v3445
        %v3526 = vrot.slane %v2710, 2
        %v3527 = vrot.slane %v2711, 2
        %v3528 = vrot.slane %v2712, 2
        %v3529 = vsel %vm1307, %v3526, %v3528
        %v3530 = vrot.slane %v2713, 2
        %v3531 = vsel %vm1307, %v3527, %v3530
        %v3532 = vrot.slane %v2714, 2
        %v3533 = vrot.slane %v2715, 2
        %v3534 = vrot.slane %v2716, 2
        %v3535 = vsel %vm1307, %v3532, %v3534
        %v3536 = vrot.slane %v2717, 2
        %v3537 = vsel %vm1307, %v3533, %v3536
        %v3538 = vrot.slane %v2718, 2
        %v3539 = vrot.slane %v2719, 2
        %v3540 = vrot.slane %v2720, 2
        %v3541 = vsel %vm1307, %v3538, %v3540
        %v3542 = vrot.slane %v2721, 2
        %v3543 = vsel %vm1307, %v3539, %v3542
        %v3544 = vrot.slane %v2722, 2
        %v3545 = vrot.slane %v2723, 2
        %v3546 = vrot.slane %v2724, 2
        %v3547 = vsel %vm1307, %v3544, %v3546
        %v3548 = vrot.slane %v2725, 2
        %v3549 = vsel %vm1307, %v3545, %v3548
        %v3550 = vrot.slane %v2726, 2
        %v3551 = vrot.slane %v2727, 2
        %v3552 = vrot.slane %v2728, 2
        %v3553 = vsel %vm1307, %v3550, %v3552
        %v3554 = vrot.slane %v2729, 2
        %v3555 = vsel %vm1307, %v3551, %v3554
        %v3556 = vrot.slane %v2730, 2
        %v3557 = vrot.slane %v2731, 2
        %v3558 = vrot.slane %v2732, 2
        %v3559 = vsel %vm1307, %v3556, %v3558
        %v3560 = vrot.slane %v2733, 2
        %v3561 = vsel %vm1307, %v3557, %v3560
        %v3562 = vrot.slane %v2734, 2
        %v3563 = vrot.slane %v2735, 2
        %v3564 = vrot.slane %v2736, 2
        %v3565 = vsel %vm1307, %v3562, %v3564
        %v3566 = vrot.slane %v2737, 2
        %v3567 = vsel %vm1307, %v3563, %v3566
        %v3568 = vrot.slane %v2738, 2
        %v3569 = vrot.slane %v2739, 2
        %v3570 = vrot.slane %v2740, 2
        %v3571 = vsel %vm1307, %v3568, %v3570
        %v3572 = vrot.slane %v2741, 2
        %v3573 = vsel %vm1307, %v3569, %v3572
        %v3606 = vadd.f32 %v3462, %v3526
        %v3607 = vadd.f32 %v3463, %v3527
        %v3608 = vadd.f32 %v3464, %v3529
        %v3609 = vadd.f32 %v3465, %v3531
        %v3610 = vadd.f32 %v3466, %v3532
        %v3611 = vadd.f32 %v3467, %v3533
        %v3612 = vadd.f32 %v3468, %v3535
        %v3613 = vadd.f32 %v3469, %v3537
        %v3614 = vadd.f32 %v3470, %v3538
        %v3615 = vadd.f32 %v3471, %v3539
        %v3616 = vadd.f32 %v3472, %v3541
        %v3617 = vadd.f32 %v3473, %v3543
        %v3618 = vadd.f32 %v3474, %v3544
        %v3619 = vadd.f32 %v3475, %v3545
        %v3620 = vadd.f32 %v3476, %v3547
        %v3621 = vadd.f32 %v3477, %v3549
        %v3622 = vadd.f32 %v3478, %v3550
        %v3623 = vadd.f32 %v3479, %v3551
        %v3624 = vadd.f32 %v3480, %v3553
        %v3625 = vadd.f32 %v3481, %v3555
        %v3626 = vadd.f32 %v3482, %v3556
        %v3627 = vadd.f32 %v3483, %v3557
        %v3628 = vadd.f32 %v3484, %v3559
        %v3629 = vadd.f32 %v3485, %v3561
        %v3630 = vadd.f32 %v3486, %v3562
        %v3631 = vadd.f32 %v3487, %v3563
        %v3632 = vadd.f32 %v3488, %v3565
        %v3633 = vadd.f32 %v3489, %v3567
        %v3634 = vadd.f32 %v3490, %v3568
        %v3635 = vadd.f32 %v3491, %v3569
        %v3636 = vadd.f32 %v3492, %v3571
        %v3637 = vadd.f32 %v3493, %v3573
        %v3670 = vrot.slane %v3606, 7
        %v3671 = vrot.slane %v3608, 7
        %v3672 = vsel %vm1452, %v3670, %v3671
        %v3673 = vrot.slane %v3607, 7
        %v3674 = vrot.slane %v3609, 7
        %v3675 = vsel %vm1452, %v3673, %v3674
        %v3676 = vrot.slane %v3610, 7
        %v3677 = vrot.slane %v3612, 7
        %v3678 = vsel %vm1452, %v3676, %v3677
        %v3679 = vrot.slane %v3611, 7
        %v3680 = vrot.slane %v3613, 7
        %v3681 = vsel %vm1452, %v3679, %v3680
        %v3682 = vrot.slane %v3614, 7
        %v3683 = vrot.slane %v3616, 7
        %v3684 = vsel %vm1452, %v3682, %v3683
        %v3685 = vrot.slane %v3615, 7
        %v3686 = vrot.slane %v3617, 7
        %v3687 = vsel %vm1452, %v3685, %v3686
        %v3688 = vrot.slane %v3618, 7
        %v3689 = vrot.slane %v3620, 7
        %v3690 = vsel %vm1452, %v3688, %v3689
        %v3691 = vrot.slane %v3619, 7
        %v3692 = vrot.slane %v3621, 7
        %v3693 = vsel %vm1452, %v3691, %v3692
        %v3694 = vrot.slane %v3622, 7
        %v3695 = vrot.slane %v3624, 7
        %v3696 = vsel %vm1452, %v3694, %v3695
        %v3697 = vrot.slane %v3623, 7
        %v3698 = vrot.slane %v3625, 7
        %v3699 = vsel %vm1452, %v3697, %v3698
        %v3700 = vrot.slane %v3626, 7
        %v3701 = vrot.slane %v3628, 7
        %v3702 = vsel %vm1452, %v3700, %v3701
        %v3703 = vrot.slane %v3627, 7
        %v3704 = vrot.slane %v3629, 7
        %v3705 = vsel %vm1452, %v3703, %v3704
        %v3706 = vrot.slane %v3630, 7
        %v3707 = vrot.slane %v3632, 7
        %v3708 = vsel %vm1452, %v3706, %v3707
        %v3709 = vrot.slane %v3631, 7
        %v3710 = vrot.slane %v3633, 7
        %v3711 = vsel %vm1452, %v3709, %v3710
        %v3712 = vrot.slane %v3634, 7
        %v3713 = vrot.slane %v3636, 7
        %v3714 = vsel %vm1452, %v3712, %v3713
        %v3715 = vrot.slane %v3635, 7
        %v3716 = vrot.slane %v3637, 7
        %v3717 = vsel %vm1452, %v3715, %v3716
        %v3734 = vpack.c.bf16 %v3678, %v3672
        %v3735 = vpack.c.bf16 %v3681, %v3675
        %v3736 = vpack.c.bf16 %v3690, %v3684
        %v3737 = vpack.c.bf16 %v3693, %v3687
        %v3738 = vpack.c.bf16 %v3702, %v3696
        %v3739 = vpack.c.bf16 %v3705, %v3699
        %v3740 = vpack.c.bf16 %v3714, %v3708
        %v3741 = vpack.c.bf16 %v3717, %v3711
        %s3742 = scalar_lea.vmem [#allocation3], 256
        %v3743 = vld [vmem:[%s3742] sm:$0xff]
        %v3744 = vld [vmem:[%s3742 + $0x8] sm:$0xff]
        %v3745 = vld [vmem:[%s3742 + $0x10] sm:$0xff]
        %v3746 = vld [vmem:[%s3742 + $0x18] sm:$0xff]
        %v3747 = vld [vmem:[%s3742 + $0x20] sm:$0xff]
        %v3748 = vld [vmem:[%s3742 + $0x28] sm:$0xff]
        %v3749 = vld [vmem:[%s3742 + $0x30] sm:$0xff]
        %v3750 = vld [vmem:[%s3742 + $0x38] sm:$0xff]
        %v3751 = vld [vmem:[%s3742 + $0x40] sm:$0xff]
        %v3752 = vld [vmem:[%s3742 + $0x48] sm:$0xff]
        %v3753 = vld [vmem:[%s3742 + $0x50] sm:$0xff]
        %v3754 = vld [vmem:[%s3742 + $0x58] sm:$0xff]
        %v3755 = vld [vmem:[%s3742 + $0x60] sm:$0xff]
        %v3756 = vld [vmem:[%s3742 + $0x68] sm:$0xff]
        %v3757 = vld [vmem:[%s3742 + $0x70] sm:$0xff]
        %v3758 = vld [vmem:[%s3742 + $0x78] sm:$0xff]
        %v3759 = vld [vmem:[%s3742 + $0x80] sm:$0xff]
        %v3760 = vld [vmem:[%s3742 + $0x88] sm:$0xff]
        %v3761 = vld [vmem:[%s3742 + $0x90] sm:$0xff]
        %v3762 = vld [vmem:[%s3742 + $0x98] sm:$0xff]
        %v3763 = vld [vmem:[%s3742 + $0xa0] sm:$0xff]
        %v3764 = vld [vmem:[%s3742 + $0xa8] sm:$0xff]
        %v3765 = vld [vmem:[%s3742 + $0xb0] sm:$0xff]
        %v3766 = vld [vmem:[%s3742 + $0xb8] sm:$0xff]
        %v3767 = vld [vmem:[%s3742 + $0xc0] sm:$0xff]
        %v3768 = vld [vmem:[%s3742 + $0xc8] sm:$0xff]
        %v3769 = vld [vmem:[%s3742 + $0xd0] sm:$0xff]
        %v3770 = vld [vmem:[%s3742 + $0xd8] sm:$0xff]
        %v3771 = vld [vmem:[%s3742 + $0xe0] sm:$0xff]
        %v3772 = vld [vmem:[%s3742 + $0xe8] sm:$0xff]
        %v3773 = vld [vmem:[%s3742 + $0xf0] sm:$0xff]
        %v3774 = vld [vmem:[%s3742 + $0xf8] sm:$0xff]
        %s3775 = scalar_lea.vmem %s3, 2
        %v3776 = vld [vmem:[%s3775] sm:$0x3]
        %v3778 = vperm.slane %v3776, 0
        %v3779 = vperm.slane %v3776, 1
        %v3814 = vunpack.c.l.b16 %v3743
        %v3815 = vunpack.c.h.b16 %v3743
        %v3816 = vunpack.c.l.b16 %v3744
        %v3817 = vunpack.c.h.b16 %v3744
        %v3818 = vunpack.c.l.b16 %v3745
        %v3819 = vunpack.c.h.b16 %v3745
        %v3820 = vunpack.c.l.b16 %v3746
        %v3821 = vunpack.c.h.b16 %v3746
        %v3822 = vunpack.c.l.b16 %v3747
        %v3823 = vunpack.c.h.b16 %v3747
        %v3824 = vunpack.c.l.b16 %v3748
        %v3825 = vunpack.c.h.b16 %v3748
        %v3826 = vunpack.c.l.b16 %v3749
        %v3827 = vunpack.c.h.b16 %v3749
        %v3828 = vunpack.c.l.b16 %v3750
        %v3829 = vunpack.c.h.b16 %v3750
        %v3830 = vunpack.c.l.b16 %v3751
        %v3831 = vunpack.c.h.b16 %v3751
        %v3832 = vunpack.c.l.b16 %v3752
        %v3833 = vunpack.c.h.b16 %v3752
        %v3834 = vunpack.c.l.b16 %v3753
        %v3835 = vunpack.c.h.b16 %v3753
        %v3836 = vunpack.c.l.b16 %v3754
        %v3837 = vunpack.c.h.b16 %v3754
        %v3838 = vunpack.c.l.b16 %v3755
        %v3839 = vunpack.c.h.b16 %v3755
        %v3840 = vunpack.c.l.b16 %v3756
        %v3841 = vunpack.c.h.b16 %v3756
        %v3842 = vunpack.c.l.b16 %v3757
        %v3843 = vunpack.c.h.b16 %v3757
        %v3844 = vunpack.c.l.b16 %v3758
        %v3845 = vunpack.c.h.b16 %v3758
        %v3846 = vunpack.c.l.b16 %v3759
        %v3847 = vunpack.c.h.b16 %v3759
        %v3848 = vunpack.c.l.b16 %v3760
        %v3849 = vunpack.c.h.b16 %v3760
        %v3850 = vunpack.c.l.b16 %v3761
        %v3851 = vunpack.c.h.b16 %v3761
        %v3852 = vunpack.c.l.b16 %v3762
        %v3853 = vunpack.c.h.b16 %v3762
        %v3854 = vunpack.c.l.b16 %v3763
        %v3855 = vunpack.c.h.b16 %v3763
        %v3856 = vunpack.c.l.b16 %v3764
        %v3857 = vunpack.c.h.b16 %v3764
        %v3858 = vunpack.c.l.b16 %v3765
        %v3859 = vunpack.c.h.b16 %v3765
        %v3860 = vunpack.c.l.b16 %v3766
        %v3861 = vunpack.c.h.b16 %v3766
        %v3862 = vunpack.c.l.b16 %v3767
        %v3863 = vunpack.c.h.b16 %v3767
        %v3864 = vunpack.c.l.b16 %v3768
        %v3865 = vunpack.c.h.b16 %v3768
        %v3866 = vunpack.c.l.b16 %v3769
        %v3867 = vunpack.c.h.b16 %v3769
        %v3868 = vunpack.c.l.b16 %v3770
        %v3869 = vunpack.c.h.b16 %v3770
        %v3870 = vunpack.c.l.b16 %v3771
        %v3871 = vunpack.c.h.b16 %v3771
        %v3872 = vunpack.c.l.b16 %v3772
        %v3873 = vunpack.c.h.b16 %v3772
        %v3874 = vunpack.c.l.b16 %v3773
        %v3875 = vunpack.c.h.b16 %v3773
        %v3876 = vunpack.c.l.b16 %v3774
        %v3877 = vunpack.c.h.b16 %v3774
        %v3878 = vpack.c.b16 %v3816, %v3814
        %v3879 = vpack.c.b16 %v3817, %v3815
        %v3880 = vpack.c.b16 %v3820, %v3818
        %v3881 = vpack.c.b16 %v3821, %v3819
        %v3882 = vpack.c.b16 %v3824, %v3822
        %v3883 = vpack.c.b16 %v3825, %v3823
        %v3884 = vpack.c.b16 %v3828, %v3826
        %v3885 = vpack.c.b16 %v3829, %v3827
        %v3886 = vpack.c.b16 %v3832, %v3830
        %v3887 = vpack.c.b16 %v3833, %v3831
        %v3888 = vpack.c.b16 %v3836, %v3834
        %v3889 = vpack.c.b16 %v3837, %v3835
        %v3890 = vpack.c.b16 %v3840, %v3838
        %v3891 = vpack.c.b16 %v3841, %v3839
        %v3892 = vpack.c.b16 %v3844, %v3842
        %v3893 = vpack.c.b16 %v3845, %v3843
        %v3894 = vpack.c.b16 %v3848, %v3846
        %v3895 = vpack.c.b16 %v3849, %v3847
        %v3896 = vpack.c.b16 %v3852, %v3850
        %v3897 = vpack.c.b16 %v3853, %v3851
        %v3898 = vpack.c.b16 %v3856, %v3854
        %v3899 = vpack.c.b16 %v3857, %v3855
        %v3900 = vpack.c.b16 %v3860, %v3858
        %v3901 = vpack.c.b16 %v3861, %v3859
        %v3902 = vpack.c.b16 %v3864, %v3862
        %v3903 = vpack.c.b16 %v3865, %v3863
        %v3904 = vpack.c.b16 %v3868, %v3866
        %v3905 = vpack.c.b16 %v3869, %v3867
        %v3906 = vpack.c.b16 %v3872, %v3870
        %v3907 = vpack.c.b16 %v3873, %v3871
        %v3908 = vpack.c.b16 %v3876, %v3874
        %v3909 = vpack.c.b16 %v3877, %v3875
        %3942 = vmatpush.bf16.msra.mxu0 %v3892
        %3943 = vmatpush.bf16.msra.mxu0 %v3890
        %3944 = vmatpush.bf16.msra.mxu0 %v3888
        %3945 = vmatpush.bf16.msra.mxu0 %v3886
        %3946 = vmatpush.bf16.msra.mxu0 %v3884
        %3947 = vmatpush.bf16.msra.mxu0 %v3882
        %3948 = vmatpush.bf16.msra.mxu0 %v3880
        %3949 = vmatpush.bf16.msra.mxu0 %v3878
        %3950 = vmatmul.bf16.gmra.mxu0 %v3734
        %v3951 = vpop.f32.mrf.mxu0
        %v3952 = vadd.f32 %v3778, %v3951
        %v3953 = vpop.f32.mrf.mxu0
        %v3954 = vadd.f32 %v3778, %v3953
        %3955 = vmatmul.bf16.gmra.mxu0 %v3736
        %v3956 = vpop.f32.mrf.mxu0
        %v3957 = vadd.f32 %v3778, %v3956
        %v3958 = vpop.f32.mrf.mxu0
        %v3959 = vadd.f32 %v3778, %v3958
        %3960 = vmatmul.bf16.gmra.mxu0 %v3738
        %v3961 = vpop.f32.mrf.mxu0
        %v3962 = vadd.f32 %v3778, %v3961
        %v3963 = vpop.f32.mrf.mxu0
        %v3964 = vadd.f32 %v3778, %v3963
        %3965 = vmatmul.bf16.gmra.mxu0 %v3740
        %v3966 = vpop.f32.mrf.mxu0
        %v3967 = vadd.f32 %v3778, %v3966
        %v3968 = vpop.f32.mrf.mxu0
        %v3969 = vadd.f32 %v3778, %v3968
        %3970 = vdwg.mxu0
        %3971 = vmatpush.bf16.msra.mxu0 %v3908
        %3972 = vmatpush.bf16.msra.mxu0 %v3906
        %3973 = vmatpush.bf16.msra.mxu0 %v3904
        %3974 = vmatpush.bf16.msra.mxu0 %v3902
        %3975 = vmatpush.bf16.msra.mxu0 %v3900
        %3976 = vmatpush.bf16.msra.mxu0 %v3898
        %3977 = vmatpush.bf16.msra.mxu0 %v3896
        %3978 = vmatpush.bf16.msra.mxu0 %v3894
        %3979 = vmatmul.bf16.gmra.mxu0 %v3735
        %v3980 = vpop.f32.mrf.mxu0
        %v3981 = vadd.f32 %v3952, %v3980
        %v3982 = vpop.f32.mrf.mxu0
        %v3983 = vadd.f32 %v3954, %v3982
        %3984 = vmatmul.bf16.gmra.mxu0 %v3737
        %v3985 = vpop.f32.mrf.mxu0
        %v3986 = vadd.f32 %v3957, %v3985
        %v3987 = vpop.f32.mrf.mxu0
        %v3988 = vadd.f32 %v3959, %v3987
        %3989 = vmatmul.bf16.gmra.mxu0 %v3739
        %v3990 = vpop.f32.mrf.mxu0
        %v3991 = vadd.f32 %v3962, %v3990
        %v3992 = vpop.f32.mrf.mxu0
        %v3993 = vadd.f32 %v3964, %v3992
        %3994 = vmatmul.bf16.gmra.mxu0 %v3741
        %v3995 = vpop.f32.mrf.mxu0
        %v3996 = vadd.f32 %v3967, %v3995
        %v3997 = vpop.f32.mrf.mxu0
        %v3998 = vadd.f32 %v3969, %v3997
        %3999 = vdwg.mxu0
        %4000 = vmatpush.bf16.msra.mxu0 %v3893
        %4001 = vmatpush.bf16.msra.mxu0 %v3891
        %4002 = vmatpush.bf16.msra.mxu0 %v3889
        %4003 = vmatpush.bf16.msra.mxu0 %v3887
        %4004 = vmatpush.bf16.msra.mxu0 %v3885
        %4005 = vmatpush.bf16.msra.mxu0 %v3883
        %4006 = vmatpush.bf16.msra.mxu0 %v3881
        %4007 = vmatpush.bf16.msra.mxu0 %v3879
        %4008 = vmatmul.bf16.gmra.mxu0 %v3734
        %v4009 = vpop.f32.mrf.mxu0
        %v4010 = vadd.f32 %v3779, %v4009
        %v4011 = vpop.f32.mrf.mxu0
        %v4012 = vadd.f32 %v3779, %v4011
        %4013 = vmatmul.bf16.gmra.mxu0 %v3736
        %v4014 = vpop.f32.mrf.mxu0
        %v4015 = vadd.f32 %v3779, %v4014
        %v4016 = vpop.f32.mrf.mxu0
        %v4017 = vadd.f32 %v3779, %v4016
        %4018 = vmatmul.bf16.gmra.mxu0 %v3738
        %v4019 = vpop.f32.mrf.mxu0
        %v4020 = vadd.f32 %v3779, %v4019
        %v4021 = vpop.f32.mrf.mxu0
        %v4022 = vadd.f32 %v3779, %v4021
        %4023 = vmatmul.bf16.gmra.mxu0 %v3740
        %v4024 = vpop.f32.mrf.mxu0
        %v4025 = vadd.f32 %v3779, %v4024
        %v4026 = vpop.f32.mrf.mxu0
        %v4027 = vadd.f32 %v3779, %v4026
        %4028 = vdwg.mxu0
        %4029 = vmatpush.bf16.msra.mxu0 %v3909
        %4030 = vmatpush.bf16.msra.mxu0 %v3907
        %4031 = vmatpush.bf16.msra.mxu0 %v3905
        %4032 = vmatpush.bf16.msra.mxu0 %v3903
        %4033 = vmatpush.bf16.msra.mxu0 %v3901
        %4034 = vmatpush.bf16.msra.mxu0 %v3899
        %4035 = vmatpush.bf16.msra.mxu0 %v3897
        %4036 = vmatpush.bf16.msra.mxu0 %v3895
        %4037 = vmatmul.bf16.gmra.mxu0 %v3735
        %v4038 = vpop.f32.mrf.mxu0
        %v4039 = vadd.f32 %v4010, %v4038
        %v4040 = vpop.f32.mrf.mxu0
        %v4041 = vadd.f32 %v4012, %v4040
        %4042 = vmatmul.bf16.gmra.mxu0 %v3737
        %v4043 = vpop.f32.mrf.mxu0
        %v4044 = vadd.f32 %v4015, %v4043
        %v4045 = vpop.f32.mrf.mxu0
        %v4046 = vadd.f32 %v4017, %v4045
        %4047 = vmatmul.bf16.gmra.mxu0 %v3739
        %v4048 = vpop.f32.mrf.mxu0
        %v4049 = vadd.f32 %v4020, %v4048
        %v4050 = vpop.f32.mrf.mxu0
        %v4051 = vadd.f32 %v4022, %v4050
        %4052 = vmatmul.bf16.gmra.mxu0 %v3741
        %v4053 = vpop.f32.mrf.mxu0
        %v4054 = vadd.f32 %v4025, %v4053
        %v4055 = vpop.f32.mrf.mxu0
        %v4056 = vadd.f32 %v4027, %v4055
        %4057 = vdwg.mxu0
        %vm4058 = vcmp.ge.f32.partialorder %v3981, 0.0
        %vm4059 = vcmp.ge.f32.partialorder %v4039, 0.0
        %vm4060 = vcmp.ge.f32.partialorder %v3983, 0.0
        %vm4061 = vcmp.ge.f32.partialorder %v4041, 0.0
        %vm4062 = vcmp.ge.f32.partialorder %v3986, 0.0
        %vm4063 = vcmp.ge.f32.partialorder %v4044, 0.0
        %vm4064 = vcmp.ge.f32.partialorder %v3988, 0.0
        %vm4065 = vcmp.ge.f32.partialorder %v4046, 0.0
        %vm4066 = vcmp.ge.f32.partialorder %v3991, 0.0
        %vm4067 = vcmp.ge.f32.partialorder %v4049, 0.0
        %vm4068 = vcmp.ge.f32.partialorder %v3993, 0.0
        %vm4069 = vcmp.ge.f32.partialorder %v4051, 0.0
        %vm4070 = vcmp.ge.f32.partialorder %v3996, 0.0
        %vm4071 = vcmp.ge.f32.partialorder %v4054, 0.0
        %vm4072 = vcmp.ge.f32.partialorder %v3998, 0.0
        %vm4073 = vcmp.ge.f32.partialorder %v4056, 0.0
        %v4074 = vmul.f32 %v3981, 0.2
        %v4075 = vmul.f32 %v4039, 0.2
        %v4076 = vmul.f32 %v3983, 0.2
        %v4077 = vmul.f32 %v4041, 0.2
        %v4078 = vmul.f32 %v3986, 0.2
        %v4079 = vmul.f32 %v4044, 0.2
        %v4080 = vmul.f32 %v3988, 0.2
        %v4081 = vmul.f32 %v4046, 0.2
        %v4082 = vmul.f32 %v3991, 0.2
        %v4083 = vmul.f32 %v4049, 0.2
        %v4084 = vmul.f32 %v3993, 0.2
        %v4085 = vmul.f32 %v4051, 0.2
        %v4086 = vmul.f32 %v3996, 0.2
        %v4087 = vmul.f32 %v4054, 0.2
        %v4088 = vmul.f32 %v3998, 0.2
        %v4089 = vmul.f32 %v4056, 0.2
        %v4090 = vsel %vm4058, %v3981, %v4074
        %v4091 = vsel %vm4059, %v4039, %v4075
        %v4092 = vsel %vm4060, %v3983, %v4076
        %v4093 = vsel %vm4061, %v4041, %v4077
        %v4094 = vsel %vm4062, %v3986, %v4078
        %v4095 = vsel %vm4063, %v4044, %v4079
        %v4096 = vsel %vm4064, %v3988, %v4080
        %v4097 = vsel %vm4065, %v4046, %v4081
        %v4098 = vsel %vm4066, %v3991, %v4082
        %v4099 = vsel %vm4067, %v4049, %v4083
        %v4100 = vsel %vm4068, %v3993, %v4084
        %v4101 = vsel %vm4069, %v4051, %v4085
        %v4102 = vsel %vm4070, %v3996, %v4086
        %v4103 = vsel %vm4071, %v4054, %v4087
        %v4104 = vsel %vm4072, %v3998, %v4088
        %v4105 = vsel %vm4073, %v4056, %v4089
        %4106 = vst [vmem:[%s337 + $0x10] sm:$0xff] %v4090
        %4107 = vst [vmem:[%s337 + $0x18] sm:$0xff] %v4091
        %4108 = vst [vmem:[%s337 + $0x40] sm:$0xff] %v4092
        %4109 = vst [vmem:[%s337 + $0x48] sm:$0xff] %v4093
        %4110 = vst [vmem:[%s337 + $0x70] sm:$0xff] %v4094
        %4111 = vst [vmem:[%s337 + $0x78] sm:$0xff] %v4095
        %4112 = vst [vmem:[%s337 + $0xa0] sm:$0xff] %v4096
        %4113 = vst [vmem:[%s337 + $0xa8] sm:$0xff] %v4097
        %4114 = vst [vmem:[%s337 + $0xd0] sm:$0xff] %v4098
        %4115 = vst [vmem:[%s337 + $0xd8] sm:$0xff] %v4099
        %4116 = vst [vmem:[%s337 + $0x100] sm:$0xff] %v4100
        %4117 = vst [vmem:[%s337 + $0x108] sm:$0xff] %v4101
        %4118 = vst [vmem:[%s337 + $0x130] sm:$0xff] %v4102
        %4119 = vst [vmem:[%s337 + $0x138] sm:$0xff] %v4103
        %4120 = vst [vmem:[%s337 + $0x160] sm:$0xff] %v4104
        %4121 = vst [vmem:[%s337 + $0x168] sm:$0xff] %v4105
        %s4122 = scalar_lea.vmem %s1, 64
        %v4123 = vld [vmem:[%s4122] sm:$0xff]
        %v4124 = vld [vmem:[%s4122 + $0x8] sm:$0xff]
        %v4125 = vld [vmem:[%s4122 + $0x10] sm:$0x1]
        %v4126 = vld [vmem:[%s4122 + $0x18] sm:$0x1]
        %v4127 = vld [vmem:[#allocation2] sm:$0x80]
        %v4128 = vld [vmem:[#allocation2 + $0x8] sm:$0x80]
        %v4129 = vld [vmem:[#allocation2 + $0x10] sm:$0x7f]
        %v4130 = vld [vmem:[#allocation2 + $0x18] sm:$0x7f]
        %v4131 = vld [vmem:[#allocation2 + $0x30] sm:$0x80]
        %v4132 = vld [vmem:[#allocation2 + $0x38] sm:$0x80]
        %v4133 = vld [vmem:[#allocation2 + $0x40] sm:$0x7f]
        %v4134 = vld [vmem:[#allocation2 + $0x48] sm:$0x7f]
        %v4135 = vld [vmem:[#allocation2 + $0x60] sm:$0x80]
        %v4136 = vld [vmem:[#allocation2 + $0x68] sm:$0x80]
        %v4137 = vld [vmem:[#allocation2 + $0x70] sm:$0x7f]
        %v4138 = vld [vmem:[#allocation2 + $0x78] sm:$0x7f]
        %v4139 = vld [vmem:[#allocation2 + $0x90] sm:$0x80]
        %v4140 = vld [vmem:[#allocation2 + $0x98] sm:$0x80]
        %v4141 = vld [vmem:[#allocation2 + $0xa0] sm:$0x7f]
        %v4142 = vld [vmem:[#allocation2 + $0xa8] sm:$0x7f]
        %v4143 = vld [vmem:[#allocation2 + $0xc0] sm:$0x80]
        %v4144 = vld [vmem:[#allocation2 + $0xc8] sm:$0x80]
        %v4145 = vld [vmem:[#allocation2 + $0xd0] sm:$0x7f]
        %v4146 = vld [vmem:[#allocation2 + $0xd8] sm:$0x7f]
        %v4147 = vld [vmem:[#allocation2 + $0xf0] sm:$0x80]
        %v4148 = vld [vmem:[#allocation2 + $0xf8] sm:$0x80]
        %v4149 = vld [vmem:[#allocation2 + $0x100] sm:$0x7f]
        %v4150 = vld [vmem:[#allocation2 + $0x108] sm:$0x7f]
        %v4151 = vld [vmem:[#allocation2 + $0x120] sm:$0x80]
        %v4152 = vld [vmem:[#allocation2 + $0x128] sm:$0x80]
        %v4153 = vld [vmem:[#allocation2 + $0x130] sm:$0x7f]
        %v4154 = vld [vmem:[#allocation2 + $0x138] sm:$0x7f]
        %v4155 = vld [vmem:[#allocation2 + $0x150] sm:$0x80]
        %v4156 = vld [vmem:[#allocation2 + $0x158] sm:$0x80]
        %v4157 = vld [vmem:[#allocation2 + $0x160] sm:$0x7f]
        %v4158 = vld [vmem:[#allocation2 + $0x168] sm:$0x7f]
        %v4159 = vperm.slane %v4123, 0
        %v4160 = vperm.slane %v4124, 0
        %v4161 = vmul.f32 %v4127, %v4159
        %v4162 = vmul.f32 %v4128, %v4160
        %v4163 = vmul.f32 %v4129, %v4159
        %v4164 = vmul.f32 %v4130, %v4160
        %v4165 = vmul.f32 %v4131, %v4159
        %v4166 = vmul.f32 %v4132, %v4160
        %v4167 = vmul.f32 %v4133, %v4159
        %v4168 = vmul.f32 %v4134, %v4160
        %v4169 = vmul.f32 %v4135, %v4159
        %v4170 = vmul.f32 %v4136, %v4160
        %v4171 = vmul.f32 %v4137, %v4159
        %v4172 = vmul.f32 %v4138, %v4160
        %v4173 = vmul.f32 %v4139, %v4159
        %v4174 = vmul.f32 %v4140, %v4160
        %v4175 = vmul.f32 %v4141, %v4159
        %v4176 = vmul.f32 %v4142, %v4160
        %v4177 = vmul.f32 %v4143, %v4159
        %v4178 = vmul.f32 %v4144, %v4160
        %v4179 = vmul.f32 %v4145, %v4159
        %v4180 = vmul.f32 %v4146, %v4160
        %v4181 = vmul.f32 %v4147, %v4159
        %v4182 = vmul.f32 %v4148, %v4160
        %v4183 = vmul.f32 %v4149, %v4159
        %v4184 = vmul.f32 %v4150, %v4160
        %v4185 = vmul.f32 %v4151, %v4159
        %v4186 = vmul.f32 %v4152, %v4160
        %v4187 = vmul.f32 %v4153, %v4159
        %v4188 = vmul.f32 %v4154, %v4160
        %v4189 = vmul.f32 %v4155, %v4159
        %v4190 = vmul.f32 %v4156, %v4160
        %v4191 = vmul.f32 %v4157, %v4159
        %v4192 = vmul.f32 %v4158, %v4160
        %v4193 = vld [vmem:[#allocation2 + $0x10] sm:$0xff]
        %v4194 = vld [vmem:[#allocation2 + $0x18] sm:$0xff]
        %v4195 = vld [vmem:[#allocation2 + $0x40] sm:$0xff]
        %v4196 = vld [vmem:[#allocation2 + $0x48] sm:$0xff]
        %v4197 = vld [vmem:[#allocation2 + $0x70] sm:$0xff]
        %v4198 = vld [vmem:[#allocation2 + $0x78] sm:$0xff]
        %v4199 = vld [vmem:[#allocation2 + $0xa0] sm:$0xff]
        %v4200 = vld [vmem:[#allocation2 + $0xa8] sm:$0xff]
        %v4201 = vld [vmem:[#allocation2 + $0xd0] sm:$0xff]
        %v4202 = vld [vmem:[#allocation2 + $0xd8] sm:$0xff]
        %v4203 = vld [vmem:[#allocation2 + $0x100] sm:$0xff]
        %v4204 = vld [vmem:[#allocation2 + $0x108] sm:$0xff]
        %v4205 = vld [vmem:[#allocation2 + $0x130] sm:$0xff]
        %v4206 = vld [vmem:[#allocation2 + $0x138] sm:$0xff]
        %v4207 = vld [vmem:[#allocation2 + $0x160] sm:$0xff]
        %v4208 = vld [vmem:[#allocation2 + $0x168] sm:$0xff]
        %v4209 = vperm.slane %v4123, 1
        %v4210 = vperm.slane %v4124, 1
        %v4211 = vmul.f32 %v4193, %v4209
        %v4212 = vmul.f32 %v4194, %v4210
        %v4213 = vmul.f32 %v4195, %v4209
        %v4214 = vmul.f32 %v4196, %v4210
        %v4215 = vmul.f32 %v4197, %v4209
        %v4216 = vmul.f32 %v4198, %v4210
        %v4217 = vmul.f32 %v4199, %v4209
        %v4218 = vmul.f32 %v4200, %v4210
        %v4219 = vmul.f32 %v4201, %v4209
        %v4220 = vmul.f32 %v4202, %v4210
        %v4221 = vmul.f32 %v4203, %v4209
        %v4222 = vmul.f32 %v4204, %v4210
        %v4223 = vmul.f32 %v4205, %v4209
        %v4224 = vmul.f32 %v4206, %v4210
        %v4225 = vmul.f32 %v4207, %v4209
        %v4226 = vmul.f32 %v4208, %v4210
        %v4227 = vld [vmem:[#allocation2 + $0x10] sm:$0xfe]
        %v4228 = vld [vmem:[#allocation2 + $0x18] sm:$0xfe]
        %v4229 = vld [vmem:[#allocation2 + $0x20] sm:$0x1]
        %v4230 = vld [vmem:[#allocation2 + $0x28] sm:$0x1]
        %v4231 = vld [vmem:[#allocation2 + $0x40] sm:$0xfe]
        %v4232 = vld [vmem:[#allocation2 + $0x48] sm:$0xfe]
        %v4233 = vld [vmem:[#allocation2 + $0x50] sm:$0x1]
        %v4234 = vld [vmem:[#allocation2 + $0x58] sm:$0x1]
        %v4235 = vld [vmem:[#allocation2 + $0x70] sm:$0xfe]
        %v4236 = vld [vmem:[#allocation2 + $0x78] sm:$0xfe]
        %v4237 = vld [vmem:[#allocation2 + $0x80] sm:$0x1]
        %v4238 = vld [vmem:[#allocation2 + $0x88] sm:$0x1]
        %v4239 = vld [vmem:[#allocation2 + $0xa0] sm:$0xfe]
        %v4240 = vld [vmem:[#allocation2 + $0xa8] sm:$0xfe]
        %v4241 = vld [vmem:[#allocation2 + $0xb0] sm:$0x1]
        %v4242 = vld [vmem:[#allocation2 + $0xb8] sm:$0x1]
        %v4243 = vld [vmem:[#allocation2 + $0xd0] sm:$0xfe]
        %v4244 = vld [vmem:[#allocation2 + $0xd8] sm:$0xfe]
        %v4245 = vld [vmem:[#allocation2 + $0xe0] sm:$0x1]
        %v4246 = vld [vmem:[#allocation2 + $0xe8] sm:$0x1]
        %v4247 = vld [vmem:[#allocation2 + $0x100] sm:$0xfe]
        %v4248 = vld [vmem:[#allocation2 + $0x108] sm:$0xfe]
        %v4249 = vld [vmem:[#allocation2 + $0x110] sm:$0x1]
        %v4250 = vld [vmem:[#allocation2 + $0x118] sm:$0x1]
        %v4251 = vld [vmem:[#allocation2 + $0x130] sm:$0xfe]
        %v4252 = vld [vmem:[#allocation2 + $0x138] sm:$0xfe]
        %v4253 = vld [vmem:[#allocation2 + $0x140] sm:$0x1]
        %v4254 = vld [vmem:[#allocation2 + $0x148] sm:$0x1]
        %v4255 = vld [vmem:[#allocation2 + $0x160] sm:$0xfe]
        %v4256 = vld [vmem:[#allocation2 + $0x168] sm:$0xfe]
        %v4257 = vld [vmem:[#allocation2 + $0x170] sm:$0x1]
        %v4258 = vld [vmem:[#allocation2 + $0x178] sm:$0x1]
        %v4259 = vperm.slane %v4123, 2
        %v4260 = vperm.slane %v4124, 2
        %v4261 = vmul.f32 %v4227, %v4259
        %v4262 = vmul.f32 %v4228, %v4260
        %v4263 = vmul.f32 %v4229, %v4259
        %v4264 = vmul.f32 %v4230, %v4260
        %v4265 = vmul.f32 %v4231, %v4259
        %v4266 = vmul.f32 %v4232, %v4260
        %v4267 = vmul.f32 %v4233, %v4259
        %v4268 = vmul.f32 %v4234, %v4260
        %v4269 = vmul.f32 %v4235, %v4259
        %v4270 = vmul.f32 %v4236, %v4260
        %v4271 = vmul.f32 %v4237, %v4259
        %v4272 = vmul.f32 %v4238, %v4260
        %v4273 = vmul.f32 %v4239, %v4259
        %v4274 = vmul.f32 %v4240, %v4260
        %v4275 = vmul.f32 %v4241, %v4259
        %v4276 = vmul.f32 %v4242, %v4260
        %v4277 = vmul.f32 %v4243, %v4259
        %v4278 = vmul.f32 %v4244, %v4260
        %v4279 = vmul.f32 %v4245, %v4259
        %v4280 = vmul.f32 %v4246, %v4260
        %v4281 = vmul.f32 %v4247, %v4259
        %v4282 = vmul.f32 %v4248, %v4260
        %v4283 = vmul.f32 %v4249, %v4259
        %v4284 = vmul.f32 %v4250, %v4260
        %v4285 = vmul.f32 %v4251, %v4259
        %v4286 = vmul.f32 %v4252, %v4260
        %v4287 = vmul.f32 %v4253, %v4259
        %v4288 = vmul.f32 %v4254, %v4260
        %v4289 = vmul.f32 %v4255, %v4259
        %v4290 = vmul.f32 %v4256, %v4260
        %v4291 = vmul.f32 %v4257, %v4259
        %v4292 = vmul.f32 %v4258, %v4260
        %v4293 = vld [vmem:[%s337] sm:$0x80]
        %v4294 = vld [vmem:[%s337 + $0x8] sm:$0x80]
        %v4295 = vld [vmem:[%s337 + $0x10] sm:$0x7f]
        %v4296 = vld [vmem:[%s337 + $0x18] sm:$0x7f]
        %v4297 = vld [vmem:[%s337 + $0x30] sm:$0x80]
        %v4298 = vld [vmem:[%s337 + $0x38] sm:$0x80]
        %v4299 = vld [vmem:[%s337 + $0x40] sm:$0x7f]
        %v4300 = vld [vmem:[%s337 + $0x48] sm:$0x7f]
        %v4301 = vld [vmem:[%s337 + $0x60] sm:$0x80]
        %v4302 = vld [vmem:[%s337 + $0x68] sm:$0x80]
        %v4303 = vld [vmem:[%s337 + $0x70] sm:$0x7f]
        %v4304 = vld [vmem:[%s337 + $0x78] sm:$0x7f]
        %v4305 = vld [vmem:[%s337 + $0x90] sm:$0x80]
        %v4306 = vld [vmem:[%s337 + $0x98] sm:$0x80]
        %v4307 = vld [vmem:[%s337 + $0xa0] sm:$0x7f]
        %v4308 = vld [vmem:[%s337 + $0xa8] sm:$0x7f]
        %v4309 = vld [vmem:[%s337 + $0xc0] sm:$0x80]
        %v4310 = vld [vmem:[%s337 + $0xc8] sm:$0x80]
        %v4311 = vld [vmem:[%s337 + $0xd0] sm:$0x7f]
        %v4312 = vld [vmem:[%s337 + $0xd8] sm:$0x7f]
        %v4313 = vld [vmem:[%s337 + $0xf0] sm:$0x80]
        %v4314 = vld [vmem:[%s337 + $0xf8] sm:$0x80]
        %v4315 = vld [vmem:[%s337 + $0x100] sm:$0x7f]
        %v4316 = vld [vmem:[%s337 + $0x108] sm:$0x7f]
        %v4317 = vld [vmem:[%s337 + $0x120] sm:$0x80]
        %v4318 = vld [vmem:[%s337 + $0x128] sm:$0x80]
        %v4319 = vld [vmem:[%s337 + $0x130] sm:$0x7f]
        %v4320 = vld [vmem:[%s337 + $0x138] sm:$0x7f]
        %v4321 = vld [vmem:[%s337 + $0x150] sm:$0x80]
        %v4322 = vld [vmem:[%s337 + $0x158] sm:$0x80]
        %v4323 = vld [vmem:[%s337 + $0x160] sm:$0x7f]
        %v4324 = vld [vmem:[%s337 + $0x168] sm:$0x7f]
        %v4325 = vperm.slane %v4123, 3
        %v4326 = vperm.slane %v4124, 3
        %v4327 = vmul.f32 %v4293, %v4325
        %v4328 = vmul.f32 %v4294, %v4326
        %v4329 = vmul.f32 %v4295, %v4325
        %v4330 = vmul.f32 %v4296, %v4326
        %v4331 = vmul.f32 %v4297, %v4325
        %v4332 = vmul.f32 %v4298, %v4326
        %v4333 = vmul.f32 %v4299, %v4325
        %v4334 = vmul.f32 %v4300, %v4326
        %v4335 = vmul.f32 %v4301, %v4325
        %v4336 = vmul.f32 %v4302, %v4326
        %v4337 = vmul.f32 %v4303, %v4325
        %v4338 = vmul.f32 %v4304, %v4326
        %v4339 = vmul.f32 %v4305, %v4325
        %v4340 = vmul.f32 %v4306, %v4326
        %v4341 = vmul.f32 %v4307, %v4325
        %v4342 = vmul.f32 %v4308, %v4326
        %v4343 = vmul.f32 %v4309, %v4325
        %v4344 = vmul.f32 %v4310, %v4326
        %v4345 = vmul.f32 %v4311, %v4325
        %v4346 = vmul.f32 %v4312, %v4326
        %v4347 = vmul.f32 %v4313, %v4325
        %v4348 = vmul.f32 %v4314, %v4326
        %v4349 = vmul.f32 %v4315, %v4325
        %v4350 = vmul.f32 %v4316, %v4326
        %v4351 = vmul.f32 %v4317, %v4325
        %v4352 = vmul.f32 %v4318, %v4326
        %v4353 = vmul.f32 %v4319, %v4325
        %v4354 = vmul.f32 %v4320, %v4326
        %v4355 = vmul.f32 %v4321, %v4325
        %v4356 = vmul.f32 %v4322, %v4326
        %v4357 = vmul.f32 %v4323, %v4325
        %v4358 = vmul.f32 %v4324, %v4326
        %v4359 = vld [vmem:[%s337 + $0x10] sm:$0xff]
        %v4360 = vld [vmem:[%s337 + $0x18] sm:$0xff]
        %v4361 = vld [vmem:[%s337 + $0x40] sm:$0xff]
        %v4362 = vld [vmem:[%s337 + $0x48] sm:$0xff]
        %v4363 = vld [vmem:[%s337 + $0x70] sm:$0xff]
        %v4364 = vld [vmem:[%s337 + $0x78] sm:$0xff]
        %v4365 = vld [vmem:[%s337 + $0xa0] sm:$0xff]
        %v4366 = vld [vmem:[%s337 + $0xa8] sm:$0xff]
        %v4367 = vld [vmem:[%s337 + $0xd0] sm:$0xff]
        %v4368 = vld [vmem:[%s337 + $0xd8] sm:$0xff]
        %v4369 = vld [vmem:[%s337 + $0x100] sm:$0xff]
        %v4370 = vld [vmem:[%s337 + $0x108] sm:$0xff]
        %v4371 = vld [vmem:[%s337 + $0x130] sm:$0xff]
        %v4372 = vld [vmem:[%s337 + $0x138] sm:$0xff]
        %v4373 = vld [vmem:[%s337 + $0x160] sm:$0xff]
        %v4374 = vld [vmem:[%s337 + $0x168] sm:$0xff]
        %v4375 = vperm.slane %v4123, 4
        %v4376 = vperm.slane %v4124, 4
        %v4377 = vmul.f32 %v4359, %v4375
        %v4378 = vmul.f32 %v4360, %v4376
        %v4379 = vmul.f32 %v4361, %v4375
        %v4380 = vmul.f32 %v4362, %v4376
        %v4381 = vmul.f32 %v4363, %v4375
        %v4382 = vmul.f32 %v4364, %v4376
        %v4383 = vmul.f32 %v4365, %v4375
        %v4384 = vmul.f32 %v4366, %v4376
        %v4385 = vmul.f32 %v4367, %v4375
        %v4386 = vmul.f32 %v4368, %v4376
        %v4387 = vmul.f32 %v4369, %v4375
        %v4388 = vmul.f32 %v4370, %v4376
        %v4389 = vmul.f32 %v4371, %v4375
        %v4390 = vmul.f32 %v4372, %v4376
        %v4391 = vmul.f32 %v4373, %v4375
        %v4392 = vmul.f32 %v4374, %v4376
        %v4393 = vld [vmem:[%s337 + $0x10] sm:$0xfe]
        %v4394 = vld [vmem:[%s337 + $0x18] sm:$0xfe]
        %v4395 = vld [vmem:[%s337 + $0x20] sm:$0x1]
        %v4396 = vld [vmem:[%s337 + $0x28] sm:$0x1]
        %v4397 = vld [vmem:[%s337 + $0x40] sm:$0xfe]
        %v4398 = vld [vmem:[%s337 + $0x48] sm:$0xfe]
        %v4399 = vld [vmem:[%s337 + $0x50] sm:$0x1]
        %v4400 = vld [vmem:[%s337 + $0x58] sm:$0x1]
        %v4401 = vld [vmem:[%s337 + $0x70] sm:$0xfe]
        %v4402 = vld [vmem:[%s337 + $0x78] sm:$0xfe]
        %v4403 = vld [vmem:[%s337 + $0x80] sm:$0x1]
        %v4404 = vld [vmem:[%s337 + $0x88] sm:$0x1]
        %v4405 = vld [vmem:[%s337 + $0xa0] sm:$0xfe]
        %v4406 = vld [vmem:[%s337 + $0xa8] sm:$0xfe]
        %v4407 = vld [vmem:[%s337 + $0xb0] sm:$0x1]
        %v4408 = vld [vmem:[%s337 + $0xb8] sm:$0x1]
        %v4409 = vld [vmem:[%s337 + $0xd0] sm:$0xfe]
        %v4410 = vld [vmem:[%s337 + $0xd8] sm:$0xfe]
        %v4411 = vld [vmem:[%s337 + $0xe0] sm:$0x1]
        %v4412 = vld [vmem:[%s337 + $0xe8] sm:$0x1]
        %v4413 = vld [vmem:[%s337 + $0x100] sm:$0xfe]
        %v4414 = vld [vmem:[%s337 + $0x108] sm:$0xfe]
        %v4415 = vld [vmem:[%s337 + $0x110] sm:$0x1]
        %v4416 = vld [vmem:[%s337 + $0x118] sm:$0x1]
        %v4417 = vld [vmem:[%s337 + $0x130] sm:$0xfe]
        %v4418 = vld [vmem:[%s337 + $0x138] sm:$0xfe]
        %v4419 = vld [vmem:[%s337 + $0x140] sm:$0x1]
        %v4420 = vld [vmem:[%s337 + $0x148] sm:$0x1]
        %v4421 = vld [vmem:[%s337 + $0x160] sm:$0xfe]
        %v4422 = vld [vmem:[%s337 + $0x168] sm:$0xfe]
        %v4423 = vld [vmem:[%s337 + $0x170] sm:$0x1]
        %v4424 = vld [vmem:[%s337 + $0x178] sm:$0x1]
        %v4425 = vperm.slane %v4123, 5
        %v4426 = vperm.slane %v4124, 5
        %v4427 = vmul.f32 %v4393, %v4425
        %v4428 = vmul.f32 %v4394, %v4426
        %v4429 = vmul.f32 %v4395, %v4425
        %v4430 = vmul.f32 %v4396, %v4426
        %v4431 = vmul.f32 %v4397, %v4425
        %v4432 = vmul.f32 %v4398, %v4426
        %v4433 = vmul.f32 %v4399, %v4425
        %v4434 = vmul.f32 %v4400, %v4426
        %v4435 = vmul.f32 %v4401, %v4425
        %v4436 = vmul.f32 %v4402, %v4426
        %v4437 = vmul.f32 %v4403, %v4425
        %v4438 = vmul.f32 %v4404, %v4426
        %v4439 = vmul.f32 %v4405, %v4425
        %v4440 = vmul.f32 %v4406, %v4426
        %v4441 = vmul.f32 %v4407, %v4425
        %v4442 = vmul.f32 %v4408, %v4426
        %v4443 = vmul.f32 %v4409, %v4425
        %v4444 = vmul.f32 %v4410, %v4426
        %v4445 = vmul.f32 %v4411, %v4425
        %v4446 = vmul.f32 %v4412, %v4426
        %v4447 = vmul.f32 %v4413, %v4425
        %v4448 = vmul.f32 %v4414, %v4426
        %v4449 = vmul.f32 %v4415, %v4425
        %v4450 = vmul.f32 %v4416, %v4426
        %v4451 = vmul.f32 %v4417, %v4425
        %v4452 = vmul.f32 %v4418, %v4426
        %v4453 = vmul.f32 %v4419, %v4425
        %v4454 = vmul.f32 %v4420, %v4426
        %v4455 = vmul.f32 %v4421, %v4425
        %v4456 = vmul.f32 %v4422, %v4426
        %v4457 = vmul.f32 %v4423, %v4425
        %v4458 = vmul.f32 %v4424, %v4426
        %v4459 = vld [vmem:[%s690] sm:$0x80]
        %v4460 = vld [vmem:[%s690 + $0x8] sm:$0x80]
        %v4461 = vld [vmem:[%s690 + $0x10] sm:$0x7f]
        %v4462 = vld [vmem:[%s690 + $0x18] sm:$0x7f]
        %v4463 = vld [vmem:[%s690 + $0x30] sm:$0x80]
        %v4464 = vld [vmem:[%s690 + $0x38] sm:$0x80]
        %v4465 = vld [vmem:[%s690 + $0x40] sm:$0x7f]
        %v4466 = vld [vmem:[%s690 + $0x48] sm:$0x7f]
        %v4467 = vld [vmem:[%s690 + $0x60] sm:$0x80]
        %v4468 = vld [vmem:[%s690 + $0x68] sm:$0x80]
        %v4469 = vld [vmem:[%s690 + $0x70] sm:$0x7f]
        %v4470 = vld [vmem:[%s690 + $0x78] sm:$0x7f]
        %v4471 = vld [vmem:[%s690 + $0x90] sm:$0x80]
        %v4472 = vld [vmem:[%s690 + $0x98] sm:$0x80]
        %v4473 = vld [vmem:[%s690 + $0xa0] sm:$0x7f]
        %v4474 = vld [vmem:[%s690 + $0xa8] sm:$0x7f]
        %v4475 = vld [vmem:[%s690 + $0xc0] sm:$0x80]
        %v4476 = vld [vmem:[%s690 + $0xc8] sm:$0x80]
        %v4477 = vld [vmem:[%s690 + $0xd0] sm:$0x7f]
        %v4478 = vld [vmem:[%s690 + $0xd8] sm:$0x7f]
        %v4479 = vld [vmem:[%s690 + $0xf0] sm:$0x80]
        %v4480 = vld [vmem:[%s690 + $0xf8] sm:$0x80]
        %v4481 = vld [vmem:[%s690 + $0x100] sm:$0x7f]
        %v4482 = vld [vmem:[%s690 + $0x108] sm:$0x7f]
        %v4483 = vld [vmem:[%s690 + $0x120] sm:$0x80]
        %v4484 = vld [vmem:[%s690 + $0x128] sm:$0x80]
        %v4485 = vld [vmem:[%s690 + $0x130] sm:$0x7f]
        %v4486 = vld [vmem:[%s690 + $0x138] sm:$0x7f]
        %v4487 = vld [vmem:[%s690 + $0x150] sm:$0x80]
        %v4488 = vld [vmem:[%s690 + $0x158] sm:$0x80]
        %v4489 = vld [vmem:[%s690 + $0x160] sm:$0x7f]
        %v4490 = vld [vmem:[%s690 + $0x168] sm:$0x7f]
        %v4491 = vperm.slane %v4123, 6
        %v4492 = vperm.slane %v4124, 6
        %v4493 = vmul.f32 %v4459, %v4491
        %v4494 = vmul.f32 %v4460, %v4492
        %v4495 = vmul.f32 %v4461, %v4491
        %v4496 = vmul.f32 %v4462, %v4492
        %v4497 = vmul.f32 %v4463, %v4491
        %v4498 = vmul.f32 %v4464, %v4492
        %v4499 = vmul.f32 %v4465, %v4491
        %v4500 = vmul.f32 %v4466, %v4492
        %v4501 = vmul.f32 %v4467, %v4491
        %v4502 = vmul.f32 %v4468, %v4492
        %v4503 = vmul.f32 %v4469, %v4491
        %v4504 = vmul.f32 %v4470, %v4492
        %v4505 = vmul.f32 %v4471, %v4491
        %v4506 = vmul.f32 %v4472, %v4492
        %v4507 = vmul.f32 %v4473, %v4491
        %v4508 = vmul.f32 %v4474, %v4492
        %v4509 = vmul.f32 %v4475, %v4491
        %v4510 = vmul.f32 %v4476, %v4492
        %v4511 = vmul.f32 %v4477, %v4491
        %v4512 = vmul.f32 %v4478, %v4492
        %v4513 = vmul.f32 %v4479, %v4491
        %v4514 = vmul.f32 %v4480, %v4492
        %v4515 = vmul.f32 %v4481, %v4491
        %v4516 = vmul.f32 %v4482, %v4492
        %v4517 = vmul.f32 %v4483, %v4491
        %v4518 = vmul.f32 %v4484, %v4492
        %v4519 = vmul.f32 %v4485, %v4491
        %v4520 = vmul.f32 %v4486, %v4492
        %v4521 = vmul.f32 %v4487, %v4491
        %v4522 = vmul.f32 %v4488, %v4492
        %v4523 = vmul.f32 %v4489, %v4491
        %v4524 = vmul.f32 %v4490, %v4492
        %v4525 = vld [vmem:[%s690 + $0x10] sm:$0xff]
        %v4526 = vld [vmem:[%s690 + $0x18] sm:$0xff]
        %v4527 = vld [vmem:[%s690 + $0x40] sm:$0xff]
        %v4528 = vld [vmem:[%s690 + $0x48] sm:$0xff]
        %v4529 = vld [vmem:[%s690 + $0x70] sm:$0xff]
        %v4530 = vld [vmem:[%s690 + $0x78] sm:$0xff]
        %v4531 = vld [vmem:[%s690 + $0xa0] sm:$0xff]
        %v4532 = vld [vmem:[%s690 + $0xa8] sm:$0xff]
        %v4533 = vld [vmem:[%s690 + $0xd0] sm:$0xff]
        %v4534 = vld [vmem:[%s690 + $0xd8] sm:$0xff]
        %v4535 = vld [vmem:[%s690 + $0x100] sm:$0xff]
        %v4536 = vld [vmem:[%s690 + $0x108] sm:$0xff]
        %v4537 = vld [vmem:[%s690 + $0x130] sm:$0xff]
        %v4538 = vld [vmem:[%s690 + $0x138] sm:$0xff]
        %v4539 = vld [vmem:[%s690 + $0x160] sm:$0xff]
        %v4540 = vld [vmem:[%s690 + $0x168] sm:$0xff]
        %v4541 = vperm.slane %v4123, 7
        %v4542 = vperm.slane %v4124, 7
        %v4543 = vmul.f32 %v4525, %v4541
        %v4544 = vmul.f32 %v4526, %v4542
        %v4545 = vmul.f32 %v4527, %v4541
        %v4546 = vmul.f32 %v4528, %v4542
        %v4547 = vmul.f32 %v4529, %v4541
        %v4548 = vmul.f32 %v4530, %v4542
        %v4549 = vmul.f32 %v4531, %v4541
        %v4550 = vmul.f32 %v4532, %v4542
        %v4551 = vmul.f32 %v4533, %v4541
        %v4552 = vmul.f32 %v4534, %v4542
        %v4553 = vmul.f32 %v4535, %v4541
        %v4554 = vmul.f32 %v4536, %v4542
        %v4555 = vmul.f32 %v4537, %v4541
        %v4556 = vmul.f32 %v4538, %v4542
        %v4557 = vmul.f32 %v4539, %v4541
        %v4558 = vmul.f32 %v4540, %v4542
        %v4559 = vld [vmem:[%s690 + $0x10] sm:$0xfe]
        %v4560 = vld [vmem:[%s690 + $0x18] sm:$0xfe]
        %v4561 = vld [vmem:[%s690 + $0x20] sm:$0x1]
        %v4562 = vld [vmem:[%s690 + $0x28] sm:$0x1]
        %v4563 = vld [vmem:[%s690 + $0x40] sm:$0xfe]
        %v4564 = vld [vmem:[%s690 + $0x48] sm:$0xfe]
        %v4565 = vld [vmem:[%s690 + $0x50] sm:$0x1]
        %v4566 = vld [vmem:[%s690 + $0x58] sm:$0x1]
        %v4567 = vld [vmem:[%s690 + $0x70] sm:$0xfe]
        %v4568 = vld [vmem:[%s690 + $0x78] sm:$0xfe]
        %v4569 = vld [vmem:[%s690 + $0x80] sm:$0x1]
        %v4570 = vld [vmem:[%s690 + $0x88] sm:$0x1]
        %v4571 = vld [vmem:[%s690 + $0xa0] sm:$0xfe]
        %v4572 = vld [vmem:[%s690 + $0xa8] sm:$0xfe]
        %v4573 = vld [vmem:[%s690 + $0xb0] sm:$0x1]
        %v4574 = vld [vmem:[%s690 + $0xb8] sm:$0x1]
        %v4575 = vld [vmem:[%s690 + $0xd0] sm:$0xfe]
        %v4576 = vld [vmem:[%s690 + $0xd8] sm:$0xfe]
        %v4577 = vld [vmem:[%s690 + $0xe0] sm:$0x1]
        %v4578 = vld [vmem:[%s690 + $0xe8] sm:$0x1]
        %v4579 = vld [vmem:[%s690 + $0x100] sm:$0xfe]
        %v4580 = vld [vmem:[%s690 + $0x108] sm:$0xfe]
        %v4581 = vld [vmem:[%s690 + $0x110] sm:$0x1]
        %v4582 = vld [vmem:[%s690 + $0x118] sm:$0x1]
        %v4583 = vld [vmem:[%s690 + $0x130] sm:$0xfe]
        %v4584 = vld [vmem:[%s690 + $0x138] sm:$0xfe]
        %v4585 = vld [vmem:[%s690 + $0x140] sm:$0x1]
        %v4586 = vld [vmem:[%s690 + $0x148] sm:$0x1]
        %v4587 = vld [vmem:[%s690 + $0x160] sm:$0xfe]
        %v4588 = vld [vmem:[%s690 + $0x168] sm:$0xfe]
        %v4589 = vld [vmem:[%s690 + $0x170] sm:$0x1]
        %v4590 = vld [vmem:[%s690 + $0x178] sm:$0x1]
        %v4591 = vperm.slane %v4125, 0
        %v4592 = vperm.slane %v4126, 0
        %v4593 = vmul.f32 %v4559, %v4591
        %v4594 = vmul.f32 %v4560, %v4592
        %v4595 = vmul.f32 %v4561, %v4591
        %v4596 = vmul.f32 %v4562, %v4592
        %v4597 = vmul.f32 %v4563, %v4591
        %v4598 = vmul.f32 %v4564, %v4592
        %v4599 = vmul.f32 %v4565, %v4591
        %v4600 = vmul.f32 %v4566, %v4592
        %v4601 = vmul.f32 %v4567, %v4591
        %v4602 = vmul.f32 %v4568, %v4592
        %v4603 = vmul.f32 %v4569, %v4591
        %v4604 = vmul.f32 %v4570, %v4592
        %v4605 = vmul.f32 %v4571, %v4591
        %v4606 = vmul.f32 %v4572, %v4592
        %v4607 = vmul.f32 %v4573, %v4591
        %v4608 = vmul.f32 %v4574, %v4592
        %v4609 = vmul.f32 %v4575, %v4591
        %v4610 = vmul.f32 %v4576, %v4592
        %v4611 = vmul.f32 %v4577, %v4591
        %v4612 = vmul.f32 %v4578, %v4592
        %v4613 = vmul.f32 %v4579, %v4591
        %v4614 = vmul.f32 %v4580, %v4592
        %v4615 = vmul.f32 %v4581, %v4591
        %v4616 = vmul.f32 %v4582, %v4592
        %v4617 = vmul.f32 %v4583, %v4591
        %v4618 = vmul.f32 %v4584, %v4592
        %v4619 = vmul.f32 %v4585, %v4591
        %v4620 = vmul.f32 %v4586, %v4592
        %v4621 = vmul.f32 %v4587, %v4591
        %v4622 = vmul.f32 %v4588, %v4592
        %v4623 = vmul.f32 %v4589, %v4591
        %v4624 = vmul.f32 %v4590, %v4592
        %v4641 = vrot.slane %v4211, 1
        %v4642 = vrot.slane %v4212, 1
        %v4643 = vrot.slane %v4213, 1
        %v4644 = vrot.slane %v4214, 1
        %v4645 = vrot.slane %v4215, 1
        %v4646 = vrot.slane %v4216, 1
        %v4647 = vrot.slane %v4217, 1
        %v4648 = vrot.slane %v4218, 1
        %v4649 = vrot.slane %v4219, 1
        %v4650 = vrot.slane %v4220, 1
        %v4651 = vrot.slane %v4221, 1
        %v4652 = vrot.slane %v4222, 1
        %v4653 = vrot.slane %v4223, 1
        %v4654 = vrot.slane %v4224, 1
        %v4655 = vrot.slane %v4225, 1
        %v4656 = vrot.slane %v4226, 1
        %v4673 = vadd.f32 %v4161, %v4641
        %v4674 = vadd.f32 %v4162, %v4642
        %v4675 = vadd.f32 %v4163, %v4641
        %v4676 = vadd.f32 %v4164, %v4642
        %v4677 = vadd.f32 %v4165, %v4643
        %v4678 = vadd.f32 %v4166, %v4644
        %v4679 = vadd.f32 %v4167, %v4643
        %v4680 = vadd.f32 %v4168, %v4644
        %v4681 = vadd.f32 %v4169, %v4645
        %v4682 = vadd.f32 %v4170, %v4646
        %v4683 = vadd.f32 %v4171, %v4645
        %v4684 = vadd.f32 %v4172, %v4646
        %v4685 = vadd.f32 %v4173, %v4647
        %v4686 = vadd.f32 %v4174, %v4648
        %v4687 = vadd.f32 %v4175, %v4647
        %v4688 = vadd.f32 %v4176, %v4648
        %v4689 = vadd.f32 %v4177, %v4649
        %v4690 = vadd.f32 %v4178, %v4650
        %v4691 = vadd.f32 %v4179, %v4649
        %v4692 = vadd.f32 %v4180, %v4650
        %v4693 = vadd.f32 %v4181, %v4651
        %v4694 = vadd.f32 %v4182, %v4652
        %v4695 = vadd.f32 %v4183, %v4651
        %v4696 = vadd.f32 %v4184, %v4652
        %v4697 = vadd.f32 %v4185, %v4653
        %v4698 = vadd.f32 %v4186, %v4654
        %v4699 = vadd.f32 %v4187, %v4653
        %v4700 = vadd.f32 %v4188, %v4654
        %v4701 = vadd.f32 %v4189, %v4655
        %v4702 = vadd.f32 %v4190, %v4656
        %v4703 = vadd.f32 %v4191, %v4655
        %v4704 = vadd.f32 %v4192, %v4656
        %v4737 = vrot.slane %v4327, 6
        %v4738 = vrot.slane %v4329, 6
        %v4739 = vsel %vm969, %v4737, %v4738
        %v4740 = vrot.slane %v4328, 6
        %v4741 = vrot.slane %v4330, 6
        %v4742 = vsel %vm969, %v4740, %v4741
        %v4743 = vrot.slane %v4331, 6
        %v4744 = vrot.slane %v4333, 6
        %v4745 = vsel %vm969, %v4743, %v4744
        %v4746 = vrot.slane %v4332, 6
        %v4747 = vrot.slane %v4334, 6
        %v4748 = vsel %vm969, %v4746, %v4747
        %v4749 = vrot.slane %v4335, 6
        %v4750 = vrot.slane %v4337, 6
        %v4751 = vsel %vm969, %v4749, %v4750
        %v4752 = vrot.slane %v4336, 6
        %v4753 = vrot.slane %v4338, 6
        %v4754 = vsel %vm969, %v4752, %v4753
        %v4755 = vrot.slane %v4339, 6
        %v4756 = vrot.slane %v4341, 6
        %v4757 = vsel %vm969, %v4755, %v4756
        %v4758 = vrot.slane %v4340, 6
        %v4759 = vrot.slane %v4342, 6
        %v4760 = vsel %vm969, %v4758, %v4759
        %v4761 = vrot.slane %v4343, 6
        %v4762 = vrot.slane %v4345, 6
        %v4763 = vsel %vm969, %v4761, %v4762
        %v4764 = vrot.slane %v4344, 6
        %v4765 = vrot.slane %v4346, 6
        %v4766 = vsel %vm969, %v4764, %v4765
        %v4767 = vrot.slane %v4347, 6
        %v4768 = vrot.slane %v4349, 6
        %v4769 = vsel %vm969, %v4767, %v4768
        %v4770 = vrot.slane %v4348, 6
        %v4771 = vrot.slane %v4350, 6
        %v4772 = vsel %vm969, %v4770, %v4771
        %v4773 = vrot.slane %v4351, 6
        %v4774 = vrot.slane %v4353, 6
        %v4775 = vsel %vm969, %v4773, %v4774
        %v4776 = vrot.slane %v4352, 6
        %v4777 = vrot.slane %v4354, 6
        %v4778 = vsel %vm969, %v4776, %v4777
        %v4779 = vrot.slane %v4355, 6
        %v4780 = vrot.slane %v4357, 6
        %v4781 = vsel %vm969, %v4779, %v4780
        %v4782 = vrot.slane %v4356, 6
        %v4783 = vrot.slane %v4358, 6
        %v4784 = vsel %vm969, %v4782, %v4783
        %v4817 = vadd.f32 %v4261, %v4739
        %v4818 = vadd.f32 %v4262, %v4742
        %v4819 = vadd.f32 %v4263, %v4738
        %v4820 = vadd.f32 %v4264, %v4741
        %v4821 = vadd.f32 %v4265, %v4745
        %v4822 = vadd.f32 %v4266, %v4748
        %v4823 = vadd.f32 %v4267, %v4744
        %v4824 = vadd.f32 %v4268, %v4747
        %v4825 = vadd.f32 %v4269, %v4751
        %v4826 = vadd.f32 %v4270, %v4754
        %v4827 = vadd.f32 %v4271, %v4750
        %v4828 = vadd.f32 %v4272, %v4753
        %v4829 = vadd.f32 %v4273, %v4757
        %v4830 = vadd.f32 %v4274, %v4760
        %v4831 = vadd.f32 %v4275, %v4756
        %v4832 = vadd.f32 %v4276, %v4759
        %v4833 = vadd.f32 %v4277, %v4763
        %v4834 = vadd.f32 %v4278, %v4766
        %v4835 = vadd.f32 %v4279, %v4762
        %v4836 = vadd.f32 %v4280, %v4765
        %v4837 = vadd.f32 %v4281, %v4769
        %v4838 = vadd.f32 %v4282, %v4772
        %v4839 = vadd.f32 %v4283, %v4768
        %v4840 = vadd.f32 %v4284, %v4771
        %v4841 = vadd.f32 %v4285, %v4775
        %v4842 = vadd.f32 %v4286, %v4778
        %v4843 = vadd.f32 %v4287, %v4774
        %v4844 = vadd.f32 %v4288, %v4777
        %v4845 = vadd.f32 %v4289, %v4781
        %v4846 = vadd.f32 %v4290, %v4784
        %v4847 = vadd.f32 %v4291, %v4780
        %v4848 = vadd.f32 %v4292, %v4783
        %v4881 = vrot.slane %v4427, 1
        %v4882 = vrot.slane %v4429, 1
        %v4883 = vsel %vm1114, %v4881, %v4882
        %v4884 = vrot.slane %v4428, 1
        %v4885 = vrot.slane %v4430, 1
        %v4886 = vsel %vm1114, %v4884, %v4885
        %v4887 = vrot.slane %v4431, 1
        %v4888 = vrot.slane %v4433, 1
        %v4889 = vsel %vm1114, %v4887, %v4888
        %v4890 = vrot.slane %v4432, 1
        %v4891 = vrot.slane %v4434, 1
        %v4892 = vsel %vm1114, %v4890, %v4891
        %v4893 = vrot.slane %v4435, 1
        %v4894 = vrot.slane %v4437, 1
        %v4895 = vsel %vm1114, %v4893, %v4894
        %v4896 = vrot.slane %v4436, 1
        %v4897 = vrot.slane %v4438, 1
        %v4898 = vsel %vm1114, %v4896, %v4897
        %v4899 = vrot.slane %v4439, 1
        %v4900 = vrot.slane %v4441, 1
        %v4901 = vsel %vm1114, %v4899, %v4900
        %v4902 = vrot.slane %v4440, 1
        %v4903 = vrot.slane %v4442, 1
        %v4904 = vsel %vm1114, %v4902, %v4903
        %v4905 = vrot.slane %v4443, 1
        %v4906 = vrot.slane %v4445, 1
        %v4907 = vsel %vm1114, %v4905, %v4906
        %v4908 = vrot.slane %v4444, 1
        %v4909 = vrot.slane %v4446, 1
        %v4910 = vsel %vm1114, %v4908, %v4909
        %v4911 = vrot.slane %v4447, 1
        %v4912 = vrot.slane %v4449, 1
        %v4913 = vsel %vm1114, %v4911, %v4912
        %v4914 = vrot.slane %v4448, 1
        %v4915 = vrot.slane %v4450, 1
        %v4916 = vsel %vm1114, %v4914, %v4915
        %v4917 = vrot.slane %v4451, 1
        %v4918 = vrot.slane %v4453, 1
        %v4919 = vsel %vm1114, %v4917, %v4918
        %v4920 = vrot.slane %v4452, 1
        %v4921 = vrot.slane %v4454, 1
        %v4922 = vsel %vm1114, %v4920, %v4921
        %v4923 = vrot.slane %v4455, 1
        %v4924 = vrot.slane %v4457, 1
        %v4925 = vsel %vm1114, %v4923, %v4924
        %v4926 = vrot.slane %v4456, 1
        %v4927 = vrot.slane %v4458, 1
        %v4928 = vsel %vm1114, %v4926, %v4927
        %v4945 = vadd.f32 %v4377, %v4883
        %v4946 = vadd.f32 %v4378, %v4886
        %v4947 = vadd.f32 %v4379, %v4889
        %v4948 = vadd.f32 %v4380, %v4892
        %v4949 = vadd.f32 %v4381, %v4895
        %v4950 = vadd.f32 %v4382, %v4898
        %v4951 = vadd.f32 %v4383, %v4901
        %v4952 = vadd.f32 %v4384, %v4904
        %v4953 = vadd.f32 %v4385, %v4907
        %v4954 = vadd.f32 %v4386, %v4910
        %v4955 = vadd.f32 %v4387, %v4913
        %v4956 = vadd.f32 %v4388, %v4916
        %v4957 = vadd.f32 %v4389, %v4919
        %v4958 = vadd.f32 %v4390, %v4922
        %v4959 = vadd.f32 %v4391, %v4925
        %v4960 = vadd.f32 %v4392, %v4928
        %v4977 = vrot.slane %v4543, 1
        %v4978 = vrot.slane %v4544, 1
        %v4979 = vrot.slane %v4545, 1
        %v4980 = vrot.slane %v4546, 1
        %v4981 = vrot.slane %v4547, 1
        %v4982 = vrot.slane %v4548, 1
        %v4983 = vrot.slane %v4549, 1
        %v4984 = vrot.slane %v4550, 1
        %v4985 = vrot.slane %v4551, 1
        %v4986 = vrot.slane %v4552, 1
        %v4987 = vrot.slane %v4553, 1
        %v4988 = vrot.slane %v4554, 1
        %v4989 = vrot.slane %v4555, 1
        %v4990 = vrot.slane %v4556, 1
        %v4991 = vrot.slane %v4557, 1
        %v4992 = vrot.slane %v4558, 1
        %v5009 = vadd.f32 %v4493, %v4977
        %v5010 = vadd.f32 %v4494, %v4978
        %v5011 = vadd.f32 %v4495, %v4977
        %v5012 = vadd.f32 %v4496, %v4978
        %v5013 = vadd.f32 %v4497, %v4979
        %v5014 = vadd.f32 %v4498, %v4980
        %v5015 = vadd.f32 %v4499, %v4979
        %v5016 = vadd.f32 %v4500, %v4980
        %v5017 = vadd.f32 %v4501, %v4981
        %v5018 = vadd.f32 %v4502, %v4982
        %v5019 = vadd.f32 %v4503, %v4981
        %v5020 = vadd.f32 %v4504, %v4982
        %v5021 = vadd.f32 %v4505, %v4983
        %v5022 = vadd.f32 %v4506, %v4984
        %v5023 = vadd.f32 %v4507, %v4983
        %v5024 = vadd.f32 %v4508, %v4984
        %v5025 = vadd.f32 %v4509, %v4985
        %v5026 = vadd.f32 %v4510, %v4986
        %v5027 = vadd.f32 %v4511, %v4985
        %v5028 = vadd.f32 %v4512, %v4986
        %v5029 = vadd.f32 %v4513, %v4987
        %v5030 = vadd.f32 %v4514, %v4988
        %v5031 = vadd.f32 %v4515, %v4987
        %v5032 = vadd.f32 %v4516, %v4988
        %v5033 = vadd.f32 %v4517, %v4989
        %v5034 = vadd.f32 %v4518, %v4990
        %v5035 = vadd.f32 %v4519, %v4989
        %v5036 = vadd.f32 %v4520, %v4990
        %v5037 = vadd.f32 %v4521, %v4991
        %v5038 = vadd.f32 %v4522, %v4992
        %v5039 = vadd.f32 %v4523, %v4991
        %v5040 = vadd.f32 %v4524, %v4992
        %v5073 = vrot.slane %v4817, 2
        %v5074 = vrot.slane %v4818, 2
        %v5075 = vrot.slane %v4819, 2
        %v5076 = vsel %vm1307, %v5073, %v5075
        %v5077 = vrot.slane %v4820, 2
        %v5078 = vsel %vm1307, %v5074, %v5077
        %v5079 = vrot.slane %v4821, 2
        %v5080 = vrot.slane %v4822, 2
        %v5081 = vrot.slane %v4823, 2
        %v5082 = vsel %vm1307, %v5079, %v5081
        %v5083 = vrot.slane %v4824, 2
        %v5084 = vsel %vm1307, %v5080, %v5083
        %v5085 = vrot.slane %v4825, 2
        %v5086 = vrot.slane %v4826, 2
        %v5087 = vrot.slane %v4827, 2
        %v5088 = vsel %vm1307, %v5085, %v5087
        %v5089 = vrot.slane %v4828, 2
        %v5090 = vsel %vm1307, %v5086, %v5089
        %v5091 = vrot.slane %v4829, 2
        %v5092 = vrot.slane %v4830, 2
        %v5093 = vrot.slane %v4831, 2
        %v5094 = vsel %vm1307, %v5091, %v5093
        %v5095 = vrot.slane %v4832, 2
        %v5096 = vsel %vm1307, %v5092, %v5095
        %v5097 = vrot.slane %v4833, 2
        %v5098 = vrot.slane %v4834, 2
        %v5099 = vrot.slane %v4835, 2
        %v5100 = vsel %vm1307, %v5097, %v5099
        %v5101 = vrot.slane %v4836, 2
        %v5102 = vsel %vm1307, %v5098, %v5101
        %v5103 = vrot.slane %v4837, 2
        %v5104 = vrot.slane %v4838, 2
        %v5105 = vrot.slane %v4839, 2
        %v5106 = vsel %vm1307, %v5103, %v5105
        %v5107 = vrot.slane %v4840, 2
        %v5108 = vsel %vm1307, %v5104, %v5107
        %v5109 = vrot.slane %v4841, 2
        %v5110 = vrot.slane %v4842, 2
        %v5111 = vrot.slane %v4843, 2
        %v5112 = vsel %vm1307, %v5109, %v5111
        %v5113 = vrot.slane %v4844, 2
        %v5114 = vsel %vm1307, %v5110, %v5113
        %v5115 = vrot.slane %v4845, 2
        %v5116 = vrot.slane %v4846, 2
        %v5117 = vrot.slane %v4847, 2
        %v5118 = vsel %vm1307, %v5115, %v5117
        %v5119 = vrot.slane %v4848, 2
        %v5120 = vsel %vm1307, %v5116, %v5119
        %v5153 = vadd.f32 %v4673, %v5073
        %v5154 = vadd.f32 %v4674, %v5074
        %v5155 = vadd.f32 %v4675, %v5076
        %v5156 = vadd.f32 %v4676, %v5078
        %v5157 = vadd.f32 %v4677, %v5079
        %v5158 = vadd.f32 %v4678, %v5080
        %v5159 = vadd.f32 %v4679, %v5082
        %v5160 = vadd.f32 %v4680, %v5084
        %v5161 = vadd.f32 %v4681, %v5085
        %v5162 = vadd.f32 %v4682, %v5086
        %v5163 = vadd.f32 %v4683, %v5088
        %v5164 = vadd.f32 %v4684, %v5090
        %v5165 = vadd.f32 %v4685, %v5091
        %v5166 = vadd.f32 %v4686, %v5092
        %v5167 = vadd.f32 %v4687, %v5094
        %v5168 = vadd.f32 %v4688, %v5096
        %v5169 = vadd.f32 %v4689, %v5097
        %v5170 = vadd.f32 %v4690, %v5098
        %v5171 = vadd.f32 %v4691, %v5100
        %v5172 = vadd.f32 %v4692, %v5102
        %v5173 = vadd.f32 %v4693, %v5103
        %v5174 = vadd.f32 %v4694, %v5104
        %v5175 = vadd.f32 %v4695, %v5106
        %v5176 = vadd.f32 %v4696, %v5108
        %v5177 = vadd.f32 %v4697, %v5109
        %v5178 = vadd.f32 %v4698, %v5110
        %v5179 = vadd.f32 %v4699, %v5112
        %v5180 = vadd.f32 %v4700, %v5114
        %v5181 = vadd.f32 %v4701, %v5115
        %v5182 = vadd.f32 %v4702, %v5116
        %v5183 = vadd.f32 %v4703, %v5118
        %v5184 = vadd.f32 %v4704, %v5120
        %v5217 = vrot.slane %v5009, 7
        %v5218 = vrot.slane %v5011, 7
        %v5219 = vsel %vm1452, %v5217, %v5218
        %v5220 = vrot.slane %v5010, 7
        %v5221 = vrot.slane %v5012, 7
        %v5222 = vsel %vm1452, %v5220, %v5221
        %v5223 = vrot.slane %v5013, 7
        %v5224 = vrot.slane %v5015, 7
        %v5225 = vsel %vm1452, %v5223, %v5224
        %v5226 = vrot.slane %v5014, 7
        %v5227 = vrot.slane %v5016, 7
        %v5228 = vsel %vm1452, %v5226, %v5227
        %v5229 = vrot.slane %v5017, 7
        %v5230 = vrot.slane %v5019, 7
        %v5231 = vsel %vm1452, %v5229, %v5230
        %v5232 = vrot.slane %v5018, 7
        %v5233 = vrot.slane %v5020, 7
        %v5234 = vsel %vm1452, %v5232, %v5233
        %v5235 = vrot.slane %v5021, 7
        %v5236 = vrot.slane %v5023, 7
        %v5237 = vsel %vm1452, %v5235, %v5236
        %v5238 = vrot.slane %v5022, 7
        %v5239 = vrot.slane %v5024, 7
        %v5240 = vsel %vm1452, %v5238, %v5239
        %v5241 = vrot.slane %v5025, 7
        %v5242 = vrot.slane %v5027, 7
        %v5243 = vsel %vm1452, %v5241, %v5242
        %v5244 = vrot.slane %v5026, 7
        %v5245 = vrot.slane %v5028, 7
        %v5246 = vsel %vm1452, %v5244, %v5245
        %v5247 = vrot.slane %v5029, 7
        %v5248 = vrot.slane %v5031, 7
        %v5249 = vsel %vm1452, %v5247, %v5248
        %v5250 = vrot.slane %v5030, 7
        %v5251 = vrot.slane %v5032, 7
        %v5252 = vsel %vm1452, %v5250, %v5251
        %v5253 = vrot.slane %v5033, 7
        %v5254 = vrot.slane %v5035, 7
        %v5255 = vsel %vm1452, %v5253, %v5254
        %v5256 = vrot.slane %v5034, 7
        %v5257 = vrot.slane %v5036, 7
        %v5258 = vsel %vm1452, %v5256, %v5257
        %v5259 = vrot.slane %v5037, 7
        %v5260 = vrot.slane %v5039, 7
        %v5261 = vsel %vm1452, %v5259, %v5260
        %v5262 = vrot.slane %v5038, 7
        %v5263 = vrot.slane %v5040, 7
        %v5264 = vsel %vm1452, %v5262, %v5263
        %v5281 = vadd.f32 %v4945, %v5219
        %v5282 = vadd.f32 %v4946, %v5222
        %v5283 = vadd.f32 %v4947, %v5225
        %v5284 = vadd.f32 %v4948, %v5228
        %v5285 = vadd.f32 %v4949, %v5231
        %v5286 = vadd.f32 %v4950, %v5234
        %v5287 = vadd.f32 %v4951, %v5237
        %v5288 = vadd.f32 %v4952, %v5240
        %v5289 = vadd.f32 %v4953, %v5243
        %v5290 = vadd.f32 %v4954, %v5246
        %v5291 = vadd.f32 %v4955, %v5249
        %v5292 = vadd.f32 %v4956, %v5252
        %v5293 = vadd.f32 %v4957, %v5255
        %v5294 = vadd.f32 %v4958, %v5258
        %v5295 = vadd.f32 %v4959, %v5261
        %v5296 = vadd.f32 %v4960, %v5264
        %v5313 = vrot.slane %v5281, 1
        %v5314 = vrot.slane %v5282, 1
        %v5315 = vrot.slane %v5283, 1
        %v5316 = vrot.slane %v5284, 1
        %v5317 = vrot.slane %v5285, 1
        %v5318 = vrot.slane %v5286, 1
        %v5319 = vrot.slane %v5287, 1
        %v5320 = vrot.slane %v5288, 1
        %v5321 = vrot.slane %v5289, 1
        %v5322 = vrot.slane %v5290, 1
        %v5323 = vrot.slane %v5291, 1
        %v5324 = vrot.slane %v5292, 1
        %v5325 = vrot.slane %v5293, 1
        %v5326 = vrot.slane %v5294, 1
        %v5327 = vrot.slane %v5295, 1
        %v5328 = vrot.slane %v5296, 1
        %v5345 = vadd.f32 %v5153, %v5313
        %v5346 = vadd.f32 %v5154, %v5314
        %v5347 = vadd.f32 %v5155, %v5313
        %v5348 = vadd.f32 %v5156, %v5314
        %v5349 = vadd.f32 %v5157, %v5315
        %v5350 = vadd.f32 %v5158, %v5316
        %v5351 = vadd.f32 %v5159, %v5315
        %v5352 = vadd.f32 %v5160, %v5316
        %v5353 = vadd.f32 %v5161, %v5317
        %v5354 = vadd.f32 %v5162, %v5318
        %v5355 = vadd.f32 %v5163, %v5317
        %v5356 = vadd.f32 %v5164, %v5318
        %v5357 = vadd.f32 %v5165, %v5319
        %v5358 = vadd.f32 %v5166, %v5320
        %v5359 = vadd.f32 %v5167, %v5319
        %v5360 = vadd.f32 %v5168, %v5320
        %v5361 = vadd.f32 %v5169, %v5321
        %v5362 = vadd.f32 %v5170, %v5322
        %v5363 = vadd.f32 %v5171, %v5321
        %v5364 = vadd.f32 %v5172, %v5322
        %v5365 = vadd.f32 %v5173, %v5323
        %v5366 = vadd.f32 %v5174, %v5324
        %v5367 = vadd.f32 %v5175, %v5323
        %v5368 = vadd.f32 %v5176, %v5324
        %v5369 = vadd.f32 %v5177, %v5325
        %v5370 = vadd.f32 %v5178, %v5326
        %v5371 = vadd.f32 %v5179, %v5325
        %v5372 = vadd.f32 %v5180, %v5326
        %v5373 = vadd.f32 %v5181, %v5327
        %v5374 = vadd.f32 %v5182, %v5328
        %v5375 = vadd.f32 %v5183, %v5327
        %v5376 = vadd.f32 %v5184, %v5328
        %v5409 = vrot.slane %v4593, 2
        %v5410 = vrot.slane %v4594, 2
        %v5411 = vrot.slane %v4595, 2
        %v5412 = vsel %vm1307, %v5409, %v5411
        %v5413 = vrot.slane %v4596, 2
        %v5414 = vsel %vm1307, %v5410, %v5413
        %v5415 = vrot.slane %v4597, 2
        %v5416 = vrot.slane %v4598, 2
        %v5417 = vrot.slane %v4599, 2
        %v5418 = vsel %vm1307, %v5415, %v5417
        %v5419 = vrot.slane %v4600, 2
        %v5420 = vsel %vm1307, %v5416, %v5419
        %v5421 = vrot.slane %v4601, 2
        %v5422 = vrot.slane %v4602, 2
        %v5423 = vrot.slane %v4603, 2
        %v5424 = vsel %vm1307, %v5421, %v5423
        %v5425 = vrot.slane %v4604, 2
        %v5426 = vsel %vm1307, %v5422, %v5425
        %v5427 = vrot.slane %v4605, 2
        %v5428 = vrot.slane %v4606, 2
        %v5429 = vrot.slane %v4607, 2
        %v5430 = vsel %vm1307, %v5427, %v5429
        %v5431 = vrot.slane %v4608, 2
        %v5432 = vsel %vm1307, %v5428, %v5431
        %v5433 = vrot.slane %v4609, 2
        %v5434 = vrot.slane %v4610, 2
        %v5435 = vrot.slane %v4611, 2
        %v5436 = vsel %vm1307, %v5433, %v5435
        %v5437 = vrot.slane %v4612, 2
        %v5438 = vsel %vm1307, %v5434, %v5437
        %v5439 = vrot.slane %v4613, 2
        %v5440 = vrot.slane %v4614, 2
        %v5441 = vrot.slane %v4615, 2
        %v5442 = vsel %vm1307, %v5439, %v5441
        %v5443 = vrot.slane %v4616, 2
        %v5444 = vsel %vm1307, %v5440, %v5443
        %v5445 = vrot.slane %v4617, 2
        %v5446 = vrot.slane %v4618, 2
        %v5447 = vrot.slane %v4619, 2
        %v5448 = vsel %vm1307, %v5445, %v5447
        %v5449 = vrot.slane %v4620, 2
        %v5450 = vsel %vm1307, %v5446, %v5449
        %v5451 = vrot.slane %v4621, 2
        %v5452 = vrot.slane %v4622, 2
        %v5453 = vrot.slane %v4623, 2
        %v5454 = vsel %vm1307, %v5451, %v5453
        %v5455 = vrot.slane %v4624, 2
        %v5456 = vsel %vm1307, %v5452, %v5455
        %v5489 = vadd.f32 %v5345, %v5409
        %v5490 = vadd.f32 %v5346, %v5410
        %v5491 = vadd.f32 %v5347, %v5412
        %v5492 = vadd.f32 %v5348, %v5414
        %v5493 = vadd.f32 %v5349, %v5415
        %v5494 = vadd.f32 %v5350, %v5416
        %v5495 = vadd.f32 %v5351, %v5418
        %v5496 = vadd.f32 %v5352, %v5420
        %v5497 = vadd.f32 %v5353, %v5421
        %v5498 = vadd.f32 %v5354, %v5422
        %v5499 = vadd.f32 %v5355, %v5424
        %v5500 = vadd.f32 %v5356, %v5426
        %v5501 = vadd.f32 %v5357, %v5427
        %v5502 = vadd.f32 %v5358, %v5428
        %v5503 = vadd.f32 %v5359, %v5430
        %v5504 = vadd.f32 %v5360, %v5432
        %v5505 = vadd.f32 %v5361, %v5433
        %v5506 = vadd.f32 %v5362, %v5434
        %v5507 = vadd.f32 %v5363, %v5436
        %v5508 = vadd.f32 %v5364, %v5438
        %v5509 = vadd.f32 %v5365, %v5439
        %v5510 = vadd.f32 %v5366, %v5440
        %v5511 = vadd.f32 %v5367, %v5442
        %v5512 = vadd.f32 %v5368, %v5444
        %v5513 = vadd.f32 %v5369, %v5445
        %v5514 = vadd.f32 %v5370, %v5446
        %v5515 = vadd.f32 %v5371, %v5448
        %v5516 = vadd.f32 %v5372, %v5450
        %v5517 = vadd.f32 %v5373, %v5451
        %v5518 = vadd.f32 %v5374, %v5452
        %v5519 = vadd.f32 %v5375, %v5454
        %v5520 = vadd.f32 %v5376, %v5456
        %v5553 = vrot.slane %v5489, 7
        %v5554 = vrot.slane %v5491, 7
        %v5555 = vsel %vm1452, %v5553, %v5554
        %v5556 = vrot.slane %v5490, 7
        %v5557 = vrot.slane %v5492, 7
        %v5558 = vsel %vm1452, %v5556, %v5557
        %v5559 = vrot.slane %v5493, 7
        %v5560 = vrot.slane %v5495, 7
        %v5561 = vsel %vm1452, %v5559, %v5560
        %v5562 = vrot.slane %v5494, 7
        %v5563 = vrot.slane %v5496, 7
        %v5564 = vsel %vm1452, %v5562, %v5563
        %v5565 = vrot.slane %v5497, 7
        %v5566 = vrot.slane %v5499, 7
        %v5567 = vsel %vm1452, %v5565, %v5566
        %v5568 = vrot.slane %v5498, 7
        %v5569 = vrot.slane %v5500, 7
        %v5570 = vsel %vm1452, %v5568, %v5569
        %v5571 = vrot.slane %v5501, 7
        %v5572 = vrot.slane %v5503, 7
        %v5573 = vsel %vm1452, %v5571, %v5572
        %v5574 = vrot.slane %v5502, 7
        %v5575 = vrot.slane %v5504, 7
        %v5576 = vsel %vm1452, %v5574, %v5575
        %v5577 = vrot.slane %v5505, 7
        %v5578 = vrot.slane %v5507, 7
        %v5579 = vsel %vm1452, %v5577, %v5578
        %v5580 = vrot.slane %v5506, 7
        %v5581 = vrot.slane %v5508, 7
        %v5582 = vsel %vm1452, %v5580, %v5581
        %v5583 = vrot.slane %v5509, 7
        %v5584 = vrot.slane %v5511, 7
        %v5585 = vsel %vm1452, %v5583, %v5584
        %v5586 = vrot.slane %v5510, 7
        %v5587 = vrot.slane %v5512, 7
        %v5588 = vsel %vm1452, %v5586, %v5587
        %v5589 = vrot.slane %v5513, 7
        %v5590 = vrot.slane %v5515, 7
        %v5591 = vsel %vm1452, %v5589, %v5590
        %v5592 = vrot.slane %v5514, 7
        %v5593 = vrot.slane %v5516, 7
        %v5594 = vsel %vm1452, %v5592, %v5593
        %v5595 = vrot.slane %v5517, 7
        %v5596 = vrot.slane %v5519, 7
        %v5597 = vsel %vm1452, %v5595, %v5596
        %v5598 = vrot.slane %v5518, 7
        %v5599 = vrot.slane %v5520, 7
        %v5600 = vsel %vm1452, %v5598, %v5599
        %v5617 = vpack.c.bf16 %v5561, %v5555
        %v5618 = vpack.c.bf16 %v5564, %v5558
        %v5619 = vpack.c.bf16 %v5573, %v5567
        %v5620 = vpack.c.bf16 %v5576, %v5570
        %v5621 = vpack.c.bf16 %v5585, %v5579
        %v5622 = vpack.c.bf16 %v5588, %v5582
        %v5623 = vpack.c.bf16 %v5597, %v5591
        %v5624 = vpack.c.bf16 %v5600, %v5594
        %s5625 = scalar_lea.vmem [#allocation3], 512
        %v5626 = vld [vmem:[%s5625] sm:$0xff]
        %v5627 = vld [vmem:[%s5625 + $0x8] sm:$0xff]
        %v5628 = vld [vmem:[%s5625 + $0x10] sm:$0xff]
        %v5629 = vld [vmem:[%s5625 + $0x18] sm:$0xff]
        %v5630 = vld [vmem:[%s5625 + $0x20] sm:$0xff]
        %v5631 = vld [vmem:[%s5625 + $0x28] sm:$0xff]
        %v5632 = vld [vmem:[%s5625 + $0x30] sm:$0xff]
        %v5633 = vld [vmem:[%s5625 + $0x38] sm:$0xff]
        %v5634 = vld [vmem:[%s5625 + $0x40] sm:$0xff]
        %v5635 = vld [vmem:[%s5625 + $0x48] sm:$0xff]
        %v5636 = vld [vmem:[%s5625 + $0x50] sm:$0xff]
        %v5637 = vld [vmem:[%s5625 + $0x58] sm:$0xff]
        %v5638 = vld [vmem:[%s5625 + $0x60] sm:$0xff]
        %v5639 = vld [vmem:[%s5625 + $0x68] sm:$0xff]
        %v5640 = vld [vmem:[%s5625 + $0x70] sm:$0xff]
        %v5641 = vld [vmem:[%s5625 + $0x78] sm:$0xff]
        %v5642 = vld [vmem:[%s5625 + $0x80] sm:$0xff]
        %v5643 = vld [vmem:[%s5625 + $0x88] sm:$0xff]
        %v5644 = vld [vmem:[%s5625 + $0x90] sm:$0xff]
        %v5645 = vld [vmem:[%s5625 + $0x98] sm:$0xff]
        %v5646 = vld [vmem:[%s5625 + $0xa0] sm:$0xff]
        %v5647 = vld [vmem:[%s5625 + $0xa8] sm:$0xff]
        %v5648 = vld [vmem:[%s5625 + $0xb0] sm:$0xff]
        %v5649 = vld [vmem:[%s5625 + $0xb8] sm:$0xff]
        %v5650 = vld [vmem:[%s5625 + $0xc0] sm:$0xff]
        %v5651 = vld [vmem:[%s5625 + $0xc8] sm:$0xff]
        %v5652 = vld [vmem:[%s5625 + $0xd0] sm:$0xff]
        %v5653 = vld [vmem:[%s5625 + $0xd8] sm:$0xff]
        %v5654 = vld [vmem:[%s5625 + $0xe0] sm:$0xff]
        %v5655 = vld [vmem:[%s5625 + $0xe8] sm:$0xff]
        %v5656 = vld [vmem:[%s5625 + $0xf0] sm:$0xff]
        %v5657 = vld [vmem:[%s5625 + $0xf8] sm:$0xff]
        %s5658 = scalar_lea.vmem %s3, 4
        %v5659 = vld [vmem:[%s5658] sm:$0x3]
        %v5661 = vperm.slane %v5659, 0
        %v5662 = vperm.slane %v5659, 1
        %v5697 = vunpack.c.l.b16 %v5626
        %v5698 = vunpack.c.h.b16 %v5626
        %v5699 = vunpack.c.l.b16 %v5627
        %v5700 = vunpack.c.h.b16 %v5627
        %v5701 = vunpack.c.l.b16 %v5628
        %v5702 = vunpack.c.h.b16 %v5628
        %v5703 = vunpack.c.l.b16 %v5629
        %v5704 = vunpack.c.h.b16 %v5629
        %v5705 = vunpack.c.l.b16 %v5630
        %v5706 = vunpack.c.h.b16 %v5630
        %v5707 = vunpack.c.l.b16 %v5631
        %v5708 = vunpack.c.h.b16 %v5631
        %v5709 = vunpack.c.l.b16 %v5632
        %v5710 = vunpack.c.h.b16 %v5632
        %v5711 = vunpack.c.l.b16 %v5633
        %v5712 = vunpack.c.h.b16 %v5633
        %v5713 = vunpack.c.l.b16 %v5634
        %v5714 = vunpack.c.h.b16 %v5634
        %v5715 = vunpack.c.l.b16 %v5635
        %v5716 = vunpack.c.h.b16 %v5635
        %v5717 = vunpack.c.l.b16 %v5636
        %v5718 = vunpack.c.h.b16 %v5636
        %v5719 = vunpack.c.l.b16 %v5637
        %v5720 = vunpack.c.h.b16 %v5637
        %v5721 = vunpack.c.l.b16 %v5638
        %v5722 = vunpack.c.h.b16 %v5638
        %v5723 = vunpack.c.l.b16 %v5639
        %v5724 = vunpack.c.h.b16 %v5639
        %v5725 = vunpack.c.l.b16 %v5640
        %v5726 = vunpack.c.h.b16 %v5640
        %v5727 = vunpack.c.l.b16 %v5641
        %v5728 = vunpack.c.h.b16 %v5641
        %v5729 = vunpack.c.l.b16 %v5642
        %v5730 = vunpack.c.h.b16 %v5642
        %v5731 = vunpack.c.l.b16 %v5643
        %v5732 = vunpack.c.h.b16 %v5643
        %v5733 = vunpack.c.l.b16 %v5644
        %v5734 = vunpack.c.h.b16 %v5644
        %v5735 = vunpack.c.l.b16 %v5645
        %v5736 = vunpack.c.h.b16 %v5645
        %v5737 = vunpack.c.l.b16 %v5646
        %v5738 = vunpack.c.h.b16 %v5646
        %v5739 = vunpack.c.l.b16 %v5647
        %v5740 = vunpack.c.h.b16 %v5647
        %v5741 = vunpack.c.l.b16 %v5648
        %v5742 = vunpack.c.h.b16 %v5648
        %v5743 = vunpack.c.l.b16 %v5649
        %v5744 = vunpack.c.h.b16 %v5649
        %v5745 = vunpack.c.l.b16 %v5650
        %v5746 = vunpack.c.h.b16 %v5650
        %v5747 = vunpack.c.l.b16 %v5651
        %v5748 = vunpack.c.h.b16 %v5651
        %v5749 = vunpack.c.l.b16 %v5652
        %v5750 = vunpack.c.h.b16 %v5652
        %v5751 = vunpack.c.l.b16 %v5653
        %v5752 = vunpack.c.h.b16 %v5653
        %v5753 = vunpack.c.l.b16 %v5654
        %v5754 = vunpack.c.h.b16 %v5654
        %v5755 = vunpack.c.l.b16 %v5655
        %v5756 = vunpack.c.h.b16 %v5655
        %v5757 = vunpack.c.l.b16 %v5656
        %v5758 = vunpack.c.h.b16 %v5656
        %v5759 = vunpack.c.l.b16 %v5657
        %v5760 = vunpack.c.h.b16 %v5657
        %v5761 = vpack.c.b16 %v5699, %v5697
        %v5762 = vpack.c.b16 %v5700, %v5698
        %v5763 = vpack.c.b16 %v5703, %v5701
        %v5764 = vpack.c.b16 %v5704, %v5702
        %v5765 = vpack.c.b16 %v5707, %v5705
        %v5766 = vpack.c.b16 %v5708, %v5706
        %v5767 = vpack.c.b16 %v5711, %v5709
        %v5768 = vpack.c.b16 %v5712, %v5710
        %v5769 = vpack.c.b16 %v5715, %v5713
        %v5770 = vpack.c.b16 %v5716, %v5714
        %v5771 = vpack.c.b16 %v5719, %v5717
        %v5772 = vpack.c.b16 %v5720, %v5718
        %v5773 = vpack.c.b16 %v5723, %v5721
        %v5774 = vpack.c.b16 %v5724, %v5722
        %v5775 = vpack.c.b16 %v5727, %v5725
        %v5776 = vpack.c.b16 %v5728, %v5726
        %v5777 = vpack.c.b16 %v5731, %v5729
        %v5778 = vpack.c.b16 %v5732, %v5730
        %v5779 = vpack.c.b16 %v5735, %v5733
        %v5780 = vpack.c.b16 %v5736, %v5734
        %v5781 = vpack.c.b16 %v5739, %v5737
        %v5782 = vpack.c.b16 %v5740, %v5738
        %v5783 = vpack.c.b16 %v5743, %v5741
        %v5784 = vpack.c.b16 %v5744, %v5742
        %v5785 = vpack.c.b16 %v5747, %v5745
        %v5786 = vpack.c.b16 %v5748, %v5746
        %v5787 = vpack.c.b16 %v5751, %v5749
        %v5788 = vpack.c.b16 %v5752, %v5750
        %v5789 = vpack.c.b16 %v5755, %v5753
        %v5790 = vpack.c.b16 %v5756, %v5754
        %v5791 = vpack.c.b16 %v5759, %v5757
        %v5792 = vpack.c.b16 %v5760, %v5758
        %5825 = vmatpush.bf16.msra.mxu0 %v5775
        %5826 = vmatpush.bf16.msra.mxu0 %v5773
        %5827 = vmatpush.bf16.msra.mxu0 %v5771
        %5828 = vmatpush.bf16.msra.mxu0 %v5769
        %5829 = vmatpush.bf16.msra.mxu0 %v5767
        %5830 = vmatpush.bf16.msra.mxu0 %v5765
        %5831 = vmatpush.bf16.msra.mxu0 %v5763
        %5832 = vmatpush.bf16.msra.mxu0 %v5761
        %5833 = vmatmul.bf16.gmra.mxu0 %v5617
        %v5834 = vpop.f32.mrf.mxu0
        %v5835 = vadd.f32 %v5661, %v5834
        %v5836 = vpop.f32.mrf.mxu0
        %v5837 = vadd.f32 %v5661, %v5836
        %5838 = vmatmul.bf16.gmra.mxu0 %v5619
        %v5839 = vpop.f32.mrf.mxu0
        %v5840 = vadd.f32 %v5661, %v5839
        %v5841 = vpop.f32.mrf.mxu0
        %v5842 = vadd.f32 %v5661, %v5841
        %5843 = vmatmul.bf16.gmra.mxu0 %v5621
        %v5844 = vpop.f32.mrf.mxu0
        %v5845 = vadd.f32 %v5661, %v5844
        %v5846 = vpop.f32.mrf.mxu0
        %v5847 = vadd.f32 %v5661, %v5846
        %5848 = vmatmul.bf16.gmra.mxu0 %v5623
        %v5849 = vpop.f32.mrf.mxu0
        %v5850 = vadd.f32 %v5661, %v5849
        %v5851 = vpop.f32.mrf.mxu0
        %v5852 = vadd.f32 %v5661, %v5851
        %5853 = vdwg.mxu0
        %5854 = vmatpush.bf16.msra.mxu0 %v5791
        %5855 = vmatpush.bf16.msra.mxu0 %v5789
        %5856 = vmatpush.bf16.msra.mxu0 %v5787
        %5857 = vmatpush.bf16.msra.mxu0 %v5785
        %5858 = vmatpush.bf16.msra.mxu0 %v5783
        %5859 = vmatpush.bf16.msra.mxu0 %v5781
        %5860 = vmatpush.bf16.msra.mxu0 %v5779
        %5861 = vmatpush.bf16.msra.mxu0 %v5777
        %5862 = vmatmul.bf16.gmra.mxu0 %v5618
        %v5863 = vpop.f32.mrf.mxu0
        %v5864 = vadd.f32 %v5835, %v5863
        %v5865 = vpop.f32.mrf.mxu0
        %v5866 = vadd.f32 %v5837, %v5865
        %5867 = vmatmul.bf16.gmra.mxu0 %v5620
        %v5868 = vpop.f32.mrf.mxu0
        %v5869 = vadd.f32 %v5840, %v5868
        %v5870 = vpop.f32.mrf.mxu0
        %v5871 = vadd.f32 %v5842, %v5870
        %5872 = vmatmul.bf16.gmra.mxu0 %v5622
        %v5873 = vpop.f32.mrf.mxu0
        %v5874 = vadd.f32 %v5845, %v5873
        %v5875 = vpop.f32.mrf.mxu0
        %v5876 = vadd.f32 %v5847, %v5875
        %5877 = vmatmul.bf16.gmra.mxu0 %v5624
        %v5878 = vpop.f32.mrf.mxu0
        %v5879 = vadd.f32 %v5850, %v5878
        %v5880 = vpop.f32.mrf.mxu0
        %v5881 = vadd.f32 %v5852, %v5880
        %5882 = vdwg.mxu0
        %5883 = vmatpush.bf16.msra.mxu0 %v5776
        %5884 = vmatpush.bf16.msra.mxu0 %v5774
        %5885 = vmatpush.bf16.msra.mxu0 %v5772
        %5886 = vmatpush.bf16.msra.mxu0 %v5770
        %5887 = vmatpush.bf16.msra.mxu0 %v5768
        %5888 = vmatpush.bf16.msra.mxu0 %v5766
        %5889 = vmatpush.bf16.msra.mxu0 %v5764
        %5890 = vmatpush.bf16.msra.mxu0 %v5762
        %5891 = vmatmul.bf16.gmra.mxu0 %v5617
        %v5892 = vpop.f32.mrf.mxu0
        %v5893 = vadd.f32 %v5662, %v5892
        %v5894 = vpop.f32.mrf.mxu0
        %v5895 = vadd.f32 %v5662, %v5894
        %5896 = vmatmul.bf16.gmra.mxu0 %v5619
        %v5897 = vpop.f32.mrf.mxu0
        %v5898 = vadd.f32 %v5662, %v5897
        %v5899 = vpop.f32.mrf.mxu0
        %v5900 = vadd.f32 %v5662, %v5899
        %5901 = vmatmul.bf16.gmra.mxu0 %v5621
        %v5902 = vpop.f32.mrf.mxu0
        %v5903 = vadd.f32 %v5662, %v5902
        %v5904 = vpop.f32.mrf.mxu0
        %v5905 = vadd.f32 %v5662, %v5904
        %5906 = vmatmul.bf16.gmra.mxu0 %v5623
        %v5907 = vpop.f32.mrf.mxu0
        %v5908 = vadd.f32 %v5662, %v5907
        %v5909 = vpop.f32.mrf.mxu0
        %v5910 = vadd.f32 %v5662, %v5909
        %5911 = vdwg.mxu0
        %5912 = vmatpush.bf16.msra.mxu0 %v5792
        %5913 = vmatpush.bf16.msra.mxu0 %v5790
        %5914 = vmatpush.bf16.msra.mxu0 %v5788
        %5915 = vmatpush.bf16.msra.mxu0 %v5786
        %5916 = vmatpush.bf16.msra.mxu0 %v5784
        %5917 = vmatpush.bf16.msra.mxu0 %v5782
        %5918 = vmatpush.bf16.msra.mxu0 %v5780
        %5919 = vmatpush.bf16.msra.mxu0 %v5778
        %5920 = vmatmul.bf16.gmra.mxu0 %v5618
        %v5921 = vpop.f32.mrf.mxu0
        %v5922 = vadd.f32 %v5893, %v5921
        %v5923 = vpop.f32.mrf.mxu0
        %v5924 = vadd.f32 %v5895, %v5923
        %5925 = vmatmul.bf16.gmra.mxu0 %v5620
        %v5926 = vpop.f32.mrf.mxu0
        %v5927 = vadd.f32 %v5898, %v5926
        %v5928 = vpop.f32.mrf.mxu0
        %v5929 = vadd.f32 %v5900, %v5928
        %5930 = vmatmul.bf16.gmra.mxu0 %v5622
        %v5931 = vpop.f32.mrf.mxu0
        %v5932 = vadd.f32 %v5903, %v5931
        %v5933 = vpop.f32.mrf.mxu0
        %v5934 = vadd.f32 %v5905, %v5933
        %5935 = vmatmul.bf16.gmra.mxu0 %v5624
        %v5936 = vpop.f32.mrf.mxu0
        %v5937 = vadd.f32 %v5908, %v5936
        %v5938 = vpop.f32.mrf.mxu0
        %v5939 = vadd.f32 %v5910, %v5938
        %5940 = vdwg.mxu0
        %v5941 = vadd.f32 %v273, %v5864
        %v5942 = vadd.f32 %v274, %v5922
        %v5943 = vadd.f32 %v275, %v5866
        %v5944 = vadd.f32 %v276, %v5924
        %v5945 = vadd.f32 %v277, %v5869
        %v5946 = vadd.f32 %v278, %v5927
        %v5947 = vadd.f32 %v279, %v5871
        %v5948 = vadd.f32 %v280, %v5929
        %v5949 = vadd.f32 %v281, %v5874
        %v5950 = vadd.f32 %v282, %v5932
        %v5951 = vadd.f32 %v283, %v5876
        %v5952 = vadd.f32 %v284, %v5934
        %v5953 = vadd.f32 %v285, %v5879
        %v5954 = vadd.f32 %v286, %v5937
        %v5955 = vadd.f32 %v287, %v5881
        %v5956 = vadd.f32 %v288, %v5939
        %vm5957 = vcmp.ge.f32.partialorder %v5941, 0.0
        %vm5958 = vcmp.ge.f32.partialorder %v5942, 0.0
        %vm5959 = vcmp.ge.f32.partialorder %v5943, 0.0
        %vm5960 = vcmp.ge.f32.partialorder %v5944, 0.0
        %vm5961 = vcmp.ge.f32.partialorder %v5945, 0.0
        %vm5962 = vcmp.ge.f32.partialorder %v5946, 0.0
        %vm5963 = vcmp.ge.f32.partialorder %v5947, 0.0
        %vm5964 = vcmp.ge.f32.partialorder %v5948, 0.0
        %vm5965 = vcmp.ge.f32.partialorder %v5949, 0.0
        %vm5966 = vcmp.ge.f32.partialorder %v5950, 0.0
        %vm5967 = vcmp.ge.f32.partialorder %v5951, 0.0
        %vm5968 = vcmp.ge.f32.partialorder %v5952, 0.0
        %vm5969 = vcmp.ge.f32.partialorder %v5953, 0.0
        %vm5970 = vcmp.ge.f32.partialorder %v5954, 0.0
        %vm5971 = vcmp.ge.f32.partialorder %v5955, 0.0
        %vm5972 = vcmp.ge.f32.partialorder %v5956, 0.0
        %v5973 = vmul.f32 %v5941, 0.2
        %v5974 = vmul.f32 %v5942, 0.2
        %v5975 = vmul.f32 %v5943, 0.2
        %v5976 = vmul.f32 %v5944, 0.2
        %v5977 = vmul.f32 %v5945, 0.2
        %v5978 = vmul.f32 %v5946, 0.2
        %v5979 = vmul.f32 %v5947, 0.2
        %v5980 = vmul.f32 %v5948, 0.2
        %v5981 = vmul.f32 %v5949, 0.2
        %v5982 = vmul.f32 %v5950, 0.2
        %v5983 = vmul.f32 %v5951, 0.2
        %v5984 = vmul.f32 %v5952, 0.2
        %v5985 = vmul.f32 %v5953, 0.2
        %v5986 = vmul.f32 %v5954, 0.2
        %v5987 = vmul.f32 %v5955, 0.2
        %v5988 = vmul.f32 %v5956, 0.2
        %v5989 = vsel %vm5957, %v5941, %v5973
        %v5990 = vsel %vm5958, %v5942, %v5974
        %v5991 = vsel %vm5959, %v5943, %v5975
        %v5992 = vsel %vm5960, %v5944, %v5976
        %v5993 = vsel %vm5961, %v5945, %v5977
        %v5994 = vsel %vm5962, %v5946, %v5978
        %v5995 = vsel %vm5963, %v5947, %v5979
        %v5996 = vsel %vm5964, %v5948, %v5980
        %v5997 = vsel %vm5965, %v5949, %v5981
        %v5998 = vsel %vm5966, %v5950, %v5982
        %v5999 = vsel %vm5967, %v5951, %v5983
        %v6000 = vsel %vm5968, %v5952, %v5984
        %v6001 = vsel %vm5969, %v5953, %v5985
        %v6002 = vsel %vm5970, %v5954, %v5986
        %v6003 = vsel %vm5971, %v5955, %v5987
        %v6004 = vsel %vm5972, %v5956, %v5988
        %6005 = vst [vmem:[%s337 + $0x10] sm:$0xff] %v5989
        %6006 = vst [vmem:[%s337 + $0x18] sm:$0xff] %v5990
        %6007 = vst [vmem:[%s337 + $0x40] sm:$0xff] %v5991
        %6008 = vst [vmem:[%s337 + $0x48] sm:$0xff] %v5992
        %6009 = vst [vmem:[%s337 + $0x70] sm:$0xff] %v5993
        %6010 = vst [vmem:[%s337 + $0x78] sm:$0xff] %v5994
        %6011 = vst [vmem:[%s337 + $0xa0] sm:$0xff] %v5995
        %6012 = vst [vmem:[%s337 + $0xa8] sm:$0xff] %v5996
        %6013 = vst [vmem:[%s337 + $0xd0] sm:$0xff] %v5997
        %6014 = vst [vmem:[%s337 + $0xd8] sm:$0xff] %v5998
        %6015 = vst [vmem:[%s337 + $0x100] sm:$0xff] %v5999
        %6016 = vst [vmem:[%s337 + $0x108] sm:$0xff] %v6000
        %6017 = vst [vmem:[%s337 + $0x130] sm:$0xff] %v6001
        %6018 = vst [vmem:[%s337 + $0x138] sm:$0xff] %v6002
        %6019 = vst [vmem:[%s337 + $0x160] sm:$0xff] %v6003
        %6020 = vst [vmem:[%s337 + $0x168] sm:$0xff] %v6004
        %s6021 = scalar_lea.vmem %s1, 96
        %v6022 = vld [vmem:[%s6021] sm:$0xff]
        %v6023 = vld [vmem:[%s6021 + $0x8] sm:$0xff]
        %v6024 = vld [vmem:[%s6021 + $0x10] sm:$0x1]
        %v6025 = vld [vmem:[%s6021 + $0x18] sm:$0x1]
        %v6026 = vld [vmem:[#allocation2] sm:$0x80]
        %v6027 = vld [vmem:[#allocation2 + $0x8] sm:$0x80]
        %v6028 = vld [vmem:[#allocation2 + $0x10] sm:$0x7f]
        %v6029 = vld [vmem:[#allocation2 + $0x18] sm:$0x7f]
        %v6030 = vld [vmem:[#allocation2 + $0x30] sm:$0x80]
        %v6031 = vld [vmem:[#allocation2 + $0x38] sm:$0x80]
        %v6032 = vld [vmem:[#allocation2 + $0x40] sm:$0x7f]
        %v6033 = vld [vmem:[#allocation2 + $0x48] sm:$0x7f]
        %v6034 = vld [vmem:[#allocation2 + $0x60] sm:$0x80]
        %v6035 = vld [vmem:[#allocation2 + $0x68] sm:$0x80]
        %v6036 = vld [vmem:[#allocation2 + $0x70] sm:$0x7f]
        %v6037 = vld [vmem:[#allocation2 + $0x78] sm:$0x7f]
        %v6038 = vld [vmem:[#allocation2 + $0x90] sm:$0x80]
        %v6039 = vld [vmem:[#allocation2 + $0x98] sm:$0x80]
        %v6040 = vld [vmem:[#allocation2 + $0xa0] sm:$0x7f]
        %v6041 = vld [vmem:[#allocation2 + $0xa8] sm:$0x7f]
        %v6042 = vld [vmem:[#allocation2 + $0xc0] sm:$0x80]
        %v6043 = vld [vmem:[#allocation2 + $0xc8] sm:$0x80]
        %v6044 = vld [vmem:[#allocation2 + $0xd0] sm:$0x7f]
        %v6045 = vld [vmem:[#allocation2 + $0xd8] sm:$0x7f]
        %v6046 = vld [vmem:[#allocation2 + $0xf0] sm:$0x80]
        %v6047 = vld [vmem:[#allocation2 + $0xf8] sm:$0x80]
        %v6048 = vld [vmem:[#allocation2 + $0x100] sm:$0x7f]
        %v6049 = vld [vmem:[#allocation2 + $0x108] sm:$0x7f]
        %v6050 = vld [vmem:[#allocation2 + $0x120] sm:$0x80]
        %v6051 = vld [vmem:[#allocation2 + $0x128] sm:$0x80]
        %v6052 = vld [vmem:[#allocation2 + $0x130] sm:$0x7f]
        %v6053 = vld [vmem:[#allocation2 + $0x138] sm:$0x7f]
        %v6054 = vld [vmem:[#allocation2 + $0x150] sm:$0x80]
        %v6055 = vld [vmem:[#allocation2 + $0x158] sm:$0x80]
        %v6056 = vld [vmem:[#allocation2 + $0x160] sm:$0x7f]
        %v6057 = vld [vmem:[#allocation2 + $0x168] sm:$0x7f]
        %v6058 = vperm.slane %v6022, 0
        %v6059 = vperm.slane %v6023, 0
        %v6060 = vmul.f32 %v6026, %v6058
        %v6061 = vmul.f32 %v6027, %v6059
        %v6062 = vmul.f32 %v6028, %v6058
        %v6063 = vmul.f32 %v6029, %v6059
        %v6064 = vmul.f32 %v6030, %v6058
        %v6065 = vmul.f32 %v6031, %v6059
        %v6066 = vmul.f32 %v6032, %v6058
        %v6067 = vmul.f32 %v6033, %v6059
        %v6068 = vmul.f32 %v6034, %v6058
        %v6069 = vmul.f32 %v6035, %v6059
        %v6070 = vmul.f32 %v6036, %v6058
        %v6071 = vmul.f32 %v6037, %v6059
        %v6072 = vmul.f32 %v6038, %v6058
        %v6073 = vmul.f32 %v6039, %v6059
        %v6074 = vmul.f32 %v6040, %v6058
        %v6075 = vmul.f32 %v6041, %v6059
        %v6076 = vmul.f32 %v6042, %v6058
        %v6077 = vmul.f32 %v6043, %v6059
        %v6078 = vmul.f32 %v6044, %v6058
        %v6079 = vmul.f32 %v6045, %v6059
        %v6080 = vmul.f32 %v6046, %v6058
        %v6081 = vmul.f32 %v6047, %v6059
        %v6082 = vmul.f32 %v6048, %v6058
        %v6083 = vmul.f32 %v6049, %v6059
        %v6084 = vmul.f32 %v6050, %v6058
        %v6085 = vmul.f32 %v6051, %v6059
        %v6086 = vmul.f32 %v6052, %v6058
        %v6087 = vmul.f32 %v6053, %v6059
        %v6088 = vmul.f32 %v6054, %v6058
        %v6089 = vmul.f32 %v6055, %v6059
        %v6090 = vmul.f32 %v6056, %v6058
        %v6091 = vmul.f32 %v6057, %v6059
        %v6092 = vld [vmem:[#allocation2 + $0x10] sm:$0xff]
        %v6093 = vld [vmem:[#allocation2 + $0x18] sm:$0xff]
        %v6094 = vld [vmem:[#allocation2 + $0x40] sm:$0xff]
        %v6095 = vld [vmem:[#allocation2 + $0x48] sm:$0xff]
        %v6096 = vld [vmem:[#allocation2 + $0x70] sm:$0xff]
        %v6097 = vld [vmem:[#allocation2 + $0x78] sm:$0xff]
        %v6098 = vld [vmem:[#allocation2 + $0xa0] sm:$0xff]
        %v6099 = vld [vmem:[#allocation2 + $0xa8] sm:$0xff]
        %v6100 = vld [vmem:[#allocation2 + $0xd0] sm:$0xff]
        %v6101 = vld [vmem:[#allocation2 + $0xd8] sm:$0xff]
        %v6102 = vld [vmem:[#allocation2 + $0x100] sm:$0xff]
        %v6103 = vld [vmem:[#allocation2 + $0x108] sm:$0xff]
        %v6104 = vld [vmem:[#allocation2 + $0x130] sm:$0xff]
        %v6105 = vld [vmem:[#allocation2 + $0x138] sm:$0xff]
        %v6106 = vld [vmem:[#allocation2 + $0x160] sm:$0xff]
        %v6107 = vld [vmem:[#allocation2 + $0x168] sm:$0xff]
        %v6108 = vperm.slane %v6022, 1
        %v6109 = vperm.slane %v6023, 1
        %v6110 = vmul.f32 %v6092, %v6108
        %v6111 = vmul.f32 %v6093, %v6109
        %v6112 = vmul.f32 %v6094, %v6108
        %v6113 = vmul.f32 %v6095, %v6109
        %v6114 = vmul.f32 %v6096, %v6108
        %v6115 = vmul.f32 %v6097, %v6109
        %v6116 = vmul.f32 %v6098, %v6108
        %v6117 = vmul.f32 %v6099, %v6109
        %v6118 = vmul.f32 %v6100, %v6108
        %v6119 = vmul.f32 %v6101, %v6109
        %v6120 = vmul.f32 %v6102, %v6108
        %v6121 = vmul.f32 %v6103, %v6109
        %v6122 = vmul.f32 %v6104, %v6108
        %v6123 = vmul.f32 %v6105, %v6109
        %v6124 = vmul.f32 %v6106, %v6108
        %v6125 = vmul.f32 %v6107, %v6109
        %v6126 = vld [vmem:[#allocation2 + $0x10] sm:$0xfe]
        %v6127 = vld [vmem:[#allocation2 + $0x18] sm:$0xfe]
        %v6128 = vld [vmem:[#allocation2 + $0x20] sm:$0x1]
        %v6129 = vld [vmem:[#allocation2 + $0x28] sm:$0x1]
        %v6130 = vld [vmem:[#allocation2 + $0x40] sm:$0xfe]
        %v6131 = vld [vmem:[#allocation2 + $0x48] sm:$0xfe]
        %v6132 = vld [vmem:[#allocation2 + $0x50] sm:$0x1]
        %v6133 = vld [vmem:[#allocation2 + $0x58] sm:$0x1]
        %v6134 = vld [vmem:[#allocation2 + $0x70] sm:$0xfe]
        %v6135 = vld [vmem:[#allocation2 + $0x78] sm:$0xfe]
        %v6136 = vld [vmem:[#allocation2 + $0x80] sm:$0x1]
        %v6137 = vld [vmem:[#allocation2 + $0x88] sm:$0x1]
        %v6138 = vld [vmem:[#allocation2 + $0xa0] sm:$0xfe]
        %v6139 = vld [vmem:[#allocation2 + $0xa8] sm:$0xfe]
        %v6140 = vld [vmem:[#allocation2 + $0xb0] sm:$0x1]
        %v6141 = vld [vmem:[#allocation2 + $0xb8] sm:$0x1]
        %v6142 = vld [vmem:[#allocation2 + $0xd0] sm:$0xfe]
        %v6143 = vld [vmem:[#allocation2 + $0xd8] sm:$0xfe]
        %v6144 = vld [vmem:[#allocation2 + $0xe0] sm:$0x1]
        %v6145 = vld [vmem:[#allocation2 + $0xe8] sm:$0x1]
        %v6146 = vld [vmem:[#allocation2 + $0x100] sm:$0xfe]
        %v6147 = vld [vmem:[#allocation2 + $0x108] sm:$0xfe]
        %v6148 = vld [vmem:[#allocation2 + $0x110] sm:$0x1]
        %v6149 = vld [vmem:[#allocation2 + $0x118] sm:$0x1]
        %v6150 = vld [vmem:[#allocation2 + $0x130] sm:$0xfe]
        %v6151 = vld [vmem:[#allocation2 + $0x138] sm:$0xfe]
        %v6152 = vld [vmem:[#allocation2 + $0x140] sm:$0x1]
        %v6153 = vld [vmem:[#allocation2 + $0x148] sm:$0x1]
        %v6154 = vld [vmem:[#allocation2 + $0x160] sm:$0xfe]
        %v6155 = vld [vmem:[#allocation2 + $0x168] sm:$0xfe]
        %v6156 = vld [vmem:[#allocation2 + $0x170] sm:$0x1]
        %v6157 = vld [vmem:[#allocation2 + $0x178] sm:$0x1]
        %v6158 = vperm.slane %v6022, 2
        %v6159 = vperm.slane %v6023, 2
        %v6160 = vmul.f32 %v6126, %v6158
        %v6161 = vmul.f32 %v6127, %v6159
        %v6162 = vmul.f32 %v6128, %v6158
        %v6163 = vmul.f32 %v6129, %v6159
        %v6164 = vmul.f32 %v6130, %v6158
        %v6165 = vmul.f32 %v6131, %v6159
        %v6166 = vmul.f32 %v6132, %v6158
        %v6167 = vmul.f32 %v6133, %v6159
        %v6168 = vmul.f32 %v6134, %v6158
        %v6169 = vmul.f32 %v6135, %v6159
        %v6170 = vmul.f32 %v6136, %v6158
        %v6171 = vmul.f32 %v6137, %v6159
        %v6172 = vmul.f32 %v6138, %v6158
        %v6173 = vmul.f32 %v6139, %v6159
        %v6174 = vmul.f32 %v6140, %v6158
        %v6175 = vmul.f32 %v6141, %v6159
        %v6176 = vmul.f32 %v6142, %v6158
        %v6177 = vmul.f32 %v6143, %v6159
        %v6178 = vmul.f32 %v6144, %v6158
        %v6179 = vmul.f32 %v6145, %v6159
        %v6180 = vmul.f32 %v6146, %v6158
        %v6181 = vmul.f32 %v6147, %v6159
        %v6182 = vmul.f32 %v6148, %v6158
        %v6183 = vmul.f32 %v6149, %v6159
        %v6184 = vmul.f32 %v6150, %v6158
        %v6185 = vmul.f32 %v6151, %v6159
        %v6186 = vmul.f32 %v6152, %v6158
        %v6187 = vmul.f32 %v6153, %v6159
        %v6188 = vmul.f32 %v6154, %v6158
        %v6189 = vmul.f32 %v6155, %v6159
        %v6190 = vmul.f32 %v6156, %v6158
        %v6191 = vmul.f32 %v6157, %v6159
        %v6192 = vld [vmem:[%s337] sm:$0x80]
        %v6193 = vld [vmem:[%s337 + $0x8] sm:$0x80]
        %v6194 = vld [vmem:[%s337 + $0x10] sm:$0x7f]
        %v6195 = vld [vmem:[%s337 + $0x18] sm:$0x7f]
        %v6196 = vld [vmem:[%s337 + $0x30] sm:$0x80]
        %v6197 = vld [vmem:[%s337 + $0x38] sm:$0x80]
        %v6198 = vld [vmem:[%s337 + $0x40] sm:$0x7f]
        %v6199 = vld [vmem:[%s337 + $0x48] sm:$0x7f]
        %v6200 = vld [vmem:[%s337 + $0x60] sm:$0x80]
        %v6201 = vld [vmem:[%s337 + $0x68] sm:$0x80]
        %v6202 = vld [vmem:[%s337 + $0x70] sm:$0x7f]
        %v6203 = vld [vmem:[%s337 + $0x78] sm:$0x7f]
        %v6204 = vld [vmem:[%s337 + $0x90] sm:$0x80]
        %v6205 = vld [vmem:[%s337 + $0x98] sm:$0x80]
        %v6206 = vld [vmem:[%s337 + $0xa0] sm:$0x7f]
        %v6207 = vld [vmem:[%s337 + $0xa8] sm:$0x7f]
        %v6208 = vld [vmem:[%s337 + $0xc0] sm:$0x80]
        %v6209 = vld [vmem:[%s337 + $0xc8] sm:$0x80]
        %v6210 = vld [vmem:[%s337 + $0xd0] sm:$0x7f]
        %v6211 = vld [vmem:[%s337 + $0xd8] sm:$0x7f]
        %v6212 = vld [vmem:[%s337 + $0xf0] sm:$0x80]
        %v6213 = vld [vmem:[%s337 + $0xf8] sm:$0x80]
        %v6214 = vld [vmem:[%s337 + $0x100] sm:$0x7f]
        %v6215 = vld [vmem:[%s337 + $0x108] sm:$0x7f]
        %v6216 = vld [vmem:[%s337 + $0x120] sm:$0x80]
        %v6217 = vld [vmem:[%s337 + $0x128] sm:$0x80]
        %v6218 = vld [vmem:[%s337 + $0x130] sm:$0x7f]
        %v6219 = vld [vmem:[%s337 + $0x138] sm:$0x7f]
        %v6220 = vld [vmem:[%s337 + $0x150] sm:$0x80]
        %v6221 = vld [vmem:[%s337 + $0x158] sm:$0x80]
        %v6222 = vld [vmem:[%s337 + $0x160] sm:$0x7f]
        %v6223 = vld [vmem:[%s337 + $0x168] sm:$0x7f]
        %v6224 = vperm.slane %v6022, 3
        %v6225 = vperm.slane %v6023, 3
        %v6226 = vmul.f32 %v6192, %v6224
        %v6227 = vmul.f32 %v6193, %v6225
        %v6228 = vmul.f32 %v6194, %v6224
        %v6229 = vmul.f32 %v6195, %v6225
        %v6230 = vmul.f32 %v6196, %v6224
        %v6231 = vmul.f32 %v6197, %v6225
        %v6232 = vmul.f32 %v6198, %v6224
        %v6233 = vmul.f32 %v6199, %v6225
        %v6234 = vmul.f32 %v6200, %v6224
        %v6235 = vmul.f32 %v6201, %v6225
        %v6236 = vmul.f32 %v6202, %v6224
        %v6237 = vmul.f32 %v6203, %v6225
        %v6238 = vmul.f32 %v6204, %v6224
        %v6239 = vmul.f32 %v6205, %v6225
        %v6240 = vmul.f32 %v6206, %v6224
        %v6241 = vmul.f32 %v6207, %v6225
        %v6242 = vmul.f32 %v6208, %v6224
        %v6243 = vmul.f32 %v6209, %v6225
        %v6244 = vmul.f32 %v6210, %v6224
        %v6245 = vmul.f32 %v6211, %v6225
        %v6246 = vmul.f32 %v6212, %v6224
        %v6247 = vmul.f32 %v6213, %v6225
        %v6248 = vmul.f32 %v6214, %v6224
        %v6249 = vmul.f32 %v6215, %v6225
        %v6250 = vmul.f32 %v6216, %v6224
        %v6251 = vmul.f32 %v6217, %v6225
        %v6252 = vmul.f32 %v6218, %v6224
        %v6253 = vmul.f32 %v6219, %v6225
        %v6254 = vmul.f32 %v6220, %v6224
        %v6255 = vmul.f32 %v6221, %v6225
        %v6256 = vmul.f32 %v6222, %v6224
        %v6257 = vmul.f32 %v6223, %v6225
        %v6258 = vld [vmem:[%s337 + $0x10] sm:$0xff]
        %v6259 = vld [vmem:[%s337 + $0x18] sm:$0xff]
        %v6260 = vld [vmem:[%s337 + $0x40] sm:$0xff]
        %v6261 = vld [vmem:[%s337 + $0x48] sm:$0xff]
        %v6262 = vld [vmem:[%s337 + $0x70] sm:$0xff]
        %v6263 = vld [vmem:[%s337 + $0x78] sm:$0xff]
        %v6264 = vld [vmem:[%s337 + $0xa0] sm:$0xff]
        %v6265 = vld [vmem:[%s337 + $0xa8] sm:$0xff]
        %v6266 = vld [vmem:[%s337 + $0xd0] sm:$0xff]
        %v6267 = vld [vmem:[%s337 + $0xd8] sm:$0xff]
        %v6268 = vld [vmem:[%s337 + $0x100] sm:$0xff]
        %v6269 = vld [vmem:[%s337 + $0x108] sm:$0xff]
        %v6270 = vld [vmem:[%s337 + $0x130] sm:$0xff]
        %v6271 = vld [vmem:[%s337 + $0x138] sm:$0xff]
        %v6272 = vld [vmem:[%s337 + $0x160] sm:$0xff]
        %v6273 = vld [vmem:[%s337 + $0x168] sm:$0xff]
        %v6274 = vperm.slane %v6022, 4
        %v6275 = vperm.slane %v6023, 4
        %v6276 = vmul.f32 %v6258, %v6274
        %v6277 = vmul.f32 %v6259, %v6275
        %v6278 = vmul.f32 %v6260, %v6274
        %v6279 = vmul.f32 %v6261, %v6275
        %v6280 = vmul.f32 %v6262, %v6274
        %v6281 = vmul.f32 %v6263, %v6275
        %v6282 = vmul.f32 %v6264, %v6274
        %v6283 = vmul.f32 %v6265, %v6275
        %v6284 = vmul.f32 %v6266, %v6274
        %v6285 = vmul.f32 %v6267, %v6275
        %v6286 = vmul.f32 %v6268, %v6274
        %v6287 = vmul.f32 %v6269, %v6275
        %v6288 = vmul.f32 %v6270, %v6274
        %v6289 = vmul.f32 %v6271, %v6275
        %v6290 = vmul.f32 %v6272, %v6274
        %v6291 = vmul.f32 %v6273, %v6275
        %v6292 = vld [vmem:[%s337 + $0x10] sm:$0xfe]
        %v6293 = vld [vmem:[%s337 + $0x18] sm:$0xfe]
        %v6294 = vld [vmem:[%s337 + $0x20] sm:$0x1]
        %v6295 = vld [vmem:[%s337 + $0x28] sm:$0x1]
        %v6296 = vld [vmem:[%s337 + $0x40] sm:$0xfe]
        %v6297 = vld [vmem:[%s337 + $0x48] sm:$0xfe]
        %v6298 = vld [vmem:[%s337 + $0x50] sm:$0x1]
        %v6299 = vld [vmem:[%s337 + $0x58] sm:$0x1]
        %v6300 = vld [vmem:[%s337 + $0x70] sm:$0xfe]
        %v6301 = vld [vmem:[%s337 + $0x78] sm:$0xfe]
        %v6302 = vld [vmem:[%s337 + $0x80] sm:$0x1]
        %v6303 = vld [vmem:[%s337 + $0x88] sm:$0x1]
        %v6304 = vld [vmem:[%s337 + $0xa0] sm:$0xfe]
        %v6305 = vld [vmem:[%s337 + $0xa8] sm:$0xfe]
        %v6306 = vld [vmem:[%s337 + $0xb0] sm:$0x1]
        %v6307 = vld [vmem:[%s337 + $0xb8] sm:$0x1]
        %v6308 = vld [vmem:[%s337 + $0xd0] sm:$0xfe]
        %v6309 = vld [vmem:[%s337 + $0xd8] sm:$0xfe]
        %v6310 = vld [vmem:[%s337 + $0xe0] sm:$0x1]
        %v6311 = vld [vmem:[%s337 + $0xe8] sm:$0x1]
        %v6312 = vld [vmem:[%s337 + $0x100] sm:$0xfe]
        %v6313 = vld [vmem:[%s337 + $0x108] sm:$0xfe]
        %v6314 = vld [vmem:[%s337 + $0x110] sm:$0x1]
        %v6315 = vld [vmem:[%s337 + $0x118] sm:$0x1]
        %v6316 = vld [vmem:[%s337 + $0x130] sm:$0xfe]
        %v6317 = vld [vmem:[%s337 + $0x138] sm:$0xfe]
        %v6318 = vld [vmem:[%s337 + $0x140] sm:$0x1]
        %v6319 = vld [vmem:[%s337 + $0x148] sm:$0x1]
        %v6320 = vld [vmem:[%s337 + $0x160] sm:$0xfe]
        %v6321 = vld [vmem:[%s337 + $0x168] sm:$0xfe]
        %v6322 = vld [vmem:[%s337 + $0x170] sm:$0x1]
        %v6323 = vld [vmem:[%s337 + $0x178] sm:$0x1]
        %v6324 = vperm.slane %v6022, 5
        %v6325 = vperm.slane %v6023, 5
        %v6326 = vmul.f32 %v6292, %v6324
        %v6327 = vmul.f32 %v6293, %v6325
        %v6328 = vmul.f32 %v6294, %v6324
        %v6329 = vmul.f32 %v6295, %v6325
        %v6330 = vmul.f32 %v6296, %v6324
        %v6331 = vmul.f32 %v6297, %v6325
        %v6332 = vmul.f32 %v6298, %v6324
        %v6333 = vmul.f32 %v6299, %v6325
        %v6334 = vmul.f32 %v6300, %v6324
        %v6335 = vmul.f32 %v6301, %v6325
        %v6336 = vmul.f32 %v6302, %v6324
        %v6337 = vmul.f32 %v6303, %v6325
        %v6338 = vmul.f32 %v6304, %v6324
        %v6339 = vmul.f32 %v6305, %v6325
        %v6340 = vmul.f32 %v6306, %v6324
        %v6341 = vmul.f32 %v6307, %v6325
        %v6342 = vmul.f32 %v6308, %v6324
        %v6343 = vmul.f32 %v6309, %v6325
        %v6344 = vmul.f32 %v6310, %v6324
        %v6345 = vmul.f32 %v6311, %v6325
        %v6346 = vmul.f32 %v6312, %v6324
        %v6347 = vmul.f32 %v6313, %v6325
        %v6348 = vmul.f32 %v6314, %v6324
        %v6349 = vmul.f32 %v6315, %v6325
        %v6350 = vmul.f32 %v6316, %v6324
        %v6351 = vmul.f32 %v6317, %v6325
        %v6352 = vmul.f32 %v6318, %v6324
        %v6353 = vmul.f32 %v6319, %v6325
        %v6354 = vmul.f32 %v6320, %v6324
        %v6355 = vmul.f32 %v6321, %v6325
        %v6356 = vmul.f32 %v6322, %v6324
        %v6357 = vmul.f32 %v6323, %v6325
        %v6358 = vld [vmem:[%s690] sm:$0x80]
        %v6359 = vld [vmem:[%s690 + $0x8] sm:$0x80]
        %v6360 = vld [vmem:[%s690 + $0x10] sm:$0x7f]
        %v6361 = vld [vmem:[%s690 + $0x18] sm:$0x7f]
        %v6362 = vld [vmem:[%s690 + $0x30] sm:$0x80]
        %v6363 = vld [vmem:[%s690 + $0x38] sm:$0x80]
        %v6364 = vld [vmem:[%s690 + $0x40] sm:$0x7f]
        %v6365 = vld [vmem:[%s690 + $0x48] sm:$0x7f]
        %v6366 = vld [vmem:[%s690 + $0x60] sm:$0x80]
        %v6367 = vld [vmem:[%s690 + $0x68] sm:$0x80]
        %v6368 = vld [vmem:[%s690 + $0x70] sm:$0x7f]
        %v6369 = vld [vmem:[%s690 + $0x78] sm:$0x7f]
        %v6370 = vld [vmem:[%s690 + $0x90] sm:$0x80]
        %v6371 = vld [vmem:[%s690 + $0x98] sm:$0x80]
        %v6372 = vld [vmem:[%s690 + $0xa0] sm:$0x7f]
        %v6373 = vld [vmem:[%s690 + $0xa8] sm:$0x7f]
        %v6374 = vld [vmem:[%s690 + $0xc0] sm:$0x80]
        %v6375 = vld [vmem:[%s690 + $0xc8] sm:$0x80]
        %v6376 = vld [vmem:[%s690 + $0xd0] sm:$0x7f]
        %v6377 = vld [vmem:[%s690 + $0xd8] sm:$0x7f]
        %v6378 = vld [vmem:[%s690 + $0xf0] sm:$0x80]
        %v6379 = vld [vmem:[%s690 + $0xf8] sm:$0x80]
        %v6380 = vld [vmem:[%s690 + $0x100] sm:$0x7f]
        %v6381 = vld [vmem:[%s690 + $0x108] sm:$0x7f]
        %v6382 = vld [vmem:[%s690 + $0x120] sm:$0x80]
        %v6383 = vld [vmem:[%s690 + $0x128] sm:$0x80]
        %v6384 = vld [vmem:[%s690 + $0x130] sm:$0x7f]
        %v6385 = vld [vmem:[%s690 + $0x138] sm:$0x7f]
        %v6386 = vld [vmem:[%s690 + $0x150] sm:$0x80]
        %v6387 = vld [vmem:[%s690 + $0x158] sm:$0x80]
        %v6388 = vld [vmem:[%s690 + $0x160] sm:$0x7f]
        %v6389 = vld [vmem:[%s690 + $0x168] sm:$0x7f]
        %v6390 = vperm.slane %v6022, 6
        %v6391 = vperm.slane %v6023, 6
        %v6392 = vmul.f32 %v6358, %v6390
        %v6393 = vmul.f32 %v6359, %v6391
        %v6394 = vmul.f32 %v6360, %v6390
        %v6395 = vmul.f32 %v6361, %v6391
        %v6396 = vmul.f32 %v6362, %v6390
        %v6397 = vmul.f32 %v6363, %v6391
        %v6398 = vmul.f32 %v6364, %v6390
        %v6399 = vmul.f32 %v6365, %v6391
        %v6400 = vmul.f32 %v6366, %v6390
        %v6401 = vmul.f32 %v6367, %v6391
        %v6402 = vmul.f32 %v6368, %v6390
        %v6403 = vmul.f32 %v6369, %v6391
        %v6404 = vmul.f32 %v6370, %v6390
        %v6405 = vmul.f32 %v6371, %v6391
        %v6406 = vmul.f32 %v6372, %v6390
        %v6407 = vmul.f32 %v6373, %v6391
        %v6408 = vmul.f32 %v6374, %v6390
        %v6409 = vmul.f32 %v6375, %v6391
        %v6410 = vmul.f32 %v6376, %v6390
        %v6411 = vmul.f32 %v6377, %v6391
        %v6412 = vmul.f32 %v6378, %v6390
        %v6413 = vmul.f32 %v6379, %v6391
        %v6414 = vmul.f32 %v6380, %v6390
        %v6415 = vmul.f32 %v6381, %v6391
        %v6416 = vmul.f32 %v6382, %v6390
        %v6417 = vmul.f32 %v6383, %v6391
        %v6418 = vmul.f32 %v6384, %v6390
        %v6419 = vmul.f32 %v6385, %v6391
        %v6420 = vmul.f32 %v6386, %v6390
        %v6421 = vmul.f32 %v6387, %v6391
        %v6422 = vmul.f32 %v6388, %v6390
        %v6423 = vmul.f32 %v6389, %v6391
        %v6424 = vld [vmem:[%s690 + $0x10] sm:$0xff]
        %v6425 = vld [vmem:[%s690 + $0x18] sm:$0xff]
        %v6426 = vld [vmem:[%s690 + $0x40] sm:$0xff]
        %v6427 = vld [vmem:[%s690 + $0x48] sm:$0xff]
        %v6428 = vld [vmem:[%s690 + $0x70] sm:$0xff]
        %v6429 = vld [vmem:[%s690 + $0x78] sm:$0xff]
        %v6430 = vld [vmem:[%s690 + $0xa0] sm:$0xff]
        %v6431 = vld [vmem:[%s690 + $0xa8] sm:$0xff]
        %v6432 = vld [vmem:[%s690 + $0xd0] sm:$0xff]
        %v6433 = vld [vmem:[%s690 + $0xd8] sm:$0xff]
        %v6434 = vld [vmem:[%s690 + $0x100] sm:$0xff]
        %v6435 = vld [vmem:[%s690 + $0x108] sm:$0xff]
        %v6436 = vld [vmem:[%s690 + $0x130] sm:$0xff]
        %v6437 = vld [vmem:[%s690 + $0x138] sm:$0xff]
        %v6438 = vld [vmem:[%s690 + $0x160] sm:$0xff]
        %v6439 = vld [vmem:[%s690 + $0x168] sm:$0xff]
        %v6440 = vperm.slane %v6022, 7
        %v6441 = vperm.slane %v6023, 7
        %v6442 = vmul.f32 %v6424, %v6440
        %v6443 = vmul.f32 %v6425, %v6441
        %v6444 = vmul.f32 %v6426, %v6440
        %v6445 = vmul.f32 %v6427, %v6441
        %v6446 = vmul.f32 %v6428, %v6440
        %v6447 = vmul.f32 %v6429, %v6441
        %v6448 = vmul.f32 %v6430, %v6440
        %v6449 = vmul.f32 %v6431, %v6441
        %v6450 = vmul.f32 %v6432, %v6440
        %v6451 = vmul.f32 %v6433, %v6441
        %v6452 = vmul.f32 %v6434, %v6440
        %v6453 = vmul.f32 %v6435, %v6441
        %v6454 = vmul.f32 %v6436, %v6440
        %v6455 = vmul.f32 %v6437, %v6441
        %v6456 = vmul.f32 %v6438, %v6440
        %v6457 = vmul.f32 %v6439, %v6441
        %v6458 = vld [vmem:[%s690 + $0x10] sm:$0xfe]
        %v6459 = vld [vmem:[%s690 + $0x18] sm:$0xfe]
        %v6460 = vld [vmem:[%s690 + $0x20] sm:$0x1]
        %v6461 = vld [vmem:[%s690 + $0x28] sm:$0x1]
        %v6462 = vld [vmem:[%s690 + $0x40] sm:$0xfe]
        %v6463 = vld [vmem:[%s690 + $0x48] sm:$0xfe]
        %v6464 = vld [vmem:[%s690 + $0x50] sm:$0x1]
        %v6465 = vld [vmem:[%s690 + $0x58] sm:$0x1]
        %v6466 = vld [vmem:[%s690 + $0x70] sm:$0xfe]
        %v6467 = vld [vmem:[%s690 + $0x78] sm:$0xfe]
        %v6468 = vld [vmem:[%s690 + $0x80] sm:$0x1]
        %v6469 = vld [vmem:[%s690 + $0x88] sm:$0x1]
        %v6470 = vld [vmem:[%s690 + $0xa0] sm:$0xfe]
        %v6471 = vld [vmem:[%s690 + $0xa8] sm:$0xfe]
        %v6472 = vld [vmem:[%s690 + $0xb0] sm:$0x1]
        %v6473 = vld [vmem:[%s690 + $0xb8] sm:$0x1]
        %v6474 = vld [vmem:[%s690 + $0xd0] sm:$0xfe]
        %v6475 = vld [vmem:[%s690 + $0xd8] sm:$0xfe]
        %v6476 = vld [vmem:[%s690 + $0xe0] sm:$0x1]
        %v6477 = vld [vmem:[%s690 + $0xe8] sm:$0x1]
        %v6478 = vld [vmem:[%s690 + $0x100] sm:$0xfe]
        %v6479 = vld [vmem:[%s690 + $0x108] sm:$0xfe]
        %v6480 = vld [vmem:[%s690 + $0x110] sm:$0x1]
        %v6481 = vld [vmem:[%s690 + $0x118] sm:$0x1]
        %v6482 = vld [vmem:[%s690 + $0x130] sm:$0xfe]
        %v6483 = vld [vmem:[%s690 + $0x138] sm:$0xfe]
        %v6484 = vld [vmem:[%s690 + $0x140] sm:$0x1]
        %v6485 = vld [vmem:[%s690 + $0x148] sm:$0x1]
        %v6486 = vld [vmem:[%s690 + $0x160] sm:$0xfe]
        %v6487 = vld [vmem:[%s690 + $0x168] sm:$0xfe]
        %v6488 = vld [vmem:[%s690 + $0x170] sm:$0x1]
        %v6489 = vld [vmem:[%s690 + $0x178] sm:$0x1]
        %v6490 = vperm.slane %v6024, 0
        %v6491 = vperm.slane %v6025, 0
        %v6492 = vmul.f32 %v6458, %v6490
        %v6493 = vmul.f32 %v6459, %v6491
        %v6494 = vmul.f32 %v6460, %v6490
        %v6495 = vmul.f32 %v6461, %v6491
        %v6496 = vmul.f32 %v6462, %v6490
        %v6497 = vmul.f32 %v6463, %v6491
        %v6498 = vmul.f32 %v6464, %v6490
        %v6499 = vmul.f32 %v6465, %v6491
        %v6500 = vmul.f32 %v6466, %v6490
        %v6501 = vmul.f32 %v6467, %v6491
        %v6502 = vmul.f32 %v6468, %v6490
        %v6503 = vmul.f32 %v6469, %v6491
        %v6504 = vmul.f32 %v6470, %v6490
        %v6505 = vmul.f32 %v6471, %v6491
        %v6506 = vmul.f32 %v6472, %v6490
        %v6507 = vmul.f32 %v6473, %v6491
        %v6508 = vmul.f32 %v6474, %v6490
        %v6509 = vmul.f32 %v6475, %v6491
        %v6510 = vmul.f32 %v6476, %v6490
        %v6511 = vmul.f32 %v6477, %v6491
        %v6512 = vmul.f32 %v6478, %v6490
        %v6513 = vmul.f32 %v6479, %v6491
        %v6514 = vmul.f32 %v6480, %v6490
        %v6515 = vmul.f32 %v6481, %v6491
        %v6516 = vmul.f32 %v6482, %v6490
        %v6517 = vmul.f32 %v6483, %v6491
        %v6518 = vmul.f32 %v6484, %v6490
        %v6519 = vmul.f32 %v6485, %v6491
        %v6520 = vmul.f32 %v6486, %v6490
        %v6521 = vmul.f32 %v6487, %v6491
        %v6522 = vmul.f32 %v6488, %v6490
        %v6523 = vmul.f32 %v6489, %v6491
        %v6540 = vrot.slane %v6110, 1
        %v6541 = vrot.slane %v6111, 1
        %v6542 = vrot.slane %v6112, 1
        %v6543 = vrot.slane %v6113, 1
        %v6544 = vrot.slane %v6114, 1
        %v6545 = vrot.slane %v6115, 1
        %v6546 = vrot.slane %v6116, 1
        %v6547 = vrot.slane %v6117, 1
        %v6548 = vrot.slane %v6118, 1
        %v6549 = vrot.slane %v6119, 1
        %v6550 = vrot.slane %v6120, 1
        %v6551 = vrot.slane %v6121, 1
        %v6552 = vrot.slane %v6122, 1
        %v6553 = vrot.slane %v6123, 1
        %v6554 = vrot.slane %v6124, 1
        %v6555 = vrot.slane %v6125, 1
        %v6572 = vadd.f32 %v6060, %v6540
        %v6573 = vadd.f32 %v6061, %v6541
        %v6574 = vadd.f32 %v6062, %v6540
        %v6575 = vadd.f32 %v6063, %v6541
        %v6576 = vadd.f32 %v6064, %v6542
        %v6577 = vadd.f32 %v6065, %v6543
        %v6578 = vadd.f32 %v6066, %v6542
        %v6579 = vadd.f32 %v6067, %v6543
        %v6580 = vadd.f32 %v6068, %v6544
        %v6581 = vadd.f32 %v6069, %v6545
        %v6582 = vadd.f32 %v6070, %v6544
        %v6583 = vadd.f32 %v6071, %v6545
        %v6584 = vadd.f32 %v6072, %v6546
        %v6585 = vadd.f32 %v6073, %v6547
        %v6586 = vadd.f32 %v6074, %v6546
        %v6587 = vadd.f32 %v6075, %v6547
        %v6588 = vadd.f32 %v6076, %v6548
        %v6589 = vadd.f32 %v6077, %v6549
        %v6590 = vadd.f32 %v6078, %v6548
        %v6591 = vadd.f32 %v6079, %v6549
        %v6592 = vadd.f32 %v6080, %v6550
        %v6593 = vadd.f32 %v6081, %v6551
        %v6594 = vadd.f32 %v6082, %v6550
        %v6595 = vadd.f32 %v6083, %v6551
        %v6596 = vadd.f32 %v6084, %v6552
        %v6597 = vadd.f32 %v6085, %v6553
        %v6598 = vadd.f32 %v6086, %v6552
        %v6599 = vadd.f32 %v6087, %v6553
        %v6600 = vadd.f32 %v6088, %v6554
        %v6601 = vadd.f32 %v6089, %v6555
        %v6602 = vadd.f32 %v6090, %v6554
        %v6603 = vadd.f32 %v6091, %v6555
        %v6636 = vrot.slane %v6226, 6
        %v6637 = vrot.slane %v6228, 6
        %v6638 = vsel %vm969, %v6636, %v6637
        %v6639 = vrot.slane %v6227, 6
        %v6640 = vrot.slane %v6229, 6
        %v6641 = vsel %vm969, %v6639, %v6640
        %v6642 = vrot.slane %v6230, 6
        %v6643 = vrot.slane %v6232, 6
        %v6644 = vsel %vm969, %v6642, %v6643
        %v6645 = vrot.slane %v6231, 6
        %v6646 = vrot.slane %v6233, 6
        %v6647 = vsel %vm969, %v6645, %v6646
        %v6648 = vrot.slane %v6234, 6
        %v6649 = vrot.slane %v6236, 6
        %v6650 = vsel %vm969, %v6648, %v6649
        %v6651 = vrot.slane %v6235, 6
        %v6652 = vrot.slane %v6237, 6
        %v6653 = vsel %vm969, %v6651, %v6652
        %v6654 = vrot.slane %v6238, 6
        %v6655 = vrot.slane %v6240, 6
        %v6656 = vsel %vm969, %v6654, %v6655
        %v6657 = vrot.slane %v6239, 6
        %v6658 = vrot.slane %v6241, 6
        %v6659 = vsel %vm969, %v6657, %v6658
        %v6660 = vrot.slane %v6242, 6
        %v6661 = vrot.slane %v6244, 6
        %v6662 = vsel %vm969, %v6660, %v6661
        %v6663 = vrot.slane %v6243, 6
        %v6664 = vrot.slane %v6245, 6
        %v6665 = vsel %vm969, %v6663, %v6664
        %v6666 = vrot.slane %v6246, 6
        %v6667 = vrot.slane %v6248, 6
        %v6668 = vsel %vm969, %v6666, %v6667
        %v6669 = vrot.slane %v6247, 6
        %v6670 = vrot.slane %v6249, 6
        %v6671 = vsel %vm969, %v6669, %v6670
        %v6672 = vrot.slane %v6250, 6
        %v6673 = vrot.slane %v6252, 6
        %v6674 = vsel %vm969, %v6672, %v6673
        %v6675 = vrot.slane %v6251, 6
        %v6676 = vrot.slane %v6253, 6
        %v6677 = vsel %vm969, %v6675, %v6676
        %v6678 = vrot.slane %v6254, 6
        %v6679 = vrot.slane %v6256, 6
        %v6680 = vsel %vm969, %v6678, %v6679
        %v6681 = vrot.slane %v6255, 6
        %v6682 = vrot.slane %v6257, 6
        %v6683 = vsel %vm969, %v6681, %v6682
        %v6716 = vadd.f32 %v6160, %v6638
        %v6717 = vadd.f32 %v6161, %v6641
        %v6718 = vadd.f32 %v6162, %v6637
        %v6719 = vadd.f32 %v6163, %v6640
        %v6720 = vadd.f32 %v6164, %v6644
        %v6721 = vadd.f32 %v6165, %v6647
        %v6722 = vadd.f32 %v6166, %v6643
        %v6723 = vadd.f32 %v6167, %v6646
        %v6724 = vadd.f32 %v6168, %v6650
        %v6725 = vadd.f32 %v6169, %v6653
        %v6726 = vadd.f32 %v6170, %v6649
        %v6727 = vadd.f32 %v6171, %v6652
        %v6728 = vadd.f32 %v6172, %v6656
        %v6729 = vadd.f32 %v6173, %v6659
        %v6730 = vadd.f32 %v6174, %v6655
        %v6731 = vadd.f32 %v6175, %v6658
        %v6732 = vadd.f32 %v6176, %v6662
        %v6733 = vadd.f32 %v6177, %v6665
        %v6734 = vadd.f32 %v6178, %v6661
        %v6735 = vadd.f32 %v6179, %v6664
        %v6736 = vadd.f32 %v6180, %v6668
        %v6737 = vadd.f32 %v6181, %v6671
        %v6738 = vadd.f32 %v6182, %v6667
        %v6739 = vadd.f32 %v6183, %v6670
        %v6740 = vadd.f32 %v6184, %v6674
        %v6741 = vadd.f32 %v6185, %v6677
        %v6742 = vadd.f32 %v6186, %v6673
        %v6743 = vadd.f32 %v6187, %v6676
        %v6744 = vadd.f32 %v6188, %v6680
        %v6745 = vadd.f32 %v6189, %v6683
        %v6746 = vadd.f32 %v6190, %v6679
        %v6747 = vadd.f32 %v6191, %v6682
        %v6780 = vrot.slane %v6326, 1
        %v6781 = vrot.slane %v6328, 1
        %v6782 = vsel %vm1114, %v6780, %v6781
        %v6783 = vrot.slane %v6327, 1
        %v6784 = vrot.slane %v6329, 1
        %v6785 = vsel %vm1114, %v6783, %v6784
        %v6786 = vrot.slane %v6330, 1
        %v6787 = vrot.slane %v6332, 1
        %v6788 = vsel %vm1114, %v6786, %v6787
        %v6789 = vrot.slane %v6331, 1
        %v6790 = vrot.slane %v6333, 1
        %v6791 = vsel %vm1114, %v6789, %v6790
        %v6792 = vrot.slane %v6334, 1
        %v6793 = vrot.slane %v6336, 1
        %v6794 = vsel %vm1114, %v6792, %v6793
        %v6795 = vrot.slane %v6335, 1
        %v6796 = vrot.slane %v6337, 1
        %v6797 = vsel %vm1114, %v6795, %v6796
        %v6798 = vrot.slane %v6338, 1
        %v6799 = vrot.slane %v6340, 1
        %v6800 = vsel %vm1114, %v6798, %v6799
        %v6801 = vrot.slane %v6339, 1
        %v6802 = vrot.slane %v6341, 1
        %v6803 = vsel %vm1114, %v6801, %v6802
        %v6804 = vrot.slane %v6342, 1
        %v6805 = vrot.slane %v6344, 1
        %v6806 = vsel %vm1114, %v6804, %v6805
        %v6807 = vrot.slane %v6343, 1
        %v6808 = vrot.slane %v6345, 1
        %v6809 = vsel %vm1114, %v6807, %v6808
        %v6810 = vrot.slane %v6346, 1
        %v6811 = vrot.slane %v6348, 1
        %v6812 = vsel %vm1114, %v6810, %v6811
        %v6813 = vrot.slane %v6347, 1
        %v6814 = vrot.slane %v6349, 1
        %v6815 = vsel %vm1114, %v6813, %v6814
        %v6816 = vrot.slane %v6350, 1
        %v6817 = vrot.slane %v6352, 1
        %v6818 = vsel %vm1114, %v6816, %v6817
        %v6819 = vrot.slane %v6351, 1
        %v6820 = vrot.slane %v6353, 1
        %v6821 = vsel %vm1114, %v6819, %v6820
        %v6822 = vrot.slane %v6354, 1
        %v6823 = vrot.slane %v6356, 1
        %v6824 = vsel %vm1114, %v6822, %v6823
        %v6825 = vrot.slane %v6355, 1
        %v6826 = vrot.slane %v6357, 1
        %v6827 = vsel %vm1114, %v6825, %v6826
        %v6844 = vadd.f32 %v6276, %v6782
        %v6845 = vadd.f32 %v6277, %v6785
        %v6846 = vadd.f32 %v6278, %v6788
        %v6847 = vadd.f32 %v6279, %v6791
        %v6848 = vadd.f32 %v6280, %v6794
        %v6849 = vadd.f32 %v6281, %v6797
        %v6850 = vadd.f32 %v6282, %v6800
        %v6851 = vadd.f32 %v6283, %v6803
        %v6852 = vadd.f32 %v6284, %v6806
        %v6853 = vadd.f32 %v6285, %v6809
        %v6854 = vadd.f32 %v6286, %v6812
        %v6855 = vadd.f32 %v6287, %v6815
        %v6856 = vadd.f32 %v6288, %v6818
        %v6857 = vadd.f32 %v6289, %v6821
        %v6858 = vadd.f32 %v6290, %v6824
        %v6859 = vadd.f32 %v6291, %v6827
        %v6876 = vrot.slane %v6442, 1
        %v6877 = vrot.slane %v6443, 1
        %v6878 = vrot.slane %v6444, 1
        %v6879 = vrot.slane %v6445, 1
        %v6880 = vrot.slane %v6446, 1
        %v6881 = vrot.slane %v6447, 1
        %v6882 = vrot.slane %v6448, 1
        %v6883 = vrot.slane %v6449, 1
        %v6884 = vrot.slane %v6450, 1
        %v6885 = vrot.slane %v6451, 1
        %v6886 = vrot.slane %v6452, 1
        %v6887 = vrot.slane %v6453, 1
        %v6888 = vrot.slane %v6454, 1
        %v6889 = vrot.slane %v6455, 1
        %v6890 = vrot.slane %v6456, 1
        %v6891 = vrot.slane %v6457, 1
        %v6908 = vadd.f32 %v6392, %v6876
        %v6909 = vadd.f32 %v6393, %v6877
        %v6910 = vadd.f32 %v6394, %v6876
        %v6911 = vadd.f32 %v6395, %v6877
        %v6912 = vadd.f32 %v6396, %v6878
        %v6913 = vadd.f32 %v6397, %v6879
        %v6914 = vadd.f32 %v6398, %v6878
        %v6915 = vadd.f32 %v6399, %v6879
        %v6916 = vadd.f32 %v6400, %v6880
        %v6917 = vadd.f32 %v6401, %v6881
        %v6918 = vadd.f32 %v6402, %v6880
        %v6919 = vadd.f32 %v6403, %v6881
        %v6920 = vadd.f32 %v6404, %v6882
        %v6921 = vadd.f32 %v6405, %v6883
        %v6922 = vadd.f32 %v6406, %v6882
        %v6923 = vadd.f32 %v6407, %v6883
        %v6924 = vadd.f32 %v6408, %v6884
        %v6925 = vadd.f32 %v6409, %v6885
        %v6926 = vadd.f32 %v6410, %v6884
        %v6927 = vadd.f32 %v6411, %v6885
        %v6928 = vadd.f32 %v6412, %v6886
        %v6929 = vadd.f32 %v6413, %v6887
        %v6930 = vadd.f32 %v6414, %v6886
        %v6931 = vadd.f32 %v6415, %v6887
        %v6932 = vadd.f32 %v6416, %v6888
        %v6933 = vadd.f32 %v6417, %v6889
        %v6934 = vadd.f32 %v6418, %v6888
        %v6935 = vadd.f32 %v6419, %v6889
        %v6936 = vadd.f32 %v6420, %v6890
        %v6937 = vadd.f32 %v6421, %v6891
        %v6938 = vadd.f32 %v6422, %v6890
        %v6939 = vadd.f32 %v6423, %v6891
        %v6972 = vrot.slane %v6716, 2
        %v6973 = vrot.slane %v6717, 2
        %v6974 = vrot.slane %v6718, 2
        %v6975 = vsel %vm1307, %v6972, %v6974
        %v6976 = vrot.slane %v6719, 2
        %v6977 = vsel %vm1307, %v6973, %v6976
        %v6978 = vrot.slane %v6720, 2
        %v6979 = vrot.slane %v6721, 2
        %v6980 = vrot.slane %v6722, 2
        %v6981 = vsel %vm1307, %v6978, %v6980
        %v6982 = vrot.slane %v6723, 2
        %v6983 = vsel %vm1307, %v6979, %v6982
        %v6984 = vrot.slane %v6724, 2
        %v6985 = vrot.slane %v6725, 2
        %v6986 = vrot.slane %v6726, 2
        %v6987 = vsel %vm1307, %v6984, %v6986
        %v6988 = vrot.slane %v6727, 2
        %v6989 = vsel %vm1307, %v6985, %v6988
        %v6990 = vrot.slane %v6728, 2
        %v6991 = vrot.slane %v6729, 2
        %v6992 = vrot.slane %v6730, 2
        %v6993 = vsel %vm1307, %v6990, %v6992
        %v6994 = vrot.slane %v6731, 2
        %v6995 = vsel %vm1307, %v6991, %v6994
        %v6996 = vrot.slane %v6732, 2
        %v6997 = vrot.slane %v6733, 2
        %v6998 = vrot.slane %v6734, 2
        %v6999 = vsel %vm1307, %v6996, %v6998
        %v7000 = vrot.slane %v6735, 2
        %v7001 = vsel %vm1307, %v6997, %v7000
        %v7002 = vrot.slane %v6736, 2
        %v7003 = vrot.slane %v6737, 2
        %v7004 = vrot.slane %v6738, 2
        %v7005 = vsel %vm1307, %v7002, %v7004
        %v7006 = vrot.slane %v6739, 2
        %v7007 = vsel %vm1307, %v7003, %v7006
        %v7008 = vrot.slane %v6740, 2
        %v7009 = vrot.slane %v6741, 2
        %v7010 = vrot.slane %v6742, 2
        %v7011 = vsel %vm1307, %v7008, %v7010
        %v7012 = vrot.slane %v6743, 2
        %v7013 = vsel %vm1307, %v7009, %v7012
        %v7014 = vrot.slane %v6744, 2
        %v7015 = vrot.slane %v6745, 2
        %v7016 = vrot.slane %v6746, 2
        %v7017 = vsel %vm1307, %v7014, %v7016
        %v7018 = vrot.slane %v6747, 2
        %v7019 = vsel %vm1307, %v7015, %v7018
        %v7052 = vadd.f32 %v6572, %v6972
        %v7053 = vadd.f32 %v6573, %v6973
        %v7054 = vadd.f32 %v6574, %v6975
        %v7055 = vadd.f32 %v6575, %v6977
        %v7056 = vadd.f32 %v6576, %v6978
        %v7057 = vadd.f32 %v6577, %v6979
        %v7058 = vadd.f32 %v6578, %v6981
        %v7059 = vadd.f32 %v6579, %v6983
        %v7060 = vadd.f32 %v6580, %v6984
        %v7061 = vadd.f32 %v6581, %v6985
        %v7062 = vadd.f32 %v6582, %v6987
        %v7063 = vadd.f32 %v6583, %v6989
        %v7064 = vadd.f32 %v6584, %v6990
        %v7065 = vadd.f32 %v6585, %v6991
        %v7066 = vadd.f32 %v6586, %v6993
        %v7067 = vadd.f32 %v6587, %v6995
        %v7068 = vadd.f32 %v6588, %v6996
        %v7069 = vadd.f32 %v6589, %v6997
        %v7070 = vadd.f32 %v6590, %v6999
        %v7071 = vadd.f32 %v6591, %v7001
        %v7072 = vadd.f32 %v6592, %v7002
        %v7073 = vadd.f32 %v6593, %v7003
        %v7074 = vadd.f32 %v6594, %v7005
        %v7075 = vadd.f32 %v6595, %v7007
        %v7076 = vadd.f32 %v6596, %v7008
        %v7077 = vadd.f32 %v6597, %v7009
        %v7078 = vadd.f32 %v6598, %v7011
        %v7079 = vadd.f32 %v6599, %v7013
        %v7080 = vadd.f32 %v6600, %v7014
        %v7081 = vadd.f32 %v6601, %v7015
        %v7082 = vadd.f32 %v6602, %v7017
        %v7083 = vadd.f32 %v6603, %v7019
        %v7116 = vrot.slane %v6908, 7
        %v7117 = vrot.slane %v6910, 7
        %v7118 = vsel %vm1452, %v7116, %v7117
        %v7119 = vrot.slane %v6909, 7
        %v7120 = vrot.slane %v6911, 7
        %v7121 = vsel %vm1452, %v7119, %v7120
        %v7122 = vrot.slane %v6912, 7
        %v7123 = vrot.slane %v6914, 7
        %v7124 = vsel %vm1452, %v7122, %v7123
        %v7125 = vrot.slane %v6913, 7
        %v7126 = vrot.slane %v6915, 7
        %v7127 = vsel %vm1452, %v7125, %v7126
        %v7128 = vrot.slane %v6916, 7
        %v7129 = vrot.slane %v6918, 7
        %v7130 = vsel %vm1452, %v7128, %v7129
        %v7131 = vrot.slane %v6917, 7
        %v7132 = vrot.slane %v6919, 7
        %v7133 = vsel %vm1452, %v7131, %v7132
        %v7134 = vrot.slane %v6920, 7
        %v7135 = vrot.slane %v6922, 7
        %v7136 = vsel %vm1452, %v7134, %v7135
        %v7137 = vrot.slane %v6921, 7
        %v7138 = vrot.slane %v6923, 7
        %v7139 = vsel %vm1452, %v7137, %v7138
        %v7140 = vrot.slane %v6924, 7
        %v7141 = vrot.slane %v6926, 7
        %v7142 = vsel %vm1452, %v7140, %v7141
        %v7143 = vrot.slane %v6925, 7
        %v7144 = vrot.slane %v6927, 7
        %v7145 = vsel %vm1452, %v7143, %v7144
        %v7146 = vrot.slane %v6928, 7
        %v7147 = vrot.slane %v6930, 7
        %v7148 = vsel %vm1452, %v7146, %v7147
        %v7149 = vrot.slane %v6929, 7
        %v7150 = vrot.slane %v6931, 7
        %v7151 = vsel %vm1452, %v7149, %v7150
        %v7152 = vrot.slane %v6932, 7
        %v7153 = vrot.slane %v6934, 7
        %v7154 = vsel %vm1452, %v7152, %v7153
        %v7155 = vrot.slane %v6933, 7
        %v7156 = vrot.slane %v6935, 7
        %v7157 = vsel %vm1452, %v7155, %v7156
        %v7158 = vrot.slane %v6936, 7
        %v7159 = vrot.slane %v6938, 7
        %v7160 = vsel %vm1452, %v7158, %v7159
        %v7161 = vrot.slane %v6937, 7
        %v7162 = vrot.slane %v6939, 7
        %v7163 = vsel %vm1452, %v7161, %v7162
        %v7180 = vadd.f32 %v6844, %v7118
        %v7181 = vadd.f32 %v6845, %v7121
        %v7182 = vadd.f32 %v6846, %v7124
        %v7183 = vadd.f32 %v6847, %v7127
        %v7184 = vadd.f32 %v6848, %v7130
        %v7185 = vadd.f32 %v6849, %v7133
        %v7186 = vadd.f32 %v6850, %v7136
        %v7187 = vadd.f32 %v6851, %v7139
        %v7188 = vadd.f32 %v6852, %v7142
        %v7189 = vadd.f32 %v6853, %v7145
        %v7190 = vadd.f32 %v6854, %v7148
        %v7191 = vadd.f32 %v6855, %v7151
        %v7192 = vadd.f32 %v6856, %v7154
        %v7193 = vadd.f32 %v6857, %v7157
        %v7194 = vadd.f32 %v6858, %v7160
        %v7195 = vadd.f32 %v6859, %v7163
        %v7212 = vrot.slane %v7180, 1
        %v7213 = vrot.slane %v7181, 1
        %v7214 = vrot.slane %v7182, 1
        %v7215 = vrot.slane %v7183, 1
        %v7216 = vrot.slane %v7184, 1
        %v7217 = vrot.slane %v7185, 1
        %v7218 = vrot.slane %v7186, 1
        %v7219 = vrot.slane %v7187, 1
        %v7220 = vrot.slane %v7188, 1
        %v7221 = vrot.slane %v7189, 1
        %v7222 = vrot.slane %v7190, 1
        %v7223 = vrot.slane %v7191, 1
        %v7224 = vrot.slane %v7192, 1
        %v7225 = vrot.slane %v7193, 1
        %v7226 = vrot.slane %v7194, 1
        %v7227 = vrot.slane %v7195, 1
        %v7244 = vadd.f32 %v7052, %v7212
        %v7245 = vadd.f32 %v7053, %v7213
        %v7246 = vadd.f32 %v7054, %v7212
        %v7247 = vadd.f32 %v7055, %v7213
        %v7248 = vadd.f32 %v7056, %v7214
        %v7249 = vadd.f32 %v7057, %v7215
        %v7250 = vadd.f32 %v7058, %v7214
        %v7251 = vadd.f32 %v7059, %v7215
        %v7252 = vadd.f32 %v7060, %v7216
        %v7253 = vadd.f32 %v7061, %v7217
        %v7254 = vadd.f32 %v7062, %v7216
        %v7255 = vadd.f32 %v7063, %v7217
        %v7256 = vadd.f32 %v7064, %v7218
        %v7257 = vadd.f32 %v7065, %v7219
        %v7258 = vadd.f32 %v7066, %v7218
        %v7259 = vadd.f32 %v7067, %v7219
        %v7260 = vadd.f32 %v7068, %v7220
        %v7261 = vadd.f32 %v7069, %v7221
        %v7262 = vadd.f32 %v7070, %v7220
        %v7263 = vadd.f32 %v7071, %v7221
        %v7264 = vadd.f32 %v7072, %v7222
        %v7265 = vadd.f32 %v7073, %v7223
        %v7266 = vadd.f32 %v7074, %v7222
        %v7267 = vadd.f32 %v7075, %v7223
        %v7268 = vadd.f32 %v7076, %v7224
        %v7269 = vadd.f32 %v7077, %v7225
        %v7270 = vadd.f32 %v7078, %v7224
        %v7271 = vadd.f32 %v7079, %v7225
        %v7272 = vadd.f32 %v7080, %v7226
        %v7273 = vadd.f32 %v7081, %v7227
        %v7274 = vadd.f32 %v7082, %v7226
        %v7275 = vadd.f32 %v7083, %v7227
        %v7308 = vrot.slane %v6492, 2
        %v7309 = vrot.slane %v6493, 2
        %v7310 = vrot.slane %v6494, 2
        %v7311 = vsel %vm1307, %v7308, %v7310
        %v7312 = vrot.slane %v6495, 2
        %v7313 = vsel %vm1307, %v7309, %v7312
        %v7314 = vrot.slane %v6496, 2
        %v7315 = vrot.slane %v6497, 2
        %v7316 = vrot.slane %v6498, 2
        %v7317 = vsel %vm1307, %v7314, %v7316
        %v7318 = vrot.slane %v6499, 2
        %v7319 = vsel %vm1307, %v7315, %v7318
        %v7320 = vrot.slane %v6500, 2
        %v7321 = vrot.slane %v6501, 2
        %v7322 = vrot.slane %v6502, 2
        %v7323 = vsel %vm1307, %v7320, %v7322
        %v7324 = vrot.slane %v6503, 2
        %v7325 = vsel %vm1307, %v7321, %v7324
        %v7326 = vrot.slane %v6504, 2
        %v7327 = vrot.slane %v6505, 2
        %v7328 = vrot.slane %v6506, 2
        %v7329 = vsel %vm1307, %v7326, %v7328
        %v7330 = vrot.slane %v6507, 2
        %v7331 = vsel %vm1307, %v7327, %v7330
        %v7332 = vrot.slane %v6508, 2
        %v7333 = vrot.slane %v6509, 2
        %v7334 = vrot.slane %v6510, 2
        %v7335 = vsel %vm1307, %v7332, %v7334
        %v7336 = vrot.slane %v6511, 2
        %v7337 = vsel %vm1307, %v7333, %v7336
        %v7338 = vrot.slane %v6512, 2
        %v7339 = vrot.slane %v6513, 2
        %v7340 = vrot.slane %v6514, 2
        %v7341 = vsel %vm1307, %v7338, %v7340
        %v7342 = vrot.slane %v6515, 2
        %v7343 = vsel %vm1307, %v7339, %v7342
        %v7344 = vrot.slane %v6516, 2
        %v7345 = vrot.slane %v6517, 2
        %v7346 = vrot.slane %v6518, 2
        %v7347 = vsel %vm1307, %v7344, %v7346
        %v7348 = vrot.slane %v6519, 2
        %v7349 = vsel %vm1307, %v7345, %v7348
        %v7350 = vrot.slane %v6520, 2
        %v7351 = vrot.slane %v6521, 2
        %v7352 = vrot.slane %v6522, 2
        %v7353 = vsel %vm1307, %v7350, %v7352
        %v7354 = vrot.slane %v6523, 2
        %v7355 = vsel %vm1307, %v7351, %v7354
        %v7388 = vadd.f32 %v7244, %v7308
        %v7389 = vadd.f32 %v7245, %v7309
        %v7390 = vadd.f32 %v7246, %v7311
        %v7391 = vadd.f32 %v7247, %v7313
        %v7392 = vadd.f32 %v7248, %v7314
        %v7393 = vadd.f32 %v7249, %v7315
        %v7394 = vadd.f32 %v7250, %v7317
        %v7395 = vadd.f32 %v7251, %v7319
        %v7396 = vadd.f32 %v7252, %v7320
        %v7397 = vadd.f32 %v7253, %v7321
        %v7398 = vadd.f32 %v7254, %v7323
        %v7399 = vadd.f32 %v7255, %v7325
        %v7400 = vadd.f32 %v7256, %v7326
        %v7401 = vadd.f32 %v7257, %v7327
        %v7402 = vadd.f32 %v7258, %v7329
        %v7403 = vadd.f32 %v7259, %v7331
        %v7404 = vadd.f32 %v7260, %v7332
        %v7405 = vadd.f32 %v7261, %v7333
        %v7406 = vadd.f32 %v7262, %v7335
        %v7407 = vadd.f32 %v7263, %v7337
        %v7408 = vadd.f32 %v7264, %v7338
        %v7409 = vadd.f32 %v7265, %v7339
        %v7410 = vadd.f32 %v7266, %v7341
        %v7411 = vadd.f32 %v7267, %v7343
        %v7412 = vadd.f32 %v7268, %v7344
        %v7413 = vadd.f32 %v7269, %v7345
        %v7414 = vadd.f32 %v7270, %v7347
        %v7415 = vadd.f32 %v7271, %v7349
        %v7416 = vadd.f32 %v7272, %v7350
        %v7417 = vadd.f32 %v7273, %v7351
        %v7418 = vadd.f32 %v7274, %v7353
        %v7419 = vadd.f32 %v7275, %v7355
        %v7452 = vrot.slane %v7388, 7
        %v7453 = vrot.slane %v7390, 7
        %v7454 = vsel %vm1452, %v7452, %v7453
        %v7455 = vrot.slane %v7389, 7
        %v7456 = vrot.slane %v7391, 7
        %v7457 = vsel %vm1452, %v7455, %v7456
        %v7458 = vrot.slane %v7392, 7
        %v7459 = vrot.slane %v7394, 7
        %v7460 = vsel %vm1452, %v7458, %v7459
        %v7461 = vrot.slane %v7393, 7
        %v7462 = vrot.slane %v7395, 7
        %v7463 = vsel %vm1452, %v7461, %v7462
        %v7464 = vrot.slane %v7396, 7
        %v7465 = vrot.slane %v7398, 7
        %v7466 = vsel %vm1452, %v7464, %v7465
        %v7467 = vrot.slane %v7397, 7
        %v7468 = vrot.slane %v7399, 7
        %v7469 = vsel %vm1452, %v7467, %v7468
        %v7470 = vrot.slane %v7400, 7
        %v7471 = vrot.slane %v7402, 7
        %v7472 = vsel %vm1452, %v7470, %v7471
        %v7473 = vrot.slane %v7401, 7
        %v7474 = vrot.slane %v7403, 7
        %v7475 = vsel %vm1452, %v7473, %v7474
        %v7476 = vrot.slane %v7404, 7
        %v7477 = vrot.slane %v7406, 7
        %v7478 = vsel %vm1452, %v7476, %v7477
        %v7479 = vrot.slane %v7405, 7
        %v7480 = vrot.slane %v7407, 7
        %v7481 = vsel %vm1452, %v7479, %v7480
        %v7482 = vrot.slane %v7408, 7
        %v7483 = vrot.slane %v7410, 7
        %v7484 = vsel %vm1452, %v7482, %v7483
        %v7485 = vrot.slane %v7409, 7
        %v7486 = vrot.slane %v7411, 7
        %v7487 = vsel %vm1452, %v7485, %v7486
        %v7488 = vrot.slane %v7412, 7
        %v7489 = vrot.slane %v7414, 7
        %v7490 = vsel %vm1452, %v7488, %v7489
        %v7491 = vrot.slane %v7413, 7
        %v7492 = vrot.slane %v7415, 7
        %v7493 = vsel %vm1452, %v7491, %v7492
        %v7494 = vrot.slane %v7416, 7
        %v7495 = vrot.slane %v7418, 7
        %v7496 = vsel %vm1452, %v7494, %v7495
        %v7497 = vrot.slane %v7417, 7
        %v7498 = vrot.slane %v7419, 7
        %v7499 = vsel %vm1452, %v7497, %v7498
        %v7516 = vpack.c.bf16 %v7460, %v7454
        %v7517 = vpack.c.bf16 %v7463, %v7457
        %v7518 = vpack.c.bf16 %v7472, %v7466
        %v7519 = vpack.c.bf16 %v7475, %v7469
        %v7520 = vpack.c.bf16 %v7484, %v7478
        %v7521 = vpack.c.bf16 %v7487, %v7481
        %v7522 = vpack.c.bf16 %v7496, %v7490
        %v7523 = vpack.c.bf16 %v7499, %v7493
        %s7524 = scalar_lea.vmem [#allocation3], 768
        %v7525 = vld [vmem:[%s7524] sm:$0xff]
        %v7526 = vld [vmem:[%s7524 + $0x8] sm:$0xff]
        %v7527 = vld [vmem:[%s7524 + $0x10] sm:$0xff]
        %v7528 = vld [vmem:[%s7524 + $0x18] sm:$0xff]
        %v7529 = vld [vmem:[%s7524 + $0x20] sm:$0xff]
        %v7530 = vld [vmem:[%s7524 + $0x28] sm:$0xff]
        %v7531 = vld [vmem:[%s7524 + $0x30] sm:$0xff]
        %v7532 = vld [vmem:[%s7524 + $0x38] sm:$0xff]
        %v7533 = vld [vmem:[%s7524 + $0x40] sm:$0xff]
        %v7534 = vld [vmem:[%s7524 + $0x48] sm:$0xff]
        %v7535 = vld [vmem:[%s7524 + $0x50] sm:$0xff]
        %v7536 = vld [vmem:[%s7524 + $0x58] sm:$0xff]
        %v7537 = vld [vmem:[%s7524 + $0x60] sm:$0xff]
        %v7538 = vld [vmem:[%s7524 + $0x68] sm:$0xff]
        %v7539 = vld [vmem:[%s7524 + $0x70] sm:$0xff]
        %v7540 = vld [vmem:[%s7524 + $0x78] sm:$0xff]
        %v7541 = vld [vmem:[%s7524 + $0x80] sm:$0xff]
        %v7542 = vld [vmem:[%s7524 + $0x88] sm:$0xff]
        %v7543 = vld [vmem:[%s7524 + $0x90] sm:$0xff]
        %v7544 = vld [vmem:[%s7524 + $0x98] sm:$0xff]
        %v7545 = vld [vmem:[%s7524 + $0xa0] sm:$0xff]
        %v7546 = vld [vmem:[%s7524 + $0xa8] sm:$0xff]
        %v7547 = vld [vmem:[%s7524 + $0xb0] sm:$0xff]
        %v7548 = vld [vmem:[%s7524 + $0xb8] sm:$0xff]
        %v7549 = vld [vmem:[%s7524 + $0xc0] sm:$0xff]
        %v7550 = vld [vmem:[%s7524 + $0xc8] sm:$0xff]
        %v7551 = vld [vmem:[%s7524 + $0xd0] sm:$0xff]
        %v7552 = vld [vmem:[%s7524 + $0xd8] sm:$0xff]
        %v7553 = vld [vmem:[%s7524 + $0xe0] sm:$0xff]
        %v7554 = vld [vmem:[%s7524 + $0xe8] sm:$0xff]
        %v7555 = vld [vmem:[%s7524 + $0xf0] sm:$0xff]
        %v7556 = vld [vmem:[%s7524 + $0xf8] sm:$0xff]
        %s7557 = scalar_lea.vmem %s3, 6
        %v7558 = vld [vmem:[%s7557] sm:$0x3]
        %v7560 = vperm.slane %v7558, 0
        %v7561 = vperm.slane %v7558, 1
        %v7596 = vunpack.c.l.b16 %v7525
        %v7597 = vunpack.c.h.b16 %v7525
        %v7598 = vunpack.c.l.b16 %v7526
        %v7599 = vunpack.c.h.b16 %v7526
        %v7600 = vunpack.c.l.b16 %v7527
        %v7601 = vunpack.c.h.b16 %v7527
        %v7602 = vunpack.c.l.b16 %v7528
        %v7603 = vunpack.c.h.b16 %v7528
        %v7604 = vunpack.c.l.b16 %v7529
        %v7605 = vunpack.c.h.b16 %v7529
        %v7606 = vunpack.c.l.b16 %v7530
        %v7607 = vunpack.c.h.b16 %v7530
        %v7608 = vunpack.c.l.b16 %v7531
        %v7609 = vunpack.c.h.b16 %v7531
        %v7610 = vunpack.c.l.b16 %v7532
        %v7611 = vunpack.c.h.b16 %v7532
        %v7612 = vunpack.c.l.b16 %v7533
        %v7613 = vunpack.c.h.b16 %v7533
        %v7614 = vunpack.c.l.b16 %v7534
        %v7615 = vunpack.c.h.b16 %v7534
        %v7616 = vunpack.c.l.b16 %v7535
        %v7617 = vunpack.c.h.b16 %v7535
        %v7618 = vunpack.c.l.b16 %v7536
        %v7619 = vunpack.c.h.b16 %v7536
        %v7620 = vunpack.c.l.b16 %v7537
        %v7621 = vunpack.c.h.b16 %v7537
        %v7622 = vunpack.c.l.b16 %v7538
        %v7623 = vunpack.c.h.b16 %v7538
        %v7624 = vunpack.c.l.b16 %v7539
        %v7625 = vunpack.c.h.b16 %v7539
        %v7626 = vunpack.c.l.b16 %v7540
        %v7627 = vunpack.c.h.b16 %v7540
        %v7628 = vunpack.c.l.b16 %v7541
        %v7629 = vunpack.c.h.b16 %v7541
        %v7630 = vunpack.c.l.b16 %v7542
        %v7631 = vunpack.c.h.b16 %v7542
        %v7632 = vunpack.c.l.b16 %v7543
        %v7633 = vunpack.c.h.b16 %v7543
        %v7634 = vunpack.c.l.b16 %v7544
        %v7635 = vunpack.c.h.b16 %v7544
        %v7636 = vunpack.c.l.b16 %v7545
        %v7637 = vunpack.c.h.b16 %v7545
        %v7638 = vunpack.c.l.b16 %v7546
        %v7639 = vunpack.c.h.b16 %v7546
        %v7640 = vunpack.c.l.b16 %v7547
        %v7641 = vunpack.c.h.b16 %v7547
        %v7642 = vunpack.c.l.b16 %v7548
        %v7643 = vunpack.c.h.b16 %v7548
        %v7644 = vunpack.c.l.b16 %v7549
        %v7645 = vunpack.c.h.b16 %v7549
        %v7646 = vunpack.c.l.b16 %v7550
        %v7647 = vunpack.c.h.b16 %v7550
        %v7648 = vunpack.c.l.b16 %v7551
        %v7649 = vunpack.c.h.b16 %v7551
        %v7650 = vunpack.c.l.b16 %v7552
        %v7651 = vunpack.c.h.b16 %v7552
        %v7652 = vunpack.c.l.b16 %v7553
        %v7653 = vunpack.c.h.b16 %v7553
        %v7654 = vunpack.c.l.b16 %v7554
        %v7655 = vunpack.c.h.b16 %v7554
        %v7656 = vunpack.c.l.b16 %v7555
        %v7657 = vunpack.c.h.b16 %v7555
        %v7658 = vunpack.c.l.b16 %v7556
        %v7659 = vunpack.c.h.b16 %v7556
        %v7660 = vpack.c.b16 %v7598, %v7596
        %v7661 = vpack.c.b16 %v7599, %v7597
        %v7662 = vpack.c.b16 %v7602, %v7600
        %v7663 = vpack.c.b16 %v7603, %v7601
        %v7664 = vpack.c.b16 %v7606, %v7604
        %v7665 = vpack.c.b16 %v7607, %v7605
        %v7666 = vpack.c.b16 %v7610, %v7608
        %v7667 = vpack.c.b16 %v7611, %v7609
        %v7668 = vpack.c.b16 %v7614, %v7612
        %v7669 = vpack.c.b16 %v7615, %v7613
        %v7670 = vpack.c.b16 %v7618, %v7616
        %v7671 = vpack.c.b16 %v7619, %v7617
        %v7672 = vpack.c.b16 %v7622, %v7620
        %v7673 = vpack.c.b16 %v7623, %v7621
        %v7674 = vpack.c.b16 %v7626, %v7624
        %v7675 = vpack.c.b16 %v7627, %v7625
        %v7676 = vpack.c.b16 %v7630, %v7628
        %v7677 = vpack.c.b16 %v7631, %v7629
        %v7678 = vpack.c.b16 %v7634, %v7632
        %v7679 = vpack.c.b16 %v7635, %v7633
        %v7680 = vpack.c.b16 %v7638, %v7636
        %v7681 = vpack.c.b16 %v7639, %v7637
        %v7682 = vpack.c.b16 %v7642, %v7640
        %v7683 = vpack.c.b16 %v7643, %v7641
        %v7684 = vpack.c.b16 %v7646, %v7644
        %v7685 = vpack.c.b16 %v7647, %v7645
        %v7686 = vpack.c.b16 %v7650, %v7648
        %v7687 = vpack.c.b16 %v7651, %v7649
        %v7688 = vpack.c.b16 %v7654, %v7652
        %v7689 = vpack.c.b16 %v7655, %v7653
        %v7690 = vpack.c.b16 %v7658, %v7656
        %v7691 = vpack.c.b16 %v7659, %v7657
        %7724 = vmatpush.bf16.msra.mxu0 %v7674
        %7725 = vmatpush.bf16.msra.mxu0 %v7672
        %7726 = vmatpush.bf16.msra.mxu0 %v7670
        %7727 = vmatpush.bf16.msra.mxu0 %v7668
        %7728 = vmatpush.bf16.msra.mxu0 %v7666
        %7729 = vmatpush.bf16.msra.mxu0 %v7664
        %7730 = vmatpush.bf16.msra.mxu0 %v7662
        %7731 = vmatpush.bf16.msra.mxu0 %v7660
        %7732 = vmatmul.bf16.gmra.mxu0 %v7516
        %v7733 = vpop.f32.mrf.mxu0
        %v7734 = vadd.f32 %v7560, %v7733
        %v7735 = vpop.f32.mrf.mxu0
        %v7736 = vadd.f32 %v7560, %v7735
        %7737 = vmatmul.bf16.gmra.mxu0 %v7518
        %v7738 = vpop.f32.mrf.mxu0
        %v7739 = vadd.f32 %v7560, %v7738
        %v7740 = vpop.f32.mrf.mxu0
        %v7741 = vadd.f32 %v7560, %v7740
        %7742 = vmatmul.bf16.gmra.mxu0 %v7520
        %v7743 = vpop.f32.mrf.mxu0
        %v7744 = vadd.f32 %v7560, %v7743
        %v7745 = vpop.f32.mrf.mxu0
        %v7746 = vadd.f32 %v7560, %v7745
        %7747 = vmatmul.bf16.gmra.mxu0 %v7522
        %v7748 = vpop.f32.mrf.mxu0
        %v7749 = vadd.f32 %v7560, %v7748
        %v7750 = vpop.f32.mrf.mxu0
        %v7751 = vadd.f32 %v7560, %v7750
        %7752 = vdwg.mxu0
        %7753 = vmatpush.bf16.msra.mxu0 %v7690
        %7754 = vmatpush.bf16.msra.mxu0 %v7688
        %7755 = vmatpush.bf16.msra.mxu0 %v7686
        %7756 = vmatpush.bf16.msra.mxu0 %v7684
        %7757 = vmatpush.bf16.msra.mxu0 %v7682
        %7758 = vmatpush.bf16.msra.mxu0 %v7680
        %7759 = vmatpush.bf16.msra.mxu0 %v7678
        %7760 = vmatpush.bf16.msra.mxu0 %v7676
        %7761 = vmatmul.bf16.gmra.mxu0 %v7517
        %v7762 = vpop.f32.mrf.mxu0
        %v7763 = vadd.f32 %v7734, %v7762
        %v7764 = vpop.f32.mrf.mxu0
        %v7765 = vadd.f32 %v7736, %v7764
        %7766 = vmatmul.bf16.gmra.mxu0 %v7519
        %v7767 = vpop.f32.mrf.mxu0
        %v7768 = vadd.f32 %v7739, %v7767
        %v7769 = vpop.f32.mrf.mxu0
        %v7770 = vadd.f32 %v7741, %v7769
        %7771 = vmatmul.bf16.gmra.mxu0 %v7521
        %v7772 = vpop.f32.mrf.mxu0
        %v7773 = vadd.f32 %v7744, %v7772
        %v7774 = vpop.f32.mrf.mxu0
        %v7775 = vadd.f32 %v7746, %v7774
        %7776 = vmatmul.bf16.gmra.mxu0 %v7523
        %v7777 = vpop.f32.mrf.mxu0
        %v7778 = vadd.f32 %v7749, %v7777
        %v7779 = vpop.f32.mrf.mxu0
        %v7780 = vadd.f32 %v7751, %v7779
        %7781 = vdwg.mxu0
        %7782 = vmatpush.bf16.msra.mxu0 %v7675
        %7783 = vmatpush.bf16.msra.mxu0 %v7673
        %7784 = vmatpush.bf16.msra.mxu0 %v7671
        %7785 = vmatpush.bf16.msra.mxu0 %v7669
        %7786 = vmatpush.bf16.msra.mxu0 %v7667
        %7787 = vmatpush.bf16.msra.mxu0 %v7665
        %7788 = vmatpush.bf16.msra.mxu0 %v7663
        %7789 = vmatpush.bf16.msra.mxu0 %v7661
        %7790 = vmatmul.bf16.gmra.mxu0 %v7516
        %v7791 = vpop.f32.mrf.mxu0
        %v7792 = vadd.f32 %v7561, %v7791
        %v7793 = vpop.f32.mrf.mxu0
        %v7794 = vadd.f32 %v7561, %v7793
        %7795 = vmatmul.bf16.gmra.mxu0 %v7518
        %v7796 = vpop.f32.mrf.mxu0
        %v7797 = vadd.f32 %v7561, %v7796
        %v7798 = vpop.f32.mrf.mxu0
        %v7799 = vadd.f32 %v7561, %v7798
        %7800 = vmatmul.bf16.gmra.mxu0 %v7520
        %v7801 = vpop.f32.mrf.mxu0
        %v7802 = vadd.f32 %v7561, %v7801
        %v7803 = vpop.f32.mrf.mxu0
        %v7804 = vadd.f32 %v7561, %v7803
        %7805 = vmatmul.bf16.gmra.mxu0 %v7522
        %v7806 = vpop.f32.mrf.mxu0
        %v7807 = vadd.f32 %v7561, %v7806
        %v7808 = vpop.f32.mrf.mxu0
        %v7809 = vadd.f32 %v7561, %v7808
        %7810 = vdwg.mxu0
        %7811 = vmatpush.bf16.msra.mxu0 %v7691
        %7812 = vmatpush.bf16.msra.mxu0 %v7689
        %7813 = vmatpush.bf16.msra.mxu0 %v7687
        %7814 = vmatpush.bf16.msra.mxu0 %v7685
        %7815 = vmatpush.bf16.msra.mxu0 %v7683
        %7816 = vmatpush.bf16.msra.mxu0 %v7681
        %7817 = vmatpush.bf16.msra.mxu0 %v7679
        %7818 = vmatpush.bf16.msra.mxu0 %v7677
        %7819 = vmatmul.bf16.gmra.mxu0 %v7517
        %v7820 = vpop.f32.mrf.mxu0
        %v7821 = vadd.f32 %v7792, %v7820
        %v7822 = vpop.f32.mrf.mxu0
        %v7823 = vadd.f32 %v7794, %v7822
        %7824 = vmatmul.bf16.gmra.mxu0 %v7519
        %v7825 = vpop.f32.mrf.mxu0
        %v7826 = vadd.f32 %v7797, %v7825
        %v7827 = vpop.f32.mrf.mxu0
        %v7828 = vadd.f32 %v7799, %v7827
        %7829 = vmatmul.bf16.gmra.mxu0 %v7521
        %v7830 = vpop.f32.mrf.mxu0
        %v7831 = vadd.f32 %v7802, %v7830
        %v7832 = vpop.f32.mrf.mxu0
        %v7833 = vadd.f32 %v7804, %v7832
        %7834 = vmatmul.bf16.gmra.mxu0 %v7523
        %v7835 = vpop.f32.mrf.mxu0
        %v7836 = vadd.f32 %v7807, %v7835
        %v7837 = vpop.f32.mrf.mxu0
        %v7838 = vadd.f32 %v7809, %v7837
        %7839 = vdwg.mxu0
        %vm7840 = vcmp.ge.f32.partialorder %v7763, 0.0
        %vm7841 = vcmp.ge.f32.partialorder %v7821, 0.0
        %vm7842 = vcmp.ge.f32.partialorder %v7765, 0.0
        %vm7843 = vcmp.ge.f32.partialorder %v7823, 0.0
        %vm7844 = vcmp.ge.f32.partialorder %v7768, 0.0
        %vm7845 = vcmp.ge.f32.partialorder %v7826, 0.0
        %vm7846 = vcmp.ge.f32.partialorder %v7770, 0.0
        %vm7847 = vcmp.ge.f32.partialorder %v7828, 0.0
        %vm7848 = vcmp.ge.f32.partialorder %v7773, 0.0
        %vm7849 = vcmp.ge.f32.partialorder %v7831, 0.0
        %vm7850 = vcmp.ge.f32.partialorder %v7775, 0.0
        %vm7851 = vcmp.ge.f32.partialorder %v7833, 0.0
        %vm7852 = vcmp.ge.f32.partialorder %v7778, 0.0
        %vm7853 = vcmp.ge.f32.partialorder %v7836, 0.0
        %vm7854 = vcmp.ge.f32.partialorder %v7780, 0.0
        %vm7855 = vcmp.ge.f32.partialorder %v7838, 0.0
        %v7856 = vmul.f32 %v7763, 0.2
        %v7857 = vmul.f32 %v7821, 0.2
        %v7858 = vmul.f32 %v7765, 0.2
        %v7859 = vmul.f32 %v7823, 0.2
        %v7860 = vmul.f32 %v7768, 0.2
        %v7861 = vmul.f32 %v7826, 0.2
        %v7862 = vmul.f32 %v7770, 0.2
        %v7863 = vmul.f32 %v7828, 0.2
        %v7864 = vmul.f32 %v7773, 0.2
        %v7865 = vmul.f32 %v7831, 0.2
        %v7866 = vmul.f32 %v7775, 0.2
        %v7867 = vmul.f32 %v7833, 0.2
        %v7868 = vmul.f32 %v7778, 0.2
        %v7869 = vmul.f32 %v7836, 0.2
        %v7870 = vmul.f32 %v7780, 0.2
        %v7871 = vmul.f32 %v7838, 0.2
        %v7872 = vsel %vm7840, %v7763, %v7856
        %v7873 = vsel %vm7841, %v7821, %v7857
        %v7874 = vsel %vm7842, %v7765, %v7858
        %v7875 = vsel %vm7843, %v7823, %v7859
        %v7876 = vsel %vm7844, %v7768, %v7860
        %v7877 = vsel %vm7845, %v7826, %v7861
        %v7878 = vsel %vm7846, %v7770, %v7862
        %v7879 = vsel %vm7847, %v7828, %v7863
        %v7880 = vsel %vm7848, %v7773, %v7864
        %v7881 = vsel %vm7849, %v7831, %v7865
        %v7882 = vsel %vm7850, %v7775, %v7866
        %v7883 = vsel %vm7851, %v7833, %v7867
        %v7884 = vsel %vm7852, %v7778, %v7868
        %v7885 = vsel %vm7853, %v7836, %v7869
        %v7886 = vsel %vm7854, %v7780, %v7870
        %v7887 = vsel %vm7855, %v7838, %v7871
        %7888 = vst [vmem:[%s337 + $0x10] sm:$0xff] %v7872
        %7889 = vst [vmem:[%s337 + $0x18] sm:$0xff] %v7873
        %7890 = vst [vmem:[%s337 + $0x40] sm:$0xff] %v7874
        %7891 = vst [vmem:[%s337 + $0x48] sm:$0xff] %v7875
        %7892 = vst [vmem:[%s337 + $0x70] sm:$0xff] %v7876
        %7893 = vst [vmem:[%s337 + $0x78] sm:$0xff] %v7877
        %7894 = vst [vmem:[%s337 + $0xa0] sm:$0xff] %v7878
        %7895 = vst [vmem:[%s337 + $0xa8] sm:$0xff] %v7879
        %7896 = vst [vmem:[%s337 + $0xd0] sm:$0xff] %v7880
        %7897 = vst [vmem:[%s337 + $0xd8] sm:$0xff] %v7881
        %7898 = vst [vmem:[%s337 + $0x100] sm:$0xff] %v7882
        %7899 = vst [vmem:[%s337 + $0x108] sm:$0xff] %v7883
        %7900 = vst [vmem:[%s337 + $0x130] sm:$0xff] %v7884
        %7901 = vst [vmem:[%s337 + $0x138] sm:$0xff] %v7885
        %7902 = vst [vmem:[%s337 + $0x160] sm:$0xff] %v7886
        %7903 = vst [vmem:[%s337 + $0x168] sm:$0xff] %v7887
        %s7904 = scalar_lea.vmem %s1, 128
        %v7905 = vld [vmem:[%s7904] sm:$0xff]
        %v7906 = vld [vmem:[%s7904 + $0x8] sm:$0xff]
        %v7907 = vld [vmem:[%s7904 + $0x10] sm:$0x1]
        %v7908 = vld [vmem:[%s7904 + $0x18] sm:$0x1]
        %v7909 = vld [vmem:[#allocation2] sm:$0x80]
        %v7910 = vld [vmem:[#allocation2 + $0x8] sm:$0x80]
        %v7911 = vld [vmem:[#allocation2 + $0x10] sm:$0x7f]
        %v7912 = vld [vmem:[#allocation2 + $0x18] sm:$0x7f]
        %v7913 = vld [vmem:[#allocation2 + $0x30] sm:$0x80]
        %v7914 = vld [vmem:[#allocation2 + $0x38] sm:$0x80]
        %v7915 = vld [vmem:[#allocation2 + $0x40] sm:$0x7f]
        %v7916 = vld [vmem:[#allocation2 + $0x48] sm:$0x7f]
        %v7917 = vld [vmem:[#allocation2 + $0x60] sm:$0x80]
        %v7918 = vld [vmem:[#allocation2 + $0x68] sm:$0x80]
        %v7919 = vld [vmem:[#allocation2 + $0x70] sm:$0x7f]
        %v7920 = vld [vmem:[#allocation2 + $0x78] sm:$0x7f]
        %v7921 = vld [vmem:[#allocation2 + $0x90] sm:$0x80]
        %v7922 = vld [vmem:[#allocation2 + $0x98] sm:$0x80]
        %v7923 = vld [vmem:[#allocation2 + $0xa0] sm:$0x7f]
        %v7924 = vld [vmem:[#allocation2 + $0xa8] sm:$0x7f]
        %v7925 = vld [vmem:[#allocation2 + $0xc0] sm:$0x80]
        %v7926 = vld [vmem:[#allocation2 + $0xc8] sm:$0x80]
        %v7927 = vld [vmem:[#allocation2 + $0xd0] sm:$0x7f]
        %v7928 = vld [vmem:[#allocation2 + $0xd8] sm:$0x7f]
        %v7929 = vld [vmem:[#allocation2 + $0xf0] sm:$0x80]
        %v7930 = vld [vmem:[#allocation2 + $0xf8] sm:$0x80]
        %v7931 = vld [vmem:[#allocation2 + $0x100] sm:$0x7f]
        %v7932 = vld [vmem:[#allocation2 + $0x108] sm:$0x7f]
        %v7933 = vld [vmem:[#allocation2 + $0x120] sm:$0x80]
        %v7934 = vld [vmem:[#allocation2 + $0x128] sm:$0x80]
        %v7935 = vld [vmem:[#allocation2 + $0x130] sm:$0x7f]
        %v7936 = vld [vmem:[#allocation2 + $0x138] sm:$0x7f]
        %v7937 = vld [vmem:[#allocation2 + $0x150] sm:$0x80]
        %v7938 = vld [vmem:[#allocation2 + $0x158] sm:$0x80]
        %v7939 = vld [vmem:[#allocation2 + $0x160] sm:$0x7f]
        %v7940 = vld [vmem:[#allocation2 + $0x168] sm:$0x7f]
        %v7941 = vperm.slane %v7905, 0
        %v7942 = vperm.slane %v7906, 0
        %v7943 = vmul.f32 %v7909, %v7941
        %v7944 = vmul.f32 %v7910, %v7942
        %v7945 = vmul.f32 %v7911, %v7941
        %v7946 = vmul.f32 %v7912, %v7942
        %v7947 = vmul.f32 %v7913, %v7941
        %v7948 = vmul.f32 %v7914, %v7942
        %v7949 = vmul.f32 %v7915, %v7941
        %v7950 = vmul.f32 %v7916, %v7942
        %v7951 = vmul.f32 %v7917, %v7941
        %v7952 = vmul.f32 %v7918, %v7942
        %v7953 = vmul.f32 %v7919, %v7941
        %v7954 = vmul.f32 %v7920, %v7942
        %v7955 = vmul.f32 %v7921, %v7941
        %v7956 = vmul.f32 %v7922, %v7942
        %v7957 = vmul.f32 %v7923, %v7941
        %v7958 = vmul.f32 %v7924, %v7942
        %v7959 = vmul.f32 %v7925, %v7941
        %v7960 = vmul.f32 %v7926, %v7942
        %v7961 = vmul.f32 %v7927, %v7941
        %v7962 = vmul.f32 %v7928, %v7942
        %v7963 = vmul.f32 %v7929, %v7941
        %v7964 = vmul.f32 %v7930, %v7942
        %v7965 = vmul.f32 %v7931, %v7941
        %v7966 = vmul.f32 %v7932, %v7942
        %v7967 = vmul.f32 %v7933, %v7941
        %v7968 = vmul.f32 %v7934, %v7942
        %v7969 = vmul.f32 %v7935, %v7941
        %v7970 = vmul.f32 %v7936, %v7942
        %v7971 = vmul.f32 %v7937, %v7941
        %v7972 = vmul.f32 %v7938, %v7942
        %v7973 = vmul.f32 %v7939, %v7941
        %v7974 = vmul.f32 %v7940, %v7942
        %v7975 = vld [vmem:[#allocation2 + $0x10] sm:$0xff]
        %v7976 = vld [vmem:[#allocation2 + $0x18] sm:$0xff]
        %v7977 = vld [vmem:[#allocation2 + $0x40] sm:$0xff]
        %v7978 = vld [vmem:[#allocation2 + $0x48] sm:$0xff]
        %v7979 = vld [vmem:[#allocation2 + $0x70] sm:$0xff]
        %v7980 = vld [vmem:[#allocation2 + $0x78] sm:$0xff]
        %v7981 = vld [vmem:[#allocation2 + $0xa0] sm:$0xff]
        %v7982 = vld [vmem:[#allocation2 + $0xa8] sm:$0xff]
        %v7983 = vld [vmem:[#allocation2 + $0xd0] sm:$0xff]
        %v7984 = vld [vmem:[#allocation2 + $0xd8] sm:$0xff]
        %v7985 = vld [vmem:[#allocation2 + $0x100] sm:$0xff]
        %v7986 = vld [vmem:[#allocation2 + $0x108] sm:$0xff]
        %v7987 = vld [vmem:[#allocation2 + $0x130] sm:$0xff]
        %v7988 = vld [vmem:[#allocation2 + $0x138] sm:$0xff]
        %v7989 = vld [vmem:[#allocation2 + $0x160] sm:$0xff]
        %v7990 = vld [vmem:[#allocation2 + $0x168] sm:$0xff]
        %v7991 = vperm.slane %v7905, 1
        %v7992 = vperm.slane %v7906, 1
        %v7993 = vmul.f32 %v7975, %v7991
        %v7994 = vmul.f32 %v7976, %v7992
        %v7995 = vmul.f32 %v7977, %v7991
        %v7996 = vmul.f32 %v7978, %v7992
        %v7997 = vmul.f32 %v7979, %v7991
        %v7998 = vmul.f32 %v7980, %v7992
        %v7999 = vmul.f32 %v7981, %v7991
        %v8000 = vmul.f32 %v7982, %v7992
        %v8001 = vmul.f32 %v7983, %v7991
        %v8002 = vmul.f32 %v7984, %v7992
        %v8003 = vmul.f32 %v7985, %v7991
        %v8004 = vmul.f32 %v7986, %v7992
        %v8005 = vmul.f32 %v7987, %v7991
        %v8006 = vmul.f32 %v7988, %v7992
        %v8007 = vmul.f32 %v7989, %v7991
        %v8008 = vmul.f32 %v7990, %v7992
        %v8009 = vld [vmem:[#allocation2 + $0x10] sm:$0xfe]
        %v8010 = vld [vmem:[#allocation2 + $0x18] sm:$0xfe]
        %v8011 = vld [vmem:[#allocation2 + $0x20] sm:$0x1]
        %v8012 = vld [vmem:[#allocation2 + $0x28] sm:$0x1]
        %v8013 = vld [vmem:[#allocation2 + $0x40] sm:$0xfe]
        %v8014 = vld [vmem:[#allocation2 + $0x48] sm:$0xfe]
        %v8015 = vld [vmem:[#allocation2 + $0x50] sm:$0x1]
        %v8016 = vld [vmem:[#allocation2 + $0x58] sm:$0x1]
        %v8017 = vld [vmem:[#allocation2 + $0x70] sm:$0xfe]
        %v8018 = vld [vmem:[#allocation2 + $0x78] sm:$0xfe]
        %v8019 = vld [vmem:[#allocation2 + $0x80] sm:$0x1]
        %v8020 = vld [vmem:[#allocation2 + $0x88] sm:$0x1]
        %v8021 = vld [vmem:[#allocation2 + $0xa0] sm:$0xfe]
        %v8022 = vld [vmem:[#allocation2 + $0xa8] sm:$0xfe]
        %v8023 = vld [vmem:[#allocation2 + $0xb0] sm:$0x1]
        %v8024 = vld [vmem:[#allocation2 + $0xb8] sm:$0x1]
        %v8025 = vld [vmem:[#allocation2 + $0xd0] sm:$0xfe]
        %v8026 = vld [vmem:[#allocation2 + $0xd8] sm:$0xfe]
        %v8027 = vld [vmem:[#allocation2 + $0xe0] sm:$0x1]
        %v8028 = vld [vmem:[#allocation2 + $0xe8] sm:$0x1]
        %v8029 = vld [vmem:[#allocation2 + $0x100] sm:$0xfe]
        %v8030 = vld [vmem:[#allocation2 + $0x108] sm:$0xfe]
        %v8031 = vld [vmem:[#allocation2 + $0x110] sm:$0x1]
        %v8032 = vld [vmem:[#allocation2 + $0x118] sm:$0x1]
        %v8033 = vld [vmem:[#allocation2 + $0x130] sm:$0xfe]
        %v8034 = vld [vmem:[#allocation2 + $0x138] sm:$0xfe]
        %v8035 = vld [vmem:[#allocation2 + $0x140] sm:$0x1]
        %v8036 = vld [vmem:[#allocation2 + $0x148] sm:$0x1]
        %v8037 = vld [vmem:[#allocation2 + $0x160] sm:$0xfe]
        %v8038 = vld [vmem:[#allocation2 + $0x168] sm:$0xfe]
        %v8039 = vld [vmem:[#allocation2 + $0x170] sm:$0x1]
        %v8040 = vld [vmem:[#allocation2 + $0x178] sm:$0x1]
        %v8041 = vperm.slane %v7905, 2
        %v8042 = vperm.slane %v7906, 2
        %v8043 = vmul.f32 %v8009, %v8041
        %v8044 = vmul.f32 %v8010, %v8042
        %v8045 = vmul.f32 %v8011, %v8041
        %v8046 = vmul.f32 %v8012, %v8042
        %v8047 = vmul.f32 %v8013, %v8041
        %v8048 = vmul.f32 %v8014, %v8042
        %v8049 = vmul.f32 %v8015, %v8041
        %v8050 = vmul.f32 %v8016, %v8042
        %v8051 = vmul.f32 %v8017, %v8041
        %v8052 = vmul.f32 %v8018, %v8042
        %v8053 = vmul.f32 %v8019, %v8041
        %v8054 = vmul.f32 %v8020, %v8042
        %v8055 = vmul.f32 %v8021, %v8041
        %v8056 = vmul.f32 %v8022, %v8042
        %v8057 = vmul.f32 %v8023, %v8041
        %v8058 = vmul.f32 %v8024, %v8042
        %v8059 = vmul.f32 %v8025, %v8041
        %v8060 = vmul.f32 %v8026, %v8042
        %v8061 = vmul.f32 %v8027, %v8041
        %v8062 = vmul.f32 %v8028, %v8042
        %v8063 = vmul.f32 %v8029, %v8041
        %v8064 = vmul.f32 %v8030, %v8042
        %v8065 = vmul.f32 %v8031, %v8041
        %v8066 = vmul.f32 %v8032, %v8042
        %v8067 = vmul.f32 %v8033, %v8041
        %v8068 = vmul.f32 %v8034, %v8042
        %v8069 = vmul.f32 %v8035, %v8041
        %v8070 = vmul.f32 %v8036, %v8042
        %v8071 = vmul.f32 %v8037, %v8041
        %v8072 = vmul.f32 %v8038, %v8042
        %v8073 = vmul.f32 %v8039, %v8041
        %v8074 = vmul.f32 %v8040, %v8042
        %v8075 = vld [vmem:[%s337] sm:$0x80]
        %v8076 = vld [vmem:[%s337 + $0x8] sm:$0x80]
        %v8077 = vld [vmem:[%s337 + $0x10] sm:$0x7f]
        %v8078 = vld [vmem:[%s337 + $0x18] sm:$0x7f]
        %v8079 = vld [vmem:[%s337 + $0x30] sm:$0x80]
        %v8080 = vld [vmem:[%s337 + $0x38] sm:$0x80]
        %v8081 = vld [vmem:[%s337 + $0x40] sm:$0x7f]
        %v8082 = vld [vmem:[%s337 + $0x48] sm:$0x7f]
        %v8083 = vld [vmem:[%s337 + $0x60] sm:$0x80]
        %v8084 = vld [vmem:[%s337 + $0x68] sm:$0x80]
        %v8085 = vld [vmem:[%s337 + $0x70] sm:$0x7f]
        %v8086 = vld [vmem:[%s337 + $0x78] sm:$0x7f]
        %v8087 = vld [vmem:[%s337 + $0x90] sm:$0x80]
        %v8088 = vld [vmem:[%s337 + $0x98] sm:$0x80]
        %v8089 = vld [vmem:[%s337 + $0xa0] sm:$0x7f]
        %v8090 = vld [vmem:[%s337 + $0xa8] sm:$0x7f]
        %v8091 = vld [vmem:[%s337 + $0xc0] sm:$0x80]
        %v8092 = vld [vmem:[%s337 + $0xc8] sm:$0x80]
        %v8093 = vld [vmem:[%s337 + $0xd0] sm:$0x7f]
        %v8094 = vld [vmem:[%s337 + $0xd8] sm:$0x7f]
        %v8095 = vld [vmem:[%s337 + $0xf0] sm:$0x80]
        %v8096 = vld [vmem:[%s337 + $0xf8] sm:$0x80]
        %v8097 = vld [vmem:[%s337 + $0x100] sm:$0x7f]
        %v8098 = vld [vmem:[%s337 + $0x108] sm:$0x7f]
        %v8099 = vld [vmem:[%s337 + $0x120] sm:$0x80]
        %v8100 = vld [vmem:[%s337 + $0x128] sm:$0x80]
        %v8101 = vld [vmem:[%s337 + $0x130] sm:$0x7f]
        %v8102 = vld [vmem:[%s337 + $0x138] sm:$0x7f]
        %v8103 = vld [vmem:[%s337 + $0x150] sm:$0x80]
        %v8104 = vld [vmem:[%s337 + $0x158] sm:$0x80]
        %v8105 = vld [vmem:[%s337 + $0x160] sm:$0x7f]
        %v8106 = vld [vmem:[%s337 + $0x168] sm:$0x7f]
        %v8107 = vperm.slane %v7905, 3
        %v8108 = vperm.slane %v7906, 3
        %v8109 = vmul.f32 %v8075, %v8107
        %v8110 = vmul.f32 %v8076, %v8108
        %v8111 = vmul.f32 %v8077, %v8107
        %v8112 = vmul.f32 %v8078, %v8108
        %v8113 = vmul.f32 %v8079, %v8107
        %v8114 = vmul.f32 %v8080, %v8108
        %v8115 = vmul.f32 %v8081, %v8107
        %v8116 = vmul.f32 %v8082, %v8108
        %v8117 = vmul.f32 %v8083, %v8107
        %v8118 = vmul.f32 %v8084, %v8108
        %v8119 = vmul.f32 %v8085, %v8107
        %v8120 = vmul.f32 %v8086, %v8108
        %v8121 = vmul.f32 %v8087, %v8107
        %v8122 = vmul.f32 %v8088, %v8108
        %v8123 = vmul.f32 %v8089, %v8107
        %v8124 = vmul.f32 %v8090, %v8108
        %v8125 = vmul.f32 %v8091, %v8107
        %v8126 = vmul.f32 %v8092, %v8108
        %v8127 = vmul.f32 %v8093, %v8107
        %v8128 = vmul.f32 %v8094, %v8108
        %v8129 = vmul.f32 %v8095, %v8107
        %v8130 = vmul.f32 %v8096, %v8108
        %v8131 = vmul.f32 %v8097, %v8107
        %v8132 = vmul.f32 %v8098, %v8108
        %v8133 = vmul.f32 %v8099, %v8107
        %v8134 = vmul.f32 %v8100, %v8108
        %v8135 = vmul.f32 %v8101, %v8107
        %v8136 = vmul.f32 %v8102, %v8108
        %v8137 = vmul.f32 %v8103, %v8107
        %v8138 = vmul.f32 %v8104, %v8108
        %v8139 = vmul.f32 %v8105, %v8107
        %v8140 = vmul.f32 %v8106, %v8108
        %v8141 = vld [vmem:[%s337 + $0x10] sm:$0xff]
        %v8142 = vld [vmem:[%s337 + $0x18] sm:$0xff]
        %v8143 = vld [vmem:[%s337 + $0x40] sm:$0xff]
        %v8144 = vld [vmem:[%s337 + $0x48] sm:$0xff]
        %v8145 = vld [vmem:[%s337 + $0x70] sm:$0xff]
        %v8146 = vld [vmem:[%s337 + $0x78] sm:$0xff]
        %v8147 = vld [vmem:[%s337 + $0xa0] sm:$0xff]
        %v8148 = vld [vmem:[%s337 + $0xa8] sm:$0xff]
        %v8149 = vld [vmem:[%s337 + $0xd0] sm:$0xff]
        %v8150 = vld [vmem:[%s337 + $0xd8] sm:$0xff]
        %v8151 = vld [vmem:[%s337 + $0x100] sm:$0xff]
        %v8152 = vld [vmem:[%s337 + $0x108] sm:$0xff]
        %v8153 = vld [vmem:[%s337 + $0x130] sm:$0xff]
        %v8154 = vld [vmem:[%s337 + $0x138] sm:$0xff]
        %v8155 = vld [vmem:[%s337 + $0x160] sm:$0xff]
        %v8156 = vld [vmem:[%s337 + $0x168] sm:$0xff]
        %v8157 = vperm.slane %v7905, 4
        %v8158 = vperm.slane %v7906, 4
        %v8159 = vmul.f32 %v8141, %v8157
        %v8160 = vmul.f32 %v8142, %v8158
        %v8161 = vmul.f32 %v8143, %v8157
        %v8162 = vmul.f32 %v8144, %v8158
        %v8163 = vmul.f32 %v8145, %v8157
        %v8164 = vmul.f32 %v8146, %v8158
        %v8165 = vmul.f32 %v8147, %v8157
        %v8166 = vmul.f32 %v8148, %v8158
        %v8167 = vmul.f32 %v8149, %v8157
        %v8168 = vmul.f32 %v8150, %v8158
        %v8169 = vmul.f32 %v8151, %v8157
        %v8170 = vmul.f32 %v8152, %v8158
        %v8171 = vmul.f32 %v8153, %v8157
        %v8172 = vmul.f32 %v8154, %v8158
        %v8173 = vmul.f32 %v8155, %v8157
        %v8174 = vmul.f32 %v8156, %v8158
        %v8175 = vld [vmem:[%s337 + $0x10] sm:$0xfe]
        %v8176 = vld [vmem:[%s337 + $0x18] sm:$0xfe]
        %v8177 = vld [vmem:[%s337 + $0x20] sm:$0x1]
        %v8178 = vld [vmem:[%s337 + $0x28] sm:$0x1]
        %v8179 = vld [vmem:[%s337 + $0x40] sm:$0xfe]
        %v8180 = vld [vmem:[%s337 + $0x48] sm:$0xfe]
        %v8181 = vld [vmem:[%s337 + $0x50] sm:$0x1]
        %v8182 = vld [vmem:[%s337 + $0x58] sm:$0x1]
        %v8183 = vld [vmem:[%s337 + $0x70] sm:$0xfe]
        %v8184 = vld [vmem:[%s337 + $0x78] sm:$0xfe]
        %v8185 = vld [vmem:[%s337 + $0x80] sm:$0x1]
        %v8186 = vld [vmem:[%s337 + $0x88] sm:$0x1]
        %v8187 = vld [vmem:[%s337 + $0xa0] sm:$0xfe]
        %v8188 = vld [vmem:[%s337 + $0xa8] sm:$0xfe]
        %v8189 = vld [vmem:[%s337 + $0xb0] sm:$0x1]
        %v8190 = vld [vmem:[%s337 + $0xb8] sm:$0x1]
        %v8191 = vld [vmem:[%s337 + $0xd0] sm:$0xfe]
        %v8192 = vld [vmem:[%s337 + $0xd8] sm:$0xfe]
        %v8193 = vld [vmem:[%s337 + $0xe0] sm:$0x1]
        %v8194 = vld [vmem:[%s337 + $0xe8] sm:$0x1]
        %v8195 = vld [vmem:[%s337 + $0x100] sm:$0xfe]
        %v8196 = vld [vmem:[%s337 + $0x108] sm:$0xfe]
        %v8197 = vld [vmem:[%s337 + $0x110] sm:$0x1]
        %v8198 = vld [vmem:[%s337 + $0x118] sm:$0x1]
        %v8199 = vld [vmem:[%s337 + $0x130] sm:$0xfe]
        %v8200 = vld [vmem:[%s337 + $0x138] sm:$0xfe]
        %v8201 = vld [vmem:[%s337 + $0x140] sm:$0x1]
        %v8202 = vld [vmem:[%s337 + $0x148] sm:$0x1]
        %v8203 = vld [vmem:[%s337 + $0x160] sm:$0xfe]
        %v8204 = vld [vmem:[%s337 + $0x168] sm:$0xfe]
        %v8205 = vld [vmem:[%s337 + $0x170] sm:$0x1]
        %v8206 = vld [vmem:[%s337 + $0x178] sm:$0x1]
        %v8207 = vperm.slane %v7905, 5
        %v8208 = vperm.slane %v7906, 5
        %v8209 = vmul.f32 %v8175, %v8207
        %v8210 = vmul.f32 %v8176, %v8208
        %v8211 = vmul.f32 %v8177, %v8207
        %v8212 = vmul.f32 %v8178, %v8208
        %v8213 = vmul.f32 %v8179, %v8207
        %v8214 = vmul.f32 %v8180, %v8208
        %v8215 = vmul.f32 %v8181, %v8207
        %v8216 = vmul.f32 %v8182, %v8208
        %v8217 = vmul.f32 %v8183, %v8207
        %v8218 = vmul.f32 %v8184, %v8208
        %v8219 = vmul.f32 %v8185, %v8207
        %v8220 = vmul.f32 %v8186, %v8208
        %v8221 = vmul.f32 %v8187, %v8207
        %v8222 = vmul.f32 %v8188, %v8208
        %v8223 = vmul.f32 %v8189, %v8207
        %v8224 = vmul.f32 %v8190, %v8208
        %v8225 = vmul.f32 %v8191, %v8207
        %v8226 = vmul.f32 %v8192, %v8208
        %v8227 = vmul.f32 %v8193, %v8207
        %v8228 = vmul.f32 %v8194, %v8208
        %v8229 = vmul.f32 %v8195, %v8207
        %v8230 = vmul.f32 %v8196, %v8208
        %v8231 = vmul.f32 %v8197, %v8207
        %v8232 = vmul.f32 %v8198, %v8208
        %v8233 = vmul.f32 %v8199, %v8207
        %v8234 = vmul.f32 %v8200, %v8208
        %v8235 = vmul.f32 %v8201, %v8207
        %v8236 = vmul.f32 %v8202, %v8208
        %v8237 = vmul.f32 %v8203, %v8207
        %v8238 = vmul.f32 %v8204, %v8208
        %v8239 = vmul.f32 %v8205, %v8207
        %v8240 = vmul.f32 %v8206, %v8208
        %v8241 = vld [vmem:[%s690] sm:$0x80]
        %v8242 = vld [vmem:[%s690 + $0x8] sm:$0x80]
        %v8243 = vld [vmem:[%s690 + $0x10] sm:$0x7f]
        %v8244 = vld [vmem:[%s690 + $0x18] sm:$0x7f]
        %v8245 = vld [vmem:[%s690 + $0x30] sm:$0x80]
        %v8246 = vld [vmem:[%s690 + $0x38] sm:$0x80]
        %v8247 = vld [vmem:[%s690 + $0x40] sm:$0x7f]
        %v8248 = vld [vmem:[%s690 + $0x48] sm:$0x7f]
        %v8249 = vld [vmem:[%s690 + $0x60] sm:$0x80]
        %v8250 = vld [vmem:[%s690 + $0x68] sm:$0x80]
        %v8251 = vld [vmem:[%s690 + $0x70] sm:$0x7f]
        %v8252 = vld [vmem:[%s690 + $0x78] sm:$0x7f]
        %v8253 = vld [vmem:[%s690 + $0x90] sm:$0x80]
        %v8254 = vld [vmem:[%s690 + $0x98] sm:$0x80]
        %v8255 = vld [vmem:[%s690 + $0xa0] sm:$0x7f]
        %v8256 = vld [vmem:[%s690 + $0xa8] sm:$0x7f]
        %v8257 = vld [vmem:[%s690 + $0xc0] sm:$0x80]
        %v8258 = vld [vmem:[%s690 + $0xc8] sm:$0x80]
        %v8259 = vld [vmem:[%s690 + $0xd0] sm:$0x7f]
        %v8260 = vld [vmem:[%s690 + $0xd8] sm:$0x7f]
        %v8261 = vld [vmem:[%s690 + $0xf0] sm:$0x80]
        %v8262 = vld [vmem:[%s690 + $0xf8] sm:$0x80]
        %v8263 = vld [vmem:[%s690 + $0x100] sm:$0x7f]
        %v8264 = vld [vmem:[%s690 + $0x108] sm:$0x7f]
        %v8265 = vld [vmem:[%s690 + $0x120] sm:$0x80]
        %v8266 = vld [vmem:[%s690 + $0x128] sm:$0x80]
        %v8267 = vld [vmem:[%s690 + $0x130] sm:$0x7f]
        %v8268 = vld [vmem:[%s690 + $0x138] sm:$0x7f]
        %v8269 = vld [vmem:[%s690 + $0x150] sm:$0x80]
        %v8270 = vld [vmem:[%s690 + $0x158] sm:$0x80]
        %v8271 = vld [vmem:[%s690 + $0x160] sm:$0x7f]
        %v8272 = vld [vmem:[%s690 + $0x168] sm:$0x7f]
        %v8273 = vperm.slane %v7905, 6
        %v8274 = vperm.slane %v7906, 6
        %v8275 = vmul.f32 %v8241, %v8273
        %v8276 = vmul.f32 %v8242, %v8274
        %v8277 = vmul.f32 %v8243, %v8273
        %v8278 = vmul.f32 %v8244, %v8274
        %v8279 = vmul.f32 %v8245, %v8273
        %v8280 = vmul.f32 %v8246, %v8274
        %v8281 = vmul.f32 %v8247, %v8273
        %v8282 = vmul.f32 %v8248, %v8274
        %v8283 = vmul.f32 %v8249, %v8273
        %v8284 = vmul.f32 %v8250, %v8274
        %v8285 = vmul.f32 %v8251, %v8273
        %v8286 = vmul.f32 %v8252, %v8274
        %v8287 = vmul.f32 %v8253, %v8273
        %v8288 = vmul.f32 %v8254, %v8274
        %v8289 = vmul.f32 %v8255, %v8273
        %v8290 = vmul.f32 %v8256, %v8274
        %v8291 = vmul.f32 %v8257, %v8273
        %v8292 = vmul.f32 %v8258, %v8274
        %v8293 = vmul.f32 %v8259, %v8273
        %v8294 = vmul.f32 %v8260, %v8274
        %v8295 = vmul.f32 %v8261, %v8273
        %v8296 = vmul.f32 %v8262, %v8274
        %v8297 = vmul.f32 %v8263, %v8273
        %v8298 = vmul.f32 %v8264, %v8274
        %v8299 = vmul.f32 %v8265, %v8273
        %v8300 = vmul.f32 %v8266, %v8274
        %v8301 = vmul.f32 %v8267, %v8273
        %v8302 = vmul.f32 %v8268, %v8274
        %v8303 = vmul.f32 %v8269, %v8273
        %v8304 = vmul.f32 %v8270, %v8274
        %v8305 = vmul.f32 %v8271, %v8273
        %v8306 = vmul.f32 %v8272, %v8274
        %v8307 = vld [vmem:[%s690 + $0x10] sm:$0xff]
        %v8308 = vld [vmem:[%s690 + $0x18] sm:$0xff]
        %v8309 = vld [vmem:[%s690 + $0x40] sm:$0xff]
        %v8310 = vld [vmem:[%s690 + $0x48] sm:$0xff]
        %v8311 = vld [vmem:[%s690 + $0x70] sm:$0xff]
        %v8312 = vld [vmem:[%s690 + $0x78] sm:$0xff]
        %v8313 = vld [vmem:[%s690 + $0xa0] sm:$0xff]
        %v8314 = vld [vmem:[%s690 + $0xa8] sm:$0xff]
        %v8315 = vld [vmem:[%s690 + $0xd0] sm:$0xff]
        %v8316 = vld [vmem:[%s690 + $0xd8] sm:$0xff]
        %v8317 = vld [vmem:[%s690 + $0x100] sm:$0xff]
        %v8318 = vld [vmem:[%s690 + $0x108] sm:$0xff]
        %v8319 = vld [vmem:[%s690 + $0x130] sm:$0xff]
        %v8320 = vld [vmem:[%s690 + $0x138] sm:$0xff]
        %v8321 = vld [vmem:[%s690 + $0x160] sm:$0xff]
        %v8322 = vld [vmem:[%s690 + $0x168] sm:$0xff]
        %v8323 = vperm.slane %v7905, 7
        %v8324 = vperm.slane %v7906, 7
        %v8325 = vmul.f32 %v8307, %v8323
        %v8326 = vmul.f32 %v8308, %v8324
        %v8327 = vmul.f32 %v8309, %v8323
        %v8328 = vmul.f32 %v8310, %v8324
        %v8329 = vmul.f32 %v8311, %v8323
        %v8330 = vmul.f32 %v8312, %v8324
        %v8331 = vmul.f32 %v8313, %v8323
        %v8332 = vmul.f32 %v8314, %v8324
        %v8333 = vmul.f32 %v8315, %v8323
        %v8334 = vmul.f32 %v8316, %v8324
        %v8335 = vmul.f32 %v8317, %v8323
        %v8336 = vmul.f32 %v8318, %v8324
        %v8337 = vmul.f32 %v8319, %v8323
        %v8338 = vmul.f32 %v8320, %v8324
        %v8339 = vmul.f32 %v8321, %v8323
        %v8340 = vmul.f32 %v8322, %v8324
        %v8341 = vld [vmem:[%s690 + $0x10] sm:$0xfe]
        %v8342 = vld [vmem:[%s690 + $0x18] sm:$0xfe]
        %v8343 = vld [vmem:[%s690 + $0x20] sm:$0x1]
        %v8344 = vld [vmem:[%s690 + $0x28] sm:$0x1]
        %v8345 = vld [vmem:[%s690 + $0x40] sm:$0xfe]
        %v8346 = vld [vmem:[%s690 + $0x48] sm:$0xfe]
        %v8347 = vld [vmem:[%s690 + $0x50] sm:$0x1]
        %v8348 = vld [vmem:[%s690 + $0x58] sm:$0x1]
        %v8349 = vld [vmem:[%s690 + $0x70] sm:$0xfe]
        %v8350 = vld [vmem:[%s690 + $0x78] sm:$0xfe]
        %v8351 = vld [vmem:[%s690 + $0x80] sm:$0x1]
        %v8352 = vld [vmem:[%s690 + $0x88] sm:$0x1]
        %v8353 = vld [vmem:[%s690 + $0xa0] sm:$0xfe]
        %v8354 = vld [vmem:[%s690 + $0xa8] sm:$0xfe]
        %v8355 = vld [vmem:[%s690 + $0xb0] sm:$0x1]
        %v8356 = vld [vmem:[%s690 + $0xb8] sm:$0x1]
        %v8357 = vld [vmem:[%s690 + $0xd0] sm:$0xfe]
        %v8358 = vld [vmem:[%s690 + $0xd8] sm:$0xfe]
        %v8359 = vld [vmem:[%s690 + $0xe0] sm:$0x1]
        %v8360 = vld [vmem:[%s690 + $0xe8] sm:$0x1]
        %v8361 = vld [vmem:[%s690 + $0x100] sm:$0xfe]
        %v8362 = vld [vmem:[%s690 + $0x108] sm:$0xfe]
        %v8363 = vld [vmem:[%s690 + $0x110] sm:$0x1]
        %v8364 = vld [vmem:[%s690 + $0x118] sm:$0x1]
        %v8365 = vld [vmem:[%s690 + $0x130] sm:$0xfe]
        %v8366 = vld [vmem:[%s690 + $0x138] sm:$0xfe]
        %v8367 = vld [vmem:[%s690 + $0x140] sm:$0x1]
        %v8368 = vld [vmem:[%s690 + $0x148] sm:$0x1]
        %v8369 = vld [vmem:[%s690 + $0x160] sm:$0xfe]
        %v8370 = vld [vmem:[%s690 + $0x168] sm:$0xfe]
        %v8371 = vld [vmem:[%s690 + $0x170] sm:$0x1]
        %v8372 = vld [vmem:[%s690 + $0x178] sm:$0x1]
        %v8373 = vperm.slane %v7907, 0
        %v8374 = vperm.slane %v7908, 0
        %v8375 = vmul.f32 %v8341, %v8373
        %v8376 = vmul.f32 %v8342, %v8374
        %v8377 = vmul.f32 %v8343, %v8373
        %v8378 = vmul.f32 %v8344, %v8374
        %v8379 = vmul.f32 %v8345, %v8373
        %v8380 = vmul.f32 %v8346, %v8374
        %v8381 = vmul.f32 %v8347, %v8373
        %v8382 = vmul.f32 %v8348, %v8374
        %v8383 = vmul.f32 %v8349, %v8373
        %v8384 = vmul.f32 %v8350, %v8374
        %v8385 = vmul.f32 %v8351, %v8373
        %v8386 = vmul.f32 %v8352, %v8374
        %v8387 = vmul.f32 %v8353, %v8373
        %v8388 = vmul.f32 %v8354, %v8374
        %v8389 = vmul.f32 %v8355, %v8373
        %v8390 = vmul.f32 %v8356, %v8374
        %v8391 = vmul.f32 %v8357, %v8373
        %v8392 = vmul.f32 %v8358, %v8374
        %v8393 = vmul.f32 %v8359, %v8373
        %v8394 = vmul.f32 %v8360, %v8374
        %v8395 = vmul.f32 %v8361, %v8373
        %v8396 = vmul.f32 %v8362, %v8374
        %v8397 = vmul.f32 %v8363, %v8373
        %v8398 = vmul.f32 %v8364, %v8374
        %v8399 = vmul.f32 %v8365, %v8373
        %v8400 = vmul.f32 %v8366, %v8374
        %v8401 = vmul.f32 %v8367, %v8373
        %v8402 = vmul.f32 %v8368, %v8374
        %v8403 = vmul.f32 %v8369, %v8373
        %v8404 = vmul.f32 %v8370, %v8374
        %v8405 = vmul.f32 %v8371, %v8373
        %v8406 = vmul.f32 %v8372, %v8374
        %v8423 = vrot.slane %v7993, 1
        %v8424 = vrot.slane %v7994, 1
        %v8425 = vrot.slane %v7995, 1
        %v8426 = vrot.slane %v7996, 1
        %v8427 = vrot.slane %v7997, 1
        %v8428 = vrot.slane %v7998, 1
        %v8429 = vrot.slane %v7999, 1
        %v8430 = vrot.slane %v8000, 1
        %v8431 = vrot.slane %v8001, 1
        %v8432 = vrot.slane %v8002, 1
        %v8433 = vrot.slane %v8003, 1
        %v8434 = vrot.slane %v8004, 1
        %v8435 = vrot.slane %v8005, 1
        %v8436 = vrot.slane %v8006, 1
        %v8437 = vrot.slane %v8007, 1
        %v8438 = vrot.slane %v8008, 1
        %v8455 = vadd.f32 %v7943, %v8423
        %v8456 = vadd.f32 %v7944, %v8424
        %v8457 = vadd.f32 %v7945, %v8423
        %v8458 = vadd.f32 %v7946, %v8424
        %v8459 = vadd.f32 %v7947, %v8425
        %v8460 = vadd.f32 %v7948, %v8426
        %v8461 = vadd.f32 %v7949, %v8425
        %v8462 = vadd.f32 %v7950, %v8426
        %v8463 = vadd.f32 %v7951, %v8427
        %v8464 = vadd.f32 %v7952, %v8428
        %v8465 = vadd.f32 %v7953, %v8427
        %v8466 = vadd.f32 %v7954, %v8428
        %v8467 = vadd.f32 %v7955, %v8429
        %v8468 = vadd.f32 %v7956, %v8430
        %v8469 = vadd.f32 %v7957, %v8429
        %v8470 = vadd.f32 %v7958, %v8430
        %v8471 = vadd.f32 %v7959, %v8431
        %v8472 = vadd.f32 %v7960, %v8432
        %v8473 = vadd.f32 %v7961, %v8431
        %v8474 = vadd.f32 %v7962, %v8432
        %v8475 = vadd.f32 %v7963, %v8433
        %v8476 = vadd.f32 %v7964, %v8434
        %v8477 = vadd.f32 %v7965, %v8433
        %v8478 = vadd.f32 %v7966, %v8434
        %v8479 = vadd.f32 %v7967, %v8435
        %v8480 = vadd.f32 %v7968, %v8436
        %v8481 = vadd.f32 %v7969, %v8435
        %v8482 = vadd.f32 %v7970, %v8436
        %v8483 = vadd.f32 %v7971, %v8437
        %v8484 = vadd.f32 %v7972, %v8438
        %v8485 = vadd.f32 %v7973, %v8437
        %v8486 = vadd.f32 %v7974, %v8438
        %v8519 = vrot.slane %v8109, 6
        %v8520 = vrot.slane %v8111, 6
        %v8521 = vsel %vm969, %v8519, %v8520
        %v8522 = vrot.slane %v8110, 6
        %v8523 = vrot.slane %v8112, 6
        %v8524 = vsel %vm969, %v8522, %v8523
        %v8525 = vrot.slane %v8113, 6
        %v8526 = vrot.slane %v8115, 6
        %v8527 = vsel %vm969, %v8525, %v8526
        %v8528 = vrot.slane %v8114, 6
        %v8529 = vrot.slane %v8116, 6
        %v8530 = vsel %vm969, %v8528, %v8529
        %v8531 = vrot.slane %v8117, 6
        %v8532 = vrot.slane %v8119, 6
        %v8533 = vsel %vm969, %v8531, %v8532
        %v8534 = vrot.slane %v8118, 6
        %v8535 = vrot.slane %v8120, 6
        %v8536 = vsel %vm969, %v8534, %v8535
        %v8537 = vrot.slane %v8121, 6
        %v8538 = vrot.slane %v8123, 6
        %v8539 = vsel %vm969, %v8537, %v8538
        %v8540 = vrot.slane %v8122, 6
        %v8541 = vrot.slane %v8124, 6
        %v8542 = vsel %vm969, %v8540, %v8541
        %v8543 = vrot.slane %v8125, 6
        %v8544 = vrot.slane %v8127, 6
        %v8545 = vsel %vm969, %v8543, %v8544
        %v8546 = vrot.slane %v8126, 6
        %v8547 = vrot.slane %v8128, 6
        %v8548 = vsel %vm969, %v8546, %v8547
        %v8549 = vrot.slane %v8129, 6
        %v8550 = vrot.slane %v8131, 6
        %v8551 = vsel %vm969, %v8549, %v8550
        %v8552 = vrot.slane %v8130, 6
        %v8553 = vrot.slane %v8132, 6
        %v8554 = vsel %vm969, %v8552, %v8553
        %v8555 = vrot.slane %v8133, 6
        %v8556 = vrot.slane %v8135, 6
        %v8557 = vsel %vm969, %v8555, %v8556
        %v8558 = vrot.slane %v8134, 6
        %v8559 = vrot.slane %v8136, 6
        %v8560 = vsel %vm969, %v8558, %v8559
        %v8561 = vrot.slane %v8137, 6
        %v8562 = vrot.slane %v8139, 6
        %v8563 = vsel %vm969, %v8561, %v8562
        %v8564 = vrot.slane %v8138, 6
        %v8565 = vrot.slane %v8140, 6
        %v8566 = vsel %vm969, %v8564, %v8565
        %v8599 = vadd.f32 %v8043, %v8521
        %v8600 = vadd.f32 %v8044, %v8524
        %v8601 = vadd.f32 %v8045, %v8520
        %v8602 = vadd.f32 %v8046, %v8523
        %v8603 = vadd.f32 %v8047, %v8527
        %v8604 = vadd.f32 %v8048, %v8530
        %v8605 = vadd.f32 %v8049, %v8526
        %v8606 = vadd.f32 %v8050, %v8529
        %v8607 = vadd.f32 %v8051, %v8533
        %v8608 = vadd.f32 %v8052, %v8536
        %v8609 = vadd.f32 %v8053, %v8532
        %v8610 = vadd.f32 %v8054, %v8535
        %v8611 = vadd.f32 %v8055, %v8539
        %v8612 = vadd.f32 %v8056, %v8542
        %v8613 = vadd.f32 %v8057, %v8538
        %v8614 = vadd.f32 %v8058, %v8541
        %v8615 = vadd.f32 %v8059, %v8545
        %v8616 = vadd.f32 %v8060, %v8548
        %v8617 = vadd.f32 %v8061, %v8544
        %v8618 = vadd.f32 %v8062, %v8547
        %v8619 = vadd.f32 %v8063, %v8551
        %v8620 = vadd.f32 %v8064, %v8554
        %v8621 = vadd.f32 %v8065, %v8550
        %v8622 = vadd.f32 %v8066, %v8553
        %v8623 = vadd.f32 %v8067, %v8557
        %v8624 = vadd.f32 %v8068, %v8560
        %v8625 = vadd.f32 %v8069, %v8556
        %v8626 = vadd.f32 %v8070, %v8559
        %v8627 = vadd.f32 %v8071, %v8563
        %v8628 = vadd.f32 %v8072, %v8566
        %v8629 = vadd.f32 %v8073, %v8562
        %v8630 = vadd.f32 %v8074, %v8565
        %v8663 = vrot.slane %v8209, 1
        %v8664 = vrot.slane %v8211, 1
        %v8665 = vsel %vm1114, %v8663, %v8664
        %v8666 = vrot.slane %v8210, 1
        %v8667 = vrot.slane %v8212, 1
        %v8668 = vsel %vm1114, %v8666, %v8667
        %v8669 = vrot.slane %v8213, 1
        %v8670 = vrot.slane %v8215, 1
        %v8671 = vsel %vm1114, %v8669, %v8670
        %v8672 = vrot.slane %v8214, 1
        %v8673 = vrot.slane %v8216, 1
        %v8674 = vsel %vm1114, %v8672, %v8673
        %v8675 = vrot.slane %v8217, 1
        %v8676 = vrot.slane %v8219, 1
        %v8677 = vsel %vm1114, %v8675, %v8676
        %v8678 = vrot.slane %v8218, 1
        %v8679 = vrot.slane %v8220, 1
        %v8680 = vsel %vm1114, %v8678, %v8679
        %v8681 = vrot.slane %v8221, 1
        %v8682 = vrot.slane %v8223, 1
        %v8683 = vsel %vm1114, %v8681, %v8682
        %v8684 = vrot.slane %v8222, 1
        %v8685 = vrot.slane %v8224, 1
        %v8686 = vsel %vm1114, %v8684, %v8685
        %v8687 = vrot.slane %v8225, 1
        %v8688 = vrot.slane %v8227, 1
        %v8689 = vsel %vm1114, %v8687, %v8688
        %v8690 = vrot.slane %v8226, 1
        %v8691 = vrot.slane %v8228, 1
        %v8692 = vsel %vm1114, %v8690, %v8691
        %v8693 = vrot.slane %v8229, 1
        %v8694 = vrot.slane %v8231, 1
        %v8695 = vsel %vm1114, %v8693, %v8694
        %v8696 = vrot.slane %v8230, 1
        %v8697 = vrot.slane %v8232, 1
        %v8698 = vsel %vm1114, %v8696, %v8697
        %v8699 = vrot.slane %v8233, 1
        %v8700 = vrot.slane %v8235, 1
        %v8701 = vsel %vm1114, %v8699, %v8700
        %v8702 = vrot.slane %v8234, 1
        %v8703 = vrot.slane %v8236, 1
        %v8704 = vsel %vm1114, %v8702, %v8703
        %v8705 = vrot.slane %v8237, 1
        %v8706 = vrot.slane %v8239, 1
        %v8707 = vsel %vm1114, %v8705, %v8706
        %v8708 = vrot.slane %v8238, 1
        %v8709 = vrot.slane %v8240, 1
        %v8710 = vsel %vm1114, %v8708, %v8709
        %v8727 = vadd.f32 %v8159, %v8665
        %v8728 = vadd.f32 %v8160, %v8668
        %v8729 = vadd.f32 %v8161, %v8671
        %v8730 = vadd.f32 %v8162, %v8674
        %v8731 = vadd.f32 %v8163, %v8677
        %v8732 = vadd.f32 %v8164, %v8680
        %v8733 = vadd.f32 %v8165, %v8683
        %v8734 = vadd.f32 %v8166, %v8686
        %v8735 = vadd.f32 %v8167, %v8689
        %v8736 = vadd.f32 %v8168, %v8692
        %v8737 = vadd.f32 %v8169, %v8695
        %v8738 = vadd.f32 %v8170, %v8698
        %v8739 = vadd.f32 %v8171, %v8701
        %v8740 = vadd.f32 %v8172, %v8704
        %v8741 = vadd.f32 %v8173, %v8707
        %v8742 = vadd.f32 %v8174, %v8710
        %v8759 = vrot.slane %v8325, 1
        %v8760 = vrot.slane %v8326, 1
        %v8761 = vrot.slane %v8327, 1
        %v8762 = vrot.slane %v8328, 1
        %v8763 = vrot.slane %v8329, 1
        %v8764 = vrot.slane %v8330, 1
        %v8765 = vrot.slane %v8331, 1
        %v8766 = vrot.slane %v8332, 1
        %v8767 = vrot.slane %v8333, 1
        %v8768 = vrot.slane %v8334, 1
        %v8769 = vrot.slane %v8335, 1
        %v8770 = vrot.slane %v8336, 1
        %v8771 = vrot.slane %v8337, 1
        %v8772 = vrot.slane %v8338, 1
        %v8773 = vrot.slane %v8339, 1
        %v8774 = vrot.slane %v8340, 1
        %v8791 = vadd.f32 %v8275, %v8759
        %v8792 = vadd.f32 %v8276, %v8760
        %v8793 = vadd.f32 %v8277, %v8759
        %v8794 = vadd.f32 %v8278, %v8760
        %v8795 = vadd.f32 %v8279, %v8761
        %v8796 = vadd.f32 %v8280, %v8762
        %v8797 = vadd.f32 %v8281, %v8761
        %v8798 = vadd.f32 %v8282, %v8762
        %v8799 = vadd.f32 %v8283, %v8763
        %v8800 = vadd.f32 %v8284, %v8764
        %v8801 = vadd.f32 %v8285, %v8763
        %v8802 = vadd.f32 %v8286, %v8764
        %v8803 = vadd.f32 %v8287, %v8765
        %v8804 = vadd.f32 %v8288, %v8766
        %v8805 = vadd.f32 %v8289, %v8765
        %v8806 = vadd.f32 %v8290, %v8766
        %v8807 = vadd.f32 %v8291, %v8767
        %v8808 = vadd.f32 %v8292, %v8768
        %v8809 = vadd.f32 %v8293, %v8767
        %v8810 = vadd.f32 %v8294, %v8768
        %v8811 = vadd.f32 %v8295, %v8769
        %v8812 = vadd.f32 %v8296, %v8770
        %v8813 = vadd.f32 %v8297, %v8769
        %v8814 = vadd.f32 %v8298, %v8770
        %v8815 = vadd.f32 %v8299, %v8771
        %v8816 = vadd.f32 %v8300, %v8772
        %v8817 = vadd.f32 %v8301, %v8771
        %v8818 = vadd.f32 %v8302, %v8772
        %v8819 = vadd.f32 %v8303, %v8773
        %v8820 = vadd.f32 %v8304, %v8774
        %v8821 = vadd.f32 %v8305, %v8773
        %v8822 = vadd.f32 %v8306, %v8774
        %v8855 = vrot.slane %v8599, 2
        %v8856 = vrot.slane %v8600, 2
        %v8857 = vrot.slane %v8601, 2
        %v8858 = vsel %vm1307, %v8855, %v8857
        %v8859 = vrot.slane %v8602, 2
        %v8860 = vsel %vm1307, %v8856, %v8859
        %v8861 = vrot.slane %v8603, 2
        %v8862 = vrot.slane %v8604, 2
        %v8863 = vrot.slane %v8605, 2
        %v8864 = vsel %vm1307, %v8861, %v8863
        %v8865 = vrot.slane %v8606, 2
        %v8866 = vsel %vm1307, %v8862, %v8865
        %v8867 = vrot.slane %v8607, 2
        %v8868 = vrot.slane %v8608, 2
        %v8869 = vrot.slane %v8609, 2
        %v8870 = vsel %vm1307, %v8867, %v8869
        %v8871 = vrot.slane %v8610, 2
        %v8872 = vsel %vm1307, %v8868, %v8871
        %v8873 = vrot.slane %v8611, 2
        %v8874 = vrot.slane %v8612, 2
        %v8875 = vrot.slane %v8613, 2
        %v8876 = vsel %vm1307, %v8873, %v8875
        %v8877 = vrot.slane %v8614, 2
        %v8878 = vsel %vm1307, %v8874, %v8877
        %v8879 = vrot.slane %v8615, 2
        %v8880 = vrot.slane %v8616, 2
        %v8881 = vrot.slane %v8617, 2
        %v8882 = vsel %vm1307, %v8879, %v8881
        %v8883 = vrot.slane %v8618, 2
        %v8884 = vsel %vm1307, %v8880, %v8883
        %v8885 = vrot.slane %v8619, 2
        %v8886 = vrot.slane %v8620, 2
        %v8887 = vrot.slane %v8621, 2
        %v8888 = vsel %vm1307, %v8885, %v8887
        %v8889 = vrot.slane %v8622, 2
        %v8890 = vsel %vm1307, %v8886, %v8889
        %v8891 = vrot.slane %v8623, 2
        %v8892 = vrot.slane %v8624, 2
        %v8893 = vrot.slane %v8625, 2
        %v8894 = vsel %vm1307, %v8891, %v8893
        %v8895 = vrot.slane %v8626, 2
        %v8896 = vsel %vm1307, %v8892, %v8895
        %v8897 = vrot.slane %v8627, 2
        %v8898 = vrot.slane %v8628, 2
        %v8899 = vrot.slane %v8629, 2
        %v8900 = vsel %vm1307, %v8897, %v8899
        %v8901 = vrot.slane %v8630, 2
        %v8902 = vsel %vm1307, %v8898, %v8901
        %v8935 = vadd.f32 %v8455, %v8855
        %v8936 = vadd.f32 %v8456, %v8856
        %v8937 = vadd.f32 %v8457, %v8858
        %v8938 = vadd.f32 %v8458, %v8860
        %v8939 = vadd.f32 %v8459, %v8861
        %v8940 = vadd.f32 %v8460, %v8862
        %v8941 = vadd.f32 %v8461, %v8864
        %v8942 = vadd.f32 %v8462, %v8866
        %v8943 = vadd.f32 %v8463, %v8867
        %v8944 = vadd.f32 %v8464, %v8868
        %v8945 = vadd.f32 %v8465, %v8870
        %v8946 = vadd.f32 %v8466, %v8872
        %v8947 = vadd.f32 %v8467, %v8873
        %v8948 = vadd.f32 %v8468, %v8874
        %v8949 = vadd.f32 %v8469, %v8876
        %v8950 = vadd.f32 %v8470, %v8878
        %v8951 = vadd.f32 %v8471, %v8879
        %v8952 = vadd.f32 %v8472, %v8880
        %v8953 = vadd.f32 %v8473, %v8882
        %v8954 = vadd.f32 %v8474, %v8884
        %v8955 = vadd.f32 %v8475, %v8885
        %v8956 = vadd.f32 %v8476, %v8886
        %v8957 = vadd.f32 %v8477, %v8888
        %v8958 = vadd.f32 %v8478, %v8890
        %v8959 = vadd.f32 %v8479, %v8891
        %v8960 = vadd.f32 %v8480, %v8892
        %v8961 = vadd.f32 %v8481, %v8894
        %v8962 = vadd.f32 %v8482, %v8896
        %v8963 = vadd.f32 %v8483, %v8897
        %v8964 = vadd.f32 %v8484, %v8898
        %v8965 = vadd.f32 %v8485, %v8900
        %v8966 = vadd.f32 %v8486, %v8902
        %v8999 = vrot.slane %v8791, 7
        %v9000 = vrot.slane %v8793, 7
        %v9001 = vsel %vm1452, %v8999, %v9000
        %v9002 = vrot.slane %v8792, 7
        %v9003 = vrot.slane %v8794, 7
        %v9004 = vsel %vm1452, %v9002, %v9003
        %v9005 = vrot.slane %v8795, 7
        %v9006 = vrot.slane %v8797, 7
        %v9007 = vsel %vm1452, %v9005, %v9006
        %v9008 = vrot.slane %v8796, 7
        %v9009 = vrot.slane %v8798, 7
        %v9010 = vsel %vm1452, %v9008, %v9009
        %v9011 = vrot.slane %v8799, 7
        %v9012 = vrot.slane %v8801, 7
        %v9013 = vsel %vm1452, %v9011, %v9012
        %v9014 = vrot.slane %v8800, 7
        %v9015 = vrot.slane %v8802, 7
        %v9016 = vsel %vm1452, %v9014, %v9015
        %v9017 = vrot.slane %v8803, 7
        %v9018 = vrot.slane %v8805, 7
        %v9019 = vsel %vm1452, %v9017, %v9018
        %v9020 = vrot.slane %v8804, 7
        %v9021 = vrot.slane %v8806, 7
        %v9022 = vsel %vm1452, %v9020, %v9021
        %v9023 = vrot.slane %v8807, 7
        %v9024 = vrot.slane %v8809, 7
        %v9025 = vsel %vm1452, %v9023, %v9024
        %v9026 = vrot.slane %v8808, 7
        %v9027 = vrot.slane %v8810, 7
        %v9028 = vsel %vm1452, %v9026, %v9027
        %v9029 = vrot.slane %v8811, 7
        %v9030 = vrot.slane %v8813, 7
        %v9031 = vsel %vm1452, %v9029, %v9030
        %v9032 = vrot.slane %v8812, 7
        %v9033 = vrot.slane %v8814, 7
        %v9034 = vsel %vm1452, %v9032, %v9033
        %v9035 = vrot.slane %v8815, 7
        %v9036 = vrot.slane %v8817, 7
        %v9037 = vsel %vm1452, %v9035, %v9036
        %v9038 = vrot.slane %v8816, 7
        %v9039 = vrot.slane %v8818, 7
        %v9040 = vsel %vm1452, %v9038, %v9039
        %v9041 = vrot.slane %v8819, 7
        %v9042 = vrot.slane %v8821, 7
        %v9043 = vsel %vm1452, %v9041, %v9042
        %v9044 = vrot.slane %v8820, 7
        %v9045 = vrot.slane %v8822, 7
        %v9046 = vsel %vm1452, %v9044, %v9045
        %v9063 = vadd.f32 %v8727, %v9001
        %v9064 = vadd.f32 %v8728, %v9004
        %v9065 = vadd.f32 %v8729, %v9007
        %v9066 = vadd.f32 %v8730, %v9010
        %v9067 = vadd.f32 %v8731, %v9013
        %v9068 = vadd.f32 %v8732, %v9016
        %v9069 = vadd.f32 %v8733, %v9019
        %v9070 = vadd.f32 %v8734, %v9022
        %v9071 = vadd.f32 %v8735, %v9025
        %v9072 = vadd.f32 %v8736, %v9028
        %v9073 = vadd.f32 %v8737, %v9031
        %v9074 = vadd.f32 %v8738, %v9034
        %v9075 = vadd.f32 %v8739, %v9037
        %v9076 = vadd.f32 %v8740, %v9040
        %v9077 = vadd.f32 %v8741, %v9043
        %v9078 = vadd.f32 %v8742, %v9046
        %v9095 = vrot.slane %v9063, 1
        %v9096 = vrot.slane %v9064, 1
        %v9097 = vrot.slane %v9065, 1
        %v9098 = vrot.slane %v9066, 1
        %v9099 = vrot.slane %v9067, 1
        %v9100 = vrot.slane %v9068, 1
        %v9101 = vrot.slane %v9069, 1
        %v9102 = vrot.slane %v9070, 1
        %v9103 = vrot.slane %v9071, 1
        %v9104 = vrot.slane %v9072, 1
        %v9105 = vrot.slane %v9073, 1
        %v9106 = vrot.slane %v9074, 1
        %v9107 = vrot.slane %v9075, 1
        %v9108 = vrot.slane %v9076, 1
        %v9109 = vrot.slane %v9077, 1
        %v9110 = vrot.slane %v9078, 1
        %v9127 = vadd.f32 %v8935, %v9095
        %v9128 = vadd.f32 %v8936, %v9096
        %v9129 = vadd.f32 %v8937, %v9095
        %v9130 = vadd.f32 %v8938, %v9096
        %v9131 = vadd.f32 %v8939, %v9097
        %v9132 = vadd.f32 %v8940, %v9098
        %v9133 = vadd.f32 %v8941, %v9097
        %v9134 = vadd.f32 %v8942, %v9098
        %v9135 = vadd.f32 %v8943, %v9099
        %v9136 = vadd.f32 %v8944, %v9100
        %v9137 = vadd.f32 %v8945, %v9099
        %v9138 = vadd.f32 %v8946, %v9100
        %v9139 = vadd.f32 %v8947, %v9101
        %v9140 = vadd.f32 %v8948, %v9102
        %v9141 = vadd.f32 %v8949, %v9101
        %v9142 = vadd.f32 %v8950, %v9102
        %v9143 = vadd.f32 %v8951, %v9103
        %v9144 = vadd.f32 %v8952, %v9104
        %v9145 = vadd.f32 %v8953, %v9103
        %v9146 = vadd.f32 %v8954, %v9104
        %v9147 = vadd.f32 %v8955, %v9105
        %v9148 = vadd.f32 %v8956, %v9106
        %v9149 = vadd.f32 %v8957, %v9105
        %v9150 = vadd.f32 %v8958, %v9106
        %v9151 = vadd.f32 %v8959, %v9107
        %v9152 = vadd.f32 %v8960, %v9108
        %v9153 = vadd.f32 %v8961, %v9107
        %v9154 = vadd.f32 %v8962, %v9108
        %v9155 = vadd.f32 %v8963, %v9109
        %v9156 = vadd.f32 %v8964, %v9110
        %v9157 = vadd.f32 %v8965, %v9109
        %v9158 = vadd.f32 %v8966, %v9110
        %v9191 = vrot.slane %v8375, 2
        %v9192 = vrot.slane %v8376, 2
        %v9193 = vrot.slane %v8377, 2
        %v9194 = vsel %vm1307, %v9191, %v9193
        %v9195 = vrot.slane %v8378, 2
        %v9196 = vsel %vm1307, %v9192, %v9195
        %v9197 = vrot.slane %v8379, 2
        %v9198 = vrot.slane %v8380, 2
        %v9199 = vrot.slane %v8381, 2
        %v9200 = vsel %vm1307, %v9197, %v9199
        %v9201 = vrot.slane %v8382, 2
        %v9202 = vsel %vm1307, %v9198, %v9201
        %v9203 = vrot.slane %v8383, 2
        %v9204 = vrot.slane %v8384, 2
        %v9205 = vrot.slane %v8385, 2
        %v9206 = vsel %vm1307, %v9203, %v9205
        %v9207 = vrot.slane %v8386, 2
        %v9208 = vsel %vm1307, %v9204, %v9207
        %v9209 = vrot.slane %v8387, 2
        %v9210 = vrot.slane %v8388, 2
        %v9211 = vrot.slane %v8389, 2
        %v9212 = vsel %vm1307, %v9209, %v9211
        %v9213 = vrot.slane %v8390, 2
        %v9214 = vsel %vm1307, %v9210, %v9213
        %v9215 = vrot.slane %v8391, 2
        %v9216 = vrot.slane %v8392, 2
        %v9217 = vrot.slane %v8393, 2
        %v9218 = vsel %vm1307, %v9215, %v9217
        %v9219 = vrot.slane %v8394, 2
        %v9220 = vsel %vm1307, %v9216, %v9219
        %v9221 = vrot.slane %v8395, 2
        %v9222 = vrot.slane %v8396, 2
        %v9223 = vrot.slane %v8397, 2
        %v9224 = vsel %vm1307, %v9221, %v9223
        %v9225 = vrot.slane %v8398, 2
        %v9226 = vsel %vm1307, %v9222, %v9225
        %v9227 = vrot.slane %v8399, 2
        %v9228 = vrot.slane %v8400, 2
        %v9229 = vrot.slane %v8401, 2
        %v9230 = vsel %vm1307, %v9227, %v9229
        %v9231 = vrot.slane %v8402, 2
        %v9232 = vsel %vm1307, %v9228, %v9231
        %v9233 = vrot.slane %v8403, 2
        %v9234 = vrot.slane %v8404, 2
        %v9235 = vrot.slane %v8405, 2
        %v9236 = vsel %vm1307, %v9233, %v9235
        %v9237 = vrot.slane %v8406, 2
        %v9238 = vsel %vm1307, %v9234, %v9237
        %v9271 = vadd.f32 %v9127, %v9191
        %v9272 = vadd.f32 %v9128, %v9192
        %v9273 = vadd.f32 %v9129, %v9194
        %v9274 = vadd.f32 %v9130, %v9196
        %v9275 = vadd.f32 %v9131, %v9197
        %v9276 = vadd.f32 %v9132, %v9198
        %v9277 = vadd.f32 %v9133, %v9200
        %v9278 = vadd.f32 %v9134, %v9202
        %v9279 = vadd.f32 %v9135, %v9203
        %v9280 = vadd.f32 %v9136, %v9204
        %v9281 = vadd.f32 %v9137, %v9206
        %v9282 = vadd.f32 %v9138, %v9208
        %v9283 = vadd.f32 %v9139, %v9209
        %v9284 = vadd.f32 %v9140, %v9210
        %v9285 = vadd.f32 %v9141, %v9212
        %v9286 = vadd.f32 %v9142, %v9214
        %v9287 = vadd.f32 %v9143, %v9215
        %v9288 = vadd.f32 %v9144, %v9216
        %v9289 = vadd.f32 %v9145, %v9218
        %v9290 = vadd.f32 %v9146, %v9220
        %v9291 = vadd.f32 %v9147, %v9221
        %v9292 = vadd.f32 %v9148, %v9222
        %v9293 = vadd.f32 %v9149, %v9224
        %v9294 = vadd.f32 %v9150, %v9226
        %v9295 = vadd.f32 %v9151, %v9227
        %v9296 = vadd.f32 %v9152, %v9228
        %v9297 = vadd.f32 %v9153, %v9230
        %v9298 = vadd.f32 %v9154, %v9232
        %v9299 = vadd.f32 %v9155, %v9233
        %v9300 = vadd.f32 %v9156, %v9234
        %v9301 = vadd.f32 %v9157, %v9236
        %v9302 = vadd.f32 %v9158, %v9238
        %v9335 = vrot.slane %v9271, 7
        %v9336 = vrot.slane %v9273, 7
        %v9337 = vsel %vm1452, %v9335, %v9336
        %v9338 = vrot.slane %v9272, 7
        %v9339 = vrot.slane %v9274, 7
        %v9340 = vsel %vm1452, %v9338, %v9339
        %v9341 = vrot.slane %v9275, 7
        %v9342 = vrot.slane %v9277, 7
        %v9343 = vsel %vm1452, %v9341, %v9342
        %v9344 = vrot.slane %v9276, 7
        %v9345 = vrot.slane %v9278, 7
        %v9346 = vsel %vm1452, %v9344, %v9345
        %v9347 = vrot.slane %v9279, 7
        %v9348 = vrot.slane %v9281, 7
        %v9349 = vsel %vm1452, %v9347, %v9348
        %v9350 = vrot.slane %v9280, 7
        %v9351 = vrot.slane %v9282, 7
        %v9352 = vsel %vm1452, %v9350, %v9351
        %v9353 = vrot.slane %v9283, 7
        %v9354 = vrot.slane %v9285, 7
        %v9355 = vsel %vm1452, %v9353, %v9354
        %v9356 = vrot.slane %v9284, 7
        %v9357 = vrot.slane %v9286, 7
        %v9358 = vsel %vm1452, %v9356, %v9357
        %v9359 = vrot.slane %v9287, 7
        %v9360 = vrot.slane %v9289, 7
        %v9361 = vsel %vm1452, %v9359, %v9360
        %v9362 = vrot.slane %v9288, 7
        %v9363 = vrot.slane %v9290, 7
        %v9364 = vsel %vm1452, %v9362, %v9363
        %v9365 = vrot.slane %v9291, 7
        %v9366 = vrot.slane %v9293, 7
        %v9367 = vsel %vm1452, %v9365, %v9366
        %v9368 = vrot.slane %v9292, 7
        %v9369 = vrot.slane %v9294, 7
        %v9370 = vsel %vm1452, %v9368, %v9369
        %v9371 = vrot.slane %v9295, 7
        %v9372 = vrot.slane %v9297, 7
        %v9373 = vsel %vm1452, %v9371, %v9372
        %v9374 = vrot.slane %v9296, 7
        %v9375 = vrot.slane %v9298, 7
        %v9376 = vsel %vm1452, %v9374, %v9375
        %v9377 = vrot.slane %v9299, 7
        %v9378 = vrot.slane %v9301, 7
        %v9379 = vsel %vm1452, %v9377, %v9378
        %v9380 = vrot.slane %v9300, 7
        %v9381 = vrot.slane %v9302, 7
        %v9382 = vsel %vm1452, %v9380, %v9381
        %v9399 = vpack.c.bf16 %v9343, %v9337
        %v9400 = vpack.c.bf16 %v9346, %v9340
        %v9401 = vpack.c.bf16 %v9355, %v9349
        %v9402 = vpack.c.bf16 %v9358, %v9352
        %v9403 = vpack.c.bf16 %v9367, %v9361
        %v9404 = vpack.c.bf16 %v9370, %v9364
        %v9405 = vpack.c.bf16 %v9379, %v9373
        %v9406 = vpack.c.bf16 %v9382, %v9376
        %s9407 = scalar_lea.vmem [#allocation3], 1024
        %v9408 = vld [vmem:[%s9407] sm:$0xff]
        %v9409 = vld [vmem:[%s9407 + $0x8] sm:$0xff]
        %v9410 = vld [vmem:[%s9407 + $0x10] sm:$0xff]
        %v9411 = vld [vmem:[%s9407 + $0x18] sm:$0xff]
        %v9412 = vld [vmem:[%s9407 + $0x20] sm:$0xff]
        %v9413 = vld [vmem:[%s9407 + $0x28] sm:$0xff]
        %v9414 = vld [vmem:[%s9407 + $0x30] sm:$0xff]
        %v9415 = vld [vmem:[%s9407 + $0x38] sm:$0xff]
        %v9416 = vld [vmem:[%s9407 + $0x40] sm:$0xff]
        %v9417 = vld [vmem:[%s9407 + $0x48] sm:$0xff]
        %v9418 = vld [vmem:[%s9407 + $0x50] sm:$0xff]
        %v9419 = vld [vmem:[%s9407 + $0x58] sm:$0xff]
        %v9420 = vld [vmem:[%s9407 + $0x60] sm:$0xff]
        %v9421 = vld [vmem:[%s9407 + $0x68] sm:$0xff]
        %v9422 = vld [vmem:[%s9407 + $0x70] sm:$0xff]
        %v9423 = vld [vmem:[%s9407 + $0x78] sm:$0xff]
        %v9424 = vld [vmem:[%s9407 + $0x80] sm:$0xff]
        %v9425 = vld [vmem:[%s9407 + $0x88] sm:$0xff]
        %v9426 = vld [vmem:[%s9407 + $0x90] sm:$0xff]
        %v9427 = vld [vmem:[%s9407 + $0x98] sm:$0xff]
        %v9428 = vld [vmem:[%s9407 + $0xa0] sm:$0xff]
        %v9429 = vld [vmem:[%s9407 + $0xa8] sm:$0xff]
        %v9430 = vld [vmem:[%s9407 + $0xb0] sm:$0xff]
        %v9431 = vld [vmem:[%s9407 + $0xb8] sm:$0xff]
        %v9432 = vld [vmem:[%s9407 + $0xc0] sm:$0xff]
        %v9433 = vld [vmem:[%s9407 + $0xc8] sm:$0xff]
        %v9434 = vld [vmem:[%s9407 + $0xd0] sm:$0xff]
        %v9435 = vld [vmem:[%s9407 + $0xd8] sm:$0xff]
        %v9436 = vld [vmem:[%s9407 + $0xe0] sm:$0xff]
        %v9437 = vld [vmem:[%s9407 + $0xe8] sm:$0xff]
        %v9438 = vld [vmem:[%s9407 + $0xf0] sm:$0xff]
        %v9439 = vld [vmem:[%s9407 + $0xf8] sm:$0xff]
        %s9440 = scalar_lea.vmem %s3, 8
        %v9441 = vld [vmem:[%s9440] sm:$0x3]
        %v9443 = vperm.slane %v9441, 0
        %v9444 = vperm.slane %v9441, 1
        %v9479 = vunpack.c.l.b16 %v9408
        %v9480 = vunpack.c.h.b16 %v9408
        %v9481 = vunpack.c.l.b16 %v9409
        %v9482 = vunpack.c.h.b16 %v9409
        %v9483 = vunpack.c.l.b16 %v9410
        %v9484 = vunpack.c.h.b16 %v9410
        %v9485 = vunpack.c.l.b16 %v9411
        %v9486 = vunpack.c.h.b16 %v9411
        %v9487 = vunpack.c.l.b16 %v9412
        %v9488 = vunpack.c.h.b16 %v9412
        %v9489 = vunpack.c.l.b16 %v9413
        %v9490 = vunpack.c.h.b16 %v9413
        %v9491 = vunpack.c.l.b16 %v9414
        %v9492 = vunpack.c.h.b16 %v9414
        %v9493 = vunpack.c.l.b16 %v9415
        %v9494 = vunpack.c.h.b16 %v9415
        %v9495 = vunpack.c.l.b16 %v9416
        %v9496 = vunpack.c.h.b16 %v9416
        %v9497 = vunpack.c.l.b16 %v9417
        %v9498 = vunpack.c.h.b16 %v9417
        %v9499 = vunpack.c.l.b16 %v9418
        %v9500 = vunpack.c.h.b16 %v9418
        %v9501 = vunpack.c.l.b16 %v9419
        %v9502 = vunpack.c.h.b16 %v9419
        %v9503 = vunpack.c.l.b16 %v9420
        %v9504 = vunpack.c.h.b16 %v9420
        %v9505 = vunpack.c.l.b16 %v9421
        %v9506 = vunpack.c.h.b16 %v9421
        %v9507 = vunpack.c.l.b16 %v9422
        %v9508 = vunpack.c.h.b16 %v9422
        %v9509 = vunpack.c.l.b16 %v9423
        %v9510 = vunpack.c.h.b16 %v9423
        %v9511 = vunpack.c.l.b16 %v9424
        %v9512 = vunpack.c.h.b16 %v9424
        %v9513 = vunpack.c.l.b16 %v9425
        %v9514 = vunpack.c.h.b16 %v9425
        %v9515 = vunpack.c.l.b16 %v9426
        %v9516 = vunpack.c.h.b16 %v9426
        %v9517 = vunpack.c.l.b16 %v9427
        %v9518 = vunpack.c.h.b16 %v9427
        %v9519 = vunpack.c.l.b16 %v9428
        %v9520 = vunpack.c.h.b16 %v9428
        %v9521 = vunpack.c.l.b16 %v9429
        %v9522 = vunpack.c.h.b16 %v9429
        %v9523 = vunpack.c.l.b16 %v9430
        %v9524 = vunpack.c.h.b16 %v9430
        %v9525 = vunpack.c.l.b16 %v9431
        %v9526 = vunpack.c.h.b16 %v9431
        %v9527 = vunpack.c.l.b16 %v9432
        %v9528 = vunpack.c.h.b16 %v9432
        %v9529 = vunpack.c.l.b16 %v9433
        %v9530 = vunpack.c.h.b16 %v9433
        %v9531 = vunpack.c.l.b16 %v9434
        %v9532 = vunpack.c.h.b16 %v9434
        %v9533 = vunpack.c.l.b16 %v9435
        %v9534 = vunpack.c.h.b16 %v9435
        %v9535 = vunpack.c.l.b16 %v9436
        %v9536 = vunpack.c.h.b16 %v9436
        %v9537 = vunpack.c.l.b16 %v9437
        %v9538 = vunpack.c.h.b16 %v9437
        %v9539 = vunpack.c.l.b16 %v9438
        %v9540 = vunpack.c.h.b16 %v9438
        %v9541 = vunpack.c.l.b16 %v9439
        %v9542 = vunpack.c.h.b16 %v9439
        %v9543 = vpack.c.b16 %v9481, %v9479
        %v9544 = vpack.c.b16 %v9482, %v9480
        %v9545 = vpack.c.b16 %v9485, %v9483
        %v9546 = vpack.c.b16 %v9486, %v9484
        %v9547 = vpack.c.b16 %v9489, %v9487
        %v9548 = vpack.c.b16 %v9490, %v9488
        %v9549 = vpack.c.b16 %v9493, %v9491
        %v9550 = vpack.c.b16 %v9494, %v9492
        %v9551 = vpack.c.b16 %v9497, %v9495
        %v9552 = vpack.c.b16 %v9498, %v9496
        %v9553 = vpack.c.b16 %v9501, %v9499
        %v9554 = vpack.c.b16 %v9502, %v9500
        %v9555 = vpack.c.b16 %v9505, %v9503
        %v9556 = vpack.c.b16 %v9506, %v9504
        %v9557 = vpack.c.b16 %v9509, %v9507
        %v9558 = vpack.c.b16 %v9510, %v9508
        %v9559 = vpack.c.b16 %v9513, %v9511
        %v9560 = vpack.c.b16 %v9514, %v9512
        %v9561 = vpack.c.b16 %v9517, %v9515
        %v9562 = vpack.c.b16 %v9518, %v9516
        %v9563 = vpack.c.b16 %v9521, %v9519
        %v9564 = vpack.c.b16 %v9522, %v9520
        %v9565 = vpack.c.b16 %v9525, %v9523
        %v9566 = vpack.c.b16 %v9526, %v9524
        %v9567 = vpack.c.b16 %v9529, %v9527
        %v9568 = vpack.c.b16 %v9530, %v9528
        %v9569 = vpack.c.b16 %v9533, %v9531
        %v9570 = vpack.c.b16 %v9534, %v9532
        %v9571 = vpack.c.b16 %v9537, %v9535
        %v9572 = vpack.c.b16 %v9538, %v9536
        %v9573 = vpack.c.b16 %v9541, %v9539
        %v9574 = vpack.c.b16 %v9542, %v9540
        %9607 = vmatpush.bf16.msra.mxu0 %v9557
        %9608 = vmatpush.bf16.msra.mxu0 %v9555
        %9609 = vmatpush.bf16.msra.mxu0 %v9553
        %9610 = vmatpush.bf16.msra.mxu0 %v9551
        %9611 = vmatpush.bf16.msra.mxu0 %v9549
        %9612 = vmatpush.bf16.msra.mxu0 %v9547
        %9613 = vmatpush.bf16.msra.mxu0 %v9545
        %9614 = vmatpush.bf16.msra.mxu0 %v9543
        %9615 = vmatmul.bf16.gmra.mxu0 %v9399
        %v9616 = vpop.f32.mrf.mxu0
        %v9617 = vadd.f32 %v9443, %v9616
        %v9618 = vpop.f32.mrf.mxu0
        %v9619 = vadd.f32 %v9443, %v9618
        %9620 = vmatmul.bf16.gmra.mxu0 %v9401
        %v9621 = vpop.f32.mrf.mxu0
        %v9622 = vadd.f32 %v9443, %v9621
        %v9623 = vpop.f32.mrf.mxu0
        %v9624 = vadd.f32 %v9443, %v9623
        %9625 = vmatmul.bf16.gmra.mxu0 %v9403
        %v9626 = vpop.f32.mrf.mxu0
        %v9627 = vadd.f32 %v9443, %v9626
        %v9628 = vpop.f32.mrf.mxu0
        %v9629 = vadd.f32 %v9443, %v9628
        %9630 = vmatmul.bf16.gmra.mxu0 %v9405
        %v9631 = vpop.f32.mrf.mxu0
        %v9632 = vadd.f32 %v9443, %v9631
        %v9633 = vpop.f32.mrf.mxu0
        %v9634 = vadd.f32 %v9443, %v9633
        %9635 = vdwg.mxu0
        %9636 = vmatpush.bf16.msra.mxu0 %v9573
        %9637 = vmatpush.bf16.msra.mxu0 %v9571
        %9638 = vmatpush.bf16.msra.mxu0 %v9569
        %9639 = vmatpush.bf16.msra.mxu0 %v9567
        %9640 = vmatpush.bf16.msra.mxu0 %v9565
        %9641 = vmatpush.bf16.msra.mxu0 %v9563
        %9642 = vmatpush.bf16.msra.mxu0 %v9561
        %9643 = vmatpush.bf16.msra.mxu0 %v9559
        %9644 = vmatmul.bf16.gmra.mxu0 %v9400
        %v9645 = vpop.f32.mrf.mxu0
        %v9646 = vadd.f32 %v9617, %v9645
        %v9647 = vpop.f32.mrf.mxu0
        %v9648 = vadd.f32 %v9619, %v9647
        %9649 = vmatmul.bf16.gmra.mxu0 %v9402
        %v9650 = vpop.f32.mrf.mxu0
        %v9651 = vadd.f32 %v9622, %v9650
        %v9652 = vpop.f32.mrf.mxu0
        %v9653 = vadd.f32 %v9624, %v9652
        %9654 = vmatmul.bf16.gmra.mxu0 %v9404
        %v9655 = vpop.f32.mrf.mxu0
        %v9656 = vadd.f32 %v9627, %v9655
        %v9657 = vpop.f32.mrf.mxu0
        %v9658 = vadd.f32 %v9629, %v9657
        %9659 = vmatmul.bf16.gmra.mxu0 %v9406
        %v9660 = vpop.f32.mrf.mxu0
        %v9661 = vadd.f32 %v9632, %v9660
        %v9662 = vpop.f32.mrf.mxu0
        %v9663 = vadd.f32 %v9634, %v9662
        %9664 = vdwg.mxu0
        %9665 = vmatpush.bf16.msra.mxu0 %v9558
        %9666 = vmatpush.bf16.msra.mxu0 %v9556
        %9667 = vmatpush.bf16.msra.mxu0 %v9554
        %9668 = vmatpush.bf16.msra.mxu0 %v9552
        %9669 = vmatpush.bf16.msra.mxu0 %v9550
        %9670 = vmatpush.bf16.msra.mxu0 %v9548
        %9671 = vmatpush.bf16.msra.mxu0 %v9546
        %9672 = vmatpush.bf16.msra.mxu0 %v9544
        %9673 = vmatmul.bf16.gmra.mxu0 %v9399
        %v9674 = vpop.f32.mrf.mxu0
        %v9675 = vadd.f32 %v9444, %v9674
        %v9676 = vpop.f32.mrf.mxu0
        %v9677 = vadd.f32 %v9444, %v9676
        %9678 = vmatmul.bf16.gmra.mxu0 %v9401
        %v9679 = vpop.f32.mrf.mxu0
        %v9680 = vadd.f32 %v9444, %v9679
        %v9681 = vpop.f32.mrf.mxu0
        %v9682 = vadd.f32 %v9444, %v9681
        %9683 = vmatmul.bf16.gmra.mxu0 %v9403
        %v9684 = vpop.f32.mrf.mxu0
        %v9685 = vadd.f32 %v9444, %v9684
        %v9686 = vpop.f32.mrf.mxu0
        %v9687 = vadd.f32 %v9444, %v9686
        %9688 = vmatmul.bf16.gmra.mxu0 %v9405
        %v9689 = vpop.f32.mrf.mxu0
        %v9690 = vadd.f32 %v9444, %v9689
        %v9691 = vpop.f32.mrf.mxu0
        %v9692 = vadd.f32 %v9444, %v9691
        %9693 = vdwg.mxu0
        %9694 = vmatpush.bf16.msra.mxu0 %v9574
        %9695 = vmatpush.bf16.msra.mxu0 %v9572
        %9696 = vmatpush.bf16.msra.mxu0 %v9570
        %9697 = vmatpush.bf16.msra.mxu0 %v9568
        %9698 = vmatpush.bf16.msra.mxu0 %v9566
        %9699 = vmatpush.bf16.msra.mxu0 %v9564
        %9700 = vmatpush.bf16.msra.mxu0 %v9562
        %9701 = vmatpush.bf16.msra.mxu0 %v9560
        %9702 = vmatmul.bf16.gmra.mxu0 %v9400
        %v9703 = vpop.f32.mrf.mxu0
        %v9704 = vadd.f32 %v9675, %v9703
        %v9705 = vpop.f32.mrf.mxu0
        %v9706 = vadd.f32 %v9677, %v9705
        %9707 = vmatmul.bf16.gmra.mxu0 %v9402
        %v9708 = vpop.f32.mrf.mxu0
        %v9709 = vadd.f32 %v9680, %v9708
        %v9710 = vpop.f32.mrf.mxu0
        %v9711 = vadd.f32 %v9682, %v9710
        %9712 = vmatmul.bf16.gmra.mxu0 %v9404
        %v9713 = vpop.f32.mrf.mxu0
        %v9714 = vadd.f32 %v9685, %v9713
        %v9715 = vpop.f32.mrf.mxu0
        %v9716 = vadd.f32 %v9687, %v9715
        %9717 = vmatmul.bf16.gmra.mxu0 %v9406
        %v9718 = vpop.f32.mrf.mxu0
        %v9719 = vadd.f32 %v9690, %v9718
        %v9720 = vpop.f32.mrf.mxu0
        %v9721 = vadd.f32 %v9692, %v9720
        %9722 = vdwg.mxu0
        %vm9723 = vcmp.ge.f32.partialorder %v9646, 0.0
        %vm9724 = vcmp.ge.f32.partialorder %v9704, 0.0
        %vm9725 = vcmp.ge.f32.partialorder %v9648, 0.0
        %vm9726 = vcmp.ge.f32.partialorder %v9706, 0.0
        %vm9727 = vcmp.ge.f32.partialorder %v9651, 0.0
        %vm9728 = vcmp.ge.f32.partialorder %v9709, 0.0
        %vm9729 = vcmp.ge.f32.partialorder %v9653, 0.0
        %vm9730 = vcmp.ge.f32.partialorder %v9711, 0.0
        %vm9731 = vcmp.ge.f32.partialorder %v9656, 0.0
        %vm9732 = vcmp.ge.f32.partialorder %v9714, 0.0
        %vm9733 = vcmp.ge.f32.partialorder %v9658, 0.0
        %vm9734 = vcmp.ge.f32.partialorder %v9716, 0.0
        %vm9735 = vcmp.ge.f32.partialorder %v9661, 0.0
        %vm9736 = vcmp.ge.f32.partialorder %v9719, 0.0
        %vm9737 = vcmp.ge.f32.partialorder %v9663, 0.0
        %vm9738 = vcmp.ge.f32.partialorder %v9721, 0.0
        %v9739 = vmul.f32 %v9646, 0.2
        %v9740 = vmul.f32 %v9704, 0.2
        %v9741 = vmul.f32 %v9648, 0.2
        %v9742 = vmul.f32 %v9706, 0.2
        %v9743 = vmul.f32 %v9651, 0.2
        %v9744 = vmul.f32 %v9709, 0.2
        %v9745 = vmul.f32 %v9653, 0.2
        %v9746 = vmul.f32 %v9711, 0.2
        %v9747 = vmul.f32 %v9656, 0.2
        %v9748 = vmul.f32 %v9714, 0.2
        %v9749 = vmul.f32 %v9658, 0.2
        %v9750 = vmul.f32 %v9716, 0.2
        %v9751 = vmul.f32 %v9661, 0.2
        %v9752 = vmul.f32 %v9719, 0.2
        %v9753 = vmul.f32 %v9663, 0.2
        %v9754 = vmul.f32 %v9721, 0.2
        %v9755 = vsel %vm9723, %v9646, %v9739
        %v9756 = vsel %vm9724, %v9704, %v9740
        %v9757 = vsel %vm9725, %v9648, %v9741
        %v9758 = vsel %vm9726, %v9706, %v9742
        %v9759 = vsel %vm9727, %v9651, %v9743
        %v9760 = vsel %vm9728, %v9709, %v9744
        %v9761 = vsel %vm9729, %v9653, %v9745
        %v9762 = vsel %vm9730, %v9711, %v9746
        %v9763 = vsel %vm9731, %v9656, %v9747
        %v9764 = vsel %vm9732, %v9714, %v9748
        %v9765 = vsel %vm9733, %v9658, %v9749
        %v9766 = vsel %vm9734, %v9716, %v9750
        %v9767 = vsel %vm9735, %v9661, %v9751
        %v9768 = vsel %vm9736, %v9719, %v9752
        %v9769 = vsel %vm9737, %v9663, %v9753
        %v9770 = vsel %vm9738, %v9721, %v9754
        %9771 = vst [vmem:[%s337 + $0x10] sm:$0xff] %v9755
        %9772 = vst [vmem:[%s337 + $0x18] sm:$0xff] %v9756
        %9773 = vst [vmem:[%s337 + $0x40] sm:$0xff] %v9757
        %9774 = vst [vmem:[%s337 + $0x48] sm:$0xff] %v9758
        %9775 = vst [vmem:[%s337 + $0x70] sm:$0xff] %v9759
        %9776 = vst [vmem:[%s337 + $0x78] sm:$0xff] %v9760
        %9777 = vst [vmem:[%s337 + $0xa0] sm:$0xff] %v9761
        %9778 = vst [vmem:[%s337 + $0xa8] sm:$0xff] %v9762
        %9779 = vst [vmem:[%s337 + $0xd0] sm:$0xff] %v9763
        %9780 = vst [vmem:[%s337 + $0xd8] sm:$0xff] %v9764
        %9781 = vst [vmem:[%s337 + $0x100] sm:$0xff] %v9765
        %9782 = vst [vmem:[%s337 + $0x108] sm:$0xff] %v9766
        %9783 = vst [vmem:[%s337 + $0x130] sm:$0xff] %v9767
        %9784 = vst [vmem:[%s337 + $0x138] sm:$0xff] %v9768
        %9785 = vst [vmem:[%s337 + $0x160] sm:$0xff] %v9769
        %9786 = vst [vmem:[%s337 + $0x168] sm:$0xff] %v9770
        %s9787 = scalar_lea.vmem %s1, 160
        %v9788 = vld [vmem:[%s9787] sm:$0xff]
        %v9789 = vld [vmem:[%s9787 + $0x8] sm:$0xff]
        %v9790 = vld [vmem:[%s9787 + $0x10] sm:$0x1]
        %v9791 = vld [vmem:[%s9787 + $0x18] sm:$0x1]
        %v9792 = vld [vmem:[#allocation2] sm:$0x80]
        %v9793 = vld [vmem:[#allocation2 + $0x8] sm:$0x80]
        %v9794 = vld [vmem:[#allocation2 + $0x10] sm:$0x7f]
        %v9795 = vld [vmem:[#allocation2 + $0x18] sm:$0x7f]
        %v9796 = vld [vmem:[#allocation2 + $0x30] sm:$0x80]
        %v9797 = vld [vmem:[#allocation2 + $0x38] sm:$0x80]
        %v9798 = vld [vmem:[#allocation2 + $0x40] sm:$0x7f]
        %v9799 = vld [vmem:[#allocation2 + $0x48] sm:$0x7f]
        %v9800 = vld [vmem:[#allocation2 + $0x60] sm:$0x80]
        %v9801 = vld [vmem:[#allocation2 + $0x68] sm:$0x80]
        %v9802 = vld [vmem:[#allocation2 + $0x70] sm:$0x7f]
        %v9803 = vld [vmem:[#allocation2 + $0x78] sm:$0x7f]
        %v9804 = vld [vmem:[#allocation2 + $0x90] sm:$0x80]
        %v9805 = vld [vmem:[#allocation2 + $0x98] sm:$0x80]
        %v9806 = vld [vmem:[#allocation2 + $0xa0] sm:$0x7f]
        %v9807 = vld [vmem:[#allocation2 + $0xa8] sm:$0x7f]
        %v9808 = vld [vmem:[#allocation2 + $0xc0] sm:$0x80]
        %v9809 = vld [vmem:[#allocation2 + $0xc8] sm:$0x80]
        %v9810 = vld [vmem:[#allocation2 + $0xd0] sm:$0x7f]
        %v9811 = vld [vmem:[#allocation2 + $0xd8] sm:$0x7f]
        %v9812 = vld [vmem:[#allocation2 + $0xf0] sm:$0x80]
        %v9813 = vld [vmem:[#allocation2 + $0xf8] sm:$0x80]
        %v9814 = vld [vmem:[#allocation2 + $0x100] sm:$0x7f]
        %v9815 = vld [vmem:[#allocation2 + $0x108] sm:$0x7f]
        %v9816 = vld [vmem:[#allocation2 + $0x120] sm:$0x80]
        %v9817 = vld [vmem:[#allocation2 + $0x128] sm:$0x80]
        %v9818 = vld [vmem:[#allocation2 + $0x130] sm:$0x7f]
        %v9819 = vld [vmem:[#allocation2 + $0x138] sm:$0x7f]
        %v9820 = vld [vmem:[#allocation2 + $0x150] sm:$0x80]
        %v9821 = vld [vmem:[#allocation2 + $0x158] sm:$0x80]
        %v9822 = vld [vmem:[#allocation2 + $0x160] sm:$0x7f]
        %v9823 = vld [vmem:[#allocation2 + $0x168] sm:$0x7f]
        %v9824 = vperm.slane %v9788, 0
        %v9825 = vperm.slane %v9789, 0
        %v9826 = vmul.f32 %v9792, %v9824
        %v9827 = vmul.f32 %v9793, %v9825
        %v9828 = vmul.f32 %v9794, %v9824
        %v9829 = vmul.f32 %v9795, %v9825
        %v9830 = vmul.f32 %v9796, %v9824
        %v9831 = vmul.f32 %v9797, %v9825
        %v9832 = vmul.f32 %v9798, %v9824
        %v9833 = vmul.f32 %v9799, %v9825
        %v9834 = vmul.f32 %v9800, %v9824
        %v9835 = vmul.f32 %v9801, %v9825
        %v9836 = vmul.f32 %v9802, %v9824
        %v9837 = vmul.f32 %v9803, %v9825
        %v9838 = vmul.f32 %v9804, %v9824
        %v9839 = vmul.f32 %v9805, %v9825
        %v9840 = vmul.f32 %v9806, %v9824
        %v9841 = vmul.f32 %v9807, %v9825
        %v9842 = vmul.f32 %v9808, %v9824
        %v9843 = vmul.f32 %v9809, %v9825
        %v9844 = vmul.f32 %v9810, %v9824
        %v9845 = vmul.f32 %v9811, %v9825
        %v9846 = vmul.f32 %v9812, %v9824
        %v9847 = vmul.f32 %v9813, %v9825
        %v9848 = vmul.f32 %v9814, %v9824
        %v9849 = vmul.f32 %v9815, %v9825
        %v9850 = vmul.f32 %v9816, %v9824
        %v9851 = vmul.f32 %v9817, %v9825
        %v9852 = vmul.f32 %v9818, %v9824
        %v9853 = vmul.f32 %v9819, %v9825
        %v9854 = vmul.f32 %v9820, %v9824
        %v9855 = vmul.f32 %v9821, %v9825
        %v9856 = vmul.f32 %v9822, %v9824
        %v9857 = vmul.f32 %v9823, %v9825
        %v9858 = vld [vmem:[#allocation2 + $0x10] sm:$0xff]
        %v9859 = vld [vmem:[#allocation2 + $0x18] sm:$0xff]
        %v9860 = vld [vmem:[#allocation2 + $0x40] sm:$0xff]
        %v9861 = vld [vmem:[#allocation2 + $0x48] sm:$0xff]
        %v9862 = vld [vmem:[#allocation2 + $0x70] sm:$0xff]
        %v9863 = vld [vmem:[#allocation2 + $0x78] sm:$0xff]
        %v9864 = vld [vmem:[#allocation2 + $0xa0] sm:$0xff]
        %v9865 = vld [vmem:[#allocation2 + $0xa8] sm:$0xff]
        %v9866 = vld [vmem:[#allocation2 + $0xd0] sm:$0xff]
        %v9867 = vld [vmem:[#allocation2 + $0xd8] sm:$0xff]
        %v9868 = vld [vmem:[#allocation2 + $0x100] sm:$0xff]
        %v9869 = vld [vmem:[#allocation2 + $0x108] sm:$0xff]
        %v9870 = vld [vmem:[#allocation2 + $0x130] sm:$0xff]
        %v9871 = vld [vmem:[#allocation2 + $0x138] sm:$0xff]
        %v9872 = vld [vmem:[#allocation2 + $0x160] sm:$0xff]
        %v9873 = vld [vmem:[#allocation2 + $0x168] sm:$0xff]
        %v9874 = vperm.slane %v9788, 1
        %v9875 = vperm.slane %v9789, 1
        %v9876 = vmul.f32 %v9858, %v9874
        %v9877 = vmul.f32 %v9859, %v9875
        %v9878 = vmul.f32 %v9860, %v9874
        %v9879 = vmul.f32 %v9861, %v9875
        %v9880 = vmul.f32 %v9862, %v9874
        %v9881 = vmul.f32 %v9863, %v9875
        %v9882 = vmul.f32 %v9864, %v9874
        %v9883 = vmul.f32 %v9865, %v9875
        %v9884 = vmul.f32 %v9866, %v9874
        %v9885 = vmul.f32 %v9867, %v9875
        %v9886 = vmul.f32 %v9868, %v9874
        %v9887 = vmul.f32 %v9869, %v9875
        %v9888 = vmul.f32 %v9870, %v9874
        %v9889 = vmul.f32 %v9871, %v9875
        %v9890 = vmul.f32 %v9872, %v9874
        %v9891 = vmul.f32 %v9873, %v9875
        %v9892 = vld [vmem:[#allocation2 + $0x10] sm:$0xfe]
        %v9893 = vld [vmem:[#allocation2 + $0x18] sm:$0xfe]
        %v9894 = vld [vmem:[#allocation2 + $0x20] sm:$0x1]
        %v9895 = vld [vmem:[#allocation2 + $0x28] sm:$0x1]
        %v9896 = vld [vmem:[#allocation2 + $0x40] sm:$0xfe]
        %v9897 = vld [vmem:[#allocation2 + $0x48] sm:$0xfe]
        %v9898 = vld [vmem:[#allocation2 + $0x50] sm:$0x1]
        %v9899 = vld [vmem:[#allocation2 + $0x58] sm:$0x1]
        %v9900 = vld [vmem:[#allocation2 + $0x70] sm:$0xfe]
        %v9901 = vld [vmem:[#allocation2 + $0x78] sm:$0xfe]
        %v9902 = vld [vmem:[#allocation2 + $0x80] sm:$0x1]
        %v9903 = vld [vmem:[#allocation2 + $0x88] sm:$0x1]
        %v9904 = vld [vmem:[#allocation2 + $0xa0] sm:$0xfe]
        %v9905 = vld [vmem:[#allocation2 + $0xa8] sm:$0xfe]
        %v9906 = vld [vmem:[#allocation2 + $0xb0] sm:$0x1]
        %v9907 = vld [vmem:[#allocation2 + $0xb8] sm:$0x1]
        %v9908 = vld [vmem:[#allocation2 + $0xd0] sm:$0xfe]
        %v9909 = vld [vmem:[#allocation2 + $0xd8] sm:$0xfe]
        %v9910 = vld [vmem:[#allocation2 + $0xe0] sm:$0x1]
        %v9911 = vld [vmem:[#allocation2 + $0xe8] sm:$0x1]
        %v9912 = vld [vmem:[#allocation2 + $0x100] sm:$0xfe]
        %v9913 = vld [vmem:[#allocation2 + $0x108] sm:$0xfe]
        %v9914 = vld [vmem:[#allocation2 + $0x110] sm:$0x1]
        %v9915 = vld [vmem:[#allocation2 + $0x118] sm:$0x1]
        %v9916 = vld [vmem:[#allocation2 + $0x130] sm:$0xfe]
        %v9917 = vld [vmem:[#allocation2 + $0x138] sm:$0xfe]
        %v9918 = vld [vmem:[#allocation2 + $0x140] sm:$0x1]
        %v9919 = vld [vmem:[#allocation2 + $0x148] sm:$0x1]
        %v9920 = vld [vmem:[#allocation2 + $0x160] sm:$0xfe]
        %v9921 = vld [vmem:[#allocation2 + $0x168] sm:$0xfe]
        %v9922 = vld [vmem:[#allocation2 + $0x170] sm:$0x1]
        %v9923 = vld [vmem:[#allocation2 + $0x178] sm:$0x1]
        %v9924 = vperm.slane %v9788, 2
        %v9925 = vperm.slane %v9789, 2
        %v9926 = vmul.f32 %v9892, %v9924
        %v9927 = vmul.f32 %v9893, %v9925
        %v9928 = vmul.f32 %v9894, %v9924
        %v9929 = vmul.f32 %v9895, %v9925
        %v9930 = vmul.f32 %v9896, %v9924
        %v9931 = vmul.f32 %v9897, %v9925
        %v9932 = vmul.f32 %v9898, %v9924
        %v9933 = vmul.f32 %v9899, %v9925
        %v9934 = vmul.f32 %v9900, %v9924
        %v9935 = vmul.f32 %v9901, %v9925
        %v9936 = vmul.f32 %v9902, %v9924
        %v9937 = vmul.f32 %v9903, %v9925
        %v9938 = vmul.f32 %v9904, %v9924
        %v9939 = vmul.f32 %v9905, %v9925
        %v9940 = vmul.f32 %v9906, %v9924
        %v9941 = vmul.f32 %v9907, %v9925
        %v9942 = vmul.f32 %v9908, %v9924
        %v9943 = vmul.f32 %v9909, %v9925
        %v9944 = vmul.f32 %v9910, %v9924
        %v9945 = vmul.f32 %v9911, %v9925
        %v9946 = vmul.f32 %v9912, %v9924
        %v9947 = vmul.f32 %v9913, %v9925
        %v9948 = vmul.f32 %v9914, %v9924
        %v9949 = vmul.f32 %v9915, %v9925
        %v9950 = vmul.f32 %v9916, %v9924
        %v9951 = vmul.f32 %v9917, %v9925
        %v9952 = vmul.f32 %v9918, %v9924
        %v9953 = vmul.f32 %v9919, %v9925
        %v9954 = vmul.f32 %v9920, %v9924
        %v9955 = vmul.f32 %v9921, %v9925
        %v9956 = vmul.f32 %v9922, %v9924
        %v9957 = vmul.f32 %v9923, %v9925
        %v9958 = vld [vmem:[%s337] sm:$0x80]
        %v9959 = vld [vmem:[%s337 + $0x8] sm:$0x80]
        %v9960 = vld [vmem:[%s337 + $0x10] sm:$0x7f]
        %v9961 = vld [vmem:[%s337 + $0x18] sm:$0x7f]
        %v9962 = vld [vmem:[%s337 + $0x30] sm:$0x80]
        %v9963 = vld [vmem:[%s337 + $0x38] sm:$0x80]
        %v9964 = vld [vmem:[%s337 + $0x40] sm:$0x7f]
        %v9965 = vld [vmem:[%s337 + $0x48] sm:$0x7f]
        %v9966 = vld [vmem:[%s337 + $0x60] sm:$0x80]
        %v9967 = vld [vmem:[%s337 + $0x68] sm:$0x80]
        %v9968 = vld [vmem:[%s337 + $0x70] sm:$0x7f]
        %v9969 = vld [vmem:[%s337 + $0x78] sm:$0x7f]
        %v9970 = vld [vmem:[%s337 + $0x90] sm:$0x80]
        %v9971 = vld [vmem:[%s337 + $0x98] sm:$0x80]
        %v9972 = vld [vmem:[%s337 + $0xa0] sm:$0x7f]
        %v9973 = vld [vmem:[%s337 + $0xa8] sm:$0x7f]
        %v9974 = vld [vmem:[%s337 + $0xc0] sm:$0x80]
        %v9975 = vld [vmem:[%s337 + $0xc8] sm:$0x80]
        %v9976 = vld [vmem:[%s337 + $0xd0] sm:$0x7f]
        %v9977 = vld [vmem:[%s337 + $0xd8] sm:$0x7f]
        %v9978 = vld [vmem:[%s337 + $0xf0] sm:$0x80]
        %v9979 = vld [vmem:[%s337 + $0xf8] sm:$0x80]
        %v9980 = vld [vmem:[%s337 + $0x100] sm:$0x7f]
        %v9981 = vld [vmem:[%s337 + $0x108] sm:$0x7f]
        %v9982 = vld [vmem:[%s337 + $0x120] sm:$0x80]
        %v9983 = vld [vmem:[%s337 + $0x128] sm:$0x80]
        %v9984 = vld [vmem:[%s337 + $0x130] sm:$0x7f]
        %v9985 = vld [vmem:[%s337 + $0x138] sm:$0x7f]
        %v9986 = vld [vmem:[%s337 + $0x150] sm:$0x80]
        %v9987 = vld [vmem:[%s337 + $0x158] sm:$0x80]
        %v9988 = vld [vmem:[%s337 + $0x160] sm:$0x7f]
        %v9989 = vld [vmem:[%s337 + $0x168] sm:$0x7f]
        %v9990 = vperm.slane %v9788, 3
        %v9991 = vperm.slane %v9789, 3
        %v9992 = vmul.f32 %v9958, %v9990
        %v9993 = vmul.f32 %v9959, %v9991
        %v9994 = vmul.f32 %v9960, %v9990
        %v9995 = vmul.f32 %v9961, %v9991
        %v9996 = vmul.f32 %v9962, %v9990
        %v9997 = vmul.f32 %v9963, %v9991
        %v9998 = vmul.f32 %v9964, %v9990
        %v9999 = vmul.f32 %v9965, %v9991
        %v10000 = vmul.f32 %v9966, %v9990
        %v10001 = vmul.f32 %v9967, %v9991
        %v10002 = vmul.f32 %v9968, %v9990
        %v10003 = vmul.f32 %v9969, %v9991
        %v10004 = vmul.f32 %v9970, %v9990
        %v10005 = vmul.f32 %v9971, %v9991
        %v10006 = vmul.f32 %v9972, %v9990
        %v10007 = vmul.f32 %v9973, %v9991
        %v10008 = vmul.f32 %v9974, %v9990
        %v10009 = vmul.f32 %v9975, %v9991
        %v10010 = vmul.f32 %v9976, %v9990
        %v10011 = vmul.f32 %v9977, %v9991
        %v10012 = vmul.f32 %v9978, %v9990
        %v10013 = vmul.f32 %v9979, %v9991
        %v10014 = vmul.f32 %v9980, %v9990
        %v10015 = vmul.f32 %v9981, %v9991
        %v10016 = vmul.f32 %v9982, %v9990
        %v10017 = vmul.f32 %v9983, %v9991
        %v10018 = vmul.f32 %v9984, %v9990
        %v10019 = vmul.f32 %v9985, %v9991
        %v10020 = vmul.f32 %v9986, %v9990
        %v10021 = vmul.f32 %v9987, %v9991
        %v10022 = vmul.f32 %v9988, %v9990
        %v10023 = vmul.f32 %v9989, %v9991
        %v10024 = vld [vmem:[%s337 + $0x10] sm:$0xff]
        %v10025 = vld [vmem:[%s337 + $0x18] sm:$0xff]
        %v10026 = vld [vmem:[%s337 + $0x40] sm:$0xff]
        %v10027 = vld [vmem:[%s337 + $0x48] sm:$0xff]
        %v10028 = vld [vmem:[%s337 + $0x70] sm:$0xff]
        %v10029 = vld [vmem:[%s337 + $0x78] sm:$0xff]
        %v10030 = vld [vmem:[%s337 + $0xa0] sm:$0xff]
        %v10031 = vld [vmem:[%s337 + $0xa8] sm:$0xff]
        %v10032 = vld [vmem:[%s337 + $0xd0] sm:$0xff]
        %v10033 = vld [vmem:[%s337 + $0xd8] sm:$0xff]
        %v10034 = vld [vmem:[%s337 + $0x100] sm:$0xff]
        %v10035 = vld [vmem:[%s337 + $0x108] sm:$0xff]
        %v10036 = vld [vmem:[%s337 + $0x130] sm:$0xff]
        %v10037 = vld [vmem:[%s337 + $0x138] sm:$0xff]
        %v10038 = vld [vmem:[%s337 + $0x160] sm:$0xff]
        %v10039 = vld [vmem:[%s337 + $0x168] sm:$0xff]
        %v10040 = vperm.slane %v9788, 4
        %v10041 = vperm.slane %v9789, 4
        %v10042 = vmul.f32 %v10024, %v10040
        %v10043 = vmul.f32 %v10025, %v10041
        %v10044 = vmul.f32 %v10026, %v10040
        %v10045 = vmul.f32 %v10027, %v10041
        %v10046 = vmul.f32 %v10028, %v10040
        %v10047 = vmul.f32 %v10029, %v10041
        %v10048 = vmul.f32 %v10030, %v10040
        %v10049 = vmul.f32 %v10031, %v10041
        %v10050 = vmul.f32 %v10032, %v10040
        %v10051 = vmul.f32 %v10033, %v10041
        %v10052 = vmul.f32 %v10034, %v10040
        %v10053 = vmul.f32 %v10035, %v10041
        %v10054 = vmul.f32 %v10036, %v10040
        %v10055 = vmul.f32 %v10037, %v10041
        %v10056 = vmul.f32 %v10038, %v10040
        %v10057 = vmul.f32 %v10039, %v10041
        %v10058 = vld [vmem:[%s337 + $0x10] sm:$0xfe]
        %v10059 = vld [vmem:[%s337 + $0x18] sm:$0xfe]
        %v10060 = vld [vmem:[%s337 + $0x20] sm:$0x1]
        %v10061 = vld [vmem:[%s337 + $0x28] sm:$0x1]
        %v10062 = vld [vmem:[%s337 + $0x40] sm:$0xfe]
        %v10063 = vld [vmem:[%s337 + $0x48] sm:$0xfe]
        %v10064 = vld [vmem:[%s337 + $0x50] sm:$0x1]
        %v10065 = vld [vmem:[%s337 + $0x58] sm:$0x1]
        %v10066 = vld [vmem:[%s337 + $0x70] sm:$0xfe]
        %v10067 = vld [vmem:[%s337 + $0x78] sm:$0xfe]
        %v10068 = vld [vmem:[%s337 + $0x80] sm:$0x1]
        %v10069 = vld [vmem:[%s337 + $0x88] sm:$0x1]
        %v10070 = vld [vmem:[%s337 + $0xa0] sm:$0xfe]
        %v10071 = vld [vmem:[%s337 + $0xa8] sm:$0xfe]
        %v10072 = vld [vmem:[%s337 + $0xb0] sm:$0x1]
        %v10073 = vld [vmem:[%s337 + $0xb8] sm:$0x1]
        %v10074 = vld [vmem:[%s337 + $0xd0] sm:$0xfe]
        %v10075 = vld [vmem:[%s337 + $0xd8] sm:$0xfe]
        %v10076 = vld [vmem:[%s337 + $0xe0] sm:$0x1]
        %v10077 = vld [vmem:[%s337 + $0xe8] sm:$0x1]
        %v10078 = vld [vmem:[%s337 + $0x100] sm:$0xfe]
        %v10079 = vld [vmem:[%s337 + $0x108] sm:$0xfe]
        %v10080 = vld [vmem:[%s337 + $0x110] sm:$0x1]
        %v10081 = vld [vmem:[%s337 + $0x118] sm:$0x1]
        %v10082 = vld [vmem:[%s337 + $0x130] sm:$0xfe]
        %v10083 = vld [vmem:[%s337 + $0x138] sm:$0xfe]
        %v10084 = vld [vmem:[%s337 + $0x140] sm:$0x1]
        %v10085 = vld [vmem:[%s337 + $0x148] sm:$0x1]
        %v10086 = vld [vmem:[%s337 + $0x160] sm:$0xfe]
        %v10087 = vld [vmem:[%s337 + $0x168] sm:$0xfe]
        %v10088 = vld [vmem:[%s337 + $0x170] sm:$0x1]
        %v10089 = vld [vmem:[%s337 + $0x178] sm:$0x1]
        %v10090 = vperm.slane %v9788, 5
        %v10091 = vperm.slane %v9789, 5
        %v10092 = vmul.f32 %v10058, %v10090
        %v10093 = vmul.f32 %v10059, %v10091
        %v10094 = vmul.f32 %v10060, %v10090
        %v10095 = vmul.f32 %v10061, %v10091
        %v10096 = vmul.f32 %v10062, %v10090
        %v10097 = vmul.f32 %v10063, %v10091
        %v10098 = vmul.f32 %v10064, %v10090
        %v10099 = vmul.f32 %v10065, %v10091
        %v10100 = vmul.f32 %v10066, %v10090
        %v10101 = vmul.f32 %v10067, %v10091
        %v10102 = vmul.f32 %v10068, %v10090
        %v10103 = vmul.f32 %v10069, %v10091
        %v10104 = vmul.f32 %v10070, %v10090
        %v10105 = vmul.f32 %v10071, %v10091
        %v10106 = vmul.f32 %v10072, %v10090
        %v10107 = vmul.f32 %v10073, %v10091
        %v10108 = vmul.f32 %v10074, %v10090
        %v10109 = vmul.f32 %v10075, %v10091
        %v10110 = vmul.f32 %v10076, %v10090
        %v10111 = vmul.f32 %v10077, %v10091
        %v10112 = vmul.f32 %v10078, %v10090
        %v10113 = vmul.f32 %v10079, %v10091
        %v10114 = vmul.f32 %v10080, %v10090
        %v10115 = vmul.f32 %v10081, %v10091
        %v10116 = vmul.f32 %v10082, %v10090
        %v10117 = vmul.f32 %v10083, %v10091
        %v10118 = vmul.f32 %v10084, %v10090
        %v10119 = vmul.f32 %v10085, %v10091
        %v10120 = vmul.f32 %v10086, %v10090
        %v10121 = vmul.f32 %v10087, %v10091
        %v10122 = vmul.f32 %v10088, %v10090
        %v10123 = vmul.f32 %v10089, %v10091
        %v10124 = vld [vmem:[%s690] sm:$0x80]
        %v10125 = vld [vmem:[%s690 + $0x8] sm:$0x80]
        %v10126 = vld [vmem:[%s690 + $0x10] sm:$0x7f]
        %v10127 = vld [vmem:[%s690 + $0x18] sm:$0x7f]
        %v10128 = vld [vmem:[%s690 + $0x30] sm:$0x80]
        %v10129 = vld [vmem:[%s690 + $0x38] sm:$0x80]
        %v10130 = vld [vmem:[%s690 + $0x40] sm:$0x7f]
        %v10131 = vld [vmem:[%s690 + $0x48] sm:$0x7f]
        %v10132 = vld [vmem:[%s690 + $0x60] sm:$0x80]
        %v10133 = vld [vmem:[%s690 + $0x68] sm:$0x80]
        %v10134 = vld [vmem:[%s690 + $0x70] sm:$0x7f]
        %v10135 = vld [vmem:[%s690 + $0x78] sm:$0x7f]
        %v10136 = vld [vmem:[%s690 + $0x90] sm:$0x80]
        %v10137 = vld [vmem:[%s690 + $0x98] sm:$0x80]
        %v10138 = vld [vmem:[%s690 + $0xa0] sm:$0x7f]
        %v10139 = vld [vmem:[%s690 + $0xa8] sm:$0x7f]
        %v10140 = vld [vmem:[%s690 + $0xc0] sm:$0x80]
        %v10141 = vld [vmem:[%s690 + $0xc8] sm:$0x80]
        %v10142 = vld [vmem:[%s690 + $0xd0] sm:$0x7f]
        %v10143 = vld [vmem:[%s690 + $0xd8] sm:$0x7f]
        %v10144 = vld [vmem:[%s690 + $0xf0] sm:$0x80]
        %v10145 = vld [vmem:[%s690 + $0xf8] sm:$0x80]
        %v10146 = vld [vmem:[%s690 + $0x100] sm:$0x7f]
        %v10147 = vld [vmem:[%s690 + $0x108] sm:$0x7f]
        %v10148 = vld [vmem:[%s690 + $0x120] sm:$0x80]
        %v10149 = vld [vmem:[%s690 + $0x128] sm:$0x80]
        %v10150 = vld [vmem:[%s690 + $0x130] sm:$0x7f]
        %v10151 = vld [vmem:[%s690 + $0x138] sm:$0x7f]
        %v10152 = vld [vmem:[%s690 + $0x150] sm:$0x80]
        %v10153 = vld [vmem:[%s690 + $0x158] sm:$0x80]
        %v10154 = vld [vmem:[%s690 + $0x160] sm:$0x7f]
        %v10155 = vld [vmem:[%s690 + $0x168] sm:$0x7f]
        %v10156 = vperm.slane %v9788, 6
        %v10157 = vperm.slane %v9789, 6
        %v10158 = vmul.f32 %v10124, %v10156
        %v10159 = vmul.f32 %v10125, %v10157
        %v10160 = vmul.f32 %v10126, %v10156
        %v10161 = vmul.f32 %v10127, %v10157
        %v10162 = vmul.f32 %v10128, %v10156
        %v10163 = vmul.f32 %v10129, %v10157
        %v10164 = vmul.f32 %v10130, %v10156
        %v10165 = vmul.f32 %v10131, %v10157
        %v10166 = vmul.f32 %v10132, %v10156
        %v10167 = vmul.f32 %v10133, %v10157
        %v10168 = vmul.f32 %v10134, %v10156
        %v10169 = vmul.f32 %v10135, %v10157
        %v10170 = vmul.f32 %v10136, %v10156
        %v10171 = vmul.f32 %v10137, %v10157
        %v10172 = vmul.f32 %v10138, %v10156
        %v10173 = vmul.f32 %v10139, %v10157
        %v10174 = vmul.f32 %v10140, %v10156
        %v10175 = vmul.f32 %v10141, %v10157
        %v10176 = vmul.f32 %v10142, %v10156
        %v10177 = vmul.f32 %v10143, %v10157
        %v10178 = vmul.f32 %v10144, %v10156
        %v10179 = vmul.f32 %v10145, %v10157
        %v10180 = vmul.f32 %v10146, %v10156
        %v10181 = vmul.f32 %v10147, %v10157
        %v10182 = vmul.f32 %v10148, %v10156
        %v10183 = vmul.f32 %v10149, %v10157
        %v10184 = vmul.f32 %v10150, %v10156
        %v10185 = vmul.f32 %v10151, %v10157
        %v10186 = vmul.f32 %v10152, %v10156
        %v10187 = vmul.f32 %v10153, %v10157
        %v10188 = vmul.f32 %v10154, %v10156
        %v10189 = vmul.f32 %v10155, %v10157
        %v10190 = vld [vmem:[%s690 + $0x10] sm:$0xff]
        %v10191 = vld [vmem:[%s690 + $0x18] sm:$0xff]
        %v10192 = vld [vmem:[%s690 + $0x40] sm:$0xff]
        %v10193 = vld [vmem:[%s690 + $0x48] sm:$0xff]
        %v10194 = vld [vmem:[%s690 + $0x70] sm:$0xff]
        %v10195 = vld [vmem:[%s690 + $0x78] sm:$0xff]
        %v10196 = vld [vmem:[%s690 + $0xa0] sm:$0xff]
        %v10197 = vld [vmem:[%s690 + $0xa8] sm:$0xff]
        %v10198 = vld [vmem:[%s690 + $0xd0] sm:$0xff]
        %v10199 = vld [vmem:[%s690 + $0xd8] sm:$0xff]
        %v10200 = vld [vmem:[%s690 + $0x100] sm:$0xff]
        %v10201 = vld [vmem:[%s690 + $0x108] sm:$0xff]
        %v10202 = vld [vmem:[%s690 + $0x130] sm:$0xff]
        %v10203 = vld [vmem:[%s690 + $0x138] sm:$0xff]
        %v10204 = vld [vmem:[%s690 + $0x160] sm:$0xff]
        %v10205 = vld [vmem:[%s690 + $0x168] sm:$0xff]
        %v10206 = vperm.slane %v9788, 7
        %v10207 = vperm.slane %v9789, 7
        %v10208 = vmul.f32 %v10190, %v10206
        %v10209 = vmul.f32 %v10191, %v10207
        %v10210 = vmul.f32 %v10192, %v10206
        %v10211 = vmul.f32 %v10193, %v10207
        %v10212 = vmul.f32 %v10194, %v10206
        %v10213 = vmul.f32 %v10195, %v10207
        %v10214 = vmul.f32 %v10196, %v10206
        %v10215 = vmul.f32 %v10197, %v10207
        %v10216 = vmul.f32 %v10198, %v10206
        %v10217 = vmul.f32 %v10199, %v10207
        %v10218 = vmul.f32 %v10200, %v10206
        %v10219 = vmul.f32 %v10201, %v10207
        %v10220 = vmul.f32 %v10202, %v10206
        %v10221 = vmul.f32 %v10203, %v10207
        %v10222 = vmul.f32 %v10204, %v10206
        %v10223 = vmul.f32 %v10205, %v10207
        %v10224 = vld [vmem:[%s690 + $0x10] sm:$0xfe]
        %v10225 = vld [vmem:[%s690 + $0x18] sm:$0xfe]
        %v10226 = vld [vmem:[%s690 + $0x20] sm:$0x1]
        %v10227 = vld [vmem:[%s690 + $0x28] sm:$0x1]
        %v10228 = vld [vmem:[%s690 + $0x40] sm:$0xfe]
        %v10229 = vld [vmem:[%s690 + $0x48] sm:$0xfe]
        %v10230 = vld [vmem:[%s690 + $0x50] sm:$0x1]
        %v10231 = vld [vmem:[%s690 + $0x58] sm:$0x1]
        %v10232 = vld [vmem:[%s690 + $0x70] sm:$0xfe]
        %v10233 = vld [vmem:[%s690 + $0x78] sm:$0xfe]
        %v10234 = vld [vmem:[%s690 + $0x80] sm:$0x1]
        %v10235 = vld [vmem:[%s690 + $0x88] sm:$0x1]
        %v10236 = vld [vmem:[%s690 + $0xa0] sm:$0xfe]
        %v10237 = vld [vmem:[%s690 + $0xa8] sm:$0xfe]
        %v10238 = vld [vmem:[%s690 + $0xb0] sm:$0x1]
        %v10239 = vld [vmem:[%s690 + $0xb8] sm:$0x1]
        %v10240 = vld [vmem:[%s690 + $0xd0] sm:$0xfe]
        %v10241 = vld [vmem:[%s690 + $0xd8] sm:$0xfe]
        %v10242 = vld [vmem:[%s690 + $0xe0] sm:$0x1]
        %v10243 = vld [vmem:[%s690 + $0xe8] sm:$0x1]
        %v10244 = vld [vmem:[%s690 + $0x100] sm:$0xfe]
        %v10245 = vld [vmem:[%s690 + $0x108] sm:$0xfe]
        %v10246 = vld [vmem:[%s690 + $0x110] sm:$0x1]
        %v10247 = vld [vmem:[%s690 + $0x118] sm:$0x1]
        %v10248 = vld [vmem:[%s690 + $0x130] sm:$0xfe]
        %v10249 = vld [vmem:[%s690 + $0x138] sm:$0xfe]
        %v10250 = vld [vmem:[%s690 + $0x140] sm:$0x1]
        %v10251 = vld [vmem:[%s690 + $0x148] sm:$0x1]
        %v10252 = vld [vmem:[%s690 + $0x160] sm:$0xfe]
        %v10253 = vld [vmem:[%s690 + $0x168] sm:$0xfe]
        %v10254 = vld [vmem:[%s690 + $0x170] sm:$0x1]
        %v10255 = vld [vmem:[%s690 + $0x178] sm:$0x1]
        %v10256 = vperm.slane %v9790, 0
        %v10257 = vperm.slane %v9791, 0
        %v10258 = vmul.f32 %v10224, %v10256
        %v10259 = vmul.f32 %v10225, %v10257
        %v10260 = vmul.f32 %v10226, %v10256
        %v10261 = vmul.f32 %v10227, %v10257
        %v10262 = vmul.f32 %v10228, %v10256
        %v10263 = vmul.f32 %v10229, %v10257
        %v10264 = vmul.f32 %v10230, %v10256
        %v10265 = vmul.f32 %v10231, %v10257
        %v10266 = vmul.f32 %v10232, %v10256
        %v10267 = vmul.f32 %v10233, %v10257
        %v10268 = vmul.f32 %v10234, %v10256
        %v10269 = vmul.f32 %v10235, %v10257
        %v10270 = vmul.f32 %v10236, %v10256
        %v10271 = vmul.f32 %v10237, %v10257
        %v10272 = vmul.f32 %v10238, %v10256
        %v10273 = vmul.f32 %v10239, %v10257
        %v10274 = vmul.f32 %v10240, %v10256
        %v10275 = vmul.f32 %v10241, %v10257
        %v10276 = vmul.f32 %v10242, %v10256
        %v10277 = vmul.f32 %v10243, %v10257
        %v10278 = vmul.f32 %v10244, %v10256
        %v10279 = vmul.f32 %v10245, %v10257
        %v10280 = vmul.f32 %v10246, %v10256
        %v10281 = vmul.f32 %v10247, %v10257
        %v10282 = vmul.f32 %v10248, %v10256
        %v10283 = vmul.f32 %v10249, %v10257
        %v10284 = vmul.f32 %v10250, %v10256
        %v10285 = vmul.f32 %v10251, %v10257
        %v10286 = vmul.f32 %v10252, %v10256
        %v10287 = vmul.f32 %v10253, %v10257
        %v10288 = vmul.f32 %v10254, %v10256
        %v10289 = vmul.f32 %v10255, %v10257
        %v10306 = vrot.slane %v9876, 1
        %v10307 = vrot.slane %v9877, 1
        %v10308 = vrot.slane %v9878, 1
        %v10309 = vrot.slane %v9879, 1
        %v10310 = vrot.slane %v9880, 1
        %v10311 = vrot.slane %v9881, 1
        %v10312 = vrot.slane %v9882, 1
        %v10313 = vrot.slane %v9883, 1
        %v10314 = vrot.slane %v9884, 1
        %v10315 = vrot.slane %v9885, 1
        %v10316 = vrot.slane %v9886, 1
        %v10317 = vrot.slane %v9887, 1
        %v10318 = vrot.slane %v9888, 1
        %v10319 = vrot.slane %v9889, 1
        %v10320 = vrot.slane %v9890, 1
        %v10321 = vrot.slane %v9891, 1
        %v10338 = vadd.f32 %v9826, %v10306
        %v10339 = vadd.f32 %v9827, %v10307
        %v10340 = vadd.f32 %v9828, %v10306
        %v10341 = vadd.f32 %v9829, %v10307
        %v10342 = vadd.f32 %v9830, %v10308
        %v10343 = vadd.f32 %v9831, %v10309
        %v10344 = vadd.f32 %v9832, %v10308
        %v10345 = vadd.f32 %v9833, %v10309
        %v10346 = vadd.f32 %v9834, %v10310
        %v10347 = vadd.f32 %v9835, %v10311
        %v10348 = vadd.f32 %v9836, %v10310
        %v10349 = vadd.f32 %v9837, %v10311
        %v10350 = vadd.f32 %v9838, %v10312
        %v10351 = vadd.f32 %v9839, %v10313
        %v10352 = vadd.f32 %v9840, %v10312
        %v10353 = vadd.f32 %v9841, %v10313
        %v10354 = vadd.f32 %v9842, %v10314
        %v10355 = vadd.f32 %v9843, %v10315
        %v10356 = vadd.f32 %v9844, %v10314
        %v10357 = vadd.f32 %v9845, %v10315
        %v10358 = vadd.f32 %v9846, %v10316
        %v10359 = vadd.f32 %v9847, %v10317
        %v10360 = vadd.f32 %v9848, %v10316
        %v10361 = vadd.f32 %v9849, %v10317
        %v10362 = vadd.f32 %v9850, %v10318
        %v10363 = vadd.f32 %v9851, %v10319
        %v10364 = vadd.f32 %v9852, %v10318
        %v10365 = vadd.f32 %v9853, %v10319
        %v10366 = vadd.f32 %v9854, %v10320
        %v10367 = vadd.f32 %v9855, %v10321
        %v10368 = vadd.f32 %v9856, %v10320
        %v10369 = vadd.f32 %v9857, %v10321
        %v10402 = vrot.slane %v9992, 6
        %v10403 = vrot.slane %v9994, 6
        %v10404 = vsel %vm969, %v10402, %v10403
        %v10405 = vrot.slane %v9993, 6
        %v10406 = vrot.slane %v9995, 6
        %v10407 = vsel %vm969, %v10405, %v10406
        %v10408 = vrot.slane %v9996, 6
        %v10409 = vrot.slane %v9998, 6
        %v10410 = vsel %vm969, %v10408, %v10409
        %v10411 = vrot.slane %v9997, 6
        %v10412 = vrot.slane %v9999, 6
        %v10413 = vsel %vm969, %v10411, %v10412
        %v10414 = vrot.slane %v10000, 6
        %v10415 = vrot.slane %v10002, 6
        %v10416 = vsel %vm969, %v10414, %v10415
        %v10417 = vrot.slane %v10001, 6
        %v10418 = vrot.slane %v10003, 6
        %v10419 = vsel %vm969, %v10417, %v10418
        %v10420 = vrot.slane %v10004, 6
        %v10421 = vrot.slane %v10006, 6
        %v10422 = vsel %vm969, %v10420, %v10421
        %v10423 = vrot.slane %v10005, 6
        %v10424 = vrot.slane %v10007, 6
        %v10425 = vsel %vm969, %v10423, %v10424
        %v10426 = vrot.slane %v10008, 6
        %v10427 = vrot.slane %v10010, 6
        %v10428 = vsel %vm969, %v10426, %v10427
        %v10429 = vrot.slane %v10009, 6
        %v10430 = vrot.slane %v10011, 6
        %v10431 = vsel %vm969, %v10429, %v10430
        %v10432 = vrot.slane %v10012, 6
        %v10433 = vrot.slane %v10014, 6
        %v10434 = vsel %vm969, %v10432, %v10433
        %v10435 = vrot.slane %v10013, 6
        %v10436 = vrot.slane %v10015, 6
        %v10437 = vsel %vm969, %v10435, %v10436
        %v10438 = vrot.slane %v10016, 6
        %v10439 = vrot.slane %v10018, 6
        %v10440 = vsel %vm969, %v10438, %v10439
        %v10441 = vrot.slane %v10017, 6
        %v10442 = vrot.slane %v10019, 6
        %v10443 = vsel %vm969, %v10441, %v10442
        %v10444 = vrot.slane %v10020, 6
        %v10445 = vrot.slane %v10022, 6
        %v10446 = vsel %vm969, %v10444, %v10445
        %v10447 = vrot.slane %v10021, 6
        %v10448 = vrot.slane %v10023, 6
        %v10449 = vsel %vm969, %v10447, %v10448
        %v10482 = vadd.f32 %v9926, %v10404
        %v10483 = vadd.f32 %v9927, %v10407
        %v10484 = vadd.f32 %v9928, %v10403
        %v10485 = vadd.f32 %v9929, %v10406
        %v10486 = vadd.f32 %v9930, %v10410
        %v10487 = vadd.f32 %v9931, %v10413
        %v10488 = vadd.f32 %v9932, %v10409
        %v10489 = vadd.f32 %v9933, %v10412
        %v10490 = vadd.f32 %v9934, %v10416
        %v10491 = vadd.f32 %v9935, %v10419
        %v10492 = vadd.f32 %v9936, %v10415
        %v10493 = vadd.f32 %v9937, %v10418
        %v10494 = vadd.f32 %v9938, %v10422
        %v10495 = vadd.f32 %v9939, %v10425
        %v10496 = vadd.f32 %v9940, %v10421
        %v10497 = vadd.f32 %v9941, %v10424
        %v10498 = vadd.f32 %v9942, %v10428
        %v10499 = vadd.f32 %v9943, %v10431
        %v10500 = vadd.f32 %v9944, %v10427
        %v10501 = vadd.f32 %v9945, %v10430
        %v10502 = vadd.f32 %v9946, %v10434
        %v10503 = vadd.f32 %v9947, %v10437
        %v10504 = vadd.f32 %v9948, %v10433
        %v10505 = vadd.f32 %v9949, %v10436
        %v10506 = vadd.f32 %v9950, %v10440
        %v10507 = vadd.f32 %v9951, %v10443
        %v10508 = vadd.f32 %v9952, %v10439
        %v10509 = vadd.f32 %v9953, %v10442
        %v10510 = vadd.f32 %v9954, %v10446
        %v10511 = vadd.f32 %v9955, %v10449
        %v10512 = vadd.f32 %v9956, %v10445
        %v10513 = vadd.f32 %v9957, %v10448
        %v10546 = vrot.slane %v10092, 1
        %v10547 = vrot.slane %v10094, 1
        %v10548 = vsel %vm1114, %v10546, %v10547
        %v10549 = vrot.slane %v10093, 1
        %v10550 = vrot.slane %v10095, 1
        %v10551 = vsel %vm1114, %v10549, %v10550
        %v10552 = vrot.slane %v10096, 1
        %v10553 = vrot.slane %v10098, 1
        %v10554 = vsel %vm1114, %v10552, %v10553
        %v10555 = vrot.slane %v10097, 1
        %v10556 = vrot.slane %v10099, 1
        %v10557 = vsel %vm1114, %v10555, %v10556
        %v10558 = vrot.slane %v10100, 1
        %v10559 = vrot.slane %v10102, 1
        %v10560 = vsel %vm1114, %v10558, %v10559
        %v10561 = vrot.slane %v10101, 1
        %v10562 = vrot.slane %v10103, 1
        %v10563 = vsel %vm1114, %v10561, %v10562
        %v10564 = vrot.slane %v10104, 1
        %v10565 = vrot.slane %v10106, 1
        %v10566 = vsel %vm1114, %v10564, %v10565
        %v10567 = vrot.slane %v10105, 1
        %v10568 = vrot.slane %v10107, 1
        %v10569 = vsel %vm1114, %v10567, %v10568
        %v10570 = vrot.slane %v10108, 1
        %v10571 = vrot.slane %v10110, 1
        %v10572 = vsel %vm1114, %v10570, %v10571
        %v10573 = vrot.slane %v10109, 1
        %v10574 = vrot.slane %v10111, 1
        %v10575 = vsel %vm1114, %v10573, %v10574
        %v10576 = vrot.slane %v10112, 1
        %v10577 = vrot.slane %v10114, 1
        %v10578 = vsel %vm1114, %v10576, %v10577
        %v10579 = vrot.slane %v10113, 1
        %v10580 = vrot.slane %v10115, 1
        %v10581 = vsel %vm1114, %v10579, %v10580
        %v10582 = vrot.slane %v10116, 1
        %v10583 = vrot.slane %v10118, 1
        %v10584 = vsel %vm1114, %v10582, %v10583
        %v10585 = vrot.slane %v10117, 1
        %v10586 = vrot.slane %v10119, 1
        %v10587 = vsel %vm1114, %v10585, %v10586
        %v10588 = vrot.slane %v10120, 1
        %v10589 = vrot.slane %v10122, 1
        %v10590 = vsel %vm1114, %v10588, %v10589
        %v10591 = vrot.slane %v10121, 1
        %v10592 = vrot.slane %v10123, 1
        %v10593 = vsel %vm1114, %v10591, %v10592
        %v10610 = vadd.f32 %v10042, %v10548
        %v10611 = vadd.f32 %v10043, %v10551
        %v10612 = vadd.f32 %v10044, %v10554
        %v10613 = vadd.f32 %v10045, %v10557
        %v10614 = vadd.f32 %v10046, %v10560
        %v10615 = vadd.f32 %v10047, %v10563
        %v10616 = vadd.f32 %v10048, %v10566
        %v10617 = vadd.f32 %v10049, %v10569
        %v10618 = vadd.f32 %v10050, %v10572
        %v10619 = vadd.f32 %v10051, %v10575
        %v10620 = vadd.f32 %v10052, %v10578
        %v10621 = vadd.f32 %v10053, %v10581
        %v10622 = vadd.f32 %v10054, %v10584
        %v10623 = vadd.f32 %v10055, %v10587
        %v10624 = vadd.f32 %v10056, %v10590
        %v10625 = vadd.f32 %v10057, %v10593
        %v10642 = vrot.slane %v10208, 1
        %v10643 = vrot.slane %v10209, 1
        %v10644 = vrot.slane %v10210, 1
        %v10645 = vrot.slane %v10211, 1
        %v10646 = vrot.slane %v10212, 1
        %v10647 = vrot.slane %v10213, 1
        %v10648 = vrot.slane %v10214, 1
        %v10649 = vrot.slane %v10215, 1
        %v10650 = vrot.slane %v10216, 1
        %v10651 = vrot.slane %v10217, 1
        %v10652 = vrot.slane %v10218, 1
        %v10653 = vrot.slane %v10219, 1
        %v10654 = vrot.slane %v10220, 1
        %v10655 = vrot.slane %v10221, 1
        %v10656 = vrot.slane %v10222, 1
        %v10657 = vrot.slane %v10223, 1
        %v10674 = vadd.f32 %v10158, %v10642
        %v10675 = vadd.f32 %v10159, %v10643
        %v10676 = vadd.f32 %v10160, %v10642
        %v10677 = vadd.f32 %v10161, %v10643
        %v10678 = vadd.f32 %v10162, %v10644
        %v10679 = vadd.f32 %v10163, %v10645
        %v10680 = vadd.f32 %v10164, %v10644
        %v10681 = vadd.f32 %v10165, %v10645
        %v10682 = vadd.f32 %v10166, %v10646
        %v10683 = vadd.f32 %v10167, %v10647
        %v10684 = vadd.f32 %v10168, %v10646
        %v10685 = vadd.f32 %v10169, %v10647
        %v10686 = vadd.f32 %v10170, %v10648
        %v10687 = vadd.f32 %v10171, %v10649
        %v10688 = vadd.f32 %v10172, %v10648
        %v10689 = vadd.f32 %v10173, %v10649
        %v10690 = vadd.f32 %v10174, %v10650
        %v10691 = vadd.f32 %v10175, %v10651
        %v10692 = vadd.f32 %v10176, %v10650
        %v10693 = vadd.f32 %v10177, %v10651
        %v10694 = vadd.f32 %v10178, %v10652
        %v10695 = vadd.f32 %v10179, %v10653
        %v10696 = vadd.f32 %v10180, %v10652
        %v10697 = vadd.f32 %v10181, %v10653
        %v10698 = vadd.f32 %v10182, %v10654
        %v10699 = vadd.f32 %v10183, %v10655
        %v10700 = vadd.f32 %v10184, %v10654
        %v10701 = vadd.f32 %v10185, %v10655
        %v10702 = vadd.f32 %v10186, %v10656
        %v10703 = vadd.f32 %v10187, %v10657
        %v10704 = vadd.f32 %v10188, %v10656
        %v10705 = vadd.f32 %v10189, %v10657
        %v10738 = vrot.slane %v10482, 2
        %v10739 = vrot.slane %v10483, 2
        %v10740 = vrot.slane %v10484, 2
        %v10741 = vsel %vm1307, %v10738, %v10740
        %v10742 = vrot.slane %v10485, 2
        %v10743 = vsel %vm1307, %v10739, %v10742
        %v10744 = vrot.slane %v10486, 2
        %v10745 = vrot.slane %v10487, 2
        %v10746 = vrot.slane %v10488, 2
        %v10747 = vsel %vm1307, %v10744, %v10746
        %v10748 = vrot.slane %v10489, 2
        %v10749 = vsel %vm1307, %v10745, %v10748
        %v10750 = vrot.slane %v10490, 2
        %v10751 = vrot.slane %v10491, 2
        %v10752 = vrot.slane %v10492, 2
        %v10753 = vsel %vm1307, %v10750, %v10752
        %v10754 = vrot.slane %v10493, 2
        %v10755 = vsel %vm1307, %v10751, %v10754
        %v10756 = vrot.slane %v10494, 2
        %v10757 = vrot.slane %v10495, 2
        %v10758 = vrot.slane %v10496, 2
        %v10759 = vsel %vm1307, %v10756, %v10758
        %v10760 = vrot.slane %v10497, 2
        %v10761 = vsel %vm1307, %v10757, %v10760
        %v10762 = vrot.slane %v10498, 2
        %v10763 = vrot.slane %v10499, 2
        %v10764 = vrot.slane %v10500, 2
        %v10765 = vsel %vm1307, %v10762, %v10764
        %v10766 = vrot.slane %v10501, 2
        %v10767 = vsel %vm1307, %v10763, %v10766
        %v10768 = vrot.slane %v10502, 2
        %v10769 = vrot.slane %v10503, 2
        %v10770 = vrot.slane %v10504, 2
        %v10771 = vsel %vm1307, %v10768, %v10770
        %v10772 = vrot.slane %v10505, 2
        %v10773 = vsel %vm1307, %v10769, %v10772
        %v10774 = vrot.slane %v10506, 2
        %v10775 = vrot.slane %v10507, 2
        %v10776 = vrot.slane %v10508, 2
        %v10777 = vsel %vm1307, %v10774, %v10776
        %v10778 = vrot.slane %v10509, 2
        %v10779 = vsel %vm1307, %v10775, %v10778
        %v10780 = vrot.slane %v10510, 2
        %v10781 = vrot.slane %v10511, 2
        %v10782 = vrot.slane %v10512, 2
        %v10783 = vsel %vm1307, %v10780, %v10782
        %v10784 = vrot.slane %v10513, 2
        %v10785 = vsel %vm1307, %v10781, %v10784
        %v10818 = vadd.f32 %v10338, %v10738
        %v10819 = vadd.f32 %v10339, %v10739
        %v10820 = vadd.f32 %v10340, %v10741
        %v10821 = vadd.f32 %v10341, %v10743
        %v10822 = vadd.f32 %v10342, %v10744
        %v10823 = vadd.f32 %v10343, %v10745
        %v10824 = vadd.f32 %v10344, %v10747
        %v10825 = vadd.f32 %v10345, %v10749
        %v10826 = vadd.f32 %v10346, %v10750
        %v10827 = vadd.f32 %v10347, %v10751
        %v10828 = vadd.f32 %v10348, %v10753
        %v10829 = vadd.f32 %v10349, %v10755
        %v10830 = vadd.f32 %v10350, %v10756
        %v10831 = vadd.f32 %v10351, %v10757
        %v10832 = vadd.f32 %v10352, %v10759
        %v10833 = vadd.f32 %v10353, %v10761
        %v10834 = vadd.f32 %v10354, %v10762
        %v10835 = vadd.f32 %v10355, %v10763
        %v10836 = vadd.f32 %v10356, %v10765
        %v10837 = vadd.f32 %v10357, %v10767
        %v10838 = vadd.f32 %v10358, %v10768
        %v10839 = vadd.f32 %v10359, %v10769
        %v10840 = vadd.f32 %v10360, %v10771
        %v10841 = vadd.f32 %v10361, %v10773
        %v10842 = vadd.f32 %v10362, %v10774
        %v10843 = vadd.f32 %v10363, %v10775
        %v10844 = vadd.f32 %v10364, %v10777
        %v10845 = vadd.f32 %v10365, %v10779
        %v10846 = vadd.f32 %v10366, %v10780
        %v10847 = vadd.f32 %v10367, %v10781
        %v10848 = vadd.f32 %v10368, %v10783
        %v10849 = vadd.f32 %v10369, %v10785
        %v10882 = vrot.slane %v10674, 7
        %v10883 = vrot.slane %v10676, 7
        %v10884 = vsel %vm1452, %v10882, %v10883
        %v10885 = vrot.slane %v10675, 7
        %v10886 = vrot.slane %v10677, 7
        %v10887 = vsel %vm1452, %v10885, %v10886
        %v10888 = vrot.slane %v10678, 7
        %v10889 = vrot.slane %v10680, 7
        %v10890 = vsel %vm1452, %v10888, %v10889
        %v10891 = vrot.slane %v10679, 7
        %v10892 = vrot.slane %v10681, 7
        %v10893 = vsel %vm1452, %v10891, %v10892
        %v10894 = vrot.slane %v10682, 7
        %v10895 = vrot.slane %v10684, 7
        %v10896 = vsel %vm1452, %v10894, %v10895
        %v10897 = vrot.slane %v10683, 7
        %v10898 = vrot.slane %v10685, 7
        %v10899 = vsel %vm1452, %v10897, %v10898
        %v10900 = vrot.slane %v10686, 7
        %v10901 = vrot.slane %v10688, 7
        %v10902 = vsel %vm1452, %v10900, %v10901
        %v10903 = vrot.slane %v10687, 7
        %v10904 = vrot.slane %v10689, 7
        %v10905 = vsel %vm1452, %v10903, %v10904
        %v10906 = vrot.slane %v10690, 7
        %v10907 = vrot.slane %v10692, 7
        %v10908 = vsel %vm1452, %v10906, %v10907
        %v10909 = vrot.slane %v10691, 7
        %v10910 = vrot.slane %v10693, 7
        %v10911 = vsel %vm1452, %v10909, %v10910
        %v10912 = vrot.slane %v10694, 7
        %v10913 = vrot.slane %v10696, 7
        %v10914 = vsel %vm1452, %v10912, %v10913
        %v10915 = vrot.slane %v10695, 7
        %v10916 = vrot.slane %v10697, 7
        %v10917 = vsel %vm1452, %v10915, %v10916
        %v10918 = vrot.slane %v10698, 7
        %v10919 = vrot.slane %v10700, 7
        %v10920 = vsel %vm1452, %v10918, %v10919
        %v10921 = vrot.slane %v10699, 7
        %v10922 = vrot.slane %v10701, 7
        %v10923 = vsel %vm1452, %v10921, %v10922
        %v10924 = vrot.slane %v10702, 7
        %v10925 = vrot.slane %v10704, 7
        %v10926 = vsel %vm1452, %v10924, %v10925
        %v10927 = vrot.slane %v10703, 7
        %v10928 = vrot.slane %v10705, 7
        %v10929 = vsel %vm1452, %v10927, %v10928
        %v10946 = vadd.f32 %v10610, %v10884
        %v10947 = vadd.f32 %v10611, %v10887
        %v10948 = vadd.f32 %v10612, %v10890
        %v10949 = vadd.f32 %v10613, %v10893
        %v10950 = vadd.f32 %v10614, %v10896
        %v10951 = vadd.f32 %v10615, %v10899
        %v10952 = vadd.f32 %v10616, %v10902
        %v10953 = vadd.f32 %v10617, %v10905
        %v10954 = vadd.f32 %v10618, %v10908
        %v10955 = vadd.f32 %v10619, %v10911
        %v10956 = vadd.f32 %v10620, %v10914
        %v10957 = vadd.f32 %v10621, %v10917
        %v10958 = vadd.f32 %v10622, %v10920
        %v10959 = vadd.f32 %v10623, %v10923
        %v10960 = vadd.f32 %v10624, %v10926
        %v10961 = vadd.f32 %v10625, %v10929
        %v10978 = vrot.slane %v10946, 1
        %v10979 = vrot.slane %v10947, 1
        %v10980 = vrot.slane %v10948, 1
        %v10981 = vrot.slane %v10949, 1
        %v10982 = vrot.slane %v10950, 1
        %v10983 = vrot.slane %v10951, 1
        %v10984 = vrot.slane %v10952, 1
        %v10985 = vrot.slane %v10953, 1
        %v10986 = vrot.slane %v10954, 1
        %v10987 = vrot.slane %v10955, 1
        %v10988 = vrot.slane %v10956, 1
        %v10989 = vrot.slane %v10957, 1
        %v10990 = vrot.slane %v10958, 1
        %v10991 = vrot.slane %v10959, 1
        %v10992 = vrot.slane %v10960, 1
        %v10993 = vrot.slane %v10961, 1
        %v11010 = vadd.f32 %v10818, %v10978
        %v11011 = vadd.f32 %v10819, %v10979
        %v11012 = vadd.f32 %v10820, %v10978
        %v11013 = vadd.f32 %v10821, %v10979
        %v11014 = vadd.f32 %v10822, %v10980
        %v11015 = vadd.f32 %v10823, %v10981
        %v11016 = vadd.f32 %v10824, %v10980
        %v11017 = vadd.f32 %v10825, %v10981
        %v11018 = vadd.f32 %v10826, %v10982
        %v11019 = vadd.f32 %v10827, %v10983
        %v11020 = vadd.f32 %v10828, %v10982
        %v11021 = vadd.f32 %v10829, %v10983
        %v11022 = vadd.f32 %v10830, %v10984
        %v11023 = vadd.f32 %v10831, %v10985
        %v11024 = vadd.f32 %v10832, %v10984
        %v11025 = vadd.f32 %v10833, %v10985
        %v11026 = vadd.f32 %v10834, %v10986
        %v11027 = vadd.f32 %v10835, %v10987
        %v11028 = vadd.f32 %v10836, %v10986
        %v11029 = vadd.f32 %v10837, %v10987
        %v11030 = vadd.f32 %v10838, %v10988
        %v11031 = vadd.f32 %v10839, %v10989
        %v11032 = vadd.f32 %v10840, %v10988
        %v11033 = vadd.f32 %v10841, %v10989
        %v11034 = vadd.f32 %v10842, %v10990
        %v11035 = vadd.f32 %v10843, %v10991
        %v11036 = vadd.f32 %v10844, %v10990
        %v11037 = vadd.f32 %v10845, %v10991
        %v11038 = vadd.f32 %v10846, %v10992
        %v11039 = vadd.f32 %v10847, %v10993
        %v11040 = vadd.f32 %v10848, %v10992
        %v11041 = vadd.f32 %v10849, %v10993
        %v11074 = vrot.slane %v10258, 2
        %v11075 = vrot.slane %v10259, 2
        %v11076 = vrot.slane %v10260, 2
        %v11077 = vsel %vm1307, %v11074, %v11076
        %v11078 = vrot.slane %v10261, 2
        %v11079 = vsel %vm1307, %v11075, %v11078
        %v11080 = vrot.slane %v10262, 2
        %v11081 = vrot.slane %v10263, 2
        %v11082 = vrot.slane %v10264, 2
        %v11083 = vsel %vm1307, %v11080, %v11082
        %v11084 = vrot.slane %v10265, 2
        %v11085 = vsel %vm1307, %v11081, %v11084
        %v11086 = vrot.slane %v10266, 2
        %v11087 = vrot.slane %v10267, 2
        %v11088 = vrot.slane %v10268, 2
        %v11089 = vsel %vm1307, %v11086, %v11088
        %v11090 = vrot.slane %v10269, 2
        %v11091 = vsel %vm1307, %v11087, %v11090
        %v11092 = vrot.slane %v10270, 2
        %v11093 = vrot.slane %v10271, 2
        %v11094 = vrot.slane %v10272, 2
        %v11095 = vsel %vm1307, %v11092, %v11094
        %v11096 = vrot.slane %v10273, 2
        %v11097 = vsel %vm1307, %v11093, %v11096
        %v11098 = vrot.slane %v10274, 2
        %v11099 = vrot.slane %v10275, 2
        %v11100 = vrot.slane %v10276, 2
        %v11101 = vsel %vm1307, %v11098, %v11100
        %v11102 = vrot.slane %v10277, 2
        %v11103 = vsel %vm1307, %v11099, %v11102
        %v11104 = vrot.slane %v10278, 2
        %v11105 = vrot.slane %v10279, 2
        %v11106 = vrot.slane %v10280, 2
        %v11107 = vsel %vm1307, %v11104, %v11106
        %v11108 = vrot.slane %v10281, 2
        %v11109 = vsel %vm1307, %v11105, %v11108
        %v11110 = vrot.slane %v10282, 2
        %v11111 = vrot.slane %v10283, 2
        %v11112 = vrot.slane %v10284, 2
        %v11113 = vsel %vm1307, %v11110, %v11112
        %v11114 = vrot.slane %v10285, 2
        %v11115 = vsel %vm1307, %v11111, %v11114
        %v11116 = vrot.slane %v10286, 2
        %v11117 = vrot.slane %v10287, 2
        %v11118 = vrot.slane %v10288, 2
        %v11119 = vsel %vm1307, %v11116, %v11118
        %v11120 = vrot.slane %v10289, 2
        %v11121 = vsel %vm1307, %v11117, %v11120
        %v11154 = vadd.f32 %v11010, %v11074
        %v11155 = vadd.f32 %v11011, %v11075
        %v11156 = vadd.f32 %v11012, %v11077
        %v11157 = vadd.f32 %v11013, %v11079
        %v11158 = vadd.f32 %v11014, %v11080
        %v11159 = vadd.f32 %v11015, %v11081
        %v11160 = vadd.f32 %v11016, %v11083
        %v11161 = vadd.f32 %v11017, %v11085
        %v11162 = vadd.f32 %v11018, %v11086
        %v11163 = vadd.f32 %v11019, %v11087
        %v11164 = vadd.f32 %v11020, %v11089
        %v11165 = vadd.f32 %v11021, %v11091
        %v11166 = vadd.f32 %v11022, %v11092
        %v11167 = vadd.f32 %v11023, %v11093
        %v11168 = vadd.f32 %v11024, %v11095
        %v11169 = vadd.f32 %v11025, %v11097
        %v11170 = vadd.f32 %v11026, %v11098
        %v11171 = vadd.f32 %v11027, %v11099
        %v11172 = vadd.f32 %v11028, %v11101
        %v11173 = vadd.f32 %v11029, %v11103
        %v11174 = vadd.f32 %v11030, %v11104
        %v11175 = vadd.f32 %v11031, %v11105
        %v11176 = vadd.f32 %v11032, %v11107
        %v11177 = vadd.f32 %v11033, %v11109
        %v11178 = vadd.f32 %v11034, %v11110
        %v11179 = vadd.f32 %v11035, %v11111
        %v11180 = vadd.f32 %v11036, %v11113
        %v11181 = vadd.f32 %v11037, %v11115
        %v11182 = vadd.f32 %v11038, %v11116
        %v11183 = vadd.f32 %v11039, %v11117
        %v11184 = vadd.f32 %v11040, %v11119
        %v11185 = vadd.f32 %v11041, %v11121
        %v11218 = vrot.slane %v11154, 7
        %v11219 = vrot.slane %v11156, 7
        %v11220 = vsel %vm1452, %v11218, %v11219
        %v11221 = vrot.slane %v11155, 7
        %v11222 = vrot.slane %v11157, 7
        %v11223 = vsel %vm1452, %v11221, %v11222
        %v11224 = vrot.slane %v11158, 7
        %v11225 = vrot.slane %v11160, 7
        %v11226 = vsel %vm1452, %v11224, %v11225
        %v11227 = vrot.slane %v11159, 7
        %v11228 = vrot.slane %v11161, 7
        %v11229 = vsel %vm1452, %v11227, %v11228
        %v11230 = vrot.slane %v11162, 7
        %v11231 = vrot.slane %v11164, 7
        %v11232 = vsel %vm1452, %v11230, %v11231
        %v11233 = vrot.slane %v11163, 7
        %v11234 = vrot.slane %v11165, 7
        %v11235 = vsel %vm1452, %v11233, %v11234
        %v11236 = vrot.slane %v11166, 7
        %v11237 = vrot.slane %v11168, 7
        %v11238 = vsel %vm1452, %v11236, %v11237
        %v11239 = vrot.slane %v11167, 7
        %v11240 = vrot.slane %v11169, 7
        %v11241 = vsel %vm1452, %v11239, %v11240
        %v11242 = vrot.slane %v11170, 7
        %v11243 = vrot.slane %v11172, 7
        %v11244 = vsel %vm1452, %v11242, %v11243
        %v11245 = vrot.slane %v11171, 7
        %v11246 = vrot.slane %v11173, 7
        %v11247 = vsel %vm1452, %v11245, %v11246
        %v11248 = vrot.slane %v11174, 7
        %v11249 = vrot.slane %v11176, 7
        %v11250 = vsel %vm1452, %v11248, %v11249
        %v11251 = vrot.slane %v11175, 7
        %v11252 = vrot.slane %v11177, 7
        %v11253 = vsel %vm1452, %v11251, %v11252
        %v11254 = vrot.slane %v11178, 7
        %v11255 = vrot.slane %v11180, 7
        %v11256 = vsel %vm1452, %v11254, %v11255
        %v11257 = vrot.slane %v11179, 7
        %v11258 = vrot.slane %v11181, 7
        %v11259 = vsel %vm1452, %v11257, %v11258
        %v11260 = vrot.slane %v11182, 7
        %v11261 = vrot.slane %v11184, 7
        %v11262 = vsel %vm1452, %v11260, %v11261
        %v11263 = vrot.slane %v11183, 7
        %v11264 = vrot.slane %v11185, 7
        %v11265 = vsel %vm1452, %v11263, %v11264
        %v11282 = vpack.c.bf16 %v11226, %v11220
        %v11283 = vpack.c.bf16 %v11229, %v11223
        %v11284 = vpack.c.bf16 %v11238, %v11232
        %v11285 = vpack.c.bf16 %v11241, %v11235
        %v11286 = vpack.c.bf16 %v11250, %v11244
        %v11287 = vpack.c.bf16 %v11253, %v11247
        %v11288 = vpack.c.bf16 %v11262, %v11256
        %v11289 = vpack.c.bf16 %v11265, %v11259
        %s11290 = scalar_lea.vmem [#allocation3], 1280
        %v11291 = vld [vmem:[%s11290] sm:$0xff]
        %v11292 = vld [vmem:[%s11290 + $0x8] sm:$0xff]
        %v11293 = vld [vmem:[%s11290 + $0x10] sm:$0xff]
        %v11294 = vld [vmem:[%s11290 + $0x18] sm:$0xff]
        %v11295 = vld [vmem:[%s11290 + $0x20] sm:$0xff]
        %v11296 = vld [vmem:[%s11290 + $0x28] sm:$0xff]
        %v11297 = vld [vmem:[%s11290 + $0x30] sm:$0xff]
        %v11298 = vld [vmem:[%s11290 + $0x38] sm:$0xff]
        %v11299 = vld [vmem:[%s11290 + $0x40] sm:$0xff]
        %v11300 = vld [vmem:[%s11290 + $0x48] sm:$0xff]
        %v11301 = vld [vmem:[%s11290 + $0x50] sm:$0xff]
        %v11302 = vld [vmem:[%s11290 + $0x58] sm:$0xff]
        %v11303 = vld [vmem:[%s11290 + $0x60] sm:$0xff]
        %v11304 = vld [vmem:[%s11290 + $0x68] sm:$0xff]
        %v11305 = vld [vmem:[%s11290 + $0x70] sm:$0xff]
        %v11306 = vld [vmem:[%s11290 + $0x78] sm:$0xff]
        %v11307 = vld [vmem:[%s11290 + $0x80] sm:$0xff]
        %v11308 = vld [vmem:[%s11290 + $0x88] sm:$0xff]
        %v11309 = vld [vmem:[%s11290 + $0x90] sm:$0xff]
        %v11310 = vld [vmem:[%s11290 + $0x98] sm:$0xff]
        %v11311 = vld [vmem:[%s11290 + $0xa0] sm:$0xff]
        %v11312 = vld [vmem:[%s11290 + $0xa8] sm:$0xff]
        %v11313 = vld [vmem:[%s11290 + $0xb0] sm:$0xff]
        %v11314 = vld [vmem:[%s11290 + $0xb8] sm:$0xff]
        %v11315 = vld [vmem:[%s11290 + $0xc0] sm:$0xff]
        %v11316 = vld [vmem:[%s11290 + $0xc8] sm:$0xff]
        %v11317 = vld [vmem:[%s11290 + $0xd0] sm:$0xff]
        %v11318 = vld [vmem:[%s11290 + $0xd8] sm:$0xff]
        %v11319 = vld [vmem:[%s11290 + $0xe0] sm:$0xff]
        %v11320 = vld [vmem:[%s11290 + $0xe8] sm:$0xff]
        %v11321 = vld [vmem:[%s11290 + $0xf0] sm:$0xff]
        %v11322 = vld [vmem:[%s11290 + $0xf8] sm:$0xff]
        %s11323 = scalar_lea.vmem %s3, 10
        %v11324 = vld [vmem:[%s11323] sm:$0x3]
        %v11326 = vperm.slane %v11324, 0
        %v11327 = vperm.slane %v11324, 1
        %v11362 = vunpack.c.l.b16 %v11291
        %v11363 = vunpack.c.h.b16 %v11291
        %v11364 = vunpack.c.l.b16 %v11292
        %v11365 = vunpack.c.h.b16 %v11292
        %v11366 = vunpack.c.l.b16 %v11293
        %v11367 = vunpack.c.h.b16 %v11293
        %v11368 = vunpack.c.l.b16 %v11294
        %v11369 = vunpack.c.h.b16 %v11294
        %v11370 = vunpack.c.l.b16 %v11295
        %v11371 = vunpack.c.h.b16 %v11295
        %v11372 = vunpack.c.l.b16 %v11296
        %v11373 = vunpack.c.h.b16 %v11296
        %v11374 = vunpack.c.l.b16 %v11297
        %v11375 = vunpack.c.h.b16 %v11297
        %v11376 = vunpack.c.l.b16 %v11298
        %v11377 = vunpack.c.h.b16 %v11298
        %v11378 = vunpack.c.l.b16 %v11299
        %v11379 = vunpack.c.h.b16 %v11299
        %v11380 = vunpack.c.l.b16 %v11300
        %v11381 = vunpack.c.h.b16 %v11300
        %v11382 = vunpack.c.l.b16 %v11301
        %v11383 = vunpack.c.h.b16 %v11301
        %v11384 = vunpack.c.l.b16 %v11302
        %v11385 = vunpack.c.h.b16 %v11302
        %v11386 = vunpack.c.l.b16 %v11303
        %v11387 = vunpack.c.h.b16 %v11303
        %v11388 = vunpack.c.l.b16 %v11304
        %v11389 = vunpack.c.h.b16 %v11304
        %v11390 = vunpack.c.l.b16 %v11305
        %v11391 = vunpack.c.h.b16 %v11305
        %v11392 = vunpack.c.l.b16 %v11306
        %v11393 = vunpack.c.h.b16 %v11306
        %v11394 = vunpack.c.l.b16 %v11307
        %v11395 = vunpack.c.h.b16 %v11307
        %v11396 = vunpack.c.l.b16 %v11308
        %v11397 = vunpack.c.h.b16 %v11308
        %v11398 = vunpack.c.l.b16 %v11309
        %v11399 = vunpack.c.h.b16 %v11309
        %v11400 = vunpack.c.l.b16 %v11310
        %v11401 = vunpack.c.h.b16 %v11310
        %v11402 = vunpack.c.l.b16 %v11311
        %v11403 = vunpack.c.h.b16 %v11311
        %v11404 = vunpack.c.l.b16 %v11312
        %v11405 = vunpack.c.h.b16 %v11312
        %v11406 = vunpack.c.l.b16 %v11313
        %v11407 = vunpack.c.h.b16 %v11313
        %v11408 = vunpack.c.l.b16 %v11314
        %v11409 = vunpack.c.h.b16 %v11314
        %v11410 = vunpack.c.l.b16 %v11315
        %v11411 = vunpack.c.h.b16 %v11315
        %v11412 = vunpack.c.l.b16 %v11316
        %v11413 = vunpack.c.h.b16 %v11316
        %v11414 = vunpack.c.l.b16 %v11317
        %v11415 = vunpack.c.h.b16 %v11317
        %v11416 = vunpack.c.l.b16 %v11318
        %v11417 = vunpack.c.h.b16 %v11318
        %v11418 = vunpack.c.l.b16 %v11319
        %v11419 = vunpack.c.h.b16 %v11319
        %v11420 = vunpack.c.l.b16 %v11320
        %v11421 = vunpack.c.h.b16 %v11320
        %v11422 = vunpack.c.l.b16 %v11321
        %v11423 = vunpack.c.h.b16 %v11321
        %v11424 = vunpack.c.l.b16 %v11322
        %v11425 = vunpack.c.h.b16 %v11322
        %v11426 = vpack.c.b16 %v11364, %v11362
        %v11427 = vpack.c.b16 %v11365, %v11363
        %v11428 = vpack.c.b16 %v11368, %v11366
        %v11429 = vpack.c.b16 %v11369, %v11367
        %v11430 = vpack.c.b16 %v11372, %v11370
        %v11431 = vpack.c.b16 %v11373, %v11371
        %v11432 = vpack.c.b16 %v11376, %v11374
        %v11433 = vpack.c.b16 %v11377, %v11375
        %v11434 = vpack.c.b16 %v11380, %v11378
        %v11435 = vpack.c.b16 %v11381, %v11379
        %v11436 = vpack.c.b16 %v11384, %v11382
        %v11437 = vpack.c.b16 %v11385, %v11383
        %v11438 = vpack.c.b16 %v11388, %v11386
        %v11439 = vpack.c.b16 %v11389, %v11387
        %v11440 = vpack.c.b16 %v11392, %v11390
        %v11441 = vpack.c.b16 %v11393, %v11391
        %v11442 = vpack.c.b16 %v11396, %v11394
        %v11443 = vpack.c.b16 %v11397, %v11395
        %v11444 = vpack.c.b16 %v11400, %v11398
        %v11445 = vpack.c.b16 %v11401, %v11399
        %v11446 = vpack.c.b16 %v11404, %v11402
        %v11447 = vpack.c.b16 %v11405, %v11403
        %v11448 = vpack.c.b16 %v11408, %v11406
        %v11449 = vpack.c.b16 %v11409, %v11407
        %v11450 = vpack.c.b16 %v11412, %v11410
        %v11451 = vpack.c.b16 %v11413, %v11411
        %v11452 = vpack.c.b16 %v11416, %v11414
        %v11453 = vpack.c.b16 %v11417, %v11415
        %v11454 = vpack.c.b16 %v11420, %v11418
        %v11455 = vpack.c.b16 %v11421, %v11419
        %v11456 = vpack.c.b16 %v11424, %v11422
        %v11457 = vpack.c.b16 %v11425, %v11423
        %11490 = vmatpush.bf16.msra.mxu0 %v11440
        %11491 = vmatpush.bf16.msra.mxu0 %v11438
        %11492 = vmatpush.bf16.msra.mxu0 %v11436
        %11493 = vmatpush.bf16.msra.mxu0 %v11434
        %11494 = vmatpush.bf16.msra.mxu0 %v11432
        %11495 = vmatpush.bf16.msra.mxu0 %v11430
        %11496 = vmatpush.bf16.msra.mxu0 %v11428
        %11497 = vmatpush.bf16.msra.mxu0 %v11426
        %11498 = vmatmul.bf16.gmra.mxu0 %v11282
        %v11499 = vpop.f32.mrf.mxu0
        %v11500 = vadd.f32 %v11326, %v11499
        %v11501 = vpop.f32.mrf.mxu0
        %v11502 = vadd.f32 %v11326, %v11501
        %11503 = vmatmul.bf16.gmra.mxu0 %v11284
        %v11504 = vpop.f32.mrf.mxu0
        %v11505 = vadd.f32 %v11326, %v11504
        %v11506 = vpop.f32.mrf.mxu0
        %v11507 = vadd.f32 %v11326, %v11506
        %11508 = vmatmul.bf16.gmra.mxu0 %v11286
        %v11509 = vpop.f32.mrf.mxu0
        %v11510 = vadd.f32 %v11326, %v11509
        %v11511 = vpop.f32.mrf.mxu0
        %v11512 = vadd.f32 %v11326, %v11511
        %11513 = vmatmul.bf16.gmra.mxu0 %v11288
        %v11514 = vpop.f32.mrf.mxu0
        %v11515 = vadd.f32 %v11326, %v11514
        %v11516 = vpop.f32.mrf.mxu0
        %v11517 = vadd.f32 %v11326, %v11516
        %11518 = vdwg.mxu0
        %11519 = vmatpush.bf16.msra.mxu0 %v11456
        %11520 = vmatpush.bf16.msra.mxu0 %v11454
        %11521 = vmatpush.bf16.msra.mxu0 %v11452
        %11522 = vmatpush.bf16.msra.mxu0 %v11450
        %11523 = vmatpush.bf16.msra.mxu0 %v11448
        %11524 = vmatpush.bf16.msra.mxu0 %v11446
        %11525 = vmatpush.bf16.msra.mxu0 %v11444
        %11526 = vmatpush.bf16.msra.mxu0 %v11442
        %11527 = vmatmul.bf16.gmra.mxu0 %v11283
        %v11528 = vpop.f32.mrf.mxu0
        %v11529 = vadd.f32 %v11500, %v11528
        %v11530 = vpop.f32.mrf.mxu0
        %v11531 = vadd.f32 %v11502, %v11530
        %11532 = vmatmul.bf16.gmra.mxu0 %v11285
        %v11533 = vpop.f32.mrf.mxu0
        %v11534 = vadd.f32 %v11505, %v11533
        %v11535 = vpop.f32.mrf.mxu0
        %v11536 = vadd.f32 %v11507, %v11535
        %11537 = vmatmul.bf16.gmra.mxu0 %v11287
        %v11538 = vpop.f32.mrf.mxu0
        %v11539 = vadd.f32 %v11510, %v11538
        %v11540 = vpop.f32.mrf.mxu0
        %v11541 = vadd.f32 %v11512, %v11540
        %11542 = vmatmul.bf16.gmra.mxu0 %v11289
        %v11543 = vpop.f32.mrf.mxu0
        %v11544 = vadd.f32 %v11515, %v11543
        %v11545 = vpop.f32.mrf.mxu0
        %v11546 = vadd.f32 %v11517, %v11545
        %11547 = vdwg.mxu0
        %11548 = vmatpush.bf16.msra.mxu0 %v11441
        %11549 = vmatpush.bf16.msra.mxu0 %v11439
        %11550 = vmatpush.bf16.msra.mxu0 %v11437
        %11551 = vmatpush.bf16.msra.mxu0 %v11435
        %11552 = vmatpush.bf16.msra.mxu0 %v11433
        %11553 = vmatpush.bf16.msra.mxu0 %v11431
        %11554 = vmatpush.bf16.msra.mxu0 %v11429
        %11555 = vmatpush.bf16.msra.mxu0 %v11427
        %11556 = vmatmul.bf16.gmra.mxu0 %v11282
        %v11557 = vpop.f32.mrf.mxu0
        %v11558 = vadd.f32 %v11327, %v11557
        %v11559 = vpop.f32.mrf.mxu0
        %v11560 = vadd.f32 %v11327, %v11559
        %11561 = vmatmul.bf16.gmra.mxu0 %v11284
        %v11562 = vpop.f32.mrf.mxu0
        %v11563 = vadd.f32 %v11327, %v11562
        %v11564 = vpop.f32.mrf.mxu0
        %v11565 = vadd.f32 %v11327, %v11564
        %11566 = vmatmul.bf16.gmra.mxu0 %v11286
        %v11567 = vpop.f32.mrf.mxu0
        %v11568 = vadd.f32 %v11327, %v11567
        %v11569 = vpop.f32.mrf.mxu0
        %v11570 = vadd.f32 %v11327, %v11569
        %11571 = vmatmul.bf16.gmra.mxu0 %v11288
        %v11572 = vpop.f32.mrf.mxu0
        %v11573 = vadd.f32 %v11327, %v11572
        %v11574 = vpop.f32.mrf.mxu0
        %v11575 = vadd.f32 %v11327, %v11574
        %11576 = vdwg.mxu0
        %11577 = vmatpush.bf16.msra.mxu0 %v11457
        %11578 = vmatpush.bf16.msra.mxu0 %v11455
        %11579 = vmatpush.bf16.msra.mxu0 %v11453
        %11580 = vmatpush.bf16.msra.mxu0 %v11451
        %11581 = vmatpush.bf16.msra.mxu0 %v11449
        %11582 = vmatpush.bf16.msra.mxu0 %v11447
        %11583 = vmatpush.bf16.msra.mxu0 %v11445
        %11584 = vmatpush.bf16.msra.mxu0 %v11443
        %11585 = vmatmul.bf16.gmra.mxu0 %v11283
        %v11586 = vpop.f32.mrf.mxu0
        %v11587 = vadd.f32 %v11558, %v11586
        %v11588 = vpop.f32.mrf.mxu0
        %v11589 = vadd.f32 %v11560, %v11588
        %11590 = vmatmul.bf16.gmra.mxu0 %v11285
        %v11591 = vpop.f32.mrf.mxu0
        %v11592 = vadd.f32 %v11563, %v11591
        %v11593 = vpop.f32.mrf.mxu0
        %v11594 = vadd.f32 %v11565, %v11593
        %11595 = vmatmul.bf16.gmra.mxu0 %v11287
        %v11596 = vpop.f32.mrf.mxu0
        %v11597 = vadd.f32 %v11568, %v11596
        %v11598 = vpop.f32.mrf.mxu0
        %v11599 = vadd.f32 %v11570, %v11598
        %11600 = vmatmul.bf16.gmra.mxu0 %v11289
        %v11601 = vpop.f32.mrf.mxu0
        %v11602 = vadd.f32 %v11573, %v11601
        %v11603 = vpop.f32.mrf.mxu0
        %v11604 = vadd.f32 %v11575, %v11603
        %11605 = vdwg.mxu0
        %v11606 = vadd.f32 %v5941, %v11529
        %v11607 = vadd.f32 %v5942, %v11587
        %v11608 = vadd.f32 %v5943, %v11531
        %v11609 = vadd.f32 %v5944, %v11589
        %v11610 = vadd.f32 %v5945, %v11534
        %v11611 = vadd.f32 %v5946, %v11592
        %v11612 = vadd.f32 %v5947, %v11536
        %v11613 = vadd.f32 %v5948, %v11594
        %v11614 = vadd.f32 %v5949, %v11539
        %v11615 = vadd.f32 %v5950, %v11597
        %v11616 = vadd.f32 %v5951, %v11541
        %v11617 = vadd.f32 %v5952, %v11599
        %v11618 = vadd.f32 %v5953, %v11544
        %v11619 = vadd.f32 %v5954, %v11602
        %v11620 = vadd.f32 %v5955, %v11546
        %v11621 = vadd.f32 %v5956, %v11604
        %11622 = vst [vmem:[%s207] sm:$0xff] %v11606
        %11623 = vst [vmem:[%s207 + $0x8] sm:$0xff] %v11607
        %11624 = vst [vmem:[%s207 + $0x10] sm:$0xff] %v11608
        %11625 = vst [vmem:[%s207 + $0x18] sm:$0xff] %v11609
        %11626 = vst [vmem:[%s207 + $0x20] sm:$0xff] %v11610
        %11627 = vst [vmem:[%s207 + $0x28] sm:$0xff] %v11611
        %11628 = vst [vmem:[%s207 + $0x30] sm:$0xff] %v11612
        %11629 = vst [vmem:[%s207 + $0x38] sm:$0xff] %v11613
        %11630 = vst [vmem:[%s207 + $0x40] sm:$0xff] %v11614
        %11631 = vst [vmem:[%s207 + $0x48] sm:$0xff] %v11615
        %11632 = vst [vmem:[%s207 + $0x50] sm:$0xff] %v11616
        %11633 = vst [vmem:[%s207 + $0x58] sm:$0xff] %v11617
        %11634 = vst [vmem:[%s207 + $0x60] sm:$0xff] %v11618
        %11635 = vst [vmem:[%s207 + $0x68] sm:$0xff] %v11619
        %11636 = vst [vmem:[%s207 + $0x70] sm:$0xff] %v11620
        %11637 = vst [vmem:[%s207 + $0x78] sm:$0xff] %v11621
        %s11638 = sand.u32 %s116, 1
        %s11639 = scalar_lea.sflag [#allocation5], %s11638
        %s11640 = sand.u32 %s116, 1
        %s11641 = smul.addr %s11640, 128
        %s11642 = scalar_lea.vmem [#allocation6], %s11641
        // Predicated region
        $region41: #{middle_block_forward.1} parent=35 // pred_check
          %p11643 = pneg %p126
        $region42: #{middle_block_forward.1} parent=35 // pred_check_branch
          %11645 = sbr.rel (%p11643) target = $region44
        $region43: #{middle_block_forward.1} parent=35 // pred_region
          %11647 = vsyncadd %s11639, 0
          %s11648 = smul.addr %s19, 16
          %s11649 = smul.addr %s11648, 8
          %s11650 = scalar_lea.hbm %s4, %s11649
          %s11651 = sshll.u32 %s11642, 4
          %s11652 = int_to_ptr.vmem [resolvable:$true] %s11651
          %s11653 = sshll.u32 %s11650, 4
          %s11654 = int_to_ptr.hbm [resolvable:$true] %s11653
          %11659 = dma.vmem_to_hbm [thread:$0]  %s11652, 2048, %s11654, %s11639, 256, 256, 16
        $region44: #{middle_block_forward.1} parent=35 // pred_fallthru
          _
      $region36: #{middle_block_forward.1} parent=5 // pred_fallthru
        _
      %p11660 = scmp.le.s32.totalorder 2, %s14
      // Predicated region
      $region45: #{middle_block_forward.1} parent=5 // pred_check
        %p11661 = pneg %p11660
      $region46: #{middle_block_forward.1} parent=5 // pred_check_branch
        %11663 = sbr.rel (%p11661) target = $region48
      $region47: #{middle_block_forward.1} parent=5 // pred_region
        %s11664 = ssub.s32 %s14, 2
        // Predicated region
        $region49: #{middle_block_forward.1} parent=47 // pred_check
          %p11665 = pneg %p132
        $region50: #{middle_block_forward.1} parent=47 // pred_check_branch
          %11667 = sbr.rel (%p11665) target = $region52
        $region51: #{middle_block_forward.1} parent=47 // pred_region
          %s11668 = sand.u32 %s117, 1
          %s11669 = scalar_lea.sflag [#allocation5], %s11668
          %s11670 = sand.u32 %s117, 1
          %s11671 = smul.addr %s11670, 128
          %s11672 = scalar_lea.vmem [#allocation6], %s11671
          %11674 = dma.done %s11669, 2048
        $region52: #{middle_block_forward.1} parent=47 // pred_fallthru
          _
      $region48: #{middle_block_forward.1} parent=5 // pred_fallthru
        _
    $region6: #{middle_block_forward.1} parent=1 // loop_footer
      %s18 = sadd.s32 1, %s14
    $region7: #{middle_block_forward.1} parent=1 // loop_footer_branch
      %13 = sbr.rel target = $region3
    $region8: #{middle_block_forward.1} parent=1 // loop_exit
      _
    %11675 = vsyncpa [#allocation4], 1
    %s11676 = scalar_lea.sflag [#allocation4], 1
    %11677 = vsyncpa %s11676, 1
    %11678 = vsyncpa [#allocation5], 1
    %s11679 = scalar_lea.sflag [#allocation5], 1
    %11680 = vsyncpa %s11679, 1

</llo_original>
